<compile_context>
chip_gen: v6e
topology: v6e:2x2x1
jax: 0.10.0
libtpu: 0.0.40
codegen_flags: <defaults>
</compile_context>

<pallas_src>
import math
import functools

import jax
import jax.numpy as jnp
from jax import lax
from jax.experimental import pallas as pl
from jax.experimental.pallas import tpu as pltpu

LN_EPS = 1e-5


def mhsa_kernel(x_ref, wqkv_ref, bqkv_ref, wo_ref, bo_ref, o_ref, attn_ref,
                *, num_heads, head_dim, precision):
    # x_ref block: (Bt, S, E).  attn_ref scratch: (Bt, S, E) in the compute dtype.
    Bt, S, E = x_ref.shape
    H, D = num_heads, head_dim
    N = Bt * S
    mm_dtype = wqkv_ref.dtype          # explicit compute dtype chosen in the wrapper

    # ---- LayerNorm (f32 stats; gamma/beta already folded into wqkv/bqkv) ----
    x = x_ref[...].reshape(N, E).astype(jnp.float32)     # leading-dim merge: free
    mean = jnp.mean(x, axis=-1, keepdims=True)
    xc = x - mean
    var = jnp.mean(xc * xc, axis=-1, keepdims=True)
    xhat = (xc * lax.rsqrt(var + LN_EPS)).astype(mm_dtype)        # (N, E)

    # ---- ONE full-width fused QKV projection: (N, E) x (E, 3E) ----
    dn_proj = (((1,), (0,)), ((), ()))
    qkv = lax.dot_general(xhat, wqkv_ref[...], dn_proj,
                          preferred_element_type=jnp.float32,
                          precision=precision)
    qkv = qkv + bqkv_ref[...].astype(jnp.float32)                 # (N, 3E) f32

    scale = 1.0 / math.sqrt(D)
    q = (qkv[:, 0:E] * scale).astype(mm_dtype)                    # E-aligned lane slices
    k = qkv[:, E:2 * E].astype(mm_dtype)
    v = qkv[:, 2 * E:3 * E].astype(mm_dtype)

    dn_qk = (((2,), (2,)), ((0,), (0,)))     # 'bqd,bkd->bqk'
    dn_pv = (((2,), (1,)), ((0,), (0,)))     # 'bqk,bkd->bqd'

    # ---- per-head attention, batched over the Bt batch elements in this block ----
    # (At small S the score matmul width is bounded by S anyway; the MXU-critical
    #  projections above/below are full-width.  H is small -> static unroll.)
    for h in range(H):
        lo = h * D                                                # static offset
        qh = q[:, lo:lo + D].reshape(Bt, S, D)
        kh = k[:, lo:lo + D].reshape(Bt, S, D)
        vh = v[:, lo:lo + D].reshape(Bt, S, D)

        s = lax.dot_general(qh, kh, dn_qk,
                            preferred_element_type=jnp.float32,
                            precision=precision)                  # (Bt, S, S) f32
        m = jnp.max(s, axis=-1, keepdims=True)
        e = jnp.exp(s - m)
        denom = jnp.sum(e, axis=-1, keepdims=True)                # (Bt, S, 1)

        o3 = lax.dot_general(e.astype(mm_dtype), vh, dn_pv,
                             preferred_element_type=jnp.float32,
                             precision=precision)                 # (Bt, S, D)
        o3 = o3 / denom                                           # exact normalization

        # Static lane-offset store into the (Bt, S, E) scratch (review-approved).
        attn_ref[:, :, lo:lo + D] = o3.astype(mm_dtype)

    # ---- ONE output projection with full contraction depth E ----
    out = lax.dot_general(attn_ref[...].reshape(N, E), wo_ref[...], dn_proj,
                          preferred_element_type=jnp.float32,
                          precision=precision)
    out = out + bo_ref[...].astype(jnp.float32)                   # (N, E) f32
    o_ref[...] = out.reshape(Bt, S, E).astype(o_ref.dtype)


def _per_batch_elem_vmem_bytes(S, E, x_bytes, out_bytes, mm_bytes):
    """Rough activation VMEM per (S, E) batch element inside one grid step."""
    return S * (
        2 * E * x_bytes        # input block (double-buffered by the pipeline)
        + 2 * E * out_bytes    # output block (double-buffered)
        + E * 4                # x in f32 (LN statistics)
        + E * mm_bytes         # xhat in compute dtype
        + 3 * E * 4            # fused QKV result in f32
        + 3 * E * mm_bytes     # q, k, v in compute dtype
        + E * mm_bytes         # attention-output scratch
        + E * 4                # out-projection f32 result
        + 2 * S * 4            # per-head scores + exp (transient)
    )


def _pick_block_b(B, per_elem_bytes, weight_bytes, vmem_budget_bytes):
    avail = max(vmem_budget_bytes - weight_bytes, 1 << 20)
    cap = max(1, min(B, avail // max(per_elem_bytes, 1)))
    if B >= 2:
        # Keep >= 2 grid steps along the "parallel" axis (v7x has 2 TensorCores).
        cap = min(cap, max(1, B // 2))
    for cand in range(int(cap), 0, -1):
        if B % cand == 0:
            return cand
    return 1


def multi_head_self_attention_block(x, gamma, beta, w_in, b_in, w_out, b_out, *,
                                    num_heads,
                                    compute_dtype=jnp.bfloat16,
                                    precision=None,
                                    block_b=None,
                                    vmem_budget_bytes=48 * 1024 * 1024):
    """Fused LayerNorm + multi-head self-attention (PyTorch-layout parameters).

    compute_dtype: dtype of the MXU matmul operands (bf16 recommended in prod).
    precision:     lax.Precision for all matmuls (HIGHEST for f32 exactness).
    """
    B, S, E = x.shape
    H = num_heads
    assert E % H == 0, "embedding_dims must be divisible by num_heads"
    D = E // H

    f32 = jnp.float32
    gamma_f = gamma.reshape(E).astype(f32)
    beta_f = beta.reshape(E).astype(f32)

    # ---- one-time weight preparation (plain JAX, outside the kernel) ----
    # PyTorch in_proj_weight is (3E, E) = rows [Wq; Wk; Wv] in (out, in) layout.
    w_qkv_t = w_in.astype(f32).T                            # (E, 3E), lane-dense
    # Fold LayerNorm affine:  (xhat*g + b) @ W^T = xhat @ (g[:,None]*W^T) + b @ W^T
    w_qkv_fold = gamma_f[:, None] * w_qkv_t                 # (E, 3E)
    b_qkv_fold = (b_in.reshape(1, 3 * E).astype(f32)
                  + jnp.dot(beta_f[None, :], w_qkv_t, precision=precision))  # (1, 3E)
    w_o_t = w_out.astype(f32).T                             # (E, E), lane-dense
    b_o = b_out.reshape(1, E).astype(f32)

    w_qkv_fold = w_qkv_fold.astype(compute_dtype)
    w_o_t = w_o_t.astype(compute_dtype)
    # Biases stay f32 (added to f32 accumulators).

    x_bytes = jnp.dtype(x.dtype).itemsize
    mm_bytes = jnp.dtype(compute_dtype).itemsize
    per_elem = _per_batch_elem_vmem_bytes(S, E, x_bytes, x_bytes, mm_bytes)
    weight_bytes = 2 * (4 * E * E * mm_bytes) + 2 * (4 * E * 4)   # double-buffered
    if block_b is None:
        block_b = _pick_block_b(B, per_elem, weight_bytes, vmem_budget_bytes)
    assert B % block_b == 0
    grid = (B // block_b,)

    kernel = functools.partial(mhsa_kernel, num_heads=H, head_dim=D,
                               precision=precision)
    const2 = lambda b: (0, 0)

    return pl.pallas_call(
        kernel,
        out_shape=jax.ShapeDtypeStruct((B, S, E), x.dtype),
        grid_spec=pltpu.PrefetchScalarGridSpec(
            num_scalar_prefetch=0,
            grid=grid,
            in_specs=[
                pl.BlockSpec((block_b, S, E), lambda b: (b, 0, 0)),   # x
                pl.BlockSpec((E, 3 * E), const2),                     # fused qkv weight
                pl.BlockSpec((1, 3 * E), const2),                     # fused qkv bias
                pl.BlockSpec((E, E), const2),                         # out-proj weight^T
                pl.BlockSpec((1, E), const2),                         # out-proj bias
            ],
            out_specs=pl.BlockSpec((block_b, S, E), lambda b: (b, 0, 0)),
            scratch_shapes=[pltpu.VMEM((block_b, S, E), compute_dtype)],
        ),
        compiler_params=pltpu.CompilerParams(
            dimension_semantics=("parallel",),
            vmem_limit_bytes=vmem_budget_bytes,
        ),
    )(x, w_qkv_fold, b_qkv_fold, w_o_t, b_o)


def reference(x, gamma, beta, w_in, b_in, w_out, b_out, *, num_heads, precision=None):
    """Plain-JAX replica of LayerNorm + nn.MultiheadAttention forward (eval mode)."""
    B, S, E = x.shape
    D = E // num_heads
    mean = jnp.mean(x, -1, keepdims=True)
    var = jnp.mean((x - mean) ** 2, -1, keepdims=True)
    xn = (x - mean) / jnp.sqrt(var + LN_EPS) * gamma + beta
    qkv = jnp.einsum('bse,fe->bsf', xn, w_in, precision=precision) + b_in
    q, k, v = jnp.split(qkv, 3, axis=-1)
    split = lambda t: t.reshape(B, S, num_heads, D).transpose(0, 2, 1, 3)
    q, k, v = split(q), split(k), split(v)
    s = jnp.einsum('bhqd,bhkd->bhqk', q, k, precision=precision) / math.sqrt(D)
    p = jax.nn.softmax(s, axis=-1)
    o = jnp.einsum('bhqk,bhkd->bhqd', p, v,
                   precision=precision).transpose(0, 2, 1, 3).reshape(B, S, E)
    return jnp.einsum('bse,fe->bsf', o, w_out, precision=precision) + b_out


if __name__ == "__main__":
    # Small shapes consistent with the module (embedding_dims divisible by num_heads).
    # E=128 keeps the I/O blocks and weight stacks lane-dense (the module default
    # E=768 is also a multiple of 128).
    B, S, E, H = 2, 8, 128, 4
    key = jax.random.PRNGKey(0)
    kx, kwi, kbi, kwo, kbo, kg, kb = jax.random.split(key, 7)

    x = jax.random.normal(kx, (B, S, E), dtype=jnp.float32)

    # Parameter shapes match nn.LayerNorm / nn.MultiheadAttention (PyTorch layout).
    gamma = 1.0 + 0.05 * jax.random.normal(kg, (1, E), dtype=jnp.float32)
    beta = 0.05 * jax.random.normal(kb, (1, E), dtype=jnp.float32)
    w_in = 0.08 * jax.random.normal(kwi, (3 * E, E), dtype=jnp.float32)   # in_proj_weight
    b_in = 0.02 * jax.random.normal(kbi, (1, 3 * E), dtype=jnp.float32)   # in_proj_bias
    w_out = 0.08 * jax.random.normal(kwo, (E, E), dtype=jnp.float32)      # out_proj.weight
    b_out = 0.02 * jax.random.normal(kbo, (1, E), dtype=jnp.float32)      # out_proj.bias

    # Correctness gate: f32 compute + HIGHEST matmul precision in BOTH the kernel
    # and the reference (production would use compute_dtype=jnp.bfloat16 instead).
    hp = lax.Precision.HIGHEST
    out = multi_head_self_attention_block(
        x, gamma, beta, w_in, b_in, w_out, b_out,
        num_heads=H, compute_dtype=jnp.float32, precision=hp)
    out = jax.block_until_ready(out)

    ref = reference(x, gamma, beta, w_in, b_in, w_out, b_out, num_heads=H, precision=hp)
    ref = jax.block_until_ready(ref)

    assert out.shape == (B, S, E)
    err = float(jnp.max(jnp.abs(out - ref)))
    # Softmax normalization is an exact divide now; tolerance covers f32 rounding
    # plus any backend-dependent handling of the matmul precision attribute.
    assert jnp.allclose(out, ref, atol=5e-3, rtol=5e-3), f"max abs err {err}"

    print("KERNEL_OK")
</pallas_src>

<mosaic_0001>
module attributes {stable_mosaic.version = 11 : i64} {
  func.func @mhsa_kernel(%arg0: i32, %arg1: memref<1x8x128xf32, #tpu.memory_space<vmem>>, %arg2: memref<128x384xf32, #tpu.memory_space<vmem>>, %arg3: memref<1x384xf32, #tpu.memory_space<vmem>>, %arg4: memref<128x128xf32, #tpu.memory_space<vmem>>, %arg5: memref<1x128xf32, #tpu.memory_space<vmem>>, %arg6: memref<1x8x128xf32, #tpu.memory_space<vmem>>, %arg7: memref<1x8x128xf32, #tpu.memory_space<vmem>>) attributes {dimension_semantics = [#tpu.dimension_semantics<parallel>], iteration_bounds = array<i64: 2>, scalar_prefetch = 0 : i64, scratch_operands = 1 : i64, tpu.core_type = #tpu.core_type<tc>, window_params = [{transform_indices = @transform_0, window_bounds = array<i64: 1, 8, 128>}, {pipeline_mode = #tpu.pipeline_mode<synchronous>, transform_indices = @transform_1, window_bounds = array<i64: 128, 384>}, {pipeline_mode = #tpu.pipeline_mode<synchronous>, transform_indices = @transform_2, window_bounds = array<i64: 1, 384>}, {pipeline_mode = #tpu.pipeline_mode<synchronous>, transform_indices = @transform_3, window_bounds = array<i64: 128, 128>}, {pipeline_mode = #tpu.pipeline_mode<synchronous>, transform_indices = @transform_4, window_bounds = array<i64: 1, 128>}, {transform_indices = @transform_5, window_bounds = array<i64: 1, 8, 128>}]} {
    %c0 = arith.constant 0 : index
    %c0_0 = arith.constant 0 : index
    %c0_1 = arith.constant 0 : index
    %0 = vector.load %arg1[%c0, %c0_0, %c0_1] : memref<1x8x128xf32, #tpu.memory_space<vmem>>, vector<1x8x128xf32>
    %1 = vector.shape_cast %0 : vector<1x8x128xf32> to vector<8x128xf32>
    %cst = arith.constant dense<0.000000e+00> : vector<8xf32>
    %2 = vector.multi_reduction <add>, %1, %cst [1] : vector<8x128xf32> to vector<8xf32>
    %3 = vector.shape_cast %2 : vector<8xf32> to vector<8x1xf32>
    %cst_2 = arith.constant 1.280000e+02 : f32
    %4 = vector.broadcast %cst_2 : f32 to vector<8x1xf32>
    %5 = arith.divf %3, %4 : vector<8x1xf32>
    %6 = vector.broadcast %5 : vector<8x1xf32> to vector<8x128xf32>
    %7 = arith.subf %1, %6 : vector<8x128xf32>
    %8 = arith.mulf %7, %7 : vector<8x128xf32>
    %cst_3 = arith.constant dense<0.000000e+00> : vector<8xf32>
    %9 = vector.multi_reduction <add>, %8, %cst_3 [1] : vector<8x128xf32> to vector<8xf32>
    %10 = vector.shape_cast %9 : vector<8xf32> to vector<8x1xf32>
    %cst_4 = arith.constant 1.280000e+02 : f32
    %11 = vector.broadcast %cst_4 : f32 to vector<8x1xf32>
    %12 = arith.divf %10, %11 : vector<8x1xf32>
    %cst_5 = arith.constant 9.99999974E-6 : f32
    %13 = vector.broadcast %cst_5 : f32 to vector<8x1xf32>
    %14 = arith.addf %12, %13 : vector<8x1xf32>
    %15 = math.rsqrt %14 : vector<8x1xf32>
    %16 = vector.broadcast %15 : vector<8x1xf32> to vector<8x128xf32>
    %17 = arith.mulf %7, %16 : vector<8x128xf32>
    %c0_6 = arith.constant 0 : index
    %c0_7 = arith.constant 0 : index
    %18 = vector.load %arg2[%c0_6, %c0_7] : memref<128x384xf32, #tpu.memory_space<vmem>>, vector<128x384xf32>
    %cst_8 = arith.constant dense<0.000000e+00> : vector<8x384xf32>
    %19 = tpu.matmul %17, %18, %cst_8 {dimension_numbers = #tpu.dot_dimension_numbers<[1], [0], [0], [1], [0, 0, 1, 1], [], []>, precision = #tpu.contract_precision<fp32>} : vector<8x128xf32>, vector<128x384xf32>, vector<8x384xf32> -> vector<8x384xf32>
    %c0_9 = arith.constant 0 : index
    %c0_10 = arith.constant 0 : index
    %20 = vector.load %arg3[%c0_9, %c0_10] : memref<1x384xf32, #tpu.memory_space<vmem>>, vector<1x384xf32>
    %21 = vector.broadcast %20 : vector<1x384xf32> to vector<8x384xf32>
    %22 = arith.addf %19, %21 : vector<8x384xf32>
    %23 = vector.extract_strided_slice %22 {offsets = [0, 0], sizes = [8, 128], strides = [1, 1]} : vector<8x384xf32> to vector<8x128xf32>
    %cst_11 = arith.constant 0.176776692 : f32
    %24 = vector.broadcast %cst_11 : f32 to vector<8x128xf32>
    %25 = arith.mulf %23, %24 : vector<8x128xf32>
    %26 = vector.extract_strided_slice %22 {offsets = [0, 128], sizes = [8, 128], strides = [1, 1]} : vector<8x384xf32> to vector<8x128xf32>
    %27 = vector.extract_strided_slice %22 {offsets = [0, 256], sizes = [8, 128], strides = [1, 1]} : vector<8x384xf32> to vector<8x128xf32>
    %28 = vector.extract_strided_slice %25 {offsets = [0, 0], sizes = [8, 32], strides = [1, 1]} : vector<8x128xf32> to vector<8x32xf32>
    %29 = vector.shape_cast %28 : vector<8x32xf32> to vector<1x8x32xf32>
    %30 = vector.extract_strided_slice %26 {offsets = [0, 0], sizes = [8, 32], strides = [1, 1]} : vector<8x128xf32> to vector<8x32xf32>
    %31 = vector.shape_cast %30 : vector<8x32xf32> to vector<1x8x32xf32>
    %32 = vector.extract_strided_slice %27 {offsets = [0, 0], sizes = [8, 32], strides = [1, 1]} : vector<8x128xf32> to vector<8x32xf32>
    %33 = vector.shape_cast %32 : vector<8x32xf32> to vector<1x8x32xf32>
    %cst_12 = arith.constant dense<0.000000e+00> : vector<1x8x8xf32>
    %34 = tpu.matmul %29, %31, %cst_12 {dimension_numbers = #tpu.dot_dimension_numbers<[2], [2], [1], [1], [0, 0, 0, 1, 1, 1], [0], [0]>, precision = #tpu.contract_precision<fp32>} : vector<1x8x32xf32>, vector<1x8x32xf32>, vector<1x8x8xf32> -> vector<1x8x8xf32>
    %cst_13 = arith.constant dense<0xFF800000> : vector<1x8xf32>
    %35 = vector.multi_reduction <maximumf>, %34, %cst_13 [2] : vector<1x8x8xf32> to vector<1x8xf32>
    %36 = vector.shape_cast %35 : vector<1x8xf32> to vector<1x8x1xf32>
    %37 = vector.broadcast %36 : vector<1x8x1xf32> to vector<1x8x8xf32>
    %38 = arith.subf %34, %37 : vector<1x8x8xf32>
    %39 = math.exp %38 : vector<1x8x8xf32>
    %cst_14 = arith.constant dense<0.000000e+00> : vector<1x8xf32>
    %40 = vector.multi_reduction <add>, %39, %cst_14 [2] : vector<1x8x8xf32> to vector<1x8xf32>
    %41 = vector.shape_cast %40 : vector<1x8xf32> to vector<1x8x1xf32>
    %cst_15 = arith.constant dense<0.000000e+00> : vector<1x8x32xf32>
    %42 = tpu.matmul %39, %33, %cst_15 {dimension_numbers = #tpu.dot_dimension_numbers<[2], [1], [1], [2], [0, 0, 0, 1, 1, 2], [0], [0]>, precision = #tpu.contract_precision<fp32>} : vector<1x8x8xf32>, vector<1x8x32xf32>, vector<1x8x32xf32> -> vector<1x8x32xf32>
    %43 = vector.broadcast %41 : vector<1x8x1xf32> to vector<1x8x32xf32>
    %44 = arith.divf %42, %43 : vector<1x8x32xf32>
    %c0_16 = arith.constant 0 : index
    %c0_17 = arith.constant 0 : index
    %c0_18 = arith.constant 0 : index
    %45 = vector.load %arg7[%c0_16, %c0_17, %c0_18] : memref<1x8x128xf32, #tpu.memory_space<vmem>>, vector<1x8x32xf32>
    tpu.vector_store %arg7[%c0_16, %c0_17, %c0_18], %44 {strides = array<i32>} : memref<1x8x128xf32, #tpu.memory_space<vmem>>, vector<1x8x32xf32>,
    %46 = vector.extract_strided_slice %25 {offsets = [0, 32], sizes = [8, 32], strides = [1, 1]} : vector<8x128xf32> to vector<8x32xf32>
    %47 = vector.shape_cast %46 : vector<8x32xf32> to vector<1x8x32xf32>
    %48 = vector.extract_strided_slice %26 {offsets = [0, 32], sizes = [8, 32], strides = [1, 1]} : vector<8x128xf32> to vector<8x32xf32>
    %49 = vector.shape_cast %48 : vector<8x32xf32> to vector<1x8x32xf32>
    %50 = vector.extract_strided_slice %27 {offsets = [0, 32], sizes = [8, 32], strides = [1, 1]} : vector<8x128xf32> to vector<8x32xf32>
    %51 = vector.shape_cast %50 : vector<8x32xf32> to vector<1x8x32xf32>
    %cst_19 = arith.constant dense<0.000000e+00> : vector<1x8x8xf32>
    %52 = tpu.matmul %47, %49, %cst_19 {dimension_numbers = #tpu.dot_dimension_numbers<[2], [2], [1], [1], [0, 0, 0, 1, 1, 1], [0], [0]>, precision = #tpu.contract_precision<fp32>} : vector<1x8x32xf32>, vector<1x8x32xf32>, vector<1x8x8xf32> -> vector<1x8x8xf32>
    %cst_20 = arith.constant dense<0xFF800000> : vector<1x8xf32>
    %53 = vector.multi_reduction <maximumf>, %52, %cst_20 [2] : vector<1x8x8xf32> to vector<1x8xf32>
    %54 = vector.shape_cast %53 : vector<1x8xf32> to vector<1x8x1xf32>
    %55 = vector.broadcast %54 : vector<1x8x1xf32> to vector<1x8x8xf32>
    %56 = arith.subf %52, %55 : vector<1x8x8xf32>
    %57 = math.exp %56 : vector<1x8x8xf32>
    %cst_21 = arith.constant dense<0.000000e+00> : vector<1x8xf32>
    %58 = vector.multi_reduction <add>, %57, %cst_21 [2] : vector<1x8x8xf32> to vector<1x8xf32>
    %59 = vector.shape_cast %58 : vector<1x8xf32> to vector<1x8x1xf32>
    %cst_22 = arith.constant dense<0.000000e+00> : vector<1x8x32xf32>
    %60 = tpu.matmul %57, %51, %cst_22 {dimension_numbers = #tpu.dot_dimension_numbers<[2], [1], [1], [2], [0, 0, 0, 1, 1, 2], [0], [0]>, precision = #tpu.contract_precision<fp32>} : vector<1x8x8xf32>, vector<1x8x32xf32>, vector<1x8x32xf32> -> vector<1x8x32xf32>
    %61 = vector.broadcast %59 : vector<1x8x1xf32> to vector<1x8x32xf32>
    %62 = arith.divf %60, %61 : vector<1x8x32xf32>
    %c0_23 = arith.constant 0 : index
    %c0_24 = arith.constant 0 : index
    %c32 = arith.constant 32 : index
    %63 = vector.load %arg7[%c0_23, %c0_24, %c32] : memref<1x8x128xf32, #tpu.memory_space<vmem>>, vector<1x8x32xf32>
    tpu.vector_store %arg7[%c0_23, %c0_24, %c32], %62 {strides = array<i32>} : memref<1x8x128xf32, #tpu.memory_space<vmem>>, vector<1x8x32xf32>,
    %64 = vector.extract_strided_slice %25 {offsets = [0, 64], sizes = [8, 32], strides = [1, 1]} : vector<8x128xf32> to vector<8x32xf32>
    %65 = vector.shape_cast %64 : vector<8x32xf32> to vector<1x8x32xf32>
    %66 = vector.extract_strided_slice %26 {offsets = [0, 64], sizes = [8, 32], strides = [1, 1]} : vector<8x128xf32> to vector<8x32xf32>
    %67 = vector.shape_cast %66 : vector<8x32xf32> to vector<1x8x32xf32>
    %68 = vector.extract_strided_slice %27 {offsets = [0, 64], sizes = [8, 32], strides = [1, 1]} : vector<8x128xf32> to vector<8x32xf32>
    %69 = vector.shape_cast %68 : vector<8x32xf32> to vector<1x8x32xf32>
    %cst_25 = arith.constant dense<0.000000e+00> : vector<1x8x8xf32>
    %70 = tpu.matmul %65, %67, %cst_25 {dimension_numbers = #tpu.dot_dimension_numbers<[2], [2], [1], [1], [0, 0, 0, 1, 1, 1], [0], [0]>, precision = #tpu.contract_precision<fp32>} : vector<1x8x32xf32>, vector<1x8x32xf32>, vector<1x8x8xf32> -> vector<1x8x8xf32>
    %cst_26 = arith.constant dense<0xFF800000> : vector<1x8xf32>
    %71 = vector.multi_reduction <maximumf>, %70, %cst_26 [2] : vector<1x8x8xf32> to vector<1x8xf32>
    %72 = vector.shape_cast %71 : vector<1x8xf32> to vector<1x8x1xf32>
    %73 = vector.broadcast %72 : vector<1x8x1xf32> to vector<1x8x8xf32>
    %74 = arith.subf %70, %73 : vector<1x8x8xf32>
    %75 = math.exp %74 : vector<1x8x8xf32>
    %cst_27 = arith.constant dense<0.000000e+00> : vector<1x8xf32>
    %76 = vector.multi_reduction <add>, %75, %cst_27 [2] : vector<1x8x8xf32> to vector<1x8xf32>
    %77 = vector.shape_cast %76 : vector<1x8xf32> to vector<1x8x1xf32>
    %cst_28 = arith.constant dense<0.000000e+00> : vector<1x8x32xf32>
    %78 = tpu.matmul %75, %69, %cst_28 {dimension_numbers = #tpu.dot_dimension_numbers<[2], [1], [1], [2], [0, 0, 0, 1, 1, 2], [0], [0]>, precision = #tpu.contract_precision<fp32>} : vector<1x8x8xf32>, vector<1x8x32xf32>, vector<1x8x32xf32> -> vector<1x8x32xf32>
    %79 = vector.broadcast %77 : vector<1x8x1xf32> to vector<1x8x32xf32>
    %80 = arith.divf %78, %79 : vector<1x8x32xf32>
    %c0_29 = arith.constant 0 : index
    %c0_30 = arith.constant 0 : index
    %c64 = arith.constant 64 : index
    %81 = vector.load %arg7[%c0_29, %c0_30, %c64] : memref<1x8x128xf32, #tpu.memory_space<vmem>>, vector<1x8x32xf32>
    tpu.vector_store %arg7[%c0_29, %c0_30, %c64], %80 {strides = array<i32>} : memref<1x8x128xf32, #tpu.memory_space<vmem>>, vector<1x8x32xf32>,
    %82 = vector.extract_strided_slice %25 {offsets = [0, 96], sizes = [8, 32], strides = [1, 1]} : vector<8x128xf32> to vector<8x32xf32>
    %83 = vector.shape_cast %82 : vector<8x32xf32> to vector<1x8x32xf32>
    %84 = vector.extract_strided_slice %26 {offsets = [0, 96], sizes = [8, 32], strides = [1, 1]} : vector<8x128xf32> to vector<8x32xf32>
    %85 = vector.shape_cast %84 : vector<8x32xf32> to vector<1x8x32xf32>
    %86 = vector.extract_strided_slice %27 {offsets = [0, 96], sizes = [8, 32], strides = [1, 1]} : vector<8x128xf32> to vector<8x32xf32>
    %87 = vector.shape_cast %86 : vector<8x32xf32> to vector<1x8x32xf32>
    %cst_31 = arith.constant dense<0.000000e+00> : vector<1x8x8xf32>
    %88 = tpu.matmul %83, %85, %cst_31 {dimension_numbers = #tpu.dot_dimension_numbers<[2], [2], [1], [1], [0, 0, 0, 1, 1, 1], [0], [0]>, precision = #tpu.contract_precision<fp32>} : vector<1x8x32xf32>, vector<1x8x32xf32>, vector<1x8x8xf32> -> vector<1x8x8xf32>
    %cst_32 = arith.constant dense<0xFF800000> : vector<1x8xf32>
    %89 = vector.multi_reduction <maximumf>, %88, %cst_32 [2] : vector<1x8x8xf32> to vector<1x8xf32>
    %90 = vector.shape_cast %89 : vector<1x8xf32> to vector<1x8x1xf32>
    %91 = vector.broadcast %90 : vector<1x8x1xf32> to vector<1x8x8xf32>
    %92 = arith.subf %88, %91 : vector<1x8x8xf32>
    %93 = math.exp %92 : vector<1x8x8xf32>
    %cst_33 = arith.constant dense<0.000000e+00> : vector<1x8xf32>
    %94 = vector.multi_reduction <add>, %93, %cst_33 [2] : vector<1x8x8xf32> to vector<1x8xf32>
    %95 = vector.shape_cast %94 : vector<1x8xf32> to vector<1x8x1xf32>
    %cst_34 = arith.constant dense<0.000000e+00> : vector<1x8x32xf32>
    %96 = tpu.matmul %93, %87, %cst_34 {dimension_numbers = #tpu.dot_dimension_numbers<[2], [1], [1], [2], [0, 0, 0, 1, 1, 2], [0], [0]>, precision = #tpu.contract_precision<fp32>} : vector<1x8x8xf32>, vector<1x8x32xf32>, vector<1x8x32xf32> -> vector<1x8x32xf32>
    %97 = vector.broadcast %95 : vector<1x8x1xf32> to vector<1x8x32xf32>
    %98 = arith.divf %96, %97 : vector<1x8x32xf32>
    %c0_35 = arith.constant 0 : index
    %c0_36 = arith.constant 0 : index
    %c96 = arith.constant 96 : index
    %99 = vector.load %arg7[%c0_35, %c0_36, %c96] : memref<1x8x128xf32, #tpu.memory_space<vmem>>, vector<1x8x32xf32>
    tpu.vector_store %arg7[%c0_35, %c0_36, %c96], %98 {strides = array<i32>} : memref<1x8x128xf32, #tpu.memory_space<vmem>>, vector<1x8x32xf32>,
    %c0_37 = arith.constant 0 : index
    %c0_38 = arith.constant 0 : index
    %c0_39 = arith.constant 0 : index
    %100 = vector.load %arg7[%c0_37, %c0_38, %c0_39] : memref<1x8x128xf32, #tpu.memory_space<vmem>>, vector<1x8x128xf32>
    %101 = vector.shape_cast %100 : vector<1x8x128xf32> to vector<8x128xf32>
    %c0_40 = arith.constant 0 : index
    %c0_41 = arith.constant 0 : index
    %102 = vector.load %arg4[%c0_40, %c0_41] : memref<128x128xf32, #tpu.memory_space<vmem>>, vector<128x128xf32>
    %cst_42 = arith.constant dense<0.000000e+00> : vector<8x128xf32>
    %103 = tpu.matmul %101, %102, %cst_42 {dimension_numbers = #tpu.dot_dimension_numbers<[1], [0], [0], [1], [0, 0, 1, 1], [], []>, precision = #tpu.contract_precision<fp32>} : vector<8x128xf32>, vector<128x128xf32>, vector<8x128xf32> -> vector<8x128xf32>
    %c0_43 = arith.constant 0 : index
    %c0_44 = arith.constant 0 : index
    %104 = vector.load %arg5[%c0_43, %c0_44] : memref<1x128xf32, #tpu.memory_space<vmem>>, vector<1x128xf32>
    %105 = vector.broadcast %104 : vector<1x128xf32> to vector<8x128xf32>
    %106 = arith.addf %103, %105 : vector<8x128xf32>
    %107 = vector.shape_cast %106 : vector<8x128xf32> to vector<1x8x128xf32>
    %c0_45 = arith.constant 0 : index
    %c0_46 = arith.constant 0 : index
    %c0_47 = arith.constant 0 : index
    %108 = vector.load %arg6[%c0_45, %c0_46, %c0_47] : memref<1x8x128xf32, #tpu.memory_space<vmem>>, vector<1x8x128xf32>
    tpu.vector_store %arg6[%c0_45, %c0_46, %c0_47], %107 {strides = array<i32>} : memref<1x8x128xf32, #tpu.memory_space<vmem>>, vector<1x8x128xf32>,
    return
  }
  func.func @transform_0(%arg0: i32) -> (i32, i32, i32) {
    %c0_i32 = arith.constant 0 : i32
    %c0_i32_0 = arith.constant 0 : i32
    %c0_i32_1 = arith.constant 0 : i32
    return %arg0, %c0_i32, %c0_i32_0 : i32, i32, i32
  }
  func.func @transform_1(%arg0: i32) -> (i32, i32) {
    %c0_i32 = arith.constant 0 : i32
    %c0_i32_0 = arith.constant 0 : i32
    %c0_i32_1 = arith.constant 0 : i32
    return %c0_i32, %c0_i32_0 : i32, i32
  }
  func.func @transform_2(%arg0: i32) -> (i32, i32) {
    %c0_i32 = arith.constant 0 : i32
    %c0_i32_0 = arith.constant 0 : i32
    %c0_i32_1 = arith.constant 0 : i32
    return %c0_i32, %c0_i32_0 : i32, i32
  }
  func.func @transform_3(%arg0: i32) -> (i32, i32) {
    %c0_i32 = arith.constant 0 : i32
    %c0_i32_0 = arith.constant 0 : i32
    %c0_i32_1 = arith.constant 0 : i32
    return %c0_i32, %c0_i32_0 : i32, i32
  }
  func.func @transform_4(%arg0: i32) -> (i32, i32) {
    %c0_i32 = arith.constant 0 : i32
    %c0_i32_0 = arith.constant 0 : i32
    %c0_i32_1 = arith.constant 0 : i32
    return %c0_i32, %c0_i32_0 : i32, i32
  }
  func.func @transform_5(%arg0: i32) -> (i32, i32, i32) {
    %c0_i32 = arith.constant 0 : i32
    %c0_i32_0 = arith.constant 0 : i32
    %c0_i32_1 = arith.constant 0 : i32
    return %arg0, %c0_i32, %c0_i32_0 : i32, i32, i32
  }
}

</mosaic_0001>

<llo_original>
// kernel: tpu_custom_call.1
$region0: #{tpu_custom_call.1}
  #allocation0 [shape = 'u32[]', space=smem, size = 0x4, offset = 0x4, fixed_abs, tag = 'smem constant byte address 0x4 - core index']
  #allocation1 [shape = 'u32[144,128]{1,0:T(1,128)}', space=vmem, size = 0x12000, scoped, tag = 'internal scratch']
  #allocation2 [shape = 'f32[1,8,128]{2,1,0:T(8,128)}', space=vmem, size = 0x1000, scoped, tag = 'scratch operand']
  %s0 = inlined_call_operand.hbm [shape: f32[2,8,128], index: 0, kind: input, shape index: {}]
  %s1 = inlined_call_operand.hbm [shape: f32[128,384], index: 1, kind: input, shape index: {}]
  %s2 = inlined_call_operand.vmem [shape: f32[1,384], index: 2, kind: input, shape index: {}]
  %s3 = inlined_call_operand.hbm [shape: f32[128,128], index: 3, kind: input, shape index: {}]
  %s4 = inlined_call_operand.vmem [shape: f32[1,128], index: 4, kind: input, shape index: {}]
  %s5 = inlined_call_operand.hbm [shape: f32[2,8,128], index: 5, kind: output, shape index: {}]
  %s6 = sld [smem:[#allocation0]]
  $region65: #{tpu_custom_call.1} parent=0
    _
  %s8 = ssub.s32 1, %s6
  %s9 = scalar_select 0, %s8, %s6
  $region1: #{tpu_custom_call.1} parent=0
    #allocation3 [shape = 'u8[8192]{0}', space=vmem, size = 0x2000, scoped, tag = 'input window, operand 0']
    #allocation4 [shape = 's32[2]{0}', space=sflag, size = 0x8, scoped, tag = 'scoped memory for tpu_custom_call.1']
    #allocation5 [shape = 's32[2]{0}', space=sflag, size = 0x8, scoped, tag = 'scoped memory for tpu_custom_call.1']
    #allocation6 [shape = 'u8[196608]{0}', space=vmem, size = 0x30000, scoped, tag = 'input window, operand 1, single buffered']
    #allocation7 [shape = 's32[1]{0}', space=sflag, size = 0x4, scoped, tag = 'scoped memory for tpu_custom_call.1']
    #allocation8 [shape = 'u8[65536]{0}', space=vmem, size = 0x10000, scoped, tag = 'input window, operand 3, single buffered']
    #allocation9 [shape = 'u8[8192]{0}', space=vmem, size = 0x2000, scoped, tag = 'output window, operand 0']
    %10 = vsyncpa [#allocation4], 0
    %s11 = scalar_lea.sflag [#allocation4], 1
    %12 = vsyncpa %s11, 0
    %13 = vsyncpa [#allocation7], 0
    %14 = vsyncpa [#allocation5], 0
    %s15 = scalar_lea.sflag [#allocation5], 1
    %16 = vsyncpa %s15, 0
    loop: start=0, step=1, limit=4
    $region2: #{tpu_custom_call.1} parent=1 // loop_pre_header
      _
    $region3: #{tpu_custom_call.1} parent=1 // loop_header
      %s18 = sphi 0, %s22
      %p19 = scmp.ge.s32.totalorder %s18, 4
      %s28 = sphi 0, %s30
      %s31 = sphi 0, %s28
      %s32 = sphi 0, %s31
      %s48 = sphi 0, %s32
      %s52 = sphi 0, %s52
      %s54 = sphi 0, %s52
      %s55 = sphi 0, %s54
      %s69 = sphi 0, %s55
      %s73 = sphi 0, %s73
      %s75 = sphi 0, %s73
      %s76 = sphi 0, %s75
      %s90 = sphi 0, %s76
      %s94 = sphi 0, %s94
      %s96 = sphi 0, %s94
      %s97 = sphi 0, %s96
      %s111 = sphi 0, %s97
      %s115 = sphi 0, %s115
      %s117 = sphi 0, %s115
      %s118 = sphi 0, %s117
      %s132 = sphi 0, %s118
      %s138 = sphi 0, %s140
      %s141 = sphi 0, %s138
      %s142 = sphi 0, %s141
      %s158 = sphi 0, %s142
    $region4: #{tpu_custom_call.1} parent=1 // loop_header_branch
      %21 = sbr.rel (%p19) target = $region8
    $region5: #{tpu_custom_call.1} parent=1 // loop_body
      %s23 = ssub.s32 %s18, 1
      %s24 = ssub.s32 %s18, 2
      %s25 = sadd.s32 %s18, 1
      %s26 = ssub.s32 %s18, %s25
      %p27 = scmp.eq.s32.totalorder %s26, 0
      %s29 = sadd.s32 %s28, 1
      %s30 = scalar_select %p27, %s28, %s29
      %p33 = pneg %p27
      %p34 = scmp.eq.s32.totalorder %s18, 1
      %p35 = por %p33, %p34
      %p36 = scmp.ne.s32.totalorder %s28, %s31
      %p37 = scmp.eq.s32.totalorder %s18, 0
      %p38 = por %p36, %p37
      %p39 = scmp.ne.s32.totalorder %s28, %s31
      %p40 = scmp.eq.s32.totalorder %s23, 1
      %p41 = por %p39, %p40
      %p42 = scmp.ne.s32.totalorder %s31, %s32
      %p43 = scmp.eq.s32.totalorder %s23, 0
      %p44 = por %p42, %p43
      %p45 = scmp.ne.s32.totalorder %s31, %s32
      %p46 = scmp.eq.s32.totalorder %s24, 1
      %p47 = por %p45, %p46
      %p49 = scmp.ne.s32.totalorder %s32, %s48
      %p50 = scmp.eq.s32.totalorder %s24, 0
      %p51 = por %p49, %p50
      %s53 = sadd.s32 %s52, 1
      %p56 = scmp.eq.s32.totalorder %s18, 1
      %p57 = scmp.ne.s32.totalorder %s52, %s54
      %p58 = scmp.eq.s32.totalorder %s18, 0
      %p59 = por %p57, %p58
      %p60 = scmp.ne.s32.totalorder %s52, %s54
      %p61 = scmp.eq.s32.totalorder %s23, 1
      %p62 = por %p60, %p61
      %p63 = scmp.ne.s32.totalorder %s54, %s55
      %p64 = scmp.eq.s32.totalorder %s23, 0
      %p65 = por %p63, %p64
      %p66 = scmp.ne.s32.totalorder %s54, %s55
      %p67 = scmp.eq.s32.totalorder %s24, 1
      %p68 = por %p66, %p67
      %p70 = scmp.ne.s32.totalorder %s55, %s69
      %p71 = scmp.eq.s32.totalorder %s24, 0
      %p72 = por %p70, %p71
      %s74 = sadd.s32 %s73, 1
      %p77 = scmp.eq.s32.totalorder %s18, 1
      %p78 = scmp.ne.s32.totalorder %s73, %s75
      %p79 = scmp.eq.s32.totalorder %s18, 0
      %p80 = por %p78, %p79
      %p81 = scmp.ne.s32.totalorder %s73, %s75
      %p82 = scmp.eq.s32.totalorder %s23, 1
      %p83 = por %p81, %p82
      %p84 = scmp.ne.s32.totalorder %s75, %s76
      %p85 = scmp.eq.s32.totalorder %s23, 0
      %p86 = por %p84, %p85
      %p87 = scmp.ne.s32.totalorder %s75, %s76
      %p88 = scmp.eq.s32.totalorder %s24, 1
      %p89 = por %p87, %p88
      %p91 = scmp.ne.s32.totalorder %s76, %s90
      %p92 = scmp.eq.s32.totalorder %s24, 0
      %p93 = por %p91, %p92
      %s95 = sadd.s32 %s94, 1
      %p98 = scmp.eq.s32.totalorder %s18, 1
      %p99 = scmp.ne.s32.totalorder %s94, %s96
      %p100 = scmp.eq.s32.totalorder %s18, 0
      %p101 = por %p99, %p100
      %p102 = scmp.ne.s32.totalorder %s94, %s96
      %p103 = scmp.eq.s32.totalorder %s23, 1
      %p104 = por %p102, %p103
      %p105 = scmp.ne.s32.totalorder %s96, %s97
      %p106 = scmp.eq.s32.totalorder %s23, 0
      %p107 = por %p105, %p106
      %p108 = scmp.ne.s32.totalorder %s96, %s97
      %p109 = scmp.eq.s32.totalorder %s24, 1
      %p110 = por %p108, %p109
      %p112 = scmp.ne.s32.totalorder %s97, %s111
      %p113 = scmp.eq.s32.totalorder %s24, 0
      %p114 = por %p112, %p113
      %s116 = sadd.s32 %s115, 1
      %p119 = scmp.eq.s32.totalorder %s18, 1
      %p120 = scmp.ne.s32.totalorder %s115, %s117
      %p121 = scmp.eq.s32.totalorder %s18, 0
      %p122 = por %p120, %p121
      %p123 = scmp.ne.s32.totalorder %s115, %s117
      %p124 = scmp.eq.s32.totalorder %s23, 1
      %p125 = por %p123, %p124
      %p126 = scmp.ne.s32.totalorder %s117, %s118
      %p127 = scmp.eq.s32.totalorder %s23, 0
      %p128 = por %p126, %p127
      %p129 = scmp.ne.s32.totalorder %s117, %s118
      %p130 = scmp.eq.s32.totalorder %s24, 1
      %p131 = por %p129, %p130
      %p133 = scmp.ne.s32.totalorder %s118, %s132
      %p134 = scmp.eq.s32.totalorder %s24, 0
      %p135 = por %p133, %p134
      %s136 = ssub.s32 %s18, %s25
      %p137 = scmp.eq.s32.totalorder %s136, 0
      %s139 = sadd.s32 %s138, 1
      %s140 = scalar_select %p137, %s138, %s139
      %p143 = pneg %p137
      %p144 = scmp.eq.s32.totalorder %s18, 1
      %p145 = por %p143, %p144
      %p146 = scmp.ne.s32.totalorder %s138, %s141
      %p147 = scmp.eq.s32.totalorder %s18, 0
      %p148 = por %p146, %p147
      %p149 = scmp.ne.s32.totalorder %s138, %s141
      %p150 = scmp.eq.s32.totalorder %s23, 1
      %p151 = por %p149, %p150
      %p152 = scmp.ne.s32.totalorder %s141, %s142
      %p153 = scmp.eq.s32.totalorder %s23, 0
      %p154 = por %p152, %p153
      %p155 = scmp.ne.s32.totalorder %s141, %s142
      %p156 = scmp.eq.s32.totalorder %s24, 1
      %p157 = por %p155, %p156
      %p159 = scmp.ne.s32.totalorder %s142, %s158
      %p160 = scmp.eq.s32.totalorder %s24, 0
      %p161 = por %p159, %p160
      %p162 = scmp.le.s32.totalorder 1, %s18
      %p163 = scmp.lt.s32.totalorder %s18, 3
      %p164 = pnand %p162, %p163
      %p165 = pneg %p164
      // Predicated region
      $region9: #{tpu_custom_call.1} parent=5 // pred_check
        _
      $region10: #{tpu_custom_call.1} parent=5 // pred_check_branch
        %167 = sbr.rel (%p164) target = $region12
      $region11: #{tpu_custom_call.1} parent=5 // pred_region
        %s168 = ssub.s32 %s18, 1
        // Predicated region
        $region13: #{tpu_custom_call.1} parent=11 // pred_check
          %p169 = pneg %p65
        $region14: #{tpu_custom_call.1} parent=11 // pred_check_branch
          %171 = sbr.rel (%p169) target = $region16
        $region15: #{tpu_custom_call.1} parent=11 // pred_region
          %s173 = ssub.s32 6144, 6144
          %174 = vsyncadd [#allocation7], %s173
          %s175 = sshll.u32 [#allocation6], 4
          %s176 = int_to_ptr.vmem [resolvable:$true] %s175
          %181 = dma.hbm_to_vmem [thread:$0]  %s1, 6144, %s176, [#allocation7], 384, 384, 24
        $region16: #{tpu_custom_call.1} parent=11 // pred_fallthru
          _
        // Predicated region
        $region17: #{tpu_custom_call.1} parent=11 // pred_check
          %p182 = pneg %p86
        $region18: #{tpu_custom_call.1} parent=11 // pred_check_branch
          %184 = sbr.rel (%p182) target = $region20
        $region19: #{tpu_custom_call.1} parent=11 // pred_region
          _
        $region20: #{tpu_custom_call.1} parent=11 // pred_fallthru
          _
        // Predicated region
        $region21: #{tpu_custom_call.1} parent=11 // pred_check
          %p185 = pneg %p107
        $region22: #{tpu_custom_call.1} parent=11 // pred_check_branch
          %187 = sbr.rel (%p185) target = $region24
        $region23: #{tpu_custom_call.1} parent=11 // pred_region
          %s189 = ssub.s32 2048, 2048
          %190 = vsyncadd [#allocation7], %s189
          %s191 = sshll.u32 [#allocation8], 4
          %s192 = int_to_ptr.vmem [resolvable:$true] %s191
          %197 = dma.hbm_to_vmem [thread:$0]  %s3, 2048, %s192, [#allocation7], 128, 128, 8
        $region24: #{tpu_custom_call.1} parent=11 // pred_fallthru
          _
        // Predicated region
        $region25: #{tpu_custom_call.1} parent=11 // pred_check
          %p198 = pneg %p128
        $region26: #{tpu_custom_call.1} parent=11 // pred_check_branch
          %200 = sbr.rel (%p198) target = $region28
        $region27: #{tpu_custom_call.1} parent=11 // pred_region
          _
        $region28: #{tpu_custom_call.1} parent=11 // pred_fallthru
          _
      $region12: #{tpu_custom_call.1} parent=5 // pred_fallthru
        _
      %p201 = scmp.lt.s32.totalorder %s18, 2
      // Predicated region
      $region29: #{tpu_custom_call.1} parent=5 // pred_check
        %p202 = pneg %p201
      $region30: #{tpu_custom_call.1} parent=5 // pred_check_branch
        %204 = sbr.rel (%p202) target = $region32
      $region31: #{tpu_custom_call.1} parent=5 // pred_region
        // Predicated region
        $region33: #{tpu_custom_call.1} parent=31 // pred_check
          %p205 = pneg %p38
        $region34: #{tpu_custom_call.1} parent=31 // pred_check_branch
          %207 = sbr.rel (%p205) target = $region36
        $region35: #{tpu_custom_call.1} parent=31 // pred_region
          %s208 = sand.u32 %s28, 1
          %s209 = scalar_lea.sflag [#allocation4], %s208
          %s210 = sand.u32 %s28, 1
          %s211 = smul.addr %s210, 8
          %s212 = scalar_lea.vmem [#allocation3], %s211
          %s214 = ssub.s32 128, 128
          %215 = vsyncadd %s209, %s214
          %s216 = smul.addr %s18, 128
          %s217 = scalar_lea.hbm %s0, %s216
          %s219 = sshll.u32 %s212, 4
          %s220 = int_to_ptr.vmem [resolvable:$true] %s219
          %222 = dma.hbm_to_vmem [thread:$0]  %s217, 128, %s220, %s209
        $region36: #{tpu_custom_call.1} parent=31 // pred_fallthru
          _
      $region32: #{tpu_custom_call.1} parent=5 // pred_fallthru
        _
      %p223 = scmp.le.s32.totalorder 1, %s18
      %p224 = scmp.lt.s32.totalorder %s18, 3
      %p225 = pnand %p223, %p224
      %p226 = pneg %p225
      // Predicated region
      $region37: #{tpu_custom_call.1} parent=5 // pred_check
        _
      $region38: #{tpu_custom_call.1} parent=5 // pred_check_branch
        %228 = sbr.rel (%p225) target = $region40
      $region39: #{tpu_custom_call.1} parent=5 // pred_region
        %s229 = ssub.s32 %s18, 1
        %s230 = sand.u32 %s31, 1
        %s231 = scalar_lea.sflag [#allocation4], %s230
        %s232 = sand.u32 %s31, 1
        %s233 = smul.addr %s232, 8
        %s234 = scalar_lea.vmem [#allocation3], %s233
        // Predicated region
        $region41: #{tpu_custom_call.1} parent=39 // pred_check
          %p235 = pneg %p44
        $region42: #{tpu_custom_call.1} parent=39 // pred_check_branch
          %237 = sbr.rel (%p235) target = $region44
        $region43: #{tpu_custom_call.1} parent=39 // pred_region
          %238 = dma.done %s231, 128
        $region44: #{tpu_custom_call.1} parent=39 // pred_fallthru
          _
        // Predicated region
        $region45: #{tpu_custom_call.1} parent=39 // pred_check
          %p239 = pneg %p65
        $region46: #{tpu_custom_call.1} parent=39 // pred_check_branch
          %241 = sbr.rel (%p239) target = $region48
        $region47: #{tpu_custom_call.1} parent=39 // pred_region
          %242 = dma.done [#allocation7], 6144
        $region48: #{tpu_custom_call.1} parent=39 // pred_fallthru
          _
        // Predicated region
        $region49: #{tpu_custom_call.1} parent=39 // pred_check
          %p243 = pneg %p107
        $region50: #{tpu_custom_call.1} parent=39 // pred_check_branch
          %245 = sbr.rel (%p243) target = $region52
        $region51: #{tpu_custom_call.1} parent=39 // pred_region
          %246 = dma.done [#allocation7], 2048
        $region52: #{tpu_custom_call.1} parent=39 // pred_fallthru
          _
        %s247 = sand.u32 %s31, 1
        %s248 = scalar_lea.sflag [#allocation4], %s247
        %s249 = sand.u32 %s31, 1
        %s250 = smul.addr %s249, 8
        %s251 = scalar_lea.vmem [#allocation3], %s250
        %p252 = pneg %p44
        %p253 = pneg %p41
        %p254 = pneg %p65
        %p255 = pneg %p62
        %p256 = pneg %p86
        %p257 = pneg %p83
        %p258 = pneg %p107
        %p259 = pneg %p104
        %p260 = pneg %p128
        %p261 = pneg %p125
        %p262 = pneg %p154
        %p263 = pneg %p151
        %s264 = sand.u32 %s141, 1
        %s265 = scalar_lea.sflag [#allocation5], %s264
        %s266 = sand.u32 %s141, 1
        %s267 = smul.addr %s266, 8
        %s268 = scalar_lea.vmem [#allocation9], %s267
        %v269 = vld [vmem:[%s234] sm:$0xff]
        %270 = vadd.xlane.f32.xlu0 %v269
        %v271 = vpop.xlane.xlu0 %270
        %v272 = vrcp.pop 128.0
        %v273 = vmul.f32 %v271, %v272
        %v274 = vsub.f32 %v269, %v273
        %v275 = vmul.f32 %v274, %v274
        %276 = vadd.xlane.f32.xlu0 %v275
        %v277 = vpop.xlane.xlu0 %276
        %v278 = vmul.f32 %v277, %v272
        %v279 = vadd.f32 %v278, 1e-05
        %v280 = vrsqrt.pop %v279
        %v281 = vmul.f32 %v274, %v280
        %v282 = vld [vmem:[#allocation6] sm:$0xff]
        %v283 = vld [vmem:[#allocation6 + $0x8] sm:$0xff]
        %v284 = vld [vmem:[#allocation6 + $0x10] sm:$0xff]
        %v285 = vld [vmem:[#allocation6 + $0x18] sm:$0xff]
        %v286 = vld [vmem:[#allocation6 + $0x20] sm:$0xff]
        %v287 = vld [vmem:[#allocation6 + $0x28] sm:$0xff]
        %v288 = vld [vmem:[#allocation6 + $0x30] sm:$0xff]
        %v289 = vld [vmem:[#allocation6 + $0x38] sm:$0xff]
        %v290 = vld [vmem:[#allocation6 + $0x40] sm:$0xff]
        %v291 = vld [vmem:[#allocation6 + $0x48] sm:$0xff]
        %v292 = vld [vmem:[#allocation6 + $0x50] sm:$0xff]
        %v293 = vld [vmem:[#allocation6 + $0x58] sm:$0xff]
        %v294 = vld [vmem:[#allocation6 + $0x60] sm:$0xff]
        %v295 = vld [vmem:[#allocation6 + $0x68] sm:$0xff]
        %v296 = vld [vmem:[#allocation6 + $0x70] sm:$0xff]
        %v297 = vld [vmem:[#allocation6 + $0x78] sm:$0xff]
        %v298 = vld [vmem:[#allocation6 + $0x80] sm:$0xff]
        %v299 = vld [vmem:[#allocation6 + $0x88] sm:$0xff]
        %v300 = vld [vmem:[#allocation6 + $0x90] sm:$0xff]
        %v301 = vld [vmem:[#allocation6 + $0x98] sm:$0xff]
        %v302 = vld [vmem:[#allocation6 + $0xa0] sm:$0xff]
        %v303 = vld [vmem:[#allocation6 + $0xa8] sm:$0xff]
        %v304 = vld [vmem:[#allocation6 + $0xb0] sm:$0xff]
        %v305 = vld [vmem:[#allocation6 + $0xb8] sm:$0xff]
        %v306 = vld [vmem:[#allocation6 + $0xc0] sm:$0xff]
        %v307 = vld [vmem:[#allocation6 + $0xc8] sm:$0xff]
        %v308 = vld [vmem:[#allocation6 + $0xd0] sm:$0xff]
        %v309 = vld [vmem:[#allocation6 + $0xd8] sm:$0xff]
        %v310 = vld [vmem:[#allocation6 + $0xe0] sm:$0xff]
        %v311 = vld [vmem:[#allocation6 + $0xe8] sm:$0xff]
        %v312 = vld [vmem:[#allocation6 + $0xf0] sm:$0xff]
        %v313 = vld [vmem:[#allocation6 + $0xf8] sm:$0xff]
        %v314 = vld [vmem:[#allocation6 + $0x100] sm:$0xff]
        %v315 = vld [vmem:[#allocation6 + $0x108] sm:$0xff]
        %v316 = vld [vmem:[#allocation6 + $0x110] sm:$0xff]
        %v317 = vld [vmem:[#allocation6 + $0x118] sm:$0xff]
        %v318 = vld [vmem:[#allocation6 + $0x120] sm:$0xff]
        %v319 = vld [vmem:[#allocation6 + $0x128] sm:$0xff]
        %v320 = vld [vmem:[#allocation6 + $0x130] sm:$0xff]
        %v321 = vld [vmem:[#allocation6 + $0x138] sm:$0xff]
        %v322 = vld [vmem:[#allocation6 + $0x140] sm:$0xff]
        %v323 = vld [vmem:[#allocation6 + $0x148] sm:$0xff]
        %v324 = vld [vmem:[#allocation6 + $0x150] sm:$0xff]
        %v325 = vld [vmem:[#allocation6 + $0x158] sm:$0xff]
        %v326 = vld [vmem:[#allocation6 + $0x160] sm:$0xff]
        %v327 = vld [vmem:[#allocation6 + $0x168] sm:$0xff]
        %v328 = vld [vmem:[#allocation6 + $0x170] sm:$0xff]
        %v329 = vld [vmem:[#allocation6 + $0x178] sm:$0xff]
        %v330 = vld [vmem:[%s2] sm:$0x7]
        %v332 = vlaneseq
        %v333 = vshrl.u32 %v332, 7
        %v334 = vsub.s32 0, %v333
        %v335 = vrot.slane %v330, %v334
        %v336 = vlaneseq
        %v337 = vshrl.u32 %v336, 7
        %v338 = vsub.s32 1, %v337
        %v339 = vrot.slane %v330, %v338
        %v340 = vlaneseq
        %v341 = vshrl.u32 %v340, 7
        %v342 = vsub.s32 2, %v341
        %v343 = vrot.slane %v330, %v342
        %v347 = vand.u32 %v328, 4294901760
        %348 = vmatprep.subr.mxu0 %v347
        %v349 = vand.u32 %v327, 4294901760
        %350 = vmatpush1.msra.mxu0 %v349
        %v351 = vand.u32 %v325, 4294901760
        %352 = vmatprep.subr.mxu0 %v351
        %v353 = vand.u32 %v324, 4294901760
        %354 = vmatpush1.msra.mxu0 %v353
        %v355 = vand.u32 %v322, 4294901760
        %356 = vmatprep.subr.mxu0 %v355
        %v357 = vand.u32 %v321, 4294901760
        %358 = vmatpush1.msra.mxu0 %v357
        %v359 = vand.u32 %v319, 4294901760
        %360 = vmatprep.subr.mxu0 %v359
        %v361 = vand.u32 %v318, 4294901760
        %362 = vmatpush1.msra.mxu0 %v361
        %v363 = vand.u32 %v316, 4294901760
        %364 = vmatprep.subr.mxu0 %v363
        %v365 = vand.u32 %v315, 4294901760
        %366 = vmatpush1.msra.mxu0 %v365
        %v367 = vand.u32 %v313, 4294901760
        %368 = vmatprep.subr.mxu0 %v367
        %v369 = vand.u32 %v312, 4294901760
        %370 = vmatpush1.msra.mxu0 %v369
        %v371 = vand.u32 %v310, 4294901760
        %372 = vmatprep.subr.mxu0 %v371
        %v373 = vand.u32 %v309, 4294901760
        %374 = vmatpush1.msra.mxu0 %v373
        %v375 = vand.u32 %v307, 4294901760
        %376 = vmatprep.subr.mxu0 %v375
        %v377 = vand.u32 %v306, 4294901760
        %378 = vmatpush1.msra.mxu0 %v377
        %v379 = vand.u32 %v304, 4294901760
        %380 = vmatprep.subr.mxu0 %v379
        %v381 = vand.u32 %v303, 4294901760
        %382 = vmatpush1.msra.mxu0 %v381
        %v383 = vand.u32 %v301, 4294901760
        %384 = vmatprep.subr.mxu0 %v383
        %v385 = vand.u32 %v300, 4294901760
        %386 = vmatpush1.msra.mxu0 %v385
        %v387 = vand.u32 %v298, 4294901760
        %388 = vmatprep.subr.mxu0 %v387
        %v389 = vand.u32 %v297, 4294901760
        %390 = vmatpush1.msra.mxu0 %v389
        %v391 = vand.u32 %v295, 4294901760
        %392 = vmatprep.subr.mxu0 %v391
        %v393 = vand.u32 %v294, 4294901760
        %394 = vmatpush1.msra.mxu0 %v393
        %v395 = vand.u32 %v292, 4294901760
        %396 = vmatprep.subr.mxu0 %v395
        %v397 = vand.u32 %v291, 4294901760
        %398 = vmatpush1.msra.mxu0 %v397
        %v399 = vand.u32 %v289, 4294901760
        %400 = vmatprep.subr.mxu0 %v399
        %v401 = vand.u32 %v288, 4294901760
        %402 = vmatpush1.msra.mxu0 %v401
        %v403 = vand.u32 %v286, 4294901760
        %404 = vmatprep.subr.mxu0 %v403
        %v405 = vand.u32 %v285, 4294901760
        %406 = vmatpush1.msra.mxu0 %v405
        %v407 = vand.u32 %v283, 4294901760
        %408 = vmatprep.subr.mxu0 %v407
        %v409 = vand.u32 %v282, 4294901760
        %410 = vmatpush1.msra.mxu0 %v409
        %411 = vmatprep.subr.mxu0 0.0
        %412 = vmatpush2.msra.mxu0 0.0
        %413 = vmatprep.subr.mxu0 0.0
        %414 = vmatpush2.msra.mxu0 0.0
        %415 = vmatprep.subr.mxu0 0.0
        %416 = vmatpush2.msra.mxu0 0.0
        %417 = vmatprep.subr.mxu0 0.0
        %418 = vmatpush2.msra.mxu0 0.0
        %419 = vmatprep.subr.mxu0 0.0
        %420 = vmatpush2.msra.mxu0 0.0
        %421 = vmatprep.subr.mxu0 0.0
        %422 = vmatpush2.msra.mxu0 0.0
        %423 = vmatprep.subr.mxu0 0.0
        %424 = vmatpush2.msra.mxu0 0.0
        %425 = vmatprep.subr.mxu0 0.0
        %426 = vmatpush2.msra.mxu0 0.0
        %427 = vmatprep.subr.mxu0 0.0
        %428 = vmatpush2.msra.mxu0 0.0
        %429 = vmatprep.subr.mxu0 0.0
        %430 = vmatpush2.msra.mxu0 0.0
        %431 = vmatprep.subr.mxu0 0.0
        %432 = vmatpush2.msra.mxu0 0.0
        %433 = vmatprep.subr.mxu0 0.0
        %434 = vmatpush2.msra.mxu0 0.0
        %435 = vmatprep.subr.mxu0 0.0
        %436 = vmatpush2.msra.mxu0 0.0
        %437 = vmatprep.subr.mxu0 0.0
        %438 = vmatpush2.msra.mxu0 0.0
        %439 = vmatprep.subr.mxu0 0.0
        %440 = vmatpush2.msra.mxu0 0.0
        %441 = vmatprep.subr.mxu0 0.0
        %442 = vmatpush2.msra.mxu0 0.0
        %443 = vmatprep.mubr.f32.mxu0 0.0
        %v444 = vand.u32 %v281, 4294901760
        %v445 = vsub.f32 %v281, %v444
        %v446 = vand.u32 %v445, 4294901760
        %v447 = vsub.f32 %v445, %v446
        %v448 = vand.u32 %v447, 4294901760
        %449 = vmatmul.mubr.f32.gmra.mxu0 %v448
        %v450 = vpop.f32.mrf.mxu0
        %v451 = vadd.f32 %v335, %v450
        %v452 = vpop.f32.mrf.mxu0
        %v453 = vadd.f32 %v339, %v452
        %454 = vdwg.mxu0
        %v455 = vand.u32 %v328, 4294901760
        %v456 = vsub.f32 %v328, %v455
        %v457 = vand.u32 %v456, 4294901760
        %v458 = vsub.f32 %v456, %v457
        %v459 = vand.u32 %v458, 4294901760
        %460 = vmatprep.subr.mxu0 %v459
        %v461 = vand.u32 %v327, 4294901760
        %v462 = vsub.f32 %v327, %v461
        %v463 = vand.u32 %v462, 4294901760
        %v464 = vsub.f32 %v462, %v463
        %v465 = vand.u32 %v464, 4294901760
        %466 = vmatpush1.msra.mxu0 %v465
        %v467 = vand.u32 %v325, 4294901760
        %v468 = vsub.f32 %v325, %v467
        %v469 = vand.u32 %v468, 4294901760
        %v470 = vsub.f32 %v468, %v469
        %v471 = vand.u32 %v470, 4294901760
        %472 = vmatprep.subr.mxu0 %v471
        %v473 = vand.u32 %v324, 4294901760
        %v474 = vsub.f32 %v324, %v473
        %v475 = vand.u32 %v474, 4294901760
        %v476 = vsub.f32 %v474, %v475
        %v477 = vand.u32 %v476, 4294901760
        %478 = vmatpush1.msra.mxu0 %v477
        %v479 = vand.u32 %v322, 4294901760
        %v480 = vsub.f32 %v322, %v479
        %v481 = vand.u32 %v480, 4294901760
        %v482 = vsub.f32 %v480, %v481
        %v483 = vand.u32 %v482, 4294901760
        %484 = vmatprep.subr.mxu0 %v483
        %v485 = vand.u32 %v321, 4294901760
        %v486 = vsub.f32 %v321, %v485
        %v487 = vand.u32 %v486, 4294901760
        %v488 = vsub.f32 %v486, %v487
        %v489 = vand.u32 %v488, 4294901760
        %490 = vmatpush1.msra.mxu0 %v489
        %v491 = vand.u32 %v319, 4294901760
        %v492 = vsub.f32 %v319, %v491
        %v493 = vand.u32 %v492, 4294901760
        %v494 = vsub.f32 %v492, %v493
        %v495 = vand.u32 %v494, 4294901760
        %496 = vmatprep.subr.mxu0 %v495
        %v497 = vand.u32 %v318, 4294901760
        %v498 = vsub.f32 %v318, %v497
        %v499 = vand.u32 %v498, 4294901760
        %v500 = vsub.f32 %v498, %v499
        %v501 = vand.u32 %v500, 4294901760
        %502 = vmatpush1.msra.mxu0 %v501
        %v503 = vand.u32 %v316, 4294901760
        %v504 = vsub.f32 %v316, %v503
        %v505 = vand.u32 %v504, 4294901760
        %v506 = vsub.f32 %v504, %v505
        %v507 = vand.u32 %v506, 4294901760
        %508 = vmatprep.subr.mxu0 %v507
        %v509 = vand.u32 %v315, 4294901760
        %v510 = vsub.f32 %v315, %v509
        %v511 = vand.u32 %v510, 4294901760
        %v512 = vsub.f32 %v510, %v511
        %v513 = vand.u32 %v512, 4294901760
        %514 = vmatpush1.msra.mxu0 %v513
        %v515 = vand.u32 %v313, 4294901760
        %v516 = vsub.f32 %v313, %v515
        %v517 = vand.u32 %v516, 4294901760
        %v518 = vsub.f32 %v516, %v517
        %v519 = vand.u32 %v518, 4294901760
        %520 = vmatprep.subr.mxu0 %v519
        %v521 = vand.u32 %v312, 4294901760
        %v522 = vsub.f32 %v312, %v521
        %v523 = vand.u32 %v522, 4294901760
        %v524 = vsub.f32 %v522, %v523
        %v525 = vand.u32 %v524, 4294901760
        %526 = vmatpush1.msra.mxu0 %v525
        %v527 = vand.u32 %v310, 4294901760
        %v528 = vsub.f32 %v310, %v527
        %v529 = vand.u32 %v528, 4294901760
        %v530 = vsub.f32 %v528, %v529
        %v531 = vand.u32 %v530, 4294901760
        %532 = vmatprep.subr.mxu0 %v531
        %v533 = vand.u32 %v309, 4294901760
        %v534 = vsub.f32 %v309, %v533
        %v535 = vand.u32 %v534, 4294901760
        %v536 = vsub.f32 %v534, %v535
        %v537 = vand.u32 %v536, 4294901760
        %538 = vmatpush1.msra.mxu0 %v537
        %v539 = vand.u32 %v307, 4294901760
        %v540 = vsub.f32 %v307, %v539
        %v541 = vand.u32 %v540, 4294901760
        %v542 = vsub.f32 %v540, %v541
        %v543 = vand.u32 %v542, 4294901760
        %544 = vmatprep.subr.mxu0 %v543
        %v545 = vand.u32 %v306, 4294901760
        %v546 = vsub.f32 %v306, %v545
        %v547 = vand.u32 %v546, 4294901760
        %v548 = vsub.f32 %v546, %v547
        %v549 = vand.u32 %v548, 4294901760
        %550 = vmatpush1.msra.mxu0 %v549
        %v551 = vand.u32 %v304, 4294901760
        %v552 = vsub.f32 %v304, %v551
        %v553 = vand.u32 %v552, 4294901760
        %v554 = vsub.f32 %v552, %v553
        %v555 = vand.u32 %v554, 4294901760
        %556 = vmatprep.subr.mxu0 %v555
        %v557 = vand.u32 %v303, 4294901760
        %v558 = vsub.f32 %v303, %v557
        %v559 = vand.u32 %v558, 4294901760
        %v560 = vsub.f32 %v558, %v559
        %v561 = vand.u32 %v560, 4294901760
        %562 = vmatpush1.msra.mxu0 %v561
        %v563 = vand.u32 %v301, 4294901760
        %v564 = vsub.f32 %v301, %v563
        %v565 = vand.u32 %v564, 4294901760
        %v566 = vsub.f32 %v564, %v565
        %v567 = vand.u32 %v566, 4294901760
        %568 = vmatprep.subr.mxu0 %v567
        %v569 = vand.u32 %v300, 4294901760
        %v570 = vsub.f32 %v300, %v569
        %v571 = vand.u32 %v570, 4294901760
        %v572 = vsub.f32 %v570, %v571
        %v573 = vand.u32 %v572, 4294901760
        %574 = vmatpush1.msra.mxu0 %v573
        %v575 = vand.u32 %v298, 4294901760
        %v576 = vsub.f32 %v298, %v575
        %v577 = vand.u32 %v576, 4294901760
        %v578 = vsub.f32 %v576, %v577
        %v579 = vand.u32 %v578, 4294901760
        %580 = vmatprep.subr.mxu0 %v579
        %v581 = vand.u32 %v297, 4294901760
        %v582 = vsub.f32 %v297, %v581
        %v583 = vand.u32 %v582, 4294901760
        %v584 = vsub.f32 %v582, %v583
        %v585 = vand.u32 %v584, 4294901760
        %586 = vmatpush1.msra.mxu0 %v585
        %v587 = vand.u32 %v295, 4294901760
        %v588 = vsub.f32 %v295, %v587
        %v589 = vand.u32 %v588, 4294901760
        %v590 = vsub.f32 %v588, %v589
        %v591 = vand.u32 %v590, 4294901760
        %592 = vmatprep.subr.mxu0 %v591
        %v593 = vand.u32 %v294, 4294901760
        %v594 = vsub.f32 %v294, %v593
        %v595 = vand.u32 %v594, 4294901760
        %v596 = vsub.f32 %v594, %v595
        %v597 = vand.u32 %v596, 4294901760
        %598 = vmatpush1.msra.mxu0 %v597
        %v599 = vand.u32 %v292, 4294901760
        %v600 = vsub.f32 %v292, %v599
        %v601 = vand.u32 %v600, 4294901760
        %v602 = vsub.f32 %v600, %v601
        %v603 = vand.u32 %v602, 4294901760
        %604 = vmatprep.subr.mxu0 %v603
        %v605 = vand.u32 %v291, 4294901760
        %v606 = vsub.f32 %v291, %v605
        %v607 = vand.u32 %v606, 4294901760
        %v608 = vsub.f32 %v606, %v607
        %v609 = vand.u32 %v608, 4294901760
        %610 = vmatpush1.msra.mxu0 %v609
        %v611 = vand.u32 %v289, 4294901760
        %v612 = vsub.f32 %v289, %v611
        %v613 = vand.u32 %v612, 4294901760
        %v614 = vsub.f32 %v612, %v613
        %v615 = vand.u32 %v614, 4294901760
        %616 = vmatprep.subr.mxu0 %v615
        %v617 = vand.u32 %v288, 4294901760
        %v618 = vsub.f32 %v288, %v617
        %v619 = vand.u32 %v618, 4294901760
        %v620 = vsub.f32 %v618, %v619
        %v621 = vand.u32 %v620, 4294901760
        %622 = vmatpush1.msra.mxu0 %v621
        %v623 = vand.u32 %v286, 4294901760
        %v624 = vsub.f32 %v286, %v623
        %v625 = vand.u32 %v624, 4294901760
        %v626 = vsub.f32 %v624, %v625
        %v627 = vand.u32 %v626, 4294901760
        %628 = vmatprep.subr.mxu0 %v627
        %v629 = vand.u32 %v285, 4294901760
        %v630 = vsub.f32 %v285, %v629
        %v631 = vand.u32 %v630, 4294901760
        %v632 = vsub.f32 %v630, %v631
        %v633 = vand.u32 %v632, 4294901760
        %634 = vmatpush1.msra.mxu0 %v633
        %v635 = vand.u32 %v283, 4294901760
        %v636 = vsub.f32 %v283, %v635
        %v637 = vand.u32 %v636, 4294901760
        %v638 = vsub.f32 %v636, %v637
        %v639 = vand.u32 %v638, 4294901760
        %640 = vmatprep.subr.mxu0 %v639
        %v641 = vand.u32 %v282, 4294901760
        %v642 = vsub.f32 %v282, %v641
        %v643 = vand.u32 %v642, 4294901760
        %v644 = vsub.f32 %v642, %v643
        %v645 = vand.u32 %v644, 4294901760
        %646 = vmatpush1.msra.mxu0 %v645
        %647 = vmatprep.subr.mxu0 0.0
        %648 = vmatpush2.msra.mxu0 0.0
        %649 = vmatprep.subr.mxu0 0.0
        %650 = vmatpush2.msra.mxu0 0.0
        %651 = vmatprep.subr.mxu0 0.0
        %652 = vmatpush2.msra.mxu0 0.0
        %653 = vmatprep.subr.mxu0 0.0
        %654 = vmatpush2.msra.mxu0 0.0
        %655 = vmatprep.subr.mxu0 0.0
        %656 = vmatpush2.msra.mxu0 0.0
        %657 = vmatprep.subr.mxu0 0.0
        %658 = vmatpush2.msra.mxu0 0.0
        %659 = vmatprep.subr.mxu0 0.0
        %660 = vmatpush2.msra.mxu0 0.0
        %661 = vmatprep.subr.mxu0 0.0
        %662 = vmatpush2.msra.mxu0 0.0
        %663 = vmatprep.subr.mxu0 0.0
        %664 = vmatpush2.msra.mxu0 0.0
        %665 = vmatprep.subr.mxu0 0.0
        %666 = vmatpush2.msra.mxu0 0.0
        %667 = vmatprep.subr.mxu0 0.0
        %668 = vmatpush2.msra.mxu0 0.0
        %669 = vmatprep.subr.mxu0 0.0
        %670 = vmatpush2.msra.mxu0 0.0
        %671 = vmatprep.subr.mxu0 0.0
        %672 = vmatpush2.msra.mxu0 0.0
        %673 = vmatprep.subr.mxu0 0.0
        %674 = vmatpush2.msra.mxu0 0.0
        %675 = vmatprep.subr.mxu0 0.0
        %676 = vmatpush2.msra.mxu0 0.0
        %677 = vmatprep.subr.mxu0 0.0
        %678 = vmatpush2.msra.mxu0 0.0
        %679 = vmatprep.mubr.f32.mxu0 0.0
        %v680 = vand.u32 %v281, 4294901760
        %681 = vmatmul.mubr.f32.gmra.mxu0 %v680
        %v682 = vpop.f32.mrf.mxu0
        %v683 = vadd.f32 %v451, %v682
        %v684 = vpop.f32.mrf.mxu0
        %v685 = vadd.f32 %v453, %v684
        %686 = vdwg.mxu0
        %v687 = vand.u32 %v328, 4294901760
        %v688 = vsub.f32 %v328, %v687
        %689 = vmatprep.subr.mxu0 %v688
        %v690 = vand.u32 %v327, 4294901760
        %v691 = vsub.f32 %v327, %v690
        %692 = vmatpush1.msra.mxu0 %v691
        %v693 = vand.u32 %v325, 4294901760
        %v694 = vsub.f32 %v325, %v693
        %695 = vmatprep.subr.mxu0 %v694
        %v696 = vand.u32 %v324, 4294901760
        %v697 = vsub.f32 %v324, %v696
        %698 = vmatpush1.msra.mxu0 %v697
        %v699 = vand.u32 %v322, 4294901760
        %v700 = vsub.f32 %v322, %v699
        %701 = vmatprep.subr.mxu0 %v700
        %v702 = vand.u32 %v321, 4294901760
        %v703 = vsub.f32 %v321, %v702
        %704 = vmatpush1.msra.mxu0 %v703
        %v705 = vand.u32 %v319, 4294901760
        %v706 = vsub.f32 %v319, %v705
        %707 = vmatprep.subr.mxu0 %v706
        %v708 = vand.u32 %v318, 4294901760
        %v709 = vsub.f32 %v318, %v708
        %710 = vmatpush1.msra.mxu0 %v709
        %v711 = vand.u32 %v316, 4294901760
        %v712 = vsub.f32 %v316, %v711
        %713 = vmatprep.subr.mxu0 %v712
        %v714 = vand.u32 %v315, 4294901760
        %v715 = vsub.f32 %v315, %v714
        %716 = vmatpush1.msra.mxu0 %v715
        %v717 = vand.u32 %v313, 4294901760
        %v718 = vsub.f32 %v313, %v717
        %719 = vmatprep.subr.mxu0 %v718
        %v720 = vand.u32 %v312, 4294901760
        %v721 = vsub.f32 %v312, %v720
        %722 = vmatpush1.msra.mxu0 %v721
        %v723 = vand.u32 %v310, 4294901760
        %v724 = vsub.f32 %v310, %v723
        %725 = vmatprep.subr.mxu0 %v724
        %v726 = vand.u32 %v309, 4294901760
        %v727 = vsub.f32 %v309, %v726
        %728 = vmatpush1.msra.mxu0 %v727
        %v729 = vand.u32 %v307, 4294901760
        %v730 = vsub.f32 %v307, %v729
        %731 = vmatprep.subr.mxu0 %v730
        %v732 = vand.u32 %v306, 4294901760
        %v733 = vsub.f32 %v306, %v732
        %734 = vmatpush1.msra.mxu0 %v733
        %v735 = vand.u32 %v304, 4294901760
        %v736 = vsub.f32 %v304, %v735
        %737 = vmatprep.subr.mxu0 %v736
        %v738 = vand.u32 %v303, 4294901760
        %v739 = vsub.f32 %v303, %v738
        %740 = vmatpush1.msra.mxu0 %v739
        %v741 = vand.u32 %v301, 4294901760
        %v742 = vsub.f32 %v301, %v741
        %743 = vmatprep.subr.mxu0 %v742
        %v744 = vand.u32 %v300, 4294901760
        %v745 = vsub.f32 %v300, %v744
        %746 = vmatpush1.msra.mxu0 %v745
        %v747 = vand.u32 %v298, 4294901760
        %v748 = vsub.f32 %v298, %v747
        %749 = vmatprep.subr.mxu0 %v748
        %v750 = vand.u32 %v297, 4294901760
        %v751 = vsub.f32 %v297, %v750
        %752 = vmatpush1.msra.mxu0 %v751
        %v753 = vand.u32 %v295, 4294901760
        %v754 = vsub.f32 %v295, %v753
        %755 = vmatprep.subr.mxu0 %v754
        %v756 = vand.u32 %v294, 4294901760
        %v757 = vsub.f32 %v294, %v756
        %758 = vmatpush1.msra.mxu0 %v757
        %v759 = vand.u32 %v292, 4294901760
        %v760 = vsub.f32 %v292, %v759
        %761 = vmatprep.subr.mxu0 %v760
        %v762 = vand.u32 %v291, 4294901760
        %v763 = vsub.f32 %v291, %v762
        %764 = vmatpush1.msra.mxu0 %v763
        %v765 = vand.u32 %v289, 4294901760
        %v766 = vsub.f32 %v289, %v765
        %767 = vmatprep.subr.mxu0 %v766
        %v768 = vand.u32 %v288, 4294901760
        %v769 = vsub.f32 %v288, %v768
        %770 = vmatpush1.msra.mxu0 %v769
        %v771 = vand.u32 %v286, 4294901760
        %v772 = vsub.f32 %v286, %v771
        %773 = vmatprep.subr.mxu0 %v772
        %v774 = vand.u32 %v285, 4294901760
        %v775 = vsub.f32 %v285, %v774
        %776 = vmatpush1.msra.mxu0 %v775
        %v777 = vand.u32 %v283, 4294901760
        %v778 = vsub.f32 %v283, %v777
        %779 = vmatprep.subr.mxu0 %v778
        %v780 = vand.u32 %v282, 4294901760
        %v781 = vsub.f32 %v282, %v780
        %782 = vmatpush1.msra.mxu0 %v781
        %783 = vmatprep.subr.mxu0 0.0
        %784 = vmatpush2.msra.mxu0 0.0
        %785 = vmatprep.subr.mxu0 0.0
        %786 = vmatpush2.msra.mxu0 0.0
        %787 = vmatprep.subr.mxu0 0.0
        %788 = vmatpush2.msra.mxu0 0.0
        %789 = vmatprep.subr.mxu0 0.0
        %790 = vmatpush2.msra.mxu0 0.0
        %791 = vmatprep.subr.mxu0 0.0
        %792 = vmatpush2.msra.mxu0 0.0
        %793 = vmatprep.subr.mxu0 0.0
        %794 = vmatpush2.msra.mxu0 0.0
        %795 = vmatprep.subr.mxu0 0.0
        %796 = vmatpush2.msra.mxu0 0.0
        %797 = vmatprep.subr.mxu0 0.0
        %798 = vmatpush2.msra.mxu0 0.0
        %799 = vmatprep.subr.mxu0 0.0
        %800 = vmatpush2.msra.mxu0 0.0
        %801 = vmatprep.subr.mxu0 0.0
        %802 = vmatpush2.msra.mxu0 0.0
        %803 = vmatprep.subr.mxu0 0.0
        %804 = vmatpush2.msra.mxu0 0.0
        %805 = vmatprep.subr.mxu0 0.0
        %806 = vmatpush2.msra.mxu0 0.0
        %807 = vmatprep.subr.mxu0 0.0
        %808 = vmatpush2.msra.mxu0 0.0
        %809 = vmatprep.subr.mxu0 0.0
        %810 = vmatpush2.msra.mxu0 0.0
        %811 = vmatprep.subr.mxu0 0.0
        %812 = vmatpush2.msra.mxu0 0.0
        %813 = vmatprep.subr.mxu0 0.0
        %814 = vmatpush2.msra.mxu0 0.0
        %815 = vmatprep.mubr.f32.mxu0 0.0
        %v816 = vand.u32 %v281, 4294901760
        %v817 = vsub.f32 %v281, %v816
        %818 = vmatmul.mubr.f32.gmra.mxu0 %v817
        %v819 = vpop.f32.mrf.mxu0
        %v820 = vadd.f32 %v683, %v819
        %v821 = vpop.f32.mrf.mxu0
        %v822 = vadd.f32 %v685, %v821
        %823 = vdwg.mxu0
        %v824 = vand.u32 %v328, 4294901760
        %825 = vmatprep.subr.mxu0 %v824
        %v826 = vand.u32 %v327, 4294901760
        %827 = vmatpush1.msra.mxu0 %v826
        %v828 = vand.u32 %v325, 4294901760
        %829 = vmatprep.subr.mxu0 %v828
        %v830 = vand.u32 %v324, 4294901760
        %831 = vmatpush1.msra.mxu0 %v830
        %v832 = vand.u32 %v322, 4294901760
        %833 = vmatprep.subr.mxu0 %v832
        %v834 = vand.u32 %v321, 4294901760
        %835 = vmatpush1.msra.mxu0 %v834
        %v836 = vand.u32 %v319, 4294901760
        %837 = vmatprep.subr.mxu0 %v836
        %v838 = vand.u32 %v318, 4294901760
        %839 = vmatpush1.msra.mxu0 %v838
        %v840 = vand.u32 %v316, 4294901760
        %841 = vmatprep.subr.mxu0 %v840
        %v842 = vand.u32 %v315, 4294901760
        %843 = vmatpush1.msra.mxu0 %v842
        %v844 = vand.u32 %v313, 4294901760
        %845 = vmatprep.subr.mxu0 %v844
        %v846 = vand.u32 %v312, 4294901760
        %847 = vmatpush1.msra.mxu0 %v846
        %v848 = vand.u32 %v310, 4294901760
        %849 = vmatprep.subr.mxu0 %v848
        %v850 = vand.u32 %v309, 4294901760
        %851 = vmatpush1.msra.mxu0 %v850
        %v852 = vand.u32 %v307, 4294901760
        %853 = vmatprep.subr.mxu0 %v852
        %v854 = vand.u32 %v306, 4294901760
        %855 = vmatpush1.msra.mxu0 %v854
        %v856 = vand.u32 %v304, 4294901760
        %857 = vmatprep.subr.mxu0 %v856
        %v858 = vand.u32 %v303, 4294901760
        %859 = vmatpush1.msra.mxu0 %v858
        %v860 = vand.u32 %v301, 4294901760
        %861 = vmatprep.subr.mxu0 %v860
        %v862 = vand.u32 %v300, 4294901760
        %863 = vmatpush1.msra.mxu0 %v862
        %v864 = vand.u32 %v298, 4294901760
        %865 = vmatprep.subr.mxu0 %v864
        %v866 = vand.u32 %v297, 4294901760
        %867 = vmatpush1.msra.mxu0 %v866
        %v868 = vand.u32 %v295, 4294901760
        %869 = vmatprep.subr.mxu0 %v868
        %v870 = vand.u32 %v294, 4294901760
        %871 = vmatpush1.msra.mxu0 %v870
        %v872 = vand.u32 %v292, 4294901760
        %873 = vmatprep.subr.mxu0 %v872
        %v874 = vand.u32 %v291, 4294901760
        %875 = vmatpush1.msra.mxu0 %v874
        %v876 = vand.u32 %v289, 4294901760
        %877 = vmatprep.subr.mxu0 %v876
        %v878 = vand.u32 %v288, 4294901760
        %879 = vmatpush1.msra.mxu0 %v878
        %v880 = vand.u32 %v286, 4294901760
        %881 = vmatprep.subr.mxu0 %v880
        %v882 = vand.u32 %v285, 4294901760
        %883 = vmatpush1.msra.mxu0 %v882
        %v884 = vand.u32 %v283, 4294901760
        %885 = vmatprep.subr.mxu0 %v884
        %v886 = vand.u32 %v282, 4294901760
        %887 = vmatpush1.msra.mxu0 %v886
        %888 = vmatprep.subr.mxu0 0.0
        %889 = vmatpush2.msra.mxu0 0.0
        %890 = vmatprep.subr.mxu0 0.0
        %891 = vmatpush2.msra.mxu0 0.0
        %892 = vmatprep.subr.mxu0 0.0
        %893 = vmatpush2.msra.mxu0 0.0
        %894 = vmatprep.subr.mxu0 0.0
        %895 = vmatpush2.msra.mxu0 0.0
        %896 = vmatprep.subr.mxu0 0.0
        %897 = vmatpush2.msra.mxu0 0.0
        %898 = vmatprep.subr.mxu0 0.0
        %899 = vmatpush2.msra.mxu0 0.0
        %900 = vmatprep.subr.mxu0 0.0
        %901 = vmatpush2.msra.mxu0 0.0
        %902 = vmatprep.subr.mxu0 0.0
        %903 = vmatpush2.msra.mxu0 0.0
        %904 = vmatprep.subr.mxu0 0.0
        %905 = vmatpush2.msra.mxu0 0.0
        %906 = vmatprep.subr.mxu0 0.0
        %907 = vmatpush2.msra.mxu0 0.0
        %908 = vmatprep.subr.mxu0 0.0
        %909 = vmatpush2.msra.mxu0 0.0
        %910 = vmatprep.subr.mxu0 0.0
        %911 = vmatpush2.msra.mxu0 0.0
        %912 = vmatprep.subr.mxu0 0.0
        %913 = vmatpush2.msra.mxu0 0.0
        %914 = vmatprep.subr.mxu0 0.0
        %915 = vmatpush2.msra.mxu0 0.0
        %916 = vmatprep.subr.mxu0 0.0
        %917 = vmatpush2.msra.mxu0 0.0
        %918 = vmatprep.subr.mxu0 0.0
        %919 = vmatpush2.msra.mxu0 0.0
        %920 = vmatprep.mubr.f32.mxu0 0.0
        %v921 = vand.u32 %v281, 4294901760
        %v922 = vsub.f32 %v281, %v921
        %v923 = vand.u32 %v922, 4294901760
        %924 = vmatmul.mubr.f32.gmra.mxu0 %v923
        %v925 = vpop.f32.mrf.mxu0
        %v926 = vadd.f32 %v820, %v925
        %v927 = vpop.f32.mrf.mxu0
        %v928 = vadd.f32 %v822, %v927
        %929 = vdwg.mxu0
        %v930 = vand.u32 %v328, 4294901760
        %v931 = vsub.f32 %v328, %v930
        %v932 = vand.u32 %v931, 4294901760
        %933 = vmatprep.subr.mxu0 %v932
        %v934 = vand.u32 %v327, 4294901760
        %v935 = vsub.f32 %v327, %v934
        %v936 = vand.u32 %v935, 4294901760
        %937 = vmatpush1.msra.mxu0 %v936
        %v938 = vand.u32 %v325, 4294901760
        %v939 = vsub.f32 %v325, %v938
        %v940 = vand.u32 %v939, 4294901760
        %941 = vmatprep.subr.mxu0 %v940
        %v942 = vand.u32 %v324, 4294901760
        %v943 = vsub.f32 %v324, %v942
        %v944 = vand.u32 %v943, 4294901760
        %945 = vmatpush1.msra.mxu0 %v944
        %v946 = vand.u32 %v322, 4294901760
        %v947 = vsub.f32 %v322, %v946
        %v948 = vand.u32 %v947, 4294901760
        %949 = vmatprep.subr.mxu0 %v948
        %v950 = vand.u32 %v321, 4294901760
        %v951 = vsub.f32 %v321, %v950
        %v952 = vand.u32 %v951, 4294901760
        %953 = vmatpush1.msra.mxu0 %v952
        %v954 = vand.u32 %v319, 4294901760
        %v955 = vsub.f32 %v319, %v954
        %v956 = vand.u32 %v955, 4294901760
        %957 = vmatprep.subr.mxu0 %v956
        %v958 = vand.u32 %v318, 4294901760
        %v959 = vsub.f32 %v318, %v958
        %v960 = vand.u32 %v959, 4294901760
        %961 = vmatpush1.msra.mxu0 %v960
        %v962 = vand.u32 %v316, 4294901760
        %v963 = vsub.f32 %v316, %v962
        %v964 = vand.u32 %v963, 4294901760
        %965 = vmatprep.subr.mxu0 %v964
        %v966 = vand.u32 %v315, 4294901760
        %v967 = vsub.f32 %v315, %v966
        %v968 = vand.u32 %v967, 4294901760
        %969 = vmatpush1.msra.mxu0 %v968
        %v970 = vand.u32 %v313, 4294901760
        %v971 = vsub.f32 %v313, %v970
        %v972 = vand.u32 %v971, 4294901760
        %973 = vmatprep.subr.mxu0 %v972
        %v974 = vand.u32 %v312, 4294901760
        %v975 = vsub.f32 %v312, %v974
        %v976 = vand.u32 %v975, 4294901760
        %977 = vmatpush1.msra.mxu0 %v976
        %v978 = vand.u32 %v310, 4294901760
        %v979 = vsub.f32 %v310, %v978
        %v980 = vand.u32 %v979, 4294901760
        %981 = vmatprep.subr.mxu0 %v980
        %v982 = vand.u32 %v309, 4294901760
        %v983 = vsub.f32 %v309, %v982
        %v984 = vand.u32 %v983, 4294901760
        %985 = vmatpush1.msra.mxu0 %v984
        %v986 = vand.u32 %v307, 4294901760
        %v987 = vsub.f32 %v307, %v986
        %v988 = vand.u32 %v987, 4294901760
        %989 = vmatprep.subr.mxu0 %v988
        %v990 = vand.u32 %v306, 4294901760
        %v991 = vsub.f32 %v306, %v990
        %v992 = vand.u32 %v991, 4294901760
        %993 = vmatpush1.msra.mxu0 %v992
        %v994 = vand.u32 %v304, 4294901760
        %v995 = vsub.f32 %v304, %v994
        %v996 = vand.u32 %v995, 4294901760
        %997 = vmatprep.subr.mxu0 %v996
        %v998 = vand.u32 %v303, 4294901760
        %v999 = vsub.f32 %v303, %v998
        %v1000 = vand.u32 %v999, 4294901760
        %1001 = vmatpush1.msra.mxu0 %v1000
        %v1002 = vand.u32 %v301, 4294901760
        %v1003 = vsub.f32 %v301, %v1002
        %v1004 = vand.u32 %v1003, 4294901760
        %1005 = vmatprep.subr.mxu0 %v1004
        %v1006 = vand.u32 %v300, 4294901760
        %v1007 = vsub.f32 %v300, %v1006
        %v1008 = vand.u32 %v1007, 4294901760
        %1009 = vmatpush1.msra.mxu0 %v1008
        %v1010 = vand.u32 %v298, 4294901760
        %v1011 = vsub.f32 %v298, %v1010
        %v1012 = vand.u32 %v1011, 4294901760
        %1013 = vmatprep.subr.mxu0 %v1012
        %v1014 = vand.u32 %v297, 4294901760
        %v1015 = vsub.f32 %v297, %v1014
        %v1016 = vand.u32 %v1015, 4294901760
        %1017 = vmatpush1.msra.mxu0 %v1016
        %v1018 = vand.u32 %v295, 4294901760
        %v1019 = vsub.f32 %v295, %v1018
        %v1020 = vand.u32 %v1019, 4294901760
        %1021 = vmatprep.subr.mxu0 %v1020
        %v1022 = vand.u32 %v294, 4294901760
        %v1023 = vsub.f32 %v294, %v1022
        %v1024 = vand.u32 %v1023, 4294901760
        %1025 = vmatpush1.msra.mxu0 %v1024
        %v1026 = vand.u32 %v292, 4294901760
        %v1027 = vsub.f32 %v292, %v1026
        %v1028 = vand.u32 %v1027, 4294901760
        %1029 = vmatprep.subr.mxu0 %v1028
        %v1030 = vand.u32 %v291, 4294901760
        %v1031 = vsub.f32 %v291, %v1030
        %v1032 = vand.u32 %v1031, 4294901760
        %1033 = vmatpush1.msra.mxu0 %v1032
        %v1034 = vand.u32 %v289, 4294901760
        %v1035 = vsub.f32 %v289, %v1034
        %v1036 = vand.u32 %v1035, 4294901760
        %1037 = vmatprep.subr.mxu0 %v1036
        %v1038 = vand.u32 %v288, 4294901760
        %v1039 = vsub.f32 %v288, %v1038
        %v1040 = vand.u32 %v1039, 4294901760
        %1041 = vmatpush1.msra.mxu0 %v1040
        %v1042 = vand.u32 %v286, 4294901760
        %v1043 = vsub.f32 %v286, %v1042
        %v1044 = vand.u32 %v1043, 4294901760
        %1045 = vmatprep.subr.mxu0 %v1044
        %v1046 = vand.u32 %v285, 4294901760
        %v1047 = vsub.f32 %v285, %v1046
        %v1048 = vand.u32 %v1047, 4294901760
        %1049 = vmatpush1.msra.mxu0 %v1048
        %v1050 = vand.u32 %v283, 4294901760
        %v1051 = vsub.f32 %v283, %v1050
        %v1052 = vand.u32 %v1051, 4294901760
        %1053 = vmatprep.subr.mxu0 %v1052
        %v1054 = vand.u32 %v282, 4294901760
        %v1055 = vsub.f32 %v282, %v1054
        %v1056 = vand.u32 %v1055, 4294901760
        %1057 = vmatpush1.msra.mxu0 %v1056
        %1058 = vmatprep.subr.mxu0 0.0
        %1059 = vmatpush2.msra.mxu0 0.0
        %1060 = vmatprep.subr.mxu0 0.0
        %1061 = vmatpush2.msra.mxu0 0.0
        %1062 = vmatprep.subr.mxu0 0.0
        %1063 = vmatpush2.msra.mxu0 0.0
        %1064 = vmatprep.subr.mxu0 0.0
        %1065 = vmatpush2.msra.mxu0 0.0
        %1066 = vmatprep.subr.mxu0 0.0
        %1067 = vmatpush2.msra.mxu0 0.0
        %1068 = vmatprep.subr.mxu0 0.0
        %1069 = vmatpush2.msra.mxu0 0.0
        %1070 = vmatprep.subr.mxu0 0.0
        %1071 = vmatpush2.msra.mxu0 0.0
        %1072 = vmatprep.subr.mxu0 0.0
        %1073 = vmatpush2.msra.mxu0 0.0
        %1074 = vmatprep.subr.mxu0 0.0
        %1075 = vmatpush2.msra.mxu0 0.0
        %1076 = vmatprep.subr.mxu0 0.0
        %1077 = vmatpush2.msra.mxu0 0.0
        %1078 = vmatprep.subr.mxu0 0.0
        %1079 = vmatpush2.msra.mxu0 0.0
        %1080 = vmatprep.subr.mxu0 0.0
        %1081 = vmatpush2.msra.mxu0 0.0
        %1082 = vmatprep.subr.mxu0 0.0
        %1083 = vmatpush2.msra.mxu0 0.0
        %1084 = vmatprep.subr.mxu0 0.0
        %1085 = vmatpush2.msra.mxu0 0.0
        %1086 = vmatprep.subr.mxu0 0.0
        %1087 = vmatpush2.msra.mxu0 0.0
        %1088 = vmatprep.subr.mxu0 0.0
        %1089 = vmatpush2.msra.mxu0 0.0
        %1090 = vmatprep.mubr.f32.mxu0 0.0
        %v1091 = vand.u32 %v281, 4294901760
        %1092 = vmatmul.mubr.f32.gmra.mxu0 %v1091
        %v1093 = vpop.f32.mrf.mxu0
        %v1094 = vadd.f32 %v926, %v1093
        %v1095 = vpop.f32.mrf.mxu0
        %v1096 = vadd.f32 %v928, %v1095
        %1097 = vdwg.mxu0
        %v1098 = vand.u32 %v328, 4294901760
        %1099 = vmatprep.subr.mxu0 %v1098
        %v1100 = vand.u32 %v327, 4294901760
        %1101 = vmatpush1.msra.mxu0 %v1100
        %v1102 = vand.u32 %v325, 4294901760
        %1103 = vmatprep.subr.mxu0 %v1102
        %v1104 = vand.u32 %v324, 4294901760
        %1105 = vmatpush1.msra.mxu0 %v1104
        %v1106 = vand.u32 %v322, 4294901760
        %1107 = vmatprep.subr.mxu0 %v1106
        %v1108 = vand.u32 %v321, 4294901760
        %1109 = vmatpush1.msra.mxu0 %v1108
        %v1110 = vand.u32 %v319, 4294901760
        %1111 = vmatprep.subr.mxu0 %v1110
        %v1112 = vand.u32 %v318, 4294901760
        %1113 = vmatpush1.msra.mxu0 %v1112
        %v1114 = vand.u32 %v316, 4294901760
        %1115 = vmatprep.subr.mxu0 %v1114
        %v1116 = vand.u32 %v315, 4294901760
        %1117 = vmatpush1.msra.mxu0 %v1116
        %v1118 = vand.u32 %v313, 4294901760
        %1119 = vmatprep.subr.mxu0 %v1118
        %v1120 = vand.u32 %v312, 4294901760
        %1121 = vmatpush1.msra.mxu0 %v1120
        %v1122 = vand.u32 %v310, 4294901760
        %1123 = vmatprep.subr.mxu0 %v1122
        %v1124 = vand.u32 %v309, 4294901760
        %1125 = vmatpush1.msra.mxu0 %v1124
        %v1126 = vand.u32 %v307, 4294901760
        %1127 = vmatprep.subr.mxu0 %v1126
        %v1128 = vand.u32 %v306, 4294901760
        %1129 = vmatpush1.msra.mxu0 %v1128
        %v1130 = vand.u32 %v304, 4294901760
        %1131 = vmatprep.subr.mxu0 %v1130
        %v1132 = vand.u32 %v303, 4294901760
        %1133 = vmatpush1.msra.mxu0 %v1132
        %v1134 = vand.u32 %v301, 4294901760
        %1135 = vmatprep.subr.mxu0 %v1134
        %v1136 = vand.u32 %v300, 4294901760
        %1137 = vmatpush1.msra.mxu0 %v1136
        %v1138 = vand.u32 %v298, 4294901760
        %1139 = vmatprep.subr.mxu0 %v1138
        %v1140 = vand.u32 %v297, 4294901760
        %1141 = vmatpush1.msra.mxu0 %v1140
        %v1142 = vand.u32 %v295, 4294901760
        %1143 = vmatprep.subr.mxu0 %v1142
        %v1144 = vand.u32 %v294, 4294901760
        %1145 = vmatpush1.msra.mxu0 %v1144
        %v1146 = vand.u32 %v292, 4294901760
        %1147 = vmatprep.subr.mxu0 %v1146
        %v1148 = vand.u32 %v291, 4294901760
        %1149 = vmatpush1.msra.mxu0 %v1148
        %v1150 = vand.u32 %v289, 4294901760
        %1151 = vmatprep.subr.mxu0 %v1150
        %v1152 = vand.u32 %v288, 4294901760
        %1153 = vmatpush1.msra.mxu0 %v1152
        %v1154 = vand.u32 %v286, 4294901760
        %1155 = vmatprep.subr.mxu0 %v1154
        %v1156 = vand.u32 %v285, 4294901760
        %1157 = vmatpush1.msra.mxu0 %v1156
        %v1158 = vand.u32 %v283, 4294901760
        %1159 = vmatprep.subr.mxu0 %v1158
        %v1160 = vand.u32 %v282, 4294901760
        %1161 = vmatpush1.msra.mxu0 %v1160
        %1162 = vmatprep.subr.mxu0 0.0
        %1163 = vmatpush2.msra.mxu0 0.0
        %1164 = vmatprep.subr.mxu0 0.0
        %1165 = vmatpush2.msra.mxu0 0.0
        %1166 = vmatprep.subr.mxu0 0.0
        %1167 = vmatpush2.msra.mxu0 0.0
        %1168 = vmatprep.subr.mxu0 0.0
        %1169 = vmatpush2.msra.mxu0 0.0
        %1170 = vmatprep.subr.mxu0 0.0
        %1171 = vmatpush2.msra.mxu0 0.0
        %1172 = vmatprep.subr.mxu0 0.0
        %1173 = vmatpush2.msra.mxu0 0.0
        %1174 = vmatprep.subr.mxu0 0.0
        %1175 = vmatpush2.msra.mxu0 0.0
        %1176 = vmatprep.subr.mxu0 0.0
        %1177 = vmatpush2.msra.mxu0 0.0
        %1178 = vmatprep.subr.mxu0 0.0
        %1179 = vmatpush2.msra.mxu0 0.0
        %1180 = vmatprep.subr.mxu0 0.0
        %1181 = vmatpush2.msra.mxu0 0.0
        %1182 = vmatprep.subr.mxu0 0.0
        %1183 = vmatpush2.msra.mxu0 0.0
        %1184 = vmatprep.subr.mxu0 0.0
        %1185 = vmatpush2.msra.mxu0 0.0
        %1186 = vmatprep.subr.mxu0 0.0
        %1187 = vmatpush2.msra.mxu0 0.0
        %1188 = vmatprep.subr.mxu0 0.0
        %1189 = vmatpush2.msra.mxu0 0.0
        %1190 = vmatprep.subr.mxu0 0.0
        %1191 = vmatpush2.msra.mxu0 0.0
        %1192 = vmatprep.subr.mxu0 0.0
        %1193 = vmatpush2.msra.mxu0 0.0
        %1194 = vmatprep.mubr.f32.mxu0 0.0
        %v1195 = vand.u32 %v281, 4294901760
        %1196 = vmatmul.mubr.f32.gmra.mxu0 %v1195
        %v1197 = vpop.f32.mrf.mxu0
        %v1198 = vadd.f32 %v1094, %v1197
        %v1199 = vpop.f32.mrf.mxu0
        %v1200 = vadd.f32 %v1096, %v1199
        %1201 = vdwg.mxu0
        %1202 = vmatprep.subr.mxu0 0.0
        %v1203 = vand.u32 %v329, 4294901760
        %1204 = vmatpush1.msra.mxu0 %v1203
        %1205 = vmatprep.subr.mxu0 0.0
        %v1206 = vand.u32 %v326, 4294901760
        %1207 = vmatpush1.msra.mxu0 %v1206
        %1208 = vmatprep.subr.mxu0 0.0
        %v1209 = vand.u32 %v323, 4294901760
        %1210 = vmatpush1.msra.mxu0 %v1209
        %1211 = vmatprep.subr.mxu0 0.0
        %v1212 = vand.u32 %v320, 4294901760
        %1213 = vmatpush1.msra.mxu0 %v1212
        %1214 = vmatprep.subr.mxu0 0.0
        %v1215 = vand.u32 %v317, 4294901760
        %1216 = vmatpush1.msra.mxu0 %v1215
        %1217 = vmatprep.subr.mxu0 0.0
        %v1218 = vand.u32 %v314, 4294901760
        %1219 = vmatpush1.msra.mxu0 %v1218
        %1220 = vmatprep.subr.mxu0 0.0
        %v1221 = vand.u32 %v311, 4294901760
        %1222 = vmatpush1.msra.mxu0 %v1221
        %1223 = vmatprep.subr.mxu0 0.0
        %v1224 = vand.u32 %v308, 4294901760
        %1225 = vmatpush1.msra.mxu0 %v1224
        %1226 = vmatprep.subr.mxu0 0.0
        %v1227 = vand.u32 %v305, 4294901760
        %1228 = vmatpush1.msra.mxu0 %v1227
        %1229 = vmatprep.subr.mxu0 0.0
        %v1230 = vand.u32 %v302, 4294901760
        %1231 = vmatpush1.msra.mxu0 %v1230
        %1232 = vmatprep.subr.mxu0 0.0
        %v1233 = vand.u32 %v299, 4294901760
        %1234 = vmatpush1.msra.mxu0 %v1233
        %1235 = vmatprep.subr.mxu0 0.0
        %v1236 = vand.u32 %v296, 4294901760
        %1237 = vmatpush1.msra.mxu0 %v1236
        %1238 = vmatprep.subr.mxu0 0.0
        %v1239 = vand.u32 %v293, 4294901760
        %1240 = vmatpush1.msra.mxu0 %v1239
        %1241 = vmatprep.subr.mxu0 0.0
        %v1242 = vand.u32 %v290, 4294901760
        %1243 = vmatpush1.msra.mxu0 %v1242
        %1244 = vmatprep.subr.mxu0 0.0
        %v1245 = vand.u32 %v287, 4294901760
        %1246 = vmatpush1.msra.mxu0 %v1245
        %1247 = vmatprep.subr.mxu0 0.0
        %v1248 = vand.u32 %v284, 4294901760
        %1249 = vmatpush1.msra.mxu0 %v1248
        %1250 = vmatprep.subr.mxu0 0.0
        %1251 = vmatpush2.msra.mxu0 0.0
        %1252 = vmatprep.subr.mxu0 0.0
        %1253 = vmatpush2.msra.mxu0 0.0
        %1254 = vmatprep.subr.mxu0 0.0
        %1255 = vmatpush2.msra.mxu0 0.0
        %1256 = vmatprep.subr.mxu0 0.0
        %1257 = vmatpush2.msra.mxu0 0.0
        %1258 = vmatprep.subr.mxu0 0.0
        %1259 = vmatpush2.msra.mxu0 0.0
        %1260 = vmatprep.subr.mxu0 0.0
        %1261 = vmatpush2.msra.mxu0 0.0
        %1262 = vmatprep.subr.mxu0 0.0
        %1263 = vmatpush2.msra.mxu0 0.0
        %1264 = vmatprep.subr.mxu0 0.0
        %1265 = vmatpush2.msra.mxu0 0.0
        %1266 = vmatprep.subr.mxu0 0.0
        %1267 = vmatpush2.msra.mxu0 0.0
        %1268 = vmatprep.subr.mxu0 0.0
        %1269 = vmatpush2.msra.mxu0 0.0
        %1270 = vmatprep.subr.mxu0 0.0
        %1271 = vmatpush2.msra.mxu0 0.0
        %1272 = vmatprep.subr.mxu0 0.0
        %1273 = vmatpush2.msra.mxu0 0.0
        %1274 = vmatprep.subr.mxu0 0.0
        %1275 = vmatpush2.msra.mxu0 0.0
        %1276 = vmatprep.subr.mxu0 0.0
        %1277 = vmatpush2.msra.mxu0 0.0
        %1278 = vmatprep.subr.mxu0 0.0
        %1279 = vmatpush2.msra.mxu0 0.0
        %1280 = vmatprep.subr.mxu0 0.0
        %1281 = vmatpush2.msra.mxu0 0.0
        %1282 = vmatprep.mubr.f32.mxu0 0.0
        %v1283 = vand.u32 %v281, 4294901760
        %v1284 = vsub.f32 %v281, %v1283
        %v1285 = vand.u32 %v1284, 4294901760
        %v1286 = vsub.f32 %v1284, %v1285
        %v1287 = vand.u32 %v1286, 4294901760
        %1288 = vmatmul.mubr.f32.gmra.mxu0 %v1287
        %v1289 = vpop.f32.mrf.mxu0
        %v1290 = vadd.f32 %v343, %v1289
        %v1291 = vpop.f32.mrf.mxu0
        %1292 = vdwg.mxu0
        %1293 = vmatprep.subr.mxu0 0.0
        %v1294 = vand.u32 %v329, 4294901760
        %v1295 = vsub.f32 %v329, %v1294
        %v1296 = vand.u32 %v1295, 4294901760
        %v1297 = vsub.f32 %v1295, %v1296
        %v1298 = vand.u32 %v1297, 4294901760
        %1299 = vmatpush1.msra.mxu0 %v1298
        %1300 = vmatprep.subr.mxu0 0.0
        %v1301 = vand.u32 %v326, 4294901760
        %v1302 = vsub.f32 %v326, %v1301
        %v1303 = vand.u32 %v1302, 4294901760
        %v1304 = vsub.f32 %v1302, %v1303
        %v1305 = vand.u32 %v1304, 4294901760
        %1306 = vmatpush1.msra.mxu0 %v1305
        %1307 = vmatprep.subr.mxu0 0.0
        %v1308 = vand.u32 %v323, 4294901760
        %v1309 = vsub.f32 %v323, %v1308
        %v1310 = vand.u32 %v1309, 4294901760
        %v1311 = vsub.f32 %v1309, %v1310
        %v1312 = vand.u32 %v1311, 4294901760
        %1313 = vmatpush1.msra.mxu0 %v1312
        %1314 = vmatprep.subr.mxu0 0.0
        %v1315 = vand.u32 %v320, 4294901760
        %v1316 = vsub.f32 %v320, %v1315
        %v1317 = vand.u32 %v1316, 4294901760
        %v1318 = vsub.f32 %v1316, %v1317
        %v1319 = vand.u32 %v1318, 4294901760
        %1320 = vmatpush1.msra.mxu0 %v1319
        %1321 = vmatprep.subr.mxu0 0.0
        %v1322 = vand.u32 %v317, 4294901760
        %v1323 = vsub.f32 %v317, %v1322
        %v1324 = vand.u32 %v1323, 4294901760
        %v1325 = vsub.f32 %v1323, %v1324
        %v1326 = vand.u32 %v1325, 4294901760
        %1327 = vmatpush1.msra.mxu0 %v1326
        %1328 = vmatprep.subr.mxu0 0.0
        %v1329 = vand.u32 %v314, 4294901760
        %v1330 = vsub.f32 %v314, %v1329
        %v1331 = vand.u32 %v1330, 4294901760
        %v1332 = vsub.f32 %v1330, %v1331
        %v1333 = vand.u32 %v1332, 4294901760
        %1334 = vmatpush1.msra.mxu0 %v1333
        %1335 = vmatprep.subr.mxu0 0.0
        %v1336 = vand.u32 %v311, 4294901760
        %v1337 = vsub.f32 %v311, %v1336
        %v1338 = vand.u32 %v1337, 4294901760
        %v1339 = vsub.f32 %v1337, %v1338
        %v1340 = vand.u32 %v1339, 4294901760
        %1341 = vmatpush1.msra.mxu0 %v1340
        %1342 = vmatprep.subr.mxu0 0.0
        %v1343 = vand.u32 %v308, 4294901760
        %v1344 = vsub.f32 %v308, %v1343
        %v1345 = vand.u32 %v1344, 4294901760
        %v1346 = vsub.f32 %v1344, %v1345
        %v1347 = vand.u32 %v1346, 4294901760
        %1348 = vmatpush1.msra.mxu0 %v1347
        %1349 = vmatprep.subr.mxu0 0.0
        %v1350 = vand.u32 %v305, 4294901760
        %v1351 = vsub.f32 %v305, %v1350
        %v1352 = vand.u32 %v1351, 4294901760
        %v1353 = vsub.f32 %v1351, %v1352
        %v1354 = vand.u32 %v1353, 4294901760
        %1355 = vmatpush1.msra.mxu0 %v1354
        %1356 = vmatprep.subr.mxu0 0.0
        %v1357 = vand.u32 %v302, 4294901760
        %v1358 = vsub.f32 %v302, %v1357
        %v1359 = vand.u32 %v1358, 4294901760
        %v1360 = vsub.f32 %v1358, %v1359
        %v1361 = vand.u32 %v1360, 4294901760
        %1362 = vmatpush1.msra.mxu0 %v1361
        %1363 = vmatprep.subr.mxu0 0.0
        %v1364 = vand.u32 %v299, 4294901760
        %v1365 = vsub.f32 %v299, %v1364
        %v1366 = vand.u32 %v1365, 4294901760
        %v1367 = vsub.f32 %v1365, %v1366
        %v1368 = vand.u32 %v1367, 4294901760
        %1369 = vmatpush1.msra.mxu0 %v1368
        %1370 = vmatprep.subr.mxu0 0.0
        %v1371 = vand.u32 %v296, 4294901760
        %v1372 = vsub.f32 %v296, %v1371
        %v1373 = vand.u32 %v1372, 4294901760
        %v1374 = vsub.f32 %v1372, %v1373
        %v1375 = vand.u32 %v1374, 4294901760
        %1376 = vmatpush1.msra.mxu0 %v1375
        %1377 = vmatprep.subr.mxu0 0.0
        %v1378 = vand.u32 %v293, 4294901760
        %v1379 = vsub.f32 %v293, %v1378
        %v1380 = vand.u32 %v1379, 4294901760
        %v1381 = vsub.f32 %v1379, %v1380
        %v1382 = vand.u32 %v1381, 4294901760
        %1383 = vmatpush1.msra.mxu0 %v1382
        %1384 = vmatprep.subr.mxu0 0.0
        %v1385 = vand.u32 %v290, 4294901760
        %v1386 = vsub.f32 %v290, %v1385
        %v1387 = vand.u32 %v1386, 4294901760
        %v1388 = vsub.f32 %v1386, %v1387
        %v1389 = vand.u32 %v1388, 4294901760
        %1390 = vmatpush1.msra.mxu0 %v1389
        %1391 = vmatprep.subr.mxu0 0.0
        %v1392 = vand.u32 %v287, 4294901760
        %v1393 = vsub.f32 %v287, %v1392
        %v1394 = vand.u32 %v1393, 4294901760
        %v1395 = vsub.f32 %v1393, %v1394
        %v1396 = vand.u32 %v1395, 4294901760
        %1397 = vmatpush1.msra.mxu0 %v1396
        %1398 = vmatprep.subr.mxu0 0.0
        %v1399 = vand.u32 %v284, 4294901760
        %v1400 = vsub.f32 %v284, %v1399
        %v1401 = vand.u32 %v1400, 4294901760
        %v1402 = vsub.f32 %v1400, %v1401
        %v1403 = vand.u32 %v1402, 4294901760
        %1404 = vmatpush1.msra.mxu0 %v1403
        %1405 = vmatprep.subr.mxu0 0.0
        %1406 = vmatpush2.msra.mxu0 0.0
        %1407 = vmatprep.subr.mxu0 0.0
        %1408 = vmatpush2.msra.mxu0 0.0
        %1409 = vmatprep.subr.mxu0 0.0
        %1410 = vmatpush2.msra.mxu0 0.0
        %1411 = vmatprep.subr.mxu0 0.0
        %1412 = vmatpush2.msra.mxu0 0.0
        %1413 = vmatprep.subr.mxu0 0.0
        %1414 = vmatpush2.msra.mxu0 0.0
        %1415 = vmatprep.subr.mxu0 0.0
        %1416 = vmatpush2.msra.mxu0 0.0
        %1417 = vmatprep.subr.mxu0 0.0
        %1418 = vmatpush2.msra.mxu0 0.0
        %1419 = vmatprep.subr.mxu0 0.0
        %1420 = vmatpush2.msra.mxu0 0.0
        %1421 = vmatprep.subr.mxu0 0.0
        %1422 = vmatpush2.msra.mxu0 0.0
        %1423 = vmatprep.subr.mxu0 0.0
        %1424 = vmatpush2.msra.mxu0 0.0
        %1425 = vmatprep.subr.mxu0 0.0
        %1426 = vmatpush2.msra.mxu0 0.0
        %1427 = vmatprep.subr.mxu0 0.0
        %1428 = vmatpush2.msra.mxu0 0.0
        %1429 = vmatprep.subr.mxu0 0.0
        %1430 = vmatpush2.msra.mxu0 0.0
        %1431 = vmatprep.subr.mxu0 0.0
        %1432 = vmatpush2.msra.mxu0 0.0
        %1433 = vmatprep.subr.mxu0 0.0
        %1434 = vmatpush2.msra.mxu0 0.0
        %1435 = vmatprep.subr.mxu0 0.0
        %1436 = vmatpush2.msra.mxu0 0.0
        %1437 = vmatprep.mubr.f32.mxu0 0.0
        %v1438 = vand.u32 %v281, 4294901760
        %1439 = vmatmul.mubr.f32.gmra.mxu0 %v1438
        %v1440 = vpop.f32.mrf.mxu0
        %v1441 = vadd.f32 %v1290, %v1440
        %v1442 = vpop.f32.mrf.mxu0
        %1443 = vdwg.mxu0
        %1444 = vmatprep.subr.mxu0 0.0
        %v1445 = vand.u32 %v329, 4294901760
        %v1446 = vsub.f32 %v329, %v1445
        %1447 = vmatpush1.msra.mxu0 %v1446
        %1448 = vmatprep.subr.mxu0 0.0
        %v1449 = vand.u32 %v326, 4294901760
        %v1450 = vsub.f32 %v326, %v1449
        %1451 = vmatpush1.msra.mxu0 %v1450
        %1452 = vmatprep.subr.mxu0 0.0
        %v1453 = vand.u32 %v323, 4294901760
        %v1454 = vsub.f32 %v323, %v1453
        %1455 = vmatpush1.msra.mxu0 %v1454
        %1456 = vmatprep.subr.mxu0 0.0
        %v1457 = vand.u32 %v320, 4294901760
        %v1458 = vsub.f32 %v320, %v1457
        %1459 = vmatpush1.msra.mxu0 %v1458
        %1460 = vmatprep.subr.mxu0 0.0
        %v1461 = vand.u32 %v317, 4294901760
        %v1462 = vsub.f32 %v317, %v1461
        %1463 = vmatpush1.msra.mxu0 %v1462
        %1464 = vmatprep.subr.mxu0 0.0
        %v1465 = vand.u32 %v314, 4294901760
        %v1466 = vsub.f32 %v314, %v1465
        %1467 = vmatpush1.msra.mxu0 %v1466
        %1468 = vmatprep.subr.mxu0 0.0
        %v1469 = vand.u32 %v311, 4294901760
        %v1470 = vsub.f32 %v311, %v1469
        %1471 = vmatpush1.msra.mxu0 %v1470
        %1472 = vmatprep.subr.mxu0 0.0
        %v1473 = vand.u32 %v308, 4294901760
        %v1474 = vsub.f32 %v308, %v1473
        %1475 = vmatpush1.msra.mxu0 %v1474
        %1476 = vmatprep.subr.mxu0 0.0
        %v1477 = vand.u32 %v305, 4294901760
        %v1478 = vsub.f32 %v305, %v1477
        %1479 = vmatpush1.msra.mxu0 %v1478
        %1480 = vmatprep.subr.mxu0 0.0
        %v1481 = vand.u32 %v302, 4294901760
        %v1482 = vsub.f32 %v302, %v1481
        %1483 = vmatpush1.msra.mxu0 %v1482
        %1484 = vmatprep.subr.mxu0 0.0
        %v1485 = vand.u32 %v299, 4294901760
        %v1486 = vsub.f32 %v299, %v1485
        %1487 = vmatpush1.msra.mxu0 %v1486
        %1488 = vmatprep.subr.mxu0 0.0
        %v1489 = vand.u32 %v296, 4294901760
        %v1490 = vsub.f32 %v296, %v1489
        %1491 = vmatpush1.msra.mxu0 %v1490
        %1492 = vmatprep.subr.mxu0 0.0
        %v1493 = vand.u32 %v293, 4294901760
        %v1494 = vsub.f32 %v293, %v1493
        %1495 = vmatpush1.msra.mxu0 %v1494
        %1496 = vmatprep.subr.mxu0 0.0
        %v1497 = vand.u32 %v290, 4294901760
        %v1498 = vsub.f32 %v290, %v1497
        %1499 = vmatpush1.msra.mxu0 %v1498
        %1500 = vmatprep.subr.mxu0 0.0
        %v1501 = vand.u32 %v287, 4294901760
        %v1502 = vsub.f32 %v287, %v1501
        %1503 = vmatpush1.msra.mxu0 %v1502
        %1504 = vmatprep.subr.mxu0 0.0
        %v1505 = vand.u32 %v284, 4294901760
        %v1506 = vsub.f32 %v284, %v1505
        %1507 = vmatpush1.msra.mxu0 %v1506
        %1508 = vmatprep.subr.mxu0 0.0
        %1509 = vmatpush2.msra.mxu0 0.0
        %1510 = vmatprep.subr.mxu0 0.0
        %1511 = vmatpush2.msra.mxu0 0.0
        %1512 = vmatprep.subr.mxu0 0.0
        %1513 = vmatpush2.msra.mxu0 0.0
        %1514 = vmatprep.subr.mxu0 0.0
        %1515 = vmatpush2.msra.mxu0 0.0
        %1516 = vmatprep.subr.mxu0 0.0
        %1517 = vmatpush2.msra.mxu0 0.0
        %1518 = vmatprep.subr.mxu0 0.0
        %1519 = vmatpush2.msra.mxu0 0.0
        %1520 = vmatprep.subr.mxu0 0.0
        %1521 = vmatpush2.msra.mxu0 0.0
        %1522 = vmatprep.subr.mxu0 0.0
        %1523 = vmatpush2.msra.mxu0 0.0
        %1524 = vmatprep.subr.mxu0 0.0
        %1525 = vmatpush2.msra.mxu0 0.0
        %1526 = vmatprep.subr.mxu0 0.0
        %1527 = vmatpush2.msra.mxu0 0.0
        %1528 = vmatprep.subr.mxu0 0.0
        %1529 = vmatpush2.msra.mxu0 0.0
        %1530 = vmatprep.subr.mxu0 0.0
        %1531 = vmatpush2.msra.mxu0 0.0
        %1532 = vmatprep.subr.mxu0 0.0
        %1533 = vmatpush2.msra.mxu0 0.0
        %1534 = vmatprep.subr.mxu0 0.0
        %1535 = vmatpush2.msra.mxu0 0.0
        %1536 = vmatprep.subr.mxu0 0.0
        %1537 = vmatpush2.msra.mxu0 0.0
        %1538 = vmatprep.subr.mxu0 0.0
        %1539 = vmatpush2.msra.mxu0 0.0
        %1540 = vmatprep.mubr.f32.mxu0 0.0
        %v1541 = vand.u32 %v281, 4294901760
        %v1542 = vsub.f32 %v281, %v1541
        %1543 = vmatmul.mubr.f32.gmra.mxu0 %v1542
        %v1544 = vpop.f32.mrf.mxu0
        %v1545 = vadd.f32 %v1441, %v1544
        %v1546 = vpop.f32.mrf.mxu0
        %1547 = vdwg.mxu0
        %1548 = vmatprep.subr.mxu0 0.0
        %v1549 = vand.u32 %v329, 4294901760
        %1550 = vmatpush1.msra.mxu0 %v1549
        %1551 = vmatprep.subr.mxu0 0.0
        %v1552 = vand.u32 %v326, 4294901760
        %1553 = vmatpush1.msra.mxu0 %v1552
        %1554 = vmatprep.subr.mxu0 0.0
        %v1555 = vand.u32 %v323, 4294901760
        %1556 = vmatpush1.msra.mxu0 %v1555
        %1557 = vmatprep.subr.mxu0 0.0
        %v1558 = vand.u32 %v320, 4294901760
        %1559 = vmatpush1.msra.mxu0 %v1558
        %1560 = vmatprep.subr.mxu0 0.0
        %v1561 = vand.u32 %v317, 4294901760
        %1562 = vmatpush1.msra.mxu0 %v1561
        %1563 = vmatprep.subr.mxu0 0.0
        %v1564 = vand.u32 %v314, 4294901760
        %1565 = vmatpush1.msra.mxu0 %v1564
        %1566 = vmatprep.subr.mxu0 0.0
        %v1567 = vand.u32 %v311, 4294901760
        %1568 = vmatpush1.msra.mxu0 %v1567
        %1569 = vmatprep.subr.mxu0 0.0
        %v1570 = vand.u32 %v308, 4294901760
        %1571 = vmatpush1.msra.mxu0 %v1570
        %1572 = vmatprep.subr.mxu0 0.0
        %v1573 = vand.u32 %v305, 4294901760
        %1574 = vmatpush1.msra.mxu0 %v1573
        %1575 = vmatprep.subr.mxu0 0.0
        %v1576 = vand.u32 %v302, 4294901760
        %1577 = vmatpush1.msra.mxu0 %v1576
        %1578 = vmatprep.subr.mxu0 0.0
        %v1579 = vand.u32 %v299, 4294901760
        %1580 = vmatpush1.msra.mxu0 %v1579
        %1581 = vmatprep.subr.mxu0 0.0
        %v1582 = vand.u32 %v296, 4294901760
        %1583 = vmatpush1.msra.mxu0 %v1582
        %1584 = vmatprep.subr.mxu0 0.0
        %v1585 = vand.u32 %v293, 4294901760
        %1586 = vmatpush1.msra.mxu0 %v1585
        %1587 = vmatprep.subr.mxu0 0.0
        %v1588 = vand.u32 %v290, 4294901760
        %1589 = vmatpush1.msra.mxu0 %v1588
        %1590 = vmatprep.subr.mxu0 0.0
        %v1591 = vand.u32 %v287, 4294901760
        %1592 = vmatpush1.msra.mxu0 %v1591
        %1593 = vmatprep.subr.mxu0 0.0
        %v1594 = vand.u32 %v284, 4294901760
        %1595 = vmatpush1.msra.mxu0 %v1594
        %1596 = vmatprep.subr.mxu0 0.0
        %1597 = vmatpush2.msra.mxu0 0.0
        %1598 = vmatprep.subr.mxu0 0.0
        %1599 = vmatpush2.msra.mxu0 0.0
        %1600 = vmatprep.subr.mxu0 0.0
        %1601 = vmatpush2.msra.mxu0 0.0
        %1602 = vmatprep.subr.mxu0 0.0
        %1603 = vmatpush2.msra.mxu0 0.0
        %1604 = vmatprep.subr.mxu0 0.0
        %1605 = vmatpush2.msra.mxu0 0.0
        %1606 = vmatprep.subr.mxu0 0.0
        %1607 = vmatpush2.msra.mxu0 0.0
        %1608 = vmatprep.subr.mxu0 0.0
        %1609 = vmatpush2.msra.mxu0 0.0
        %1610 = vmatprep.subr.mxu0 0.0
        %1611 = vmatpush2.msra.mxu0 0.0
        %1612 = vmatprep.subr.mxu0 0.0
        %1613 = vmatpush2.msra.mxu0 0.0
        %1614 = vmatprep.subr.mxu0 0.0
        %1615 = vmatpush2.msra.mxu0 0.0
        %1616 = vmatprep.subr.mxu0 0.0
        %1617 = vmatpush2.msra.mxu0 0.0
        %1618 = vmatprep.subr.mxu0 0.0
        %1619 = vmatpush2.msra.mxu0 0.0
        %1620 = vmatprep.subr.mxu0 0.0
        %1621 = vmatpush2.msra.mxu0 0.0
        %1622 = vmatprep.subr.mxu0 0.0
        %1623 = vmatpush2.msra.mxu0 0.0
        %1624 = vmatprep.subr.mxu0 0.0
        %1625 = vmatpush2.msra.mxu0 0.0
        %1626 = vmatprep.subr.mxu0 0.0
        %1627 = vmatpush2.msra.mxu0 0.0
        %1628 = vmatprep.mubr.f32.mxu0 0.0
        %v1629 = vand.u32 %v281, 4294901760
        %v1630 = vsub.f32 %v281, %v1629
        %v1631 = vand.u32 %v1630, 4294901760
        %1632 = vmatmul.mubr.f32.gmra.mxu0 %v1631
        %v1633 = vpop.f32.mrf.mxu0
        %v1634 = vadd.f32 %v1545, %v1633
        %v1635 = vpop.f32.mrf.mxu0
        %1636 = vdwg.mxu0
        %1637 = vmatprep.subr.mxu0 0.0
        %v1638 = vand.u32 %v329, 4294901760
        %v1639 = vsub.f32 %v329, %v1638
        %v1640 = vand.u32 %v1639, 4294901760
        %1641 = vmatpush1.msra.mxu0 %v1640
        %1642 = vmatprep.subr.mxu0 0.0
        %v1643 = vand.u32 %v326, 4294901760
        %v1644 = vsub.f32 %v326, %v1643
        %v1645 = vand.u32 %v1644, 4294901760
        %1646 = vmatpush1.msra.mxu0 %v1645
        %1647 = vmatprep.subr.mxu0 0.0
        %v1648 = vand.u32 %v323, 4294901760
        %v1649 = vsub.f32 %v323, %v1648
        %v1650 = vand.u32 %v1649, 4294901760
        %1651 = vmatpush1.msra.mxu0 %v1650
        %1652 = vmatprep.subr.mxu0 0.0
        %v1653 = vand.u32 %v320, 4294901760
        %v1654 = vsub.f32 %v320, %v1653
        %v1655 = vand.u32 %v1654, 4294901760
        %1656 = vmatpush1.msra.mxu0 %v1655
        %1657 = vmatprep.subr.mxu0 0.0
        %v1658 = vand.u32 %v317, 4294901760
        %v1659 = vsub.f32 %v317, %v1658
        %v1660 = vand.u32 %v1659, 4294901760
        %1661 = vmatpush1.msra.mxu0 %v1660
        %1662 = vmatprep.subr.mxu0 0.0
        %v1663 = vand.u32 %v314, 4294901760
        %v1664 = vsub.f32 %v314, %v1663
        %v1665 = vand.u32 %v1664, 4294901760
        %1666 = vmatpush1.msra.mxu0 %v1665
        %1667 = vmatprep.subr.mxu0 0.0
        %v1668 = vand.u32 %v311, 4294901760
        %v1669 = vsub.f32 %v311, %v1668
        %v1670 = vand.u32 %v1669, 4294901760
        %1671 = vmatpush1.msra.mxu0 %v1670
        %1672 = vmatprep.subr.mxu0 0.0
        %v1673 = vand.u32 %v308, 4294901760
        %v1674 = vsub.f32 %v308, %v1673
        %v1675 = vand.u32 %v1674, 4294901760
        %1676 = vmatpush1.msra.mxu0 %v1675
        %1677 = vmatprep.subr.mxu0 0.0
        %v1678 = vand.u32 %v305, 4294901760
        %v1679 = vsub.f32 %v305, %v1678
        %v1680 = vand.u32 %v1679, 4294901760
        %1681 = vmatpush1.msra.mxu0 %v1680
        %1682 = vmatprep.subr.mxu0 0.0
        %v1683 = vand.u32 %v302, 4294901760
        %v1684 = vsub.f32 %v302, %v1683
        %v1685 = vand.u32 %v1684, 4294901760
        %1686 = vmatpush1.msra.mxu0 %v1685
        %1687 = vmatprep.subr.mxu0 0.0
        %v1688 = vand.u32 %v299, 4294901760
        %v1689 = vsub.f32 %v299, %v1688
        %v1690 = vand.u32 %v1689, 4294901760
        %1691 = vmatpush1.msra.mxu0 %v1690
        %1692 = vmatprep.subr.mxu0 0.0
        %v1693 = vand.u32 %v296, 4294901760
        %v1694 = vsub.f32 %v296, %v1693
        %v1695 = vand.u32 %v1694, 4294901760
        %1696 = vmatpush1.msra.mxu0 %v1695
        %1697 = vmatprep.subr.mxu0 0.0
        %v1698 = vand.u32 %v293, 4294901760
        %v1699 = vsub.f32 %v293, %v1698
        %v1700 = vand.u32 %v1699, 4294901760
        %1701 = vmatpush1.msra.mxu0 %v1700
        %1702 = vmatprep.subr.mxu0 0.0
        %v1703 = vand.u32 %v290, 4294901760
        %v1704 = vsub.f32 %v290, %v1703
        %v1705 = vand.u32 %v1704, 4294901760
        %1706 = vmatpush1.msra.mxu0 %v1705
        %1707 = vmatprep.subr.mxu0 0.0
        %v1708 = vand.u32 %v287, 4294901760
        %v1709 = vsub.f32 %v287, %v1708
        %v1710 = vand.u32 %v1709, 4294901760
        %1711 = vmatpush1.msra.mxu0 %v1710
        %1712 = vmatprep.subr.mxu0 0.0
        %v1713 = vand.u32 %v284, 4294901760
        %v1714 = vsub.f32 %v284, %v1713
        %v1715 = vand.u32 %v1714, 4294901760
        %1716 = vmatpush1.msra.mxu0 %v1715
        %1717 = vmatprep.subr.mxu0 0.0
        %1718 = vmatpush2.msra.mxu0 0.0
        %1719 = vmatprep.subr.mxu0 0.0
        %1720 = vmatpush2.msra.mxu0 0.0
        %1721 = vmatprep.subr.mxu0 0.0
        %1722 = vmatpush2.msra.mxu0 0.0
        %1723 = vmatprep.subr.mxu0 0.0
        %1724 = vmatpush2.msra.mxu0 0.0
        %1725 = vmatprep.subr.mxu0 0.0
        %1726 = vmatpush2.msra.mxu0 0.0
        %1727 = vmatprep.subr.mxu0 0.0
        %1728 = vmatpush2.msra.mxu0 0.0
        %1729 = vmatprep.subr.mxu0 0.0
        %1730 = vmatpush2.msra.mxu0 0.0
        %1731 = vmatprep.subr.mxu0 0.0
        %1732 = vmatpush2.msra.mxu0 0.0
        %1733 = vmatprep.subr.mxu0 0.0
        %1734 = vmatpush2.msra.mxu0 0.0
        %1735 = vmatprep.subr.mxu0 0.0
        %1736 = vmatpush2.msra.mxu0 0.0
        %1737 = vmatprep.subr.mxu0 0.0
        %1738 = vmatpush2.msra.mxu0 0.0
        %1739 = vmatprep.subr.mxu0 0.0
        %1740 = vmatpush2.msra.mxu0 0.0
        %1741 = vmatprep.subr.mxu0 0.0
        %1742 = vmatpush2.msra.mxu0 0.0
        %1743 = vmatprep.subr.mxu0 0.0
        %1744 = vmatpush2.msra.mxu0 0.0
        %1745 = vmatprep.subr.mxu0 0.0
        %1746 = vmatpush2.msra.mxu0 0.0
        %1747 = vmatprep.subr.mxu0 0.0
        %1748 = vmatpush2.msra.mxu0 0.0
        %1749 = vmatprep.mubr.f32.mxu0 0.0
        %v1750 = vand.u32 %v281, 4294901760
        %1751 = vmatmul.mubr.f32.gmra.mxu0 %v1750
        %v1752 = vpop.f32.mrf.mxu0
        %v1753 = vadd.f32 %v1634, %v1752
        %v1754 = vpop.f32.mrf.mxu0
        %1755 = vdwg.mxu0
        %1756 = vmatprep.subr.mxu0 0.0
        %v1757 = vand.u32 %v329, 4294901760
        %1758 = vmatpush1.msra.mxu0 %v1757
        %1759 = vmatprep.subr.mxu0 0.0
        %v1760 = vand.u32 %v326, 4294901760
        %1761 = vmatpush1.msra.mxu0 %v1760
        %1762 = vmatprep.subr.mxu0 0.0
        %v1763 = vand.u32 %v323, 4294901760
        %1764 = vmatpush1.msra.mxu0 %v1763
        %1765 = vmatprep.subr.mxu0 0.0
        %v1766 = vand.u32 %v320, 4294901760
        %1767 = vmatpush1.msra.mxu0 %v1766
        %1768 = vmatprep.subr.mxu0 0.0
        %v1769 = vand.u32 %v317, 4294901760
        %1770 = vmatpush1.msra.mxu0 %v1769
        %1771 = vmatprep.subr.mxu0 0.0
        %v1772 = vand.u32 %v314, 4294901760
        %1773 = vmatpush1.msra.mxu0 %v1772
        %1774 = vmatprep.subr.mxu0 0.0
        %v1775 = vand.u32 %v311, 4294901760
        %1776 = vmatpush1.msra.mxu0 %v1775
        %1777 = vmatprep.subr.mxu0 0.0
        %v1778 = vand.u32 %v308, 4294901760
        %1779 = vmatpush1.msra.mxu0 %v1778
        %1780 = vmatprep.subr.mxu0 0.0
        %v1781 = vand.u32 %v305, 4294901760
        %1782 = vmatpush1.msra.mxu0 %v1781
        %1783 = vmatprep.subr.mxu0 0.0
        %v1784 = vand.u32 %v302, 4294901760
        %1785 = vmatpush1.msra.mxu0 %v1784
        %1786 = vmatprep.subr.mxu0 0.0
        %v1787 = vand.u32 %v299, 4294901760
        %1788 = vmatpush1.msra.mxu0 %v1787
        %1789 = vmatprep.subr.mxu0 0.0
        %v1790 = vand.u32 %v296, 4294901760
        %1791 = vmatpush1.msra.mxu0 %v1790
        %1792 = vmatprep.subr.mxu0 0.0
        %v1793 = vand.u32 %v293, 4294901760
        %1794 = vmatpush1.msra.mxu0 %v1793
        %1795 = vmatprep.subr.mxu0 0.0
        %v1796 = vand.u32 %v290, 4294901760
        %1797 = vmatpush1.msra.mxu0 %v1796
        %1798 = vmatprep.subr.mxu0 0.0
        %v1799 = vand.u32 %v287, 4294901760
        %1800 = vmatpush1.msra.mxu0 %v1799
        %1801 = vmatprep.subr.mxu0 0.0
        %v1802 = vand.u32 %v284, 4294901760
        %1803 = vmatpush1.msra.mxu0 %v1802
        %1804 = vmatprep.subr.mxu0 0.0
        %1805 = vmatpush2.msra.mxu0 0.0
        %1806 = vmatprep.subr.mxu0 0.0
        %1807 = vmatpush2.msra.mxu0 0.0
        %1808 = vmatprep.subr.mxu0 0.0
        %1809 = vmatpush2.msra.mxu0 0.0
        %1810 = vmatprep.subr.mxu0 0.0
        %1811 = vmatpush2.msra.mxu0 0.0
        %1812 = vmatprep.subr.mxu0 0.0
        %1813 = vmatpush2.msra.mxu0 0.0
        %1814 = vmatprep.subr.mxu0 0.0
        %1815 = vmatpush2.msra.mxu0 0.0
        %1816 = vmatprep.subr.mxu0 0.0
        %1817 = vmatpush2.msra.mxu0 0.0
        %1818 = vmatprep.subr.mxu0 0.0
        %1819 = vmatpush2.msra.mxu0 0.0
        %1820 = vmatprep.subr.mxu0 0.0
        %1821 = vmatpush2.msra.mxu0 0.0
        %1822 = vmatprep.subr.mxu0 0.0
        %1823 = vmatpush2.msra.mxu0 0.0
        %1824 = vmatprep.subr.mxu0 0.0
        %1825 = vmatpush2.msra.mxu0 0.0
        %1826 = vmatprep.subr.mxu0 0.0
        %1827 = vmatpush2.msra.mxu0 0.0
        %1828 = vmatprep.subr.mxu0 0.0
        %1829 = vmatpush2.msra.mxu0 0.0
        %1830 = vmatprep.subr.mxu0 0.0
        %1831 = vmatpush2.msra.mxu0 0.0
        %1832 = vmatprep.subr.mxu0 0.0
        %1833 = vmatpush2.msra.mxu0 0.0
        %1834 = vmatprep.subr.mxu0 0.0
        %1835 = vmatpush2.msra.mxu0 0.0
        %1836 = vmatprep.mubr.f32.mxu0 0.0
        %v1837 = vand.u32 %v281, 4294901760
        %1838 = vmatmul.mubr.f32.gmra.mxu0 %v1837
        %v1839 = vpop.f32.mrf.mxu0
        %v1840 = vadd.f32 %v1753, %v1839
        %v1841 = vpop.f32.mrf.mxu0
        %1842 = vdwg.mxu0
        %v1843 = vmul.f32 %v1198, 0.17677669
        %vm1844 = vcmask 261120
        %v1846 = vsel %vm1844, %v1843, 0
        %v1849 = vsel %vm1844, %v1200, 0
        %1851 = vmatprep.subr.mxu0 0.0
        %1852 = vmatpush1.xpose.msra.mxu0 0.0
        %1853 = vmatprep.subr.mxu0 0.0
        %1854 = vmatpush1.xpose.msra.mxu0 0.0
        %1855 = vmatprep.subr.mxu0 0.0
        %1856 = vmatpush1.xpose.msra.mxu0 0.0
        %1857 = vmatprep.subr.mxu0 0.0
        %1858 = vmatpush1.xpose.msra.mxu0 0.0
        %1859 = vmatprep.subr.mxu0 0.0
        %1860 = vmatpush1.xpose.msra.mxu0 0.0
        %1861 = vmatprep.subr.mxu0 0.0
        %1862 = vmatpush1.xpose.msra.mxu0 0.0
        %1863 = vmatprep.subr.mxu0 0.0
        %1864 = vmatpush1.xpose.msra.mxu0 0.0
        %1865 = vmatprep.subr.mxu0 0.0
        %1866 = vmatpush1.xpose.msra.mxu0 0.0
        %1867 = vmatprep.subr.mxu0 0.0
        %1868 = vmatpush1.xpose.msra.mxu0 0.0
        %1869 = vmatprep.subr.mxu0 0.0
        %1870 = vmatpush1.xpose.msra.mxu0 0.0
        %1871 = vmatprep.subr.mxu0 0.0
        %1872 = vmatpush1.xpose.msra.mxu0 0.0
        %1873 = vmatprep.subr.mxu0 0.0
        %1874 = vmatpush1.xpose.msra.mxu0 0.0
        %1875 = vmatprep.subr.mxu0 0.0
        %1876 = vmatpush1.xpose.msra.mxu0 0.0
        %1877 = vmatprep.subr.mxu0 0.0
        %1878 = vmatpush1.xpose.msra.mxu0 0.0
        %1879 = vmatprep.subr.mxu0 0.0
        %1880 = vmatpush1.xpose.msra.mxu0 0.0
        %1881 = vmatprep.subr.mxu0 0.0
        %v1882 = vand.u32 %v1849, 4294901760
        %1883 = vmatpush1.xpose.msra.mxu0 %v1882
        %1884 = vmatprep.subr.mxu0 0.0
        %1885 = vmatpush2.xpose.msra.mxu0 0.0
        %1886 = vmatprep.subr.mxu0 0.0
        %1887 = vmatpush2.xpose.msra.mxu0 0.0
        %1888 = vmatprep.subr.mxu0 0.0
        %1889 = vmatpush2.xpose.msra.mxu0 0.0
        %1890 = vmatprep.subr.mxu0 0.0
        %1891 = vmatpush2.xpose.msra.mxu0 0.0
        %1892 = vmatprep.subr.mxu0 0.0
        %1893 = vmatpush2.xpose.msra.mxu0 0.0
        %1894 = vmatprep.subr.mxu0 0.0
        %1895 = vmatpush2.xpose.msra.mxu0 0.0
        %1896 = vmatprep.subr.mxu0 0.0
        %1897 = vmatpush2.xpose.msra.mxu0 0.0
        %1898 = vmatprep.subr.mxu0 0.0
        %1899 = vmatpush2.xpose.msra.mxu0 0.0
        %1900 = vmatprep.subr.mxu0 0.0
        %1901 = vmatpush2.xpose.msra.mxu0 0.0
        %1902 = vmatprep.subr.mxu0 0.0
        %1903 = vmatpush2.xpose.msra.mxu0 0.0
        %1904 = vmatprep.subr.mxu0 0.0
        %1905 = vmatpush2.xpose.msra.mxu0 0.0
        %1906 = vmatprep.subr.mxu0 0.0
        %1907 = vmatpush2.xpose.msra.mxu0 0.0
        %1908 = vmatprep.subr.mxu0 0.0
        %1909 = vmatpush2.xpose.msra.mxu0 0.0
        %1910 = vmatprep.subr.mxu0 0.0
        %1911 = vmatpush2.xpose.msra.mxu0 0.0
        %1912 = vmatprep.subr.mxu0 0.0
        %1913 = vmatpush2.xpose.msra.mxu0 0.0
        %1914 = vmatprep.subr.mxu0 0.0
        %1915 = vmatpush2.xpose.msra.mxu0 0.0
        %1916 = vmatprep.mubr.f32.mxu0 0.0
        %v1917 = vand.u32 %v1846, 4294901760
        %v1918 = vsub.f32 %v1846, %v1917
        %v1919 = vand.u32 %v1918, 4294901760
        %v1920 = vsub.f32 %v1918, %v1919
        %v1921 = vand.u32 %v1920, 4294901760
        %1922 = vmatmul.mubr.f32.gmra.mxu0 %v1921
        %v1923 = vpop.f32.mrf.mxu0
        %v1924 = vadd.f32 0.0, %v1923
        %v1925 = vpop.f32.mrf.mxu0
        %1926 = vdwg.mxu0
        %1927 = vmatprep.subr.mxu0 0.0
        %1928 = vmatpush1.xpose.msra.mxu0 0.0
        %1929 = vmatprep.subr.mxu0 0.0
        %1930 = vmatpush1.xpose.msra.mxu0 0.0
        %1931 = vmatprep.subr.mxu0 0.0
        %1932 = vmatpush1.xpose.msra.mxu0 0.0
        %1933 = vmatprep.subr.mxu0 0.0
        %1934 = vmatpush1.xpose.msra.mxu0 0.0
        %1935 = vmatprep.subr.mxu0 0.0
        %1936 = vmatpush1.xpose.msra.mxu0 0.0
        %1937 = vmatprep.subr.mxu0 0.0
        %1938 = vmatpush1.xpose.msra.mxu0 0.0
        %1939 = vmatprep.subr.mxu0 0.0
        %1940 = vmatpush1.xpose.msra.mxu0 0.0
        %1941 = vmatprep.subr.mxu0 0.0
        %1942 = vmatpush1.xpose.msra.mxu0 0.0
        %1943 = vmatprep.subr.mxu0 0.0
        %1944 = vmatpush1.xpose.msra.mxu0 0.0
        %1945 = vmatprep.subr.mxu0 0.0
        %1946 = vmatpush1.xpose.msra.mxu0 0.0
        %1947 = vmatprep.subr.mxu0 0.0
        %1948 = vmatpush1.xpose.msra.mxu0 0.0
        %1949 = vmatprep.subr.mxu0 0.0
        %1950 = vmatpush1.xpose.msra.mxu0 0.0
        %1951 = vmatprep.subr.mxu0 0.0
        %1952 = vmatpush1.xpose.msra.mxu0 0.0
        %1953 = vmatprep.subr.mxu0 0.0
        %1954 = vmatpush1.xpose.msra.mxu0 0.0
        %1955 = vmatprep.subr.mxu0 0.0
        %1956 = vmatpush1.xpose.msra.mxu0 0.0
        %1957 = vmatprep.subr.mxu0 0.0
        %v1958 = vand.u32 %v1849, 4294901760
        %v1959 = vsub.f32 %v1849, %v1958
        %v1960 = vand.u32 %v1959, 4294901760
        %v1961 = vsub.f32 %v1959, %v1960
        %v1962 = vand.u32 %v1961, 4294901760
        %1963 = vmatpush1.xpose.msra.mxu0 %v1962
        %1964 = vmatprep.subr.mxu0 0.0
        %1965 = vmatpush2.xpose.msra.mxu0 0.0
        %1966 = vmatprep.subr.mxu0 0.0
        %1967 = vmatpush2.xpose.msra.mxu0 0.0
        %1968 = vmatprep.subr.mxu0 0.0
        %1969 = vmatpush2.xpose.msra.mxu0 0.0
        %1970 = vmatprep.subr.mxu0 0.0
        %1971 = vmatpush2.xpose.msra.mxu0 0.0
        %1972 = vmatprep.subr.mxu0 0.0
        %1973 = vmatpush2.xpose.msra.mxu0 0.0
        %1974 = vmatprep.subr.mxu0 0.0
        %1975 = vmatpush2.xpose.msra.mxu0 0.0
        %1976 = vmatprep.subr.mxu0 0.0
        %1977 = vmatpush2.xpose.msra.mxu0 0.0
        %1978 = vmatprep.subr.mxu0 0.0
        %1979 = vmatpush2.xpose.msra.mxu0 0.0
        %1980 = vmatprep.subr.mxu0 0.0
        %1981 = vmatpush2.xpose.msra.mxu0 0.0
        %1982 = vmatprep.subr.mxu0 0.0
        %1983 = vmatpush2.xpose.msra.mxu0 0.0
        %1984 = vmatprep.subr.mxu0 0.0
        %1985 = vmatpush2.xpose.msra.mxu0 0.0
        %1986 = vmatprep.subr.mxu0 0.0
        %1987 = vmatpush2.xpose.msra.mxu0 0.0
        %1988 = vmatprep.subr.mxu0 0.0
        %1989 = vmatpush2.xpose.msra.mxu0 0.0
        %1990 = vmatprep.subr.mxu0 0.0
        %1991 = vmatpush2.xpose.msra.mxu0 0.0
        %1992 = vmatprep.subr.mxu0 0.0
        %1993 = vmatpush2.xpose.msra.mxu0 0.0
        %1994 = vmatprep.subr.mxu0 0.0
        %1995 = vmatpush2.xpose.msra.mxu0 0.0
        %1996 = vmatprep.mubr.f32.mxu0 0.0
        %v1997 = vand.u32 %v1846, 4294901760
        %1998 = vmatmul.mubr.f32.gmra.mxu0 %v1997
        %v1999 = vpop.f32.mrf.mxu0
        %v2000 = vadd.f32 %v1924, %v1999
        %v2001 = vpop.f32.mrf.mxu0
        %2002 = vdwg.mxu0
        %2003 = vmatprep.subr.mxu0 0.0
        %2004 = vmatpush1.xpose.msra.mxu0 0.0
        %2005 = vmatprep.subr.mxu0 0.0
        %2006 = vmatpush1.xpose.msra.mxu0 0.0
        %2007 = vmatprep.subr.mxu0 0.0
        %2008 = vmatpush1.xpose.msra.mxu0 0.0
        %2009 = vmatprep.subr.mxu0 0.0
        %2010 = vmatpush1.xpose.msra.mxu0 0.0
        %2011 = vmatprep.subr.mxu0 0.0
        %2012 = vmatpush1.xpose.msra.mxu0 0.0
        %2013 = vmatprep.subr.mxu0 0.0
        %2014 = vmatpush1.xpose.msra.mxu0 0.0
        %2015 = vmatprep.subr.mxu0 0.0
        %2016 = vmatpush1.xpose.msra.mxu0 0.0
        %2017 = vmatprep.subr.mxu0 0.0
        %2018 = vmatpush1.xpose.msra.mxu0 0.0
        %2019 = vmatprep.subr.mxu0 0.0
        %2020 = vmatpush1.xpose.msra.mxu0 0.0
        %2021 = vmatprep.subr.mxu0 0.0
        %2022 = vmatpush1.xpose.msra.mxu0 0.0
        %2023 = vmatprep.subr.mxu0 0.0
        %2024 = vmatpush1.xpose.msra.mxu0 0.0
        %2025 = vmatprep.subr.mxu0 0.0
        %2026 = vmatpush1.xpose.msra.mxu0 0.0
        %2027 = vmatprep.subr.mxu0 0.0
        %2028 = vmatpush1.xpose.msra.mxu0 0.0
        %2029 = vmatprep.subr.mxu0 0.0
        %2030 = vmatpush1.xpose.msra.mxu0 0.0
        %2031 = vmatprep.subr.mxu0 0.0
        %2032 = vmatpush1.xpose.msra.mxu0 0.0
        %2033 = vmatprep.subr.mxu0 0.0
        %v2034 = vand.u32 %v1849, 4294901760
        %v2035 = vsub.f32 %v1849, %v2034
        %2036 = vmatpush1.xpose.msra.mxu0 %v2035
        %2037 = vmatprep.subr.mxu0 0.0
        %2038 = vmatpush2.xpose.msra.mxu0 0.0
        %2039 = vmatprep.subr.mxu0 0.0
        %2040 = vmatpush2.xpose.msra.mxu0 0.0
        %2041 = vmatprep.subr.mxu0 0.0
        %2042 = vmatpush2.xpose.msra.mxu0 0.0
        %2043 = vmatprep.subr.mxu0 0.0
        %2044 = vmatpush2.xpose.msra.mxu0 0.0
        %2045 = vmatprep.subr.mxu0 0.0
        %2046 = vmatpush2.xpose.msra.mxu0 0.0
        %2047 = vmatprep.subr.mxu0 0.0
        %2048 = vmatpush2.xpose.msra.mxu0 0.0
        %2049 = vmatprep.subr.mxu0 0.0
        %2050 = vmatpush2.xpose.msra.mxu0 0.0
        %2051 = vmatprep.subr.mxu0 0.0
        %2052 = vmatpush2.xpose.msra.mxu0 0.0
        %2053 = vmatprep.subr.mxu0 0.0
        %2054 = vmatpush2.xpose.msra.mxu0 0.0
        %2055 = vmatprep.subr.mxu0 0.0
        %2056 = vmatpush2.xpose.msra.mxu0 0.0
        %2057 = vmatprep.subr.mxu0 0.0
        %2058 = vmatpush2.xpose.msra.mxu0 0.0
        %2059 = vmatprep.subr.mxu0 0.0
        %2060 = vmatpush2.xpose.msra.mxu0 0.0
        %2061 = vmatprep.subr.mxu0 0.0
        %2062 = vmatpush2.xpose.msra.mxu0 0.0
        %2063 = vmatprep.subr.mxu0 0.0
        %2064 = vmatpush2.xpose.msra.mxu0 0.0
        %2065 = vmatprep.subr.mxu0 0.0
        %2066 = vmatpush2.xpose.msra.mxu0 0.0
        %2067 = vmatprep.subr.mxu0 0.0
        %2068 = vmatpush2.xpose.msra.mxu0 0.0
        %2069 = vmatprep.mubr.f32.mxu0 0.0
        %v2070 = vand.u32 %v1846, 4294901760
        %v2071 = vsub.f32 %v1846, %v2070
        %2072 = vmatmul.mubr.f32.gmra.mxu0 %v2071
        %v2073 = vpop.f32.mrf.mxu0
        %v2074 = vadd.f32 %v2000, %v2073
        %v2075 = vpop.f32.mrf.mxu0
        %2076 = vdwg.mxu0
        %2077 = vmatprep.subr.mxu0 0.0
        %2078 = vmatpush1.xpose.msra.mxu0 0.0
        %2079 = vmatprep.subr.mxu0 0.0
        %2080 = vmatpush1.xpose.msra.mxu0 0.0
        %2081 = vmatprep.subr.mxu0 0.0
        %2082 = vmatpush1.xpose.msra.mxu0 0.0
        %2083 = vmatprep.subr.mxu0 0.0
        %2084 = vmatpush1.xpose.msra.mxu0 0.0
        %2085 = vmatprep.subr.mxu0 0.0
        %2086 = vmatpush1.xpose.msra.mxu0 0.0
        %2087 = vmatprep.subr.mxu0 0.0
        %2088 = vmatpush1.xpose.msra.mxu0 0.0
        %2089 = vmatprep.subr.mxu0 0.0
        %2090 = vmatpush1.xpose.msra.mxu0 0.0
        %2091 = vmatprep.subr.mxu0 0.0
        %2092 = vmatpush1.xpose.msra.mxu0 0.0
        %2093 = vmatprep.subr.mxu0 0.0
        %2094 = vmatpush1.xpose.msra.mxu0 0.0
        %2095 = vmatprep.subr.mxu0 0.0
        %2096 = vmatpush1.xpose.msra.mxu0 0.0
        %2097 = vmatprep.subr.mxu0 0.0
        %2098 = vmatpush1.xpose.msra.mxu0 0.0
        %2099 = vmatprep.subr.mxu0 0.0
        %2100 = vmatpush1.xpose.msra.mxu0 0.0
        %2101 = vmatprep.subr.mxu0 0.0
        %2102 = vmatpush1.xpose.msra.mxu0 0.0
        %2103 = vmatprep.subr.mxu0 0.0
        %2104 = vmatpush1.xpose.msra.mxu0 0.0
        %2105 = vmatprep.subr.mxu0 0.0
        %2106 = vmatpush1.xpose.msra.mxu0 0.0
        %2107 = vmatprep.subr.mxu0 0.0
        %v2108 = vand.u32 %v1849, 4294901760
        %2109 = vmatpush1.xpose.msra.mxu0 %v2108
        %2110 = vmatprep.subr.mxu0 0.0
        %2111 = vmatpush2.xpose.msra.mxu0 0.0
        %2112 = vmatprep.subr.mxu0 0.0
        %2113 = vmatpush2.xpose.msra.mxu0 0.0
        %2114 = vmatprep.subr.mxu0 0.0
        %2115 = vmatpush2.xpose.msra.mxu0 0.0
        %2116 = vmatprep.subr.mxu0 0.0
        %2117 = vmatpush2.xpose.msra.mxu0 0.0
        %2118 = vmatprep.subr.mxu0 0.0
        %2119 = vmatpush2.xpose.msra.mxu0 0.0
        %2120 = vmatprep.subr.mxu0 0.0
        %2121 = vmatpush2.xpose.msra.mxu0 0.0
        %2122 = vmatprep.subr.mxu0 0.0
        %2123 = vmatpush2.xpose.msra.mxu0 0.0
        %2124 = vmatprep.subr.mxu0 0.0
        %2125 = vmatpush2.xpose.msra.mxu0 0.0
        %2126 = vmatprep.subr.mxu0 0.0
        %2127 = vmatpush2.xpose.msra.mxu0 0.0
        %2128 = vmatprep.subr.mxu0 0.0
        %2129 = vmatpush2.xpose.msra.mxu0 0.0
        %2130 = vmatprep.subr.mxu0 0.0
        %2131 = vmatpush2.xpose.msra.mxu0 0.0
        %2132 = vmatprep.subr.mxu0 0.0
        %2133 = vmatpush2.xpose.msra.mxu0 0.0
        %2134 = vmatprep.subr.mxu0 0.0
        %2135 = vmatpush2.xpose.msra.mxu0 0.0
        %2136 = vmatprep.subr.mxu0 0.0
        %2137 = vmatpush2.xpose.msra.mxu0 0.0
        %2138 = vmatprep.subr.mxu0 0.0
        %2139 = vmatpush2.xpose.msra.mxu0 0.0
        %2140 = vmatprep.subr.mxu0 0.0
        %2141 = vmatpush2.xpose.msra.mxu0 0.0
        %2142 = vmatprep.mubr.f32.mxu0 0.0
        %v2143 = vand.u32 %v1846, 4294901760
        %v2144 = vsub.f32 %v1846, %v2143
        %v2145 = vand.u32 %v2144, 4294901760
        %2146 = vmatmul.mubr.f32.gmra.mxu0 %v2145
        %v2147 = vpop.f32.mrf.mxu0
        %v2148 = vadd.f32 %v2074, %v2147
        %v2149 = vpop.f32.mrf.mxu0
        %2150 = vdwg.mxu0
        %2151 = vmatprep.subr.mxu0 0.0
        %2152 = vmatpush1.xpose.msra.mxu0 0.0
        %2153 = vmatprep.subr.mxu0 0.0
        %2154 = vmatpush1.xpose.msra.mxu0 0.0
        %2155 = vmatprep.subr.mxu0 0.0
        %2156 = vmatpush1.xpose.msra.mxu0 0.0
        %2157 = vmatprep.subr.mxu0 0.0
        %2158 = vmatpush1.xpose.msra.mxu0 0.0
        %2159 = vmatprep.subr.mxu0 0.0
        %2160 = vmatpush1.xpose.msra.mxu0 0.0
        %2161 = vmatprep.subr.mxu0 0.0
        %2162 = vmatpush1.xpose.msra.mxu0 0.0
        %2163 = vmatprep.subr.mxu0 0.0
        %2164 = vmatpush1.xpose.msra.mxu0 0.0
        %2165 = vmatprep.subr.mxu0 0.0
        %2166 = vmatpush1.xpose.msra.mxu0 0.0
        %2167 = vmatprep.subr.mxu0 0.0
        %2168 = vmatpush1.xpose.msra.mxu0 0.0
        %2169 = vmatprep.subr.mxu0 0.0
        %2170 = vmatpush1.xpose.msra.mxu0 0.0
        %2171 = vmatprep.subr.mxu0 0.0
        %2172 = vmatpush1.xpose.msra.mxu0 0.0
        %2173 = vmatprep.subr.mxu0 0.0
        %2174 = vmatpush1.xpose.msra.mxu0 0.0
        %2175 = vmatprep.subr.mxu0 0.0
        %2176 = vmatpush1.xpose.msra.mxu0 0.0
        %2177 = vmatprep.subr.mxu0 0.0
        %2178 = vmatpush1.xpose.msra.mxu0 0.0
        %2179 = vmatprep.subr.mxu0 0.0
        %2180 = vmatpush1.xpose.msra.mxu0 0.0
        %2181 = vmatprep.subr.mxu0 0.0
        %v2182 = vand.u32 %v1849, 4294901760
        %v2183 = vsub.f32 %v1849, %v2182
        %v2184 = vand.u32 %v2183, 4294901760
        %2185 = vmatpush1.xpose.msra.mxu0 %v2184
        %2186 = vmatprep.subr.mxu0 0.0
        %2187 = vmatpush2.xpose.msra.mxu0 0.0
        %2188 = vmatprep.subr.mxu0 0.0
        %2189 = vmatpush2.xpose.msra.mxu0 0.0
        %2190 = vmatprep.subr.mxu0 0.0
        %2191 = vmatpush2.xpose.msra.mxu0 0.0
        %2192 = vmatprep.subr.mxu0 0.0
        %2193 = vmatpush2.xpose.msra.mxu0 0.0
        %2194 = vmatprep.subr.mxu0 0.0
        %2195 = vmatpush2.xpose.msra.mxu0 0.0
        %2196 = vmatprep.subr.mxu0 0.0
        %2197 = vmatpush2.xpose.msra.mxu0 0.0
        %2198 = vmatprep.subr.mxu0 0.0
        %2199 = vmatpush2.xpose.msra.mxu0 0.0
        %2200 = vmatprep.subr.mxu0 0.0
        %2201 = vmatpush2.xpose.msra.mxu0 0.0
        %2202 = vmatprep.subr.mxu0 0.0
        %2203 = vmatpush2.xpose.msra.mxu0 0.0
        %2204 = vmatprep.subr.mxu0 0.0
        %2205 = vmatpush2.xpose.msra.mxu0 0.0
        %2206 = vmatprep.subr.mxu0 0.0
        %2207 = vmatpush2.xpose.msra.mxu0 0.0
        %2208 = vmatprep.subr.mxu0 0.0
        %2209 = vmatpush2.xpose.msra.mxu0 0.0
        %2210 = vmatprep.subr.mxu0 0.0
        %2211 = vmatpush2.xpose.msra.mxu0 0.0
        %2212 = vmatprep.subr.mxu0 0.0
        %2213 = vmatpush2.xpose.msra.mxu0 0.0
        %2214 = vmatprep.subr.mxu0 0.0
        %2215 = vmatpush2.xpose.msra.mxu0 0.0
        %2216 = vmatprep.subr.mxu0 0.0
        %2217 = vmatpush2.xpose.msra.mxu0 0.0
        %2218 = vmatprep.mubr.f32.mxu0 0.0
        %v2219 = vand.u32 %v1846, 4294901760
        %2220 = vmatmul.mubr.f32.gmra.mxu0 %v2219
        %v2221 = vpop.f32.mrf.mxu0
        %v2222 = vadd.f32 %v2148, %v2221
        %v2223 = vpop.f32.mrf.mxu0
        %2224 = vdwg.mxu0
        %2225 = vmatprep.subr.mxu0 0.0
        %2226 = vmatpush1.xpose.msra.mxu0 0.0
        %2227 = vmatprep.subr.mxu0 0.0
        %2228 = vmatpush1.xpose.msra.mxu0 0.0
        %2229 = vmatprep.subr.mxu0 0.0
        %2230 = vmatpush1.xpose.msra.mxu0 0.0
        %2231 = vmatprep.subr.mxu0 0.0
        %2232 = vmatpush1.xpose.msra.mxu0 0.0
        %2233 = vmatprep.subr.mxu0 0.0
        %2234 = vmatpush1.xpose.msra.mxu0 0.0
        %2235 = vmatprep.subr.mxu0 0.0
        %2236 = vmatpush1.xpose.msra.mxu0 0.0
        %2237 = vmatprep.subr.mxu0 0.0
        %2238 = vmatpush1.xpose.msra.mxu0 0.0
        %2239 = vmatprep.subr.mxu0 0.0
        %2240 = vmatpush1.xpose.msra.mxu0 0.0
        %2241 = vmatprep.subr.mxu0 0.0
        %2242 = vmatpush1.xpose.msra.mxu0 0.0
        %2243 = vmatprep.subr.mxu0 0.0
        %2244 = vmatpush1.xpose.msra.mxu0 0.0
        %2245 = vmatprep.subr.mxu0 0.0
        %2246 = vmatpush1.xpose.msra.mxu0 0.0
        %2247 = vmatprep.subr.mxu0 0.0
        %2248 = vmatpush1.xpose.msra.mxu0 0.0
        %2249 = vmatprep.subr.mxu0 0.0
        %2250 = vmatpush1.xpose.msra.mxu0 0.0
        %2251 = vmatprep.subr.mxu0 0.0
        %2252 = vmatpush1.xpose.msra.mxu0 0.0
        %2253 = vmatprep.subr.mxu0 0.0
        %2254 = vmatpush1.xpose.msra.mxu0 0.0
        %2255 = vmatprep.subr.mxu0 0.0
        %v2256 = vand.u32 %v1849, 4294901760
        %2257 = vmatpush1.xpose.msra.mxu0 %v2256
        %2258 = vmatprep.subr.mxu0 0.0
        %2259 = vmatpush2.xpose.msra.mxu0 0.0
        %2260 = vmatprep.subr.mxu0 0.0
        %2261 = vmatpush2.xpose.msra.mxu0 0.0
        %2262 = vmatprep.subr.mxu0 0.0
        %2263 = vmatpush2.xpose.msra.mxu0 0.0
        %2264 = vmatprep.subr.mxu0 0.0
        %2265 = vmatpush2.xpose.msra.mxu0 0.0
        %2266 = vmatprep.subr.mxu0 0.0
        %2267 = vmatpush2.xpose.msra.mxu0 0.0
        %2268 = vmatprep.subr.mxu0 0.0
        %2269 = vmatpush2.xpose.msra.mxu0 0.0
        %2270 = vmatprep.subr.mxu0 0.0
        %2271 = vmatpush2.xpose.msra.mxu0 0.0
        %2272 = vmatprep.subr.mxu0 0.0
        %2273 = vmatpush2.xpose.msra.mxu0 0.0
        %2274 = vmatprep.subr.mxu0 0.0
        %2275 = vmatpush2.xpose.msra.mxu0 0.0
        %2276 = vmatprep.subr.mxu0 0.0
        %2277 = vmatpush2.xpose.msra.mxu0 0.0
        %2278 = vmatprep.subr.mxu0 0.0
        %2279 = vmatpush2.xpose.msra.mxu0 0.0
        %2280 = vmatprep.subr.mxu0 0.0
        %2281 = vmatpush2.xpose.msra.mxu0 0.0
        %2282 = vmatprep.subr.mxu0 0.0
        %2283 = vmatpush2.xpose.msra.mxu0 0.0
        %2284 = vmatprep.subr.mxu0 0.0
        %2285 = vmatpush2.xpose.msra.mxu0 0.0
        %2286 = vmatprep.subr.mxu0 0.0
        %2287 = vmatpush2.xpose.msra.mxu0 0.0
        %2288 = vmatprep.subr.mxu0 0.0
        %2289 = vmatpush2.xpose.msra.mxu0 0.0
        %2290 = vmatprep.mubr.f32.mxu0 0.0
        %v2291 = vand.u32 %v1846, 4294901760
        %2292 = vmatmul.mubr.f32.gmra.mxu0 %v2291
        %v2293 = vpop.f32.mrf.mxu0
        %v2294 = vadd.f32 %v2222, %v2293
        %v2295 = vpop.f32.mrf.mxu0
        %2296 = vdwg.mxu0
        %vm2297 = vcmask 64512
        %v2298 = vsel %vm2297, %v2294, -inf
        %2299 = vmax.xlane.f32.xlu0 %v2298
        %v2300 = vpop.xlane.xlu0 %2299
        %v2301 = vsub.f32 %v2294, %v2300
        %v2302 = vmul.f32 %v2301, 1.442695
        %v2303 = vpow.pop %v2302
        %v2304 = vsel %vm2297, %v2303, 0.0
        %2305 = vadd.xlane.f32.xlu0 %v2304
        %v2306 = vpop.xlane.xlu0 %2305
        %v2308 = vsel %vm2297, %v2303, 0
        %2310 = vmatprep.subr.mxu0 0.0
        %2311 = vmatpush1.msra.mxu0 0.0
        %2312 = vmatprep.subr.mxu0 0.0
        %2313 = vmatpush1.msra.mxu0 0.0
        %2314 = vmatprep.subr.mxu0 0.0
        %2315 = vmatpush1.msra.mxu0 0.0
        %2316 = vmatprep.subr.mxu0 0.0
        %2317 = vmatpush1.msra.mxu0 0.0
        %2318 = vmatprep.subr.mxu0 0.0
        %2319 = vmatpush1.msra.mxu0 0.0
        %2320 = vmatprep.subr.mxu0 0.0
        %2321 = vmatpush1.msra.mxu0 0.0
        %2322 = vmatprep.subr.mxu0 0.0
        %2323 = vmatpush1.msra.mxu0 0.0
        %2324 = vmatprep.subr.mxu0 0.0
        %2325 = vmatpush1.msra.mxu0 0.0
        %2326 = vmatprep.subr.mxu0 0.0
        %2327 = vmatpush1.msra.mxu0 0.0
        %2328 = vmatprep.subr.mxu0 0.0
        %2329 = vmatpush1.msra.mxu0 0.0
        %2330 = vmatprep.subr.mxu0 0.0
        %2331 = vmatpush1.msra.mxu0 0.0
        %2332 = vmatprep.subr.mxu0 0.0
        %2333 = vmatpush1.msra.mxu0 0.0
        %2334 = vmatprep.subr.mxu0 0.0
        %2335 = vmatpush1.msra.mxu0 0.0
        %2336 = vmatprep.subr.mxu0 0.0
        %2337 = vmatpush1.msra.mxu0 0.0
        %2338 = vmatprep.subr.mxu0 0.0
        %2339 = vmatpush1.msra.mxu0 0.0
        %2340 = vmatprep.subr.mxu0 0.0
        %v2341 = vand.u32 %v1840, 4294901760
        %2342 = vmatpush1.msra.mxu0 %v2341
        %2343 = vmatprep.subr.mxu0 0.0
        %2344 = vmatpush2.msra.mxu0 0.0
        %2345 = vmatprep.subr.mxu0 0.0
        %2346 = vmatpush2.msra.mxu0 0.0
        %2347 = vmatprep.subr.mxu0 0.0
        %2348 = vmatpush2.msra.mxu0 0.0
        %2349 = vmatprep.subr.mxu0 0.0
        %2350 = vmatpush2.msra.mxu0 0.0
        %2351 = vmatprep.subr.mxu0 0.0
        %2352 = vmatpush2.msra.mxu0 0.0
        %2353 = vmatprep.subr.mxu0 0.0
        %2354 = vmatpush2.msra.mxu0 0.0
        %2355 = vmatprep.subr.mxu0 0.0
        %2356 = vmatpush2.msra.mxu0 0.0
        %2357 = vmatprep.subr.mxu0 0.0
        %2358 = vmatpush2.msra.mxu0 0.0
        %2359 = vmatprep.subr.mxu0 0.0
        %2360 = vmatpush2.msra.mxu0 0.0
        %2361 = vmatprep.subr.mxu0 0.0
        %2362 = vmatpush2.msra.mxu0 0.0
        %2363 = vmatprep.subr.mxu0 0.0
        %2364 = vmatpush2.msra.mxu0 0.0
        %2365 = vmatprep.subr.mxu0 0.0
        %2366 = vmatpush2.msra.mxu0 0.0
        %2367 = vmatprep.subr.mxu0 0.0
        %2368 = vmatpush2.msra.mxu0 0.0
        %2369 = vmatprep.subr.mxu0 0.0
        %2370 = vmatpush2.msra.mxu0 0.0
        %2371 = vmatprep.subr.mxu0 0.0
        %2372 = vmatpush2.msra.mxu0 0.0
        %2373 = vmatprep.subr.mxu0 0.0
        %2374 = vmatpush2.msra.mxu0 0.0
        %2375 = vmatprep.mubr.f32.mxu0 0.0
        %v2376 = vand.u32 %v2308, 4294901760
        %v2377 = vsub.f32 %v2308, %v2376
        %v2378 = vand.u32 %v2377, 4294901760
        %v2379 = vsub.f32 %v2377, %v2378
        %v2380 = vand.u32 %v2379, 4294901760
        %2381 = vmatmul.mubr.f32.gmra.mxu0 %v2380
        %v2382 = vpop.f32.mrf.mxu0
        %v2383 = vadd.f32 0.0, %v2382
        %v2384 = vpop.f32.mrf.mxu0
        %2385 = vdwg.mxu0
        %2386 = vmatprep.subr.mxu0 0.0
        %2387 = vmatpush1.msra.mxu0 0.0
        %2388 = vmatprep.subr.mxu0 0.0
        %2389 = vmatpush1.msra.mxu0 0.0
        %2390 = vmatprep.subr.mxu0 0.0
        %2391 = vmatpush1.msra.mxu0 0.0
        %2392 = vmatprep.subr.mxu0 0.0
        %2393 = vmatpush1.msra.mxu0 0.0
        %2394 = vmatprep.subr.mxu0 0.0
        %2395 = vmatpush1.msra.mxu0 0.0
        %2396 = vmatprep.subr.mxu0 0.0
        %2397 = vmatpush1.msra.mxu0 0.0
        %2398 = vmatprep.subr.mxu0 0.0
        %2399 = vmatpush1.msra.mxu0 0.0
        %2400 = vmatprep.subr.mxu0 0.0
        %2401 = vmatpush1.msra.mxu0 0.0
        %2402 = vmatprep.subr.mxu0 0.0
        %2403 = vmatpush1.msra.mxu0 0.0
        %2404 = vmatprep.subr.mxu0 0.0
        %2405 = vmatpush1.msra.mxu0 0.0
        %2406 = vmatprep.subr.mxu0 0.0
        %2407 = vmatpush1.msra.mxu0 0.0
        %2408 = vmatprep.subr.mxu0 0.0
        %2409 = vmatpush1.msra.mxu0 0.0
        %2410 = vmatprep.subr.mxu0 0.0
        %2411 = vmatpush1.msra.mxu0 0.0
        %2412 = vmatprep.subr.mxu0 0.0
        %2413 = vmatpush1.msra.mxu0 0.0
        %2414 = vmatprep.subr.mxu0 0.0
        %2415 = vmatpush1.msra.mxu0 0.0
        %2416 = vmatprep.subr.mxu0 0.0
        %v2417 = vand.u32 %v1840, 4294901760
        %v2418 = vsub.f32 %v1840, %v2417
        %v2419 = vand.u32 %v2418, 4294901760
        %v2420 = vsub.f32 %v2418, %v2419
        %v2421 = vand.u32 %v2420, 4294901760
        %2422 = vmatpush1.msra.mxu0 %v2421
        %2423 = vmatprep.subr.mxu0 0.0
        %2424 = vmatpush2.msra.mxu0 0.0
        %2425 = vmatprep.subr.mxu0 0.0
        %2426 = vmatpush2.msra.mxu0 0.0
        %2427 = vmatprep.subr.mxu0 0.0
        %2428 = vmatpush2.msra.mxu0 0.0
        %2429 = vmatprep.subr.mxu0 0.0
        %2430 = vmatpush2.msra.mxu0 0.0
        %2431 = vmatprep.subr.mxu0 0.0
        %2432 = vmatpush2.msra.mxu0 0.0
        %2433 = vmatprep.subr.mxu0 0.0
        %2434 = vmatpush2.msra.mxu0 0.0
        %2435 = vmatprep.subr.mxu0 0.0
        %2436 = vmatpush2.msra.mxu0 0.0
        %2437 = vmatprep.subr.mxu0 0.0
        %2438 = vmatpush2.msra.mxu0 0.0
        %2439 = vmatprep.subr.mxu0 0.0
        %2440 = vmatpush2.msra.mxu0 0.0
        %2441 = vmatprep.subr.mxu0 0.0
        %2442 = vmatpush2.msra.mxu0 0.0
        %2443 = vmatprep.subr.mxu0 0.0
        %2444 = vmatpush2.msra.mxu0 0.0
        %2445 = vmatprep.subr.mxu0 0.0
        %2446 = vmatpush2.msra.mxu0 0.0
        %2447 = vmatprep.subr.mxu0 0.0
        %2448 = vmatpush2.msra.mxu0 0.0
        %2449 = vmatprep.subr.mxu0 0.0
        %2450 = vmatpush2.msra.mxu0 0.0
        %2451 = vmatprep.subr.mxu0 0.0
        %2452 = vmatpush2.msra.mxu0 0.0
        %2453 = vmatprep.subr.mxu0 0.0
        %2454 = vmatpush2.msra.mxu0 0.0
        %2455 = vmatprep.mubr.f32.mxu0 0.0
        %v2456 = vand.u32 %v2308, 4294901760
        %2457 = vmatmul.mubr.f32.gmra.mxu0 %v2456
        %v2458 = vpop.f32.mrf.mxu0
        %v2459 = vadd.f32 %v2383, %v2458
        %v2460 = vpop.f32.mrf.mxu0
        %2461 = vdwg.mxu0
        %2462 = vmatprep.subr.mxu0 0.0
        %2463 = vmatpush1.msra.mxu0 0.0
        %2464 = vmatprep.subr.mxu0 0.0
        %2465 = vmatpush1.msra.mxu0 0.0
        %2466 = vmatprep.subr.mxu0 0.0
        %2467 = vmatpush1.msra.mxu0 0.0
        %2468 = vmatprep.subr.mxu0 0.0
        %2469 = vmatpush1.msra.mxu0 0.0
        %2470 = vmatprep.subr.mxu0 0.0
        %2471 = vmatpush1.msra.mxu0 0.0
        %2472 = vmatprep.subr.mxu0 0.0
        %2473 = vmatpush1.msra.mxu0 0.0
        %2474 = vmatprep.subr.mxu0 0.0
        %2475 = vmatpush1.msra.mxu0 0.0
        %2476 = vmatprep.subr.mxu0 0.0
        %2477 = vmatpush1.msra.mxu0 0.0
        %2478 = vmatprep.subr.mxu0 0.0
        %2479 = vmatpush1.msra.mxu0 0.0
        %2480 = vmatprep.subr.mxu0 0.0
        %2481 = vmatpush1.msra.mxu0 0.0
        %2482 = vmatprep.subr.mxu0 0.0
        %2483 = vmatpush1.msra.mxu0 0.0
        %2484 = vmatprep.subr.mxu0 0.0
        %2485 = vmatpush1.msra.mxu0 0.0
        %2486 = vmatprep.subr.mxu0 0.0
        %2487 = vmatpush1.msra.mxu0 0.0
        %2488 = vmatprep.subr.mxu0 0.0
        %2489 = vmatpush1.msra.mxu0 0.0
        %2490 = vmatprep.subr.mxu0 0.0
        %2491 = vmatpush1.msra.mxu0 0.0
        %2492 = vmatprep.subr.mxu0 0.0
        %v2493 = vand.u32 %v1840, 4294901760
        %v2494 = vsub.f32 %v1840, %v2493
        %2495 = vmatpush1.msra.mxu0 %v2494
        %2496 = vmatprep.subr.mxu0 0.0
        %2497 = vmatpush2.msra.mxu0 0.0
        %2498 = vmatprep.subr.mxu0 0.0
        %2499 = vmatpush2.msra.mxu0 0.0
        %2500 = vmatprep.subr.mxu0 0.0
        %2501 = vmatpush2.msra.mxu0 0.0
        %2502 = vmatprep.subr.mxu0 0.0
        %2503 = vmatpush2.msra.mxu0 0.0
        %2504 = vmatprep.subr.mxu0 0.0
        %2505 = vmatpush2.msra.mxu0 0.0
        %2506 = vmatprep.subr.mxu0 0.0
        %2507 = vmatpush2.msra.mxu0 0.0
        %2508 = vmatprep.subr.mxu0 0.0
        %2509 = vmatpush2.msra.mxu0 0.0
        %2510 = vmatprep.subr.mxu0 0.0
        %2511 = vmatpush2.msra.mxu0 0.0
        %2512 = vmatprep.subr.mxu0 0.0
        %2513 = vmatpush2.msra.mxu0 0.0
        %2514 = vmatprep.subr.mxu0 0.0
        %2515 = vmatpush2.msra.mxu0 0.0
        %2516 = vmatprep.subr.mxu0 0.0
        %2517 = vmatpush2.msra.mxu0 0.0
        %2518 = vmatprep.subr.mxu0 0.0
        %2519 = vmatpush2.msra.mxu0 0.0
        %2520 = vmatprep.subr.mxu0 0.0
        %2521 = vmatpush2.msra.mxu0 0.0
        %2522 = vmatprep.subr.mxu0 0.0
        %2523 = vmatpush2.msra.mxu0 0.0
        %2524 = vmatprep.subr.mxu0 0.0
        %2525 = vmatpush2.msra.mxu0 0.0
        %2526 = vmatprep.subr.mxu0 0.0
        %2527 = vmatpush2.msra.mxu0 0.0
        %2528 = vmatprep.mubr.f32.mxu0 0.0
        %v2529 = vand.u32 %v2308, 4294901760
        %v2530 = vsub.f32 %v2308, %v2529
        %2531 = vmatmul.mubr.f32.gmra.mxu0 %v2530
        %v2532 = vpop.f32.mrf.mxu0
        %v2533 = vadd.f32 %v2459, %v2532
        %v2534 = vpop.f32.mrf.mxu0
        %2535 = vdwg.mxu0
        %2536 = vmatprep.subr.mxu0 0.0
        %2537 = vmatpush1.msra.mxu0 0.0
        %2538 = vmatprep.subr.mxu0 0.0
        %2539 = vmatpush1.msra.mxu0 0.0
        %2540 = vmatprep.subr.mxu0 0.0
        %2541 = vmatpush1.msra.mxu0 0.0
        %2542 = vmatprep.subr.mxu0 0.0
        %2543 = vmatpush1.msra.mxu0 0.0
        %2544 = vmatprep.subr.mxu0 0.0
        %2545 = vmatpush1.msra.mxu0 0.0
        %2546 = vmatprep.subr.mxu0 0.0
        %2547 = vmatpush1.msra.mxu0 0.0
        %2548 = vmatprep.subr.mxu0 0.0
        %2549 = vmatpush1.msra.mxu0 0.0
        %2550 = vmatprep.subr.mxu0 0.0
        %2551 = vmatpush1.msra.mxu0 0.0
        %2552 = vmatprep.subr.mxu0 0.0
        %2553 = vmatpush1.msra.mxu0 0.0
        %2554 = vmatprep.subr.mxu0 0.0
        %2555 = vmatpush1.msra.mxu0 0.0
        %2556 = vmatprep.subr.mxu0 0.0
        %2557 = vmatpush1.msra.mxu0 0.0
        %2558 = vmatprep.subr.mxu0 0.0
        %2559 = vmatpush1.msra.mxu0 0.0
        %2560 = vmatprep.subr.mxu0 0.0
        %2561 = vmatpush1.msra.mxu0 0.0
        %2562 = vmatprep.subr.mxu0 0.0
        %2563 = vmatpush1.msra.mxu0 0.0
        %2564 = vmatprep.subr.mxu0 0.0
        %2565 = vmatpush1.msra.mxu0 0.0
        %2566 = vmatprep.subr.mxu0 0.0
        %v2567 = vand.u32 %v1840, 4294901760
        %2568 = vmatpush1.msra.mxu0 %v2567
        %2569 = vmatprep.subr.mxu0 0.0
        %2570 = vmatpush2.msra.mxu0 0.0
        %2571 = vmatprep.subr.mxu0 0.0
        %2572 = vmatpush2.msra.mxu0 0.0
        %2573 = vmatprep.subr.mxu0 0.0
        %2574 = vmatpush2.msra.mxu0 0.0
        %2575 = vmatprep.subr.mxu0 0.0
        %2576 = vmatpush2.msra.mxu0 0.0
        %2577 = vmatprep.subr.mxu0 0.0
        %2578 = vmatpush2.msra.mxu0 0.0
        %2579 = vmatprep.subr.mxu0 0.0
        %2580 = vmatpush2.msra.mxu0 0.0
        %2581 = vmatprep.subr.mxu0 0.0
        %2582 = vmatpush2.msra.mxu0 0.0
        %2583 = vmatprep.subr.mxu0 0.0
        %2584 = vmatpush2.msra.mxu0 0.0
        %2585 = vmatprep.subr.mxu0 0.0
        %2586 = vmatpush2.msra.mxu0 0.0
        %2587 = vmatprep.subr.mxu0 0.0
        %2588 = vmatpush2.msra.mxu0 0.0
        %2589 = vmatprep.subr.mxu0 0.0
        %2590 = vmatpush2.msra.mxu0 0.0
        %2591 = vmatprep.subr.mxu0 0.0
        %2592 = vmatpush2.msra.mxu0 0.0
        %2593 = vmatprep.subr.mxu0 0.0
        %2594 = vmatpush2.msra.mxu0 0.0
        %2595 = vmatprep.subr.mxu0 0.0
        %2596 = vmatpush2.msra.mxu0 0.0
        %2597 = vmatprep.subr.mxu0 0.0
        %2598 = vmatpush2.msra.mxu0 0.0
        %2599 = vmatprep.subr.mxu0 0.0
        %2600 = vmatpush2.msra.mxu0 0.0
        %2601 = vmatprep.mubr.f32.mxu0 0.0
        %v2602 = vand.u32 %v2308, 4294901760
        %v2603 = vsub.f32 %v2308, %v2602
        %v2604 = vand.u32 %v2603, 4294901760
        %2605 = vmatmul.mubr.f32.gmra.mxu0 %v2604
        %v2606 = vpop.f32.mrf.mxu0
        %v2607 = vadd.f32 %v2533, %v2606
        %v2608 = vpop.f32.mrf.mxu0
        %2609 = vdwg.mxu0
        %2610 = vmatprep.subr.mxu0 0.0
        %2611 = vmatpush1.msra.mxu0 0.0
        %2612 = vmatprep.subr.mxu0 0.0
        %2613 = vmatpush1.msra.mxu0 0.0
        %2614 = vmatprep.subr.mxu0 0.0
        %2615 = vmatpush1.msra.mxu0 0.0
        %2616 = vmatprep.subr.mxu0 0.0
        %2617 = vmatpush1.msra.mxu0 0.0
        %2618 = vmatprep.subr.mxu0 0.0
        %2619 = vmatpush1.msra.mxu0 0.0
        %2620 = vmatprep.subr.mxu0 0.0
        %2621 = vmatpush1.msra.mxu0 0.0
        %2622 = vmatprep.subr.mxu0 0.0
        %2623 = vmatpush1.msra.mxu0 0.0
        %2624 = vmatprep.subr.mxu0 0.0
        %2625 = vmatpush1.msra.mxu0 0.0
        %2626 = vmatprep.subr.mxu0 0.0
        %2627 = vmatpush1.msra.mxu0 0.0
        %2628 = vmatprep.subr.mxu0 0.0
        %2629 = vmatpush1.msra.mxu0 0.0
        %2630 = vmatprep.subr.mxu0 0.0
        %2631 = vmatpush1.msra.mxu0 0.0
        %2632 = vmatprep.subr.mxu0 0.0
        %2633 = vmatpush1.msra.mxu0 0.0
        %2634 = vmatprep.subr.mxu0 0.0
        %2635 = vmatpush1.msra.mxu0 0.0
        %2636 = vmatprep.subr.mxu0 0.0
        %2637 = vmatpush1.msra.mxu0 0.0
        %2638 = vmatprep.subr.mxu0 0.0
        %2639 = vmatpush1.msra.mxu0 0.0
        %2640 = vmatprep.subr.mxu0 0.0
        %v2641 = vand.u32 %v1840, 4294901760
        %v2642 = vsub.f32 %v1840, %v2641
        %v2643 = vand.u32 %v2642, 4294901760
        %2644 = vmatpush1.msra.mxu0 %v2643
        %2645 = vmatprep.subr.mxu0 0.0
        %2646 = vmatpush2.msra.mxu0 0.0
        %2647 = vmatprep.subr.mxu0 0.0
        %2648 = vmatpush2.msra.mxu0 0.0
        %2649 = vmatprep.subr.mxu0 0.0
        %2650 = vmatpush2.msra.mxu0 0.0
        %2651 = vmatprep.subr.mxu0 0.0
        %2652 = vmatpush2.msra.mxu0 0.0
        %2653 = vmatprep.subr.mxu0 0.0
        %2654 = vmatpush2.msra.mxu0 0.0
        %2655 = vmatprep.subr.mxu0 0.0
        %2656 = vmatpush2.msra.mxu0 0.0
        %2657 = vmatprep.subr.mxu0 0.0
        %2658 = vmatpush2.msra.mxu0 0.0
        %2659 = vmatprep.subr.mxu0 0.0
        %2660 = vmatpush2.msra.mxu0 0.0
        %2661 = vmatprep.subr.mxu0 0.0
        %2662 = vmatpush2.msra.mxu0 0.0
        %2663 = vmatprep.subr.mxu0 0.0
        %2664 = vmatpush2.msra.mxu0 0.0
        %2665 = vmatprep.subr.mxu0 0.0
        %2666 = vmatpush2.msra.mxu0 0.0
        %2667 = vmatprep.subr.mxu0 0.0
        %2668 = vmatpush2.msra.mxu0 0.0
        %2669 = vmatprep.subr.mxu0 0.0
        %2670 = vmatpush2.msra.mxu0 0.0
        %2671 = vmatprep.subr.mxu0 0.0
        %2672 = vmatpush2.msra.mxu0 0.0
        %2673 = vmatprep.subr.mxu0 0.0
        %2674 = vmatpush2.msra.mxu0 0.0
        %2675 = vmatprep.subr.mxu0 0.0
        %2676 = vmatpush2.msra.mxu0 0.0
        %2677 = vmatprep.mubr.f32.mxu0 0.0
        %v2678 = vand.u32 %v2308, 4294901760
        %2679 = vmatmul.mubr.f32.gmra.mxu0 %v2678
        %v2680 = vpop.f32.mrf.mxu0
        %v2681 = vadd.f32 %v2607, %v2680
        %v2682 = vpop.f32.mrf.mxu0
        %2683 = vdwg.mxu0
        %2684 = vmatprep.subr.mxu0 0.0
        %2685 = vmatpush1.msra.mxu0 0.0
        %2686 = vmatprep.subr.mxu0 0.0
        %2687 = vmatpush1.msra.mxu0 0.0
        %2688 = vmatprep.subr.mxu0 0.0
        %2689 = vmatpush1.msra.mxu0 0.0
        %2690 = vmatprep.subr.mxu0 0.0
        %2691 = vmatpush1.msra.mxu0 0.0
        %2692 = vmatprep.subr.mxu0 0.0
        %2693 = vmatpush1.msra.mxu0 0.0
        %2694 = vmatprep.subr.mxu0 0.0
        %2695 = vmatpush1.msra.mxu0 0.0
        %2696 = vmatprep.subr.mxu0 0.0
        %2697 = vmatpush1.msra.mxu0 0.0
        %2698 = vmatprep.subr.mxu0 0.0
        %2699 = vmatpush1.msra.mxu0 0.0
        %2700 = vmatprep.subr.mxu0 0.0
        %2701 = vmatpush1.msra.mxu0 0.0
        %2702 = vmatprep.subr.mxu0 0.0
        %2703 = vmatpush1.msra.mxu0 0.0
        %2704 = vmatprep.subr.mxu0 0.0
        %2705 = vmatpush1.msra.mxu0 0.0
        %2706 = vmatprep.subr.mxu0 0.0
        %2707 = vmatpush1.msra.mxu0 0.0
        %2708 = vmatprep.subr.mxu0 0.0
        %2709 = vmatpush1.msra.mxu0 0.0
        %2710 = vmatprep.subr.mxu0 0.0
        %2711 = vmatpush1.msra.mxu0 0.0
        %2712 = vmatprep.subr.mxu0 0.0
        %2713 = vmatpush1.msra.mxu0 0.0
        %2714 = vmatprep.subr.mxu0 0.0
        %v2715 = vand.u32 %v1840, 4294901760
        %2716 = vmatpush1.msra.mxu0 %v2715
        %2717 = vmatprep.subr.mxu0 0.0
        %2718 = vmatpush2.msra.mxu0 0.0
        %2719 = vmatprep.subr.mxu0 0.0
        %2720 = vmatpush2.msra.mxu0 0.0
        %2721 = vmatprep.subr.mxu0 0.0
        %2722 = vmatpush2.msra.mxu0 0.0
        %2723 = vmatprep.subr.mxu0 0.0
        %2724 = vmatpush2.msra.mxu0 0.0
        %2725 = vmatprep.subr.mxu0 0.0
        %2726 = vmatpush2.msra.mxu0 0.0
        %2727 = vmatprep.subr.mxu0 0.0
        %2728 = vmatpush2.msra.mxu0 0.0
        %2729 = vmatprep.subr.mxu0 0.0
        %2730 = vmatpush2.msra.mxu0 0.0
        %2731 = vmatprep.subr.mxu0 0.0
        %2732 = vmatpush2.msra.mxu0 0.0
        %2733 = vmatprep.subr.mxu0 0.0
        %2734 = vmatpush2.msra.mxu0 0.0
        %2735 = vmatprep.subr.mxu0 0.0
        %2736 = vmatpush2.msra.mxu0 0.0
        %2737 = vmatprep.subr.mxu0 0.0
        %2738 = vmatpush2.msra.mxu0 0.0
        %2739 = vmatprep.subr.mxu0 0.0
        %2740 = vmatpush2.msra.mxu0 0.0
        %2741 = vmatprep.subr.mxu0 0.0
        %2742 = vmatpush2.msra.mxu0 0.0
        %2743 = vmatprep.subr.mxu0 0.0
        %2744 = vmatpush2.msra.mxu0 0.0
        %2745 = vmatprep.subr.mxu0 0.0
        %2746 = vmatpush2.msra.mxu0 0.0
        %2747 = vmatprep.subr.mxu0 0.0
        %2748 = vmatpush2.msra.mxu0 0.0
        %2749 = vmatprep.mubr.f32.mxu0 0.0
        %v2750 = vand.u32 %v2308, 4294901760
        %2751 = vmatmul.mubr.f32.gmra.mxu0 %v2750
        %v2752 = vpop.f32.mrf.mxu0
        %v2753 = vadd.f32 %v2681, %v2752
        %v2754 = vpop.f32.mrf.mxu0
        %2755 = vdwg.mxu0
        %v2756 = vrcp.pop %v2306
        %v2757 = vmul.f32 %v2753, %v2756
        %2758 = vst.msk [vmem:[#allocation2] sm:$0xff] %vm1844, %v2757
        %2759 = vrot.lane.b32.xlu0 %v1843, 96
        %v2760 = vpop.permute.xlu0 %2759
        %2761 = vrot.lane.b32.xlu0 %v1200, 96
        %v2762 = vpop.permute.xlu0 %2761
        %v2763 = vsel %vm1844, %v2760, 0
        %v2765 = vsel %vm1844, %v2762, 0
        %2767 = vmatprep.subr.mxu0 0.0
        %2768 = vmatpush1.xpose.msra.mxu0 0.0
        %2769 = vmatprep.subr.mxu0 0.0
        %2770 = vmatpush1.xpose.msra.mxu0 0.0
        %2771 = vmatprep.subr.mxu0 0.0
        %2772 = vmatpush1.xpose.msra.mxu0 0.0
        %2773 = vmatprep.subr.mxu0 0.0
        %2774 = vmatpush1.xpose.msra.mxu0 0.0
        %2775 = vmatprep.subr.mxu0 0.0
        %2776 = vmatpush1.xpose.msra.mxu0 0.0
        %2777 = vmatprep.subr.mxu0 0.0
        %2778 = vmatpush1.xpose.msra.mxu0 0.0
        %2779 = vmatprep.subr.mxu0 0.0
        %2780 = vmatpush1.xpose.msra.mxu0 0.0
        %2781 = vmatprep.subr.mxu0 0.0
        %2782 = vmatpush1.xpose.msra.mxu0 0.0
        %2783 = vmatprep.subr.mxu0 0.0
        %2784 = vmatpush1.xpose.msra.mxu0 0.0
        %2785 = vmatprep.subr.mxu0 0.0
        %2786 = vmatpush1.xpose.msra.mxu0 0.0
        %2787 = vmatprep.subr.mxu0 0.0
        %2788 = vmatpush1.xpose.msra.mxu0 0.0
        %2789 = vmatprep.subr.mxu0 0.0
        %2790 = vmatpush1.xpose.msra.mxu0 0.0
        %2791 = vmatprep.subr.mxu0 0.0
        %2792 = vmatpush1.xpose.msra.mxu0 0.0
        %2793 = vmatprep.subr.mxu0 0.0
        %2794 = vmatpush1.xpose.msra.mxu0 0.0
        %2795 = vmatprep.subr.mxu0 0.0
        %2796 = vmatpush1.xpose.msra.mxu0 0.0
        %2797 = vmatprep.subr.mxu0 0.0
        %v2798 = vand.u32 %v2765, 4294901760
        %2799 = vmatpush1.xpose.msra.mxu0 %v2798
        %2800 = vmatprep.subr.mxu0 0.0
        %2801 = vmatpush2.xpose.msra.mxu0 0.0
        %2802 = vmatprep.subr.mxu0 0.0
        %2803 = vmatpush2.xpose.msra.mxu0 0.0
        %2804 = vmatprep.subr.mxu0 0.0
        %2805 = vmatpush2.xpose.msra.mxu0 0.0
        %2806 = vmatprep.subr.mxu0 0.0
        %2807 = vmatpush2.xpose.msra.mxu0 0.0
        %2808 = vmatprep.subr.mxu0 0.0
        %2809 = vmatpush2.xpose.msra.mxu0 0.0
        %2810 = vmatprep.subr.mxu0 0.0
        %2811 = vmatpush2.xpose.msra.mxu0 0.0
        %2812 = vmatprep.subr.mxu0 0.0
        %2813 = vmatpush2.xpose.msra.mxu0 0.0
        %2814 = vmatprep.subr.mxu0 0.0
        %2815 = vmatpush2.xpose.msra.mxu0 0.0
        %2816 = vmatprep.subr.mxu0 0.0
        %2817 = vmatpush2.xpose.msra.mxu0 0.0
        %2818 = vmatprep.subr.mxu0 0.0
        %2819 = vmatpush2.xpose.msra.mxu0 0.0
        %2820 = vmatprep.subr.mxu0 0.0
        %2821 = vmatpush2.xpose.msra.mxu0 0.0
        %2822 = vmatprep.subr.mxu0 0.0
        %2823 = vmatpush2.xpose.msra.mxu0 0.0
        %2824 = vmatprep.subr.mxu0 0.0
        %2825 = vmatpush2.xpose.msra.mxu0 0.0
        %2826 = vmatprep.subr.mxu0 0.0
        %2827 = vmatpush2.xpose.msra.mxu0 0.0
        %2828 = vmatprep.subr.mxu0 0.0
        %2829 = vmatpush2.xpose.msra.mxu0 0.0
        %2830 = vmatprep.subr.mxu0 0.0
        %2831 = vmatpush2.xpose.msra.mxu0 0.0
        %2832 = vmatprep.mubr.f32.mxu0 0.0
        %v2833 = vand.u32 %v2763, 4294901760
        %v2834 = vsub.f32 %v2763, %v2833
        %v2835 = vand.u32 %v2834, 4294901760
        %v2836 = vsub.f32 %v2834, %v2835
        %v2837 = vand.u32 %v2836, 4294901760
        %2838 = vmatmul.mubr.f32.gmra.mxu0 %v2837
        %v2839 = vpop.f32.mrf.mxu0
        %v2840 = vadd.f32 0.0, %v2839
        %v2841 = vpop.f32.mrf.mxu0
        %2842 = vdwg.mxu0
        %2843 = vmatprep.subr.mxu0 0.0
        %2844 = vmatpush1.xpose.msra.mxu0 0.0
        %2845 = vmatprep.subr.mxu0 0.0
        %2846 = vmatpush1.xpose.msra.mxu0 0.0
        %2847 = vmatprep.subr.mxu0 0.0
        %2848 = vmatpush1.xpose.msra.mxu0 0.0
        %2849 = vmatprep.subr.mxu0 0.0
        %2850 = vmatpush1.xpose.msra.mxu0 0.0
        %2851 = vmatprep.subr.mxu0 0.0
        %2852 = vmatpush1.xpose.msra.mxu0 0.0
        %2853 = vmatprep.subr.mxu0 0.0
        %2854 = vmatpush1.xpose.msra.mxu0 0.0
        %2855 = vmatprep.subr.mxu0 0.0
        %2856 = vmatpush1.xpose.msra.mxu0 0.0
        %2857 = vmatprep.subr.mxu0 0.0
        %2858 = vmatpush1.xpose.msra.mxu0 0.0
        %2859 = vmatprep.subr.mxu0 0.0
        %2860 = vmatpush1.xpose.msra.mxu0 0.0
        %2861 = vmatprep.subr.mxu0 0.0
        %2862 = vmatpush1.xpose.msra.mxu0 0.0
        %2863 = vmatprep.subr.mxu0 0.0
        %2864 = vmatpush1.xpose.msra.mxu0 0.0
        %2865 = vmatprep.subr.mxu0 0.0
        %2866 = vmatpush1.xpose.msra.mxu0 0.0
        %2867 = vmatprep.subr.mxu0 0.0
        %2868 = vmatpush1.xpose.msra.mxu0 0.0
        %2869 = vmatprep.subr.mxu0 0.0
        %2870 = vmatpush1.xpose.msra.mxu0 0.0
        %2871 = vmatprep.subr.mxu0 0.0
        %2872 = vmatpush1.xpose.msra.mxu0 0.0
        %2873 = vmatprep.subr.mxu0 0.0
        %v2874 = vand.u32 %v2765, 4294901760
        %v2875 = vsub.f32 %v2765, %v2874
        %v2876 = vand.u32 %v2875, 4294901760
        %v2877 = vsub.f32 %v2875, %v2876
        %v2878 = vand.u32 %v2877, 4294901760
        %2879 = vmatpush1.xpose.msra.mxu0 %v2878
        %2880 = vmatprep.subr.mxu0 0.0
        %2881 = vmatpush2.xpose.msra.mxu0 0.0
        %2882 = vmatprep.subr.mxu0 0.0
        %2883 = vmatpush2.xpose.msra.mxu0 0.0
        %2884 = vmatprep.subr.mxu0 0.0
        %2885 = vmatpush2.xpose.msra.mxu0 0.0
        %2886 = vmatprep.subr.mxu0 0.0
        %2887 = vmatpush2.xpose.msra.mxu0 0.0
        %2888 = vmatprep.subr.mxu0 0.0
        %2889 = vmatpush2.xpose.msra.mxu0 0.0
        %2890 = vmatprep.subr.mxu0 0.0
        %2891 = vmatpush2.xpose.msra.mxu0 0.0
        %2892 = vmatprep.subr.mxu0 0.0
        %2893 = vmatpush2.xpose.msra.mxu0 0.0
        %2894 = vmatprep.subr.mxu0 0.0
        %2895 = vmatpush2.xpose.msra.mxu0 0.0
        %2896 = vmatprep.subr.mxu0 0.0
        %2897 = vmatpush2.xpose.msra.mxu0 0.0
        %2898 = vmatprep.subr.mxu0 0.0
        %2899 = vmatpush2.xpose.msra.mxu0 0.0
        %2900 = vmatprep.subr.mxu0 0.0
        %2901 = vmatpush2.xpose.msra.mxu0 0.0
        %2902 = vmatprep.subr.mxu0 0.0
        %2903 = vmatpush2.xpose.msra.mxu0 0.0
        %2904 = vmatprep.subr.mxu0 0.0
        %2905 = vmatpush2.xpose.msra.mxu0 0.0
        %2906 = vmatprep.subr.mxu0 0.0
        %2907 = vmatpush2.xpose.msra.mxu0 0.0
        %2908 = vmatprep.subr.mxu0 0.0
        %2909 = vmatpush2.xpose.msra.mxu0 0.0
        %2910 = vmatprep.subr.mxu0 0.0
        %2911 = vmatpush2.xpose.msra.mxu0 0.0
        %2912 = vmatprep.mubr.f32.mxu0 0.0
        %v2913 = vand.u32 %v2763, 4294901760
        %2914 = vmatmul.mubr.f32.gmra.mxu0 %v2913
        %v2915 = vpop.f32.mrf.mxu0
        %v2916 = vadd.f32 %v2840, %v2915
        %v2917 = vpop.f32.mrf.mxu0
        %2918 = vdwg.mxu0
        %2919 = vmatprep.subr.mxu0 0.0
        %2920 = vmatpush1.xpose.msra.mxu0 0.0
        %2921 = vmatprep.subr.mxu0 0.0
        %2922 = vmatpush1.xpose.msra.mxu0 0.0
        %2923 = vmatprep.subr.mxu0 0.0
        %2924 = vmatpush1.xpose.msra.mxu0 0.0
        %2925 = vmatprep.subr.mxu0 0.0
        %2926 = vmatpush1.xpose.msra.mxu0 0.0
        %2927 = vmatprep.subr.mxu0 0.0
        %2928 = vmatpush1.xpose.msra.mxu0 0.0
        %2929 = vmatprep.subr.mxu0 0.0
        %2930 = vmatpush1.xpose.msra.mxu0 0.0
        %2931 = vmatprep.subr.mxu0 0.0
        %2932 = vmatpush1.xpose.msra.mxu0 0.0
        %2933 = vmatprep.subr.mxu0 0.0
        %2934 = vmatpush1.xpose.msra.mxu0 0.0
        %2935 = vmatprep.subr.mxu0 0.0
        %2936 = vmatpush1.xpose.msra.mxu0 0.0
        %2937 = vmatprep.subr.mxu0 0.0
        %2938 = vmatpush1.xpose.msra.mxu0 0.0
        %2939 = vmatprep.subr.mxu0 0.0
        %2940 = vmatpush1.xpose.msra.mxu0 0.0
        %2941 = vmatprep.subr.mxu0 0.0
        %2942 = vmatpush1.xpose.msra.mxu0 0.0
        %2943 = vmatprep.subr.mxu0 0.0
        %2944 = vmatpush1.xpose.msra.mxu0 0.0
        %2945 = vmatprep.subr.mxu0 0.0
        %2946 = vmatpush1.xpose.msra.mxu0 0.0
        %2947 = vmatprep.subr.mxu0 0.0
        %2948 = vmatpush1.xpose.msra.mxu0 0.0
        %2949 = vmatprep.subr.mxu0 0.0
        %v2950 = vand.u32 %v2765, 4294901760
        %v2951 = vsub.f32 %v2765, %v2950
        %2952 = vmatpush1.xpose.msra.mxu0 %v2951
        %2953 = vmatprep.subr.mxu0 0.0
        %2954 = vmatpush2.xpose.msra.mxu0 0.0
        %2955 = vmatprep.subr.mxu0 0.0
        %2956 = vmatpush2.xpose.msra.mxu0 0.0
        %2957 = vmatprep.subr.mxu0 0.0
        %2958 = vmatpush2.xpose.msra.mxu0 0.0
        %2959 = vmatprep.subr.mxu0 0.0
        %2960 = vmatpush2.xpose.msra.mxu0 0.0
        %2961 = vmatprep.subr.mxu0 0.0
        %2962 = vmatpush2.xpose.msra.mxu0 0.0
        %2963 = vmatprep.subr.mxu0 0.0
        %2964 = vmatpush2.xpose.msra.mxu0 0.0
        %2965 = vmatprep.subr.mxu0 0.0
        %2966 = vmatpush2.xpose.msra.mxu0 0.0
        %2967 = vmatprep.subr.mxu0 0.0
        %2968 = vmatpush2.xpose.msra.mxu0 0.0
        %2969 = vmatprep.subr.mxu0 0.0
        %2970 = vmatpush2.xpose.msra.mxu0 0.0
        %2971 = vmatprep.subr.mxu0 0.0
        %2972 = vmatpush2.xpose.msra.mxu0 0.0
        %2973 = vmatprep.subr.mxu0 0.0
        %2974 = vmatpush2.xpose.msra.mxu0 0.0
        %2975 = vmatprep.subr.mxu0 0.0
        %2976 = vmatpush2.xpose.msra.mxu0 0.0
        %2977 = vmatprep.subr.mxu0 0.0
        %2978 = vmatpush2.xpose.msra.mxu0 0.0
        %2979 = vmatprep.subr.mxu0 0.0
        %2980 = vmatpush2.xpose.msra.mxu0 0.0
        %2981 = vmatprep.subr.mxu0 0.0
        %2982 = vmatpush2.xpose.msra.mxu0 0.0
        %2983 = vmatprep.subr.mxu0 0.0
        %2984 = vmatpush2.xpose.msra.mxu0 0.0
        %2985 = vmatprep.mubr.f32.mxu0 0.0
        %v2986 = vand.u32 %v2763, 4294901760
        %v2987 = vsub.f32 %v2763, %v2986
        %2988 = vmatmul.mubr.f32.gmra.mxu0 %v2987
        %v2989 = vpop.f32.mrf.mxu0
        %v2990 = vadd.f32 %v2916, %v2989
        %v2991 = vpop.f32.mrf.mxu0
        %2992 = vdwg.mxu0
        %2993 = vmatprep.subr.mxu0 0.0
        %2994 = vmatpush1.xpose.msra.mxu0 0.0
        %2995 = vmatprep.subr.mxu0 0.0
        %2996 = vmatpush1.xpose.msra.mxu0 0.0
        %2997 = vmatprep.subr.mxu0 0.0
        %2998 = vmatpush1.xpose.msra.mxu0 0.0
        %2999 = vmatprep.subr.mxu0 0.0
        %3000 = vmatpush1.xpose.msra.mxu0 0.0
        %3001 = vmatprep.subr.mxu0 0.0
        %3002 = vmatpush1.xpose.msra.mxu0 0.0
        %3003 = vmatprep.subr.mxu0 0.0
        %3004 = vmatpush1.xpose.msra.mxu0 0.0
        %3005 = vmatprep.subr.mxu0 0.0
        %3006 = vmatpush1.xpose.msra.mxu0 0.0
        %3007 = vmatprep.subr.mxu0 0.0
        %3008 = vmatpush1.xpose.msra.mxu0 0.0
        %3009 = vmatprep.subr.mxu0 0.0
        %3010 = vmatpush1.xpose.msra.mxu0 0.0
        %3011 = vmatprep.subr.mxu0 0.0
        %3012 = vmatpush1.xpose.msra.mxu0 0.0
        %3013 = vmatprep.subr.mxu0 0.0
        %3014 = vmatpush1.xpose.msra.mxu0 0.0
        %3015 = vmatprep.subr.mxu0 0.0
        %3016 = vmatpush1.xpose.msra.mxu0 0.0
        %3017 = vmatprep.subr.mxu0 0.0
        %3018 = vmatpush1.xpose.msra.mxu0 0.0
        %3019 = vmatprep.subr.mxu0 0.0
        %3020 = vmatpush1.xpose.msra.mxu0 0.0
        %3021 = vmatprep.subr.mxu0 0.0
        %3022 = vmatpush1.xpose.msra.mxu0 0.0
        %3023 = vmatprep.subr.mxu0 0.0
        %v3024 = vand.u32 %v2765, 4294901760
        %3025 = vmatpush1.xpose.msra.mxu0 %v3024
        %3026 = vmatprep.subr.mxu0 0.0
        %3027 = vmatpush2.xpose.msra.mxu0 0.0
        %3028 = vmatprep.subr.mxu0 0.0
        %3029 = vmatpush2.xpose.msra.mxu0 0.0
        %3030 = vmatprep.subr.mxu0 0.0
        %3031 = vmatpush2.xpose.msra.mxu0 0.0
        %3032 = vmatprep.subr.mxu0 0.0
        %3033 = vmatpush2.xpose.msra.mxu0 0.0
        %3034 = vmatprep.subr.mxu0 0.0
        %3035 = vmatpush2.xpose.msra.mxu0 0.0
        %3036 = vmatprep.subr.mxu0 0.0
        %3037 = vmatpush2.xpose.msra.mxu0 0.0
        %3038 = vmatprep.subr.mxu0 0.0
        %3039 = vmatpush2.xpose.msra.mxu0 0.0
        %3040 = vmatprep.subr.mxu0 0.0
        %3041 = vmatpush2.xpose.msra.mxu0 0.0
        %3042 = vmatprep.subr.mxu0 0.0
        %3043 = vmatpush2.xpose.msra.mxu0 0.0
        %3044 = vmatprep.subr.mxu0 0.0
        %3045 = vmatpush2.xpose.msra.mxu0 0.0
        %3046 = vmatprep.subr.mxu0 0.0
        %3047 = vmatpush2.xpose.msra.mxu0 0.0
        %3048 = vmatprep.subr.mxu0 0.0
        %3049 = vmatpush2.xpose.msra.mxu0 0.0
        %3050 = vmatprep.subr.mxu0 0.0
        %3051 = vmatpush2.xpose.msra.mxu0 0.0
        %3052 = vmatprep.subr.mxu0 0.0
        %3053 = vmatpush2.xpose.msra.mxu0 0.0
        %3054 = vmatprep.subr.mxu0 0.0
        %3055 = vmatpush2.xpose.msra.mxu0 0.0
        %3056 = vmatprep.subr.mxu0 0.0
        %3057 = vmatpush2.xpose.msra.mxu0 0.0
        %3058 = vmatprep.mubr.f32.mxu0 0.0
        %v3059 = vand.u32 %v2763, 4294901760
        %v3060 = vsub.f32 %v2763, %v3059
        %v3061 = vand.u32 %v3060, 4294901760
        %3062 = vmatmul.mubr.f32.gmra.mxu0 %v3061
        %v3063 = vpop.f32.mrf.mxu0
        %v3064 = vadd.f32 %v2990, %v3063
        %v3065 = vpop.f32.mrf.mxu0
        %3066 = vdwg.mxu0
        %3067 = vmatprep.subr.mxu0 0.0
        %3068 = vmatpush1.xpose.msra.mxu0 0.0
        %3069 = vmatprep.subr.mxu0 0.0
        %3070 = vmatpush1.xpose.msra.mxu0 0.0
        %3071 = vmatprep.subr.mxu0 0.0
        %3072 = vmatpush1.xpose.msra.mxu0 0.0
        %3073 = vmatprep.subr.mxu0 0.0
        %3074 = vmatpush1.xpose.msra.mxu0 0.0
        %3075 = vmatprep.subr.mxu0 0.0
        %3076 = vmatpush1.xpose.msra.mxu0 0.0
        %3077 = vmatprep.subr.mxu0 0.0
        %3078 = vmatpush1.xpose.msra.mxu0 0.0
        %3079 = vmatprep.subr.mxu0 0.0
        %3080 = vmatpush1.xpose.msra.mxu0 0.0
        %3081 = vmatprep.subr.mxu0 0.0
        %3082 = vmatpush1.xpose.msra.mxu0 0.0
        %3083 = vmatprep.subr.mxu0 0.0
        %3084 = vmatpush1.xpose.msra.mxu0 0.0
        %3085 = vmatprep.subr.mxu0 0.0
        %3086 = vmatpush1.xpose.msra.mxu0 0.0
        %3087 = vmatprep.subr.mxu0 0.0
        %3088 = vmatpush1.xpose.msra.mxu0 0.0
        %3089 = vmatprep.subr.mxu0 0.0
        %3090 = vmatpush1.xpose.msra.mxu0 0.0
        %3091 = vmatprep.subr.mxu0 0.0
        %3092 = vmatpush1.xpose.msra.mxu0 0.0
        %3093 = vmatprep.subr.mxu0 0.0
        %3094 = vmatpush1.xpose.msra.mxu0 0.0
        %3095 = vmatprep.subr.mxu0 0.0
        %3096 = vmatpush1.xpose.msra.mxu0 0.0
        %3097 = vmatprep.subr.mxu0 0.0
        %v3098 = vand.u32 %v2765, 4294901760
        %v3099 = vsub.f32 %v2765, %v3098
        %v3100 = vand.u32 %v3099, 4294901760
        %3101 = vmatpush1.xpose.msra.mxu0 %v3100
        %3102 = vmatprep.subr.mxu0 0.0
        %3103 = vmatpush2.xpose.msra.mxu0 0.0
        %3104 = vmatprep.subr.mxu0 0.0
        %3105 = vmatpush2.xpose.msra.mxu0 0.0
        %3106 = vmatprep.subr.mxu0 0.0
        %3107 = vmatpush2.xpose.msra.mxu0 0.0
        %3108 = vmatprep.subr.mxu0 0.0
        %3109 = vmatpush2.xpose.msra.mxu0 0.0
        %3110 = vmatprep.subr.mxu0 0.0
        %3111 = vmatpush2.xpose.msra.mxu0 0.0
        %3112 = vmatprep.subr.mxu0 0.0
        %3113 = vmatpush2.xpose.msra.mxu0 0.0
        %3114 = vmatprep.subr.mxu0 0.0
        %3115 = vmatpush2.xpose.msra.mxu0 0.0
        %3116 = vmatprep.subr.mxu0 0.0
        %3117 = vmatpush2.xpose.msra.mxu0 0.0
        %3118 = vmatprep.subr.mxu0 0.0
        %3119 = vmatpush2.xpose.msra.mxu0 0.0
        %3120 = vmatprep.subr.mxu0 0.0
        %3121 = vmatpush2.xpose.msra.mxu0 0.0
        %3122 = vmatprep.subr.mxu0 0.0
        %3123 = vmatpush2.xpose.msra.mxu0 0.0
        %3124 = vmatprep.subr.mxu0 0.0
        %3125 = vmatpush2.xpose.msra.mxu0 0.0
        %3126 = vmatprep.subr.mxu0 0.0
        %3127 = vmatpush2.xpose.msra.mxu0 0.0
        %3128 = vmatprep.subr.mxu0 0.0
        %3129 = vmatpush2.xpose.msra.mxu0 0.0
        %3130 = vmatprep.subr.mxu0 0.0
        %3131 = vmatpush2.xpose.msra.mxu0 0.0
        %3132 = vmatprep.subr.mxu0 0.0
        %3133 = vmatpush2.xpose.msra.mxu0 0.0
        %3134 = vmatprep.mubr.f32.mxu0 0.0
        %v3135 = vand.u32 %v2763, 4294901760
        %3136 = vmatmul.mubr.f32.gmra.mxu0 %v3135
        %v3137 = vpop.f32.mrf.mxu0
        %v3138 = vadd.f32 %v3064, %v3137
        %v3139 = vpop.f32.mrf.mxu0
        %3140 = vdwg.mxu0
        %3141 = vmatprep.subr.mxu0 0.0
        %3142 = vmatpush1.xpose.msra.mxu0 0.0
        %3143 = vmatprep.subr.mxu0 0.0
        %3144 = vmatpush1.xpose.msra.mxu0 0.0
        %3145 = vmatprep.subr.mxu0 0.0
        %3146 = vmatpush1.xpose.msra.mxu0 0.0
        %3147 = vmatprep.subr.mxu0 0.0
        %3148 = vmatpush1.xpose.msra.mxu0 0.0
        %3149 = vmatprep.subr.mxu0 0.0
        %3150 = vmatpush1.xpose.msra.mxu0 0.0
        %3151 = vmatprep.subr.mxu0 0.0
        %3152 = vmatpush1.xpose.msra.mxu0 0.0
        %3153 = vmatprep.subr.mxu0 0.0
        %3154 = vmatpush1.xpose.msra.mxu0 0.0
        %3155 = vmatprep.subr.mxu0 0.0
        %3156 = vmatpush1.xpose.msra.mxu0 0.0
        %3157 = vmatprep.subr.mxu0 0.0
        %3158 = vmatpush1.xpose.msra.mxu0 0.0
        %3159 = vmatprep.subr.mxu0 0.0
        %3160 = vmatpush1.xpose.msra.mxu0 0.0
        %3161 = vmatprep.subr.mxu0 0.0
        %3162 = vmatpush1.xpose.msra.mxu0 0.0
        %3163 = vmatprep.subr.mxu0 0.0
        %3164 = vmatpush1.xpose.msra.mxu0 0.0
        %3165 = vmatprep.subr.mxu0 0.0
        %3166 = vmatpush1.xpose.msra.mxu0 0.0
        %3167 = vmatprep.subr.mxu0 0.0
        %3168 = vmatpush1.xpose.msra.mxu0 0.0
        %3169 = vmatprep.subr.mxu0 0.0
        %3170 = vmatpush1.xpose.msra.mxu0 0.0
        %3171 = vmatprep.subr.mxu0 0.0
        %v3172 = vand.u32 %v2765, 4294901760
        %3173 = vmatpush1.xpose.msra.mxu0 %v3172
        %3174 = vmatprep.subr.mxu0 0.0
        %3175 = vmatpush2.xpose.msra.mxu0 0.0
        %3176 = vmatprep.subr.mxu0 0.0
        %3177 = vmatpush2.xpose.msra.mxu0 0.0
        %3178 = vmatprep.subr.mxu0 0.0
        %3179 = vmatpush2.xpose.msra.mxu0 0.0
        %3180 = vmatprep.subr.mxu0 0.0
        %3181 = vmatpush2.xpose.msra.mxu0 0.0
        %3182 = vmatprep.subr.mxu0 0.0
        %3183 = vmatpush2.xpose.msra.mxu0 0.0
        %3184 = vmatprep.subr.mxu0 0.0
        %3185 = vmatpush2.xpose.msra.mxu0 0.0
        %3186 = vmatprep.subr.mxu0 0.0
        %3187 = vmatpush2.xpose.msra.mxu0 0.0
        %3188 = vmatprep.subr.mxu0 0.0
        %3189 = vmatpush2.xpose.msra.mxu0 0.0
        %3190 = vmatprep.subr.mxu0 0.0
        %3191 = vmatpush2.xpose.msra.mxu0 0.0
        %3192 = vmatprep.subr.mxu0 0.0
        %3193 = vmatpush2.xpose.msra.mxu0 0.0
        %3194 = vmatprep.subr.mxu0 0.0
        %3195 = vmatpush2.xpose.msra.mxu0 0.0
        %3196 = vmatprep.subr.mxu0 0.0
        %3197 = vmatpush2.xpose.msra.mxu0 0.0
        %3198 = vmatprep.subr.mxu0 0.0
        %3199 = vmatpush2.xpose.msra.mxu0 0.0
        %3200 = vmatprep.subr.mxu0 0.0
        %3201 = vmatpush2.xpose.msra.mxu0 0.0
        %3202 = vmatprep.subr.mxu0 0.0
        %3203 = vmatpush2.xpose.msra.mxu0 0.0
        %3204 = vmatprep.subr.mxu0 0.0
        %3205 = vmatpush2.xpose.msra.mxu0 0.0
        %3206 = vmatprep.mubr.f32.mxu0 0.0
        %v3207 = vand.u32 %v2763, 4294901760
        %3208 = vmatmul.mubr.f32.gmra.mxu0 %v3207
        %v3209 = vpop.f32.mrf.mxu0
        %v3210 = vadd.f32 %v3138, %v3209
        %v3211 = vpop.f32.mrf.mxu0
        %3212 = vdwg.mxu0
        %v3213 = vsel %vm2297, %v3210, -inf
        %3214 = vmax.xlane.f32.xlu0 %v3213
        %v3215 = vpop.xlane.xlu0 %3214
        %v3216 = vsub.f32 %v3210, %v3215
        %v3217 = vmul.f32 %v3216, 1.442695
        %v3218 = vpow.pop %v3217
        %v3219 = vsel %vm2297, %v3218, 0.0
        %3220 = vadd.xlane.f32.xlu0 %v3219
        %v3221 = vpop.xlane.xlu0 %3220
        %3223 = vrot.lane.b32.xlu0 %v1840, 96
        %v3224 = vpop.permute.xlu0 %3223
        %v3227 = vsel %vm2297, %v3218, 0
        %3229 = vmatprep.subr.mxu0 0.0
        %3230 = vmatpush1.msra.mxu0 0.0
        %3231 = vmatprep.subr.mxu0 0.0
        %3232 = vmatpush1.msra.mxu0 0.0
        %3233 = vmatprep.subr.mxu0 0.0
        %3234 = vmatpush1.msra.mxu0 0.0
        %3235 = vmatprep.subr.mxu0 0.0
        %3236 = vmatpush1.msra.mxu0 0.0
        %3237 = vmatprep.subr.mxu0 0.0
        %3238 = vmatpush1.msra.mxu0 0.0
        %3239 = vmatprep.subr.mxu0 0.0
        %3240 = vmatpush1.msra.mxu0 0.0
        %3241 = vmatprep.subr.mxu0 0.0
        %3242 = vmatpush1.msra.mxu0 0.0
        %3243 = vmatprep.subr.mxu0 0.0
        %3244 = vmatpush1.msra.mxu0 0.0
        %3245 = vmatprep.subr.mxu0 0.0
        %3246 = vmatpush1.msra.mxu0 0.0
        %3247 = vmatprep.subr.mxu0 0.0
        %3248 = vmatpush1.msra.mxu0 0.0
        %3249 = vmatprep.subr.mxu0 0.0
        %3250 = vmatpush1.msra.mxu0 0.0
        %3251 = vmatprep.subr.mxu0 0.0
        %3252 = vmatpush1.msra.mxu0 0.0
        %3253 = vmatprep.subr.mxu0 0.0
        %3254 = vmatpush1.msra.mxu0 0.0
        %3255 = vmatprep.subr.mxu0 0.0
        %3256 = vmatpush1.msra.mxu0 0.0
        %3257 = vmatprep.subr.mxu0 0.0
        %3258 = vmatpush1.msra.mxu0 0.0
        %3259 = vmatprep.subr.mxu0 0.0
        %v3260 = vand.u32 %v3224, 4294901760
        %3261 = vmatpush1.msra.mxu0 %v3260
        %3262 = vmatprep.subr.mxu0 0.0
        %3263 = vmatpush2.msra.mxu0 0.0
        %3264 = vmatprep.subr.mxu0 0.0
        %3265 = vmatpush2.msra.mxu0 0.0
        %3266 = vmatprep.subr.mxu0 0.0
        %3267 = vmatpush2.msra.mxu0 0.0
        %3268 = vmatprep.subr.mxu0 0.0
        %3269 = vmatpush2.msra.mxu0 0.0
        %3270 = vmatprep.subr.mxu0 0.0
        %3271 = vmatpush2.msra.mxu0 0.0
        %3272 = vmatprep.subr.mxu0 0.0
        %3273 = vmatpush2.msra.mxu0 0.0
        %3274 = vmatprep.subr.mxu0 0.0
        %3275 = vmatpush2.msra.mxu0 0.0
        %3276 = vmatprep.subr.mxu0 0.0
        %3277 = vmatpush2.msra.mxu0 0.0
        %3278 = vmatprep.subr.mxu0 0.0
        %3279 = vmatpush2.msra.mxu0 0.0
        %3280 = vmatprep.subr.mxu0 0.0
        %3281 = vmatpush2.msra.mxu0 0.0
        %3282 = vmatprep.subr.mxu0 0.0
        %3283 = vmatpush2.msra.mxu0 0.0
        %3284 = vmatprep.subr.mxu0 0.0
        %3285 = vmatpush2.msra.mxu0 0.0
        %3286 = vmatprep.subr.mxu0 0.0
        %3287 = vmatpush2.msra.mxu0 0.0
        %3288 = vmatprep.subr.mxu0 0.0
        %3289 = vmatpush2.msra.mxu0 0.0
        %3290 = vmatprep.subr.mxu0 0.0
        %3291 = vmatpush2.msra.mxu0 0.0
        %3292 = vmatprep.subr.mxu0 0.0
        %3293 = vmatpush2.msra.mxu0 0.0
        %3294 = vmatprep.mubr.f32.mxu0 0.0
        %v3295 = vand.u32 %v3227, 4294901760
        %v3296 = vsub.f32 %v3227, %v3295
        %v3297 = vand.u32 %v3296, 4294901760
        %v3298 = vsub.f32 %v3296, %v3297
        %v3299 = vand.u32 %v3298, 4294901760
        %3300 = vmatmul.mubr.f32.gmra.mxu0 %v3299
        %v3301 = vpop.f32.mrf.mxu0
        %v3302 = vadd.f32 0.0, %v3301
        %v3303 = vpop.f32.mrf.mxu0
        %3304 = vdwg.mxu0
        %3305 = vmatprep.subr.mxu0 0.0
        %3306 = vmatpush1.msra.mxu0 0.0
        %3307 = vmatprep.subr.mxu0 0.0
        %3308 = vmatpush1.msra.mxu0 0.0
        %3309 = vmatprep.subr.mxu0 0.0
        %3310 = vmatpush1.msra.mxu0 0.0
        %3311 = vmatprep.subr.mxu0 0.0
        %3312 = vmatpush1.msra.mxu0 0.0
        %3313 = vmatprep.subr.mxu0 0.0
        %3314 = vmatpush1.msra.mxu0 0.0
        %3315 = vmatprep.subr.mxu0 0.0
        %3316 = vmatpush1.msra.mxu0 0.0
        %3317 = vmatprep.subr.mxu0 0.0
        %3318 = vmatpush1.msra.mxu0 0.0
        %3319 = vmatprep.subr.mxu0 0.0
        %3320 = vmatpush1.msra.mxu0 0.0
        %3321 = vmatprep.subr.mxu0 0.0
        %3322 = vmatpush1.msra.mxu0 0.0
        %3323 = vmatprep.subr.mxu0 0.0
        %3324 = vmatpush1.msra.mxu0 0.0
        %3325 = vmatprep.subr.mxu0 0.0
        %3326 = vmatpush1.msra.mxu0 0.0
        %3327 = vmatprep.subr.mxu0 0.0
        %3328 = vmatpush1.msra.mxu0 0.0
        %3329 = vmatprep.subr.mxu0 0.0
        %3330 = vmatpush1.msra.mxu0 0.0
        %3331 = vmatprep.subr.mxu0 0.0
        %3332 = vmatpush1.msra.mxu0 0.0
        %3333 = vmatprep.subr.mxu0 0.0
        %3334 = vmatpush1.msra.mxu0 0.0
        %3335 = vmatprep.subr.mxu0 0.0
        %v3336 = vand.u32 %v3224, 4294901760
        %v3337 = vsub.f32 %v3224, %v3336
        %v3338 = vand.u32 %v3337, 4294901760
        %v3339 = vsub.f32 %v3337, %v3338
        %v3340 = vand.u32 %v3339, 4294901760
        %3341 = vmatpush1.msra.mxu0 %v3340
        %3342 = vmatprep.subr.mxu0 0.0
        %3343 = vmatpush2.msra.mxu0 0.0
        %3344 = vmatprep.subr.mxu0 0.0
        %3345 = vmatpush2.msra.mxu0 0.0
        %3346 = vmatprep.subr.mxu0 0.0
        %3347 = vmatpush2.msra.mxu0 0.0
        %3348 = vmatprep.subr.mxu0 0.0
        %3349 = vmatpush2.msra.mxu0 0.0
        %3350 = vmatprep.subr.mxu0 0.0
        %3351 = vmatpush2.msra.mxu0 0.0
        %3352 = vmatprep.subr.mxu0 0.0
        %3353 = vmatpush2.msra.mxu0 0.0
        %3354 = vmatprep.subr.mxu0 0.0
        %3355 = vmatpush2.msra.mxu0 0.0
        %3356 = vmatprep.subr.mxu0 0.0
        %3357 = vmatpush2.msra.mxu0 0.0
        %3358 = vmatprep.subr.mxu0 0.0
        %3359 = vmatpush2.msra.mxu0 0.0
        %3360 = vmatprep.subr.mxu0 0.0
        %3361 = vmatpush2.msra.mxu0 0.0
        %3362 = vmatprep.subr.mxu0 0.0
        %3363 = vmatpush2.msra.mxu0 0.0
        %3364 = vmatprep.subr.mxu0 0.0
        %3365 = vmatpush2.msra.mxu0 0.0
        %3366 = vmatprep.subr.mxu0 0.0
        %3367 = vmatpush2.msra.mxu0 0.0
        %3368 = vmatprep.subr.mxu0 0.0
        %3369 = vmatpush2.msra.mxu0 0.0
        %3370 = vmatprep.subr.mxu0 0.0
        %3371 = vmatpush2.msra.mxu0 0.0
        %3372 = vmatprep.subr.mxu0 0.0
        %3373 = vmatpush2.msra.mxu0 0.0
        %3374 = vmatprep.mubr.f32.mxu0 0.0
        %v3375 = vand.u32 %v3227, 4294901760
        %3376 = vmatmul.mubr.f32.gmra.mxu0 %v3375
        %v3377 = vpop.f32.mrf.mxu0
        %v3378 = vadd.f32 %v3302, %v3377
        %v3379 = vpop.f32.mrf.mxu0
        %3380 = vdwg.mxu0
        %3381 = vmatprep.subr.mxu0 0.0
        %3382 = vmatpush1.msra.mxu0 0.0
        %3383 = vmatprep.subr.mxu0 0.0
        %3384 = vmatpush1.msra.mxu0 0.0
        %3385 = vmatprep.subr.mxu0 0.0
        %3386 = vmatpush1.msra.mxu0 0.0
        %3387 = vmatprep.subr.mxu0 0.0
        %3388 = vmatpush1.msra.mxu0 0.0
        %3389 = vmatprep.subr.mxu0 0.0
        %3390 = vmatpush1.msra.mxu0 0.0
        %3391 = vmatprep.subr.mxu0 0.0
        %3392 = vmatpush1.msra.mxu0 0.0
        %3393 = vmatprep.subr.mxu0 0.0
        %3394 = vmatpush1.msra.mxu0 0.0
        %3395 = vmatprep.subr.mxu0 0.0
        %3396 = vmatpush1.msra.mxu0 0.0
        %3397 = vmatprep.subr.mxu0 0.0
        %3398 = vmatpush1.msra.mxu0 0.0
        %3399 = vmatprep.subr.mxu0 0.0
        %3400 = vmatpush1.msra.mxu0 0.0
        %3401 = vmatprep.subr.mxu0 0.0
        %3402 = vmatpush1.msra.mxu0 0.0
        %3403 = vmatprep.subr.mxu0 0.0
        %3404 = vmatpush1.msra.mxu0 0.0
        %3405 = vmatprep.subr.mxu0 0.0
        %3406 = vmatpush1.msra.mxu0 0.0
        %3407 = vmatprep.subr.mxu0 0.0
        %3408 = vmatpush1.msra.mxu0 0.0
        %3409 = vmatprep.subr.mxu0 0.0
        %3410 = vmatpush1.msra.mxu0 0.0
        %3411 = vmatprep.subr.mxu0 0.0
        %v3412 = vand.u32 %v3224, 4294901760
        %v3413 = vsub.f32 %v3224, %v3412
        %3414 = vmatpush1.msra.mxu0 %v3413
        %3415 = vmatprep.subr.mxu0 0.0
        %3416 = vmatpush2.msra.mxu0 0.0
        %3417 = vmatprep.subr.mxu0 0.0
        %3418 = vmatpush2.msra.mxu0 0.0
        %3419 = vmatprep.subr.mxu0 0.0
        %3420 = vmatpush2.msra.mxu0 0.0
        %3421 = vmatprep.subr.mxu0 0.0
        %3422 = vmatpush2.msra.mxu0 0.0
        %3423 = vmatprep.subr.mxu0 0.0
        %3424 = vmatpush2.msra.mxu0 0.0
        %3425 = vmatprep.subr.mxu0 0.0
        %3426 = vmatpush2.msra.mxu0 0.0
        %3427 = vmatprep.subr.mxu0 0.0
        %3428 = vmatpush2.msra.mxu0 0.0
        %3429 = vmatprep.subr.mxu0 0.0
        %3430 = vmatpush2.msra.mxu0 0.0
        %3431 = vmatprep.subr.mxu0 0.0
        %3432 = vmatpush2.msra.mxu0 0.0
        %3433 = vmatprep.subr.mxu0 0.0
        %3434 = vmatpush2.msra.mxu0 0.0
        %3435 = vmatprep.subr.mxu0 0.0
        %3436 = vmatpush2.msra.mxu0 0.0
        %3437 = vmatprep.subr.mxu0 0.0
        %3438 = vmatpush2.msra.mxu0 0.0
        %3439 = vmatprep.subr.mxu0 0.0
        %3440 = vmatpush2.msra.mxu0 0.0
        %3441 = vmatprep.subr.mxu0 0.0
        %3442 = vmatpush2.msra.mxu0 0.0
        %3443 = vmatprep.subr.mxu0 0.0
        %3444 = vmatpush2.msra.mxu0 0.0
        %3445 = vmatprep.subr.mxu0 0.0
        %3446 = vmatpush2.msra.mxu0 0.0
        %3447 = vmatprep.mubr.f32.mxu0 0.0
        %v3448 = vand.u32 %v3227, 4294901760
        %v3449 = vsub.f32 %v3227, %v3448
        %3450 = vmatmul.mubr.f32.gmra.mxu0 %v3449
        %v3451 = vpop.f32.mrf.mxu0
        %v3452 = vadd.f32 %v3378, %v3451
        %v3453 = vpop.f32.mrf.mxu0
        %3454 = vdwg.mxu0
        %3455 = vmatprep.subr.mxu0 0.0
        %3456 = vmatpush1.msra.mxu0 0.0
        %3457 = vmatprep.subr.mxu0 0.0
        %3458 = vmatpush1.msra.mxu0 0.0
        %3459 = vmatprep.subr.mxu0 0.0
        %3460 = vmatpush1.msra.mxu0 0.0
        %3461 = vmatprep.subr.mxu0 0.0
        %3462 = vmatpush1.msra.mxu0 0.0
        %3463 = vmatprep.subr.mxu0 0.0
        %3464 = vmatpush1.msra.mxu0 0.0
        %3465 = vmatprep.subr.mxu0 0.0
        %3466 = vmatpush1.msra.mxu0 0.0
        %3467 = vmatprep.subr.mxu0 0.0
        %3468 = vmatpush1.msra.mxu0 0.0
        %3469 = vmatprep.subr.mxu0 0.0
        %3470 = vmatpush1.msra.mxu0 0.0
        %3471 = vmatprep.subr.mxu0 0.0
        %3472 = vmatpush1.msra.mxu0 0.0
        %3473 = vmatprep.subr.mxu0 0.0
        %3474 = vmatpush1.msra.mxu0 0.0
        %3475 = vmatprep.subr.mxu0 0.0
        %3476 = vmatpush1.msra.mxu0 0.0
        %3477 = vmatprep.subr.mxu0 0.0
        %3478 = vmatpush1.msra.mxu0 0.0
        %3479 = vmatprep.subr.mxu0 0.0
        %3480 = vmatpush1.msra.mxu0 0.0
        %3481 = vmatprep.subr.mxu0 0.0
        %3482 = vmatpush1.msra.mxu0 0.0
        %3483 = vmatprep.subr.mxu0 0.0
        %3484 = vmatpush1.msra.mxu0 0.0
        %3485 = vmatprep.subr.mxu0 0.0
        %v3486 = vand.u32 %v3224, 4294901760
        %3487 = vmatpush1.msra.mxu0 %v3486
        %3488 = vmatprep.subr.mxu0 0.0
        %3489 = vmatpush2.msra.mxu0 0.0
        %3490 = vmatprep.subr.mxu0 0.0
        %3491 = vmatpush2.msra.mxu0 0.0
        %3492 = vmatprep.subr.mxu0 0.0
        %3493 = vmatpush2.msra.mxu0 0.0
        %3494 = vmatprep.subr.mxu0 0.0
        %3495 = vmatpush2.msra.mxu0 0.0
        %3496 = vmatprep.subr.mxu0 0.0
        %3497 = vmatpush2.msra.mxu0 0.0
        %3498 = vmatprep.subr.mxu0 0.0
        %3499 = vmatpush2.msra.mxu0 0.0
        %3500 = vmatprep.subr.mxu0 0.0
        %3501 = vmatpush2.msra.mxu0 0.0
        %3502 = vmatprep.subr.mxu0 0.0
        %3503 = vmatpush2.msra.mxu0 0.0
        %3504 = vmatprep.subr.mxu0 0.0
        %3505 = vmatpush2.msra.mxu0 0.0
        %3506 = vmatprep.subr.mxu0 0.0
        %3507 = vmatpush2.msra.mxu0 0.0
        %3508 = vmatprep.subr.mxu0 0.0
        %3509 = vmatpush2.msra.mxu0 0.0
        %3510 = vmatprep.subr.mxu0 0.0
        %3511 = vmatpush2.msra.mxu0 0.0
        %3512 = vmatprep.subr.mxu0 0.0
        %3513 = vmatpush2.msra.mxu0 0.0
        %3514 = vmatprep.subr.mxu0 0.0
        %3515 = vmatpush2.msra.mxu0 0.0
        %3516 = vmatprep.subr.mxu0 0.0
        %3517 = vmatpush2.msra.mxu0 0.0
        %3518 = vmatprep.subr.mxu0 0.0
        %3519 = vmatpush2.msra.mxu0 0.0
        %3520 = vmatprep.mubr.f32.mxu0 0.0
        %v3521 = vand.u32 %v3227, 4294901760
        %v3522 = vsub.f32 %v3227, %v3521
        %v3523 = vand.u32 %v3522, 4294901760
        %3524 = vmatmul.mubr.f32.gmra.mxu0 %v3523
        %v3525 = vpop.f32.mrf.mxu0
        %v3526 = vadd.f32 %v3452, %v3525
        %v3527 = vpop.f32.mrf.mxu0
        %3528 = vdwg.mxu0
        %3529 = vmatprep.subr.mxu0 0.0
        %3530 = vmatpush1.msra.mxu0 0.0
        %3531 = vmatprep.subr.mxu0 0.0
        %3532 = vmatpush1.msra.mxu0 0.0
        %3533 = vmatprep.subr.mxu0 0.0
        %3534 = vmatpush1.msra.mxu0 0.0
        %3535 = vmatprep.subr.mxu0 0.0
        %3536 = vmatpush1.msra.mxu0 0.0
        %3537 = vmatprep.subr.mxu0 0.0
        %3538 = vmatpush1.msra.mxu0 0.0
        %3539 = vmatprep.subr.mxu0 0.0
        %3540 = vmatpush1.msra.mxu0 0.0
        %3541 = vmatprep.subr.mxu0 0.0
        %3542 = vmatpush1.msra.mxu0 0.0
        %3543 = vmatprep.subr.mxu0 0.0
        %3544 = vmatpush1.msra.mxu0 0.0
        %3545 = vmatprep.subr.mxu0 0.0
        %3546 = vmatpush1.msra.mxu0 0.0
        %3547 = vmatprep.subr.mxu0 0.0
        %3548 = vmatpush1.msra.mxu0 0.0
        %3549 = vmatprep.subr.mxu0 0.0
        %3550 = vmatpush1.msra.mxu0 0.0
        %3551 = vmatprep.subr.mxu0 0.0
        %3552 = vmatpush1.msra.mxu0 0.0
        %3553 = vmatprep.subr.mxu0 0.0
        %3554 = vmatpush1.msra.mxu0 0.0
        %3555 = vmatprep.subr.mxu0 0.0
        %3556 = vmatpush1.msra.mxu0 0.0
        %3557 = vmatprep.subr.mxu0 0.0
        %3558 = vmatpush1.msra.mxu0 0.0
        %3559 = vmatprep.subr.mxu0 0.0
        %v3560 = vand.u32 %v3224, 4294901760
        %v3561 = vsub.f32 %v3224, %v3560
        %v3562 = vand.u32 %v3561, 4294901760
        %3563 = vmatpush1.msra.mxu0 %v3562
        %3564 = vmatprep.subr.mxu0 0.0
        %3565 = vmatpush2.msra.mxu0 0.0
        %3566 = vmatprep.subr.mxu0 0.0
        %3567 = vmatpush2.msra.mxu0 0.0
        %3568 = vmatprep.subr.mxu0 0.0
        %3569 = vmatpush2.msra.mxu0 0.0
        %3570 = vmatprep.subr.mxu0 0.0
        %3571 = vmatpush2.msra.mxu0 0.0
        %3572 = vmatprep.subr.mxu0 0.0
        %3573 = vmatpush2.msra.mxu0 0.0
        %3574 = vmatprep.subr.mxu0 0.0
        %3575 = vmatpush2.msra.mxu0 0.0
        %3576 = vmatprep.subr.mxu0 0.0
        %3577 = vmatpush2.msra.mxu0 0.0
        %3578 = vmatprep.subr.mxu0 0.0
        %3579 = vmatpush2.msra.mxu0 0.0
        %3580 = vmatprep.subr.mxu0 0.0
        %3581 = vmatpush2.msra.mxu0 0.0
        %3582 = vmatprep.subr.mxu0 0.0
        %3583 = vmatpush2.msra.mxu0 0.0
        %3584 = vmatprep.subr.mxu0 0.0
        %3585 = vmatpush2.msra.mxu0 0.0
        %3586 = vmatprep.subr.mxu0 0.0
        %3587 = vmatpush2.msra.mxu0 0.0
        %3588 = vmatprep.subr.mxu0 0.0
        %3589 = vmatpush2.msra.mxu0 0.0
        %3590 = vmatprep.subr.mxu0 0.0
        %3591 = vmatpush2.msra.mxu0 0.0
        %3592 = vmatprep.subr.mxu0 0.0
        %3593 = vmatpush2.msra.mxu0 0.0
        %3594 = vmatprep.subr.mxu0 0.0
        %3595 = vmatpush2.msra.mxu0 0.0
        %3596 = vmatprep.mubr.f32.mxu0 0.0
        %v3597 = vand.u32 %v3227, 4294901760
        %3598 = vmatmul.mubr.f32.gmra.mxu0 %v3597
        %v3599 = vpop.f32.mrf.mxu0
        %v3600 = vadd.f32 %v3526, %v3599
        %v3601 = vpop.f32.mrf.mxu0
        %3602 = vdwg.mxu0
        %3603 = vmatprep.subr.mxu0 0.0
        %3604 = vmatpush1.msra.mxu0 0.0
        %3605 = vmatprep.subr.mxu0 0.0
        %3606 = vmatpush1.msra.mxu0 0.0
        %3607 = vmatprep.subr.mxu0 0.0
        %3608 = vmatpush1.msra.mxu0 0.0
        %3609 = vmatprep.subr.mxu0 0.0
        %3610 = vmatpush1.msra.mxu0 0.0
        %3611 = vmatprep.subr.mxu0 0.0
        %3612 = vmatpush1.msra.mxu0 0.0
        %3613 = vmatprep.subr.mxu0 0.0
        %3614 = vmatpush1.msra.mxu0 0.0
        %3615 = vmatprep.subr.mxu0 0.0
        %3616 = vmatpush1.msra.mxu0 0.0
        %3617 = vmatprep.subr.mxu0 0.0
        %3618 = vmatpush1.msra.mxu0 0.0
        %3619 = vmatprep.subr.mxu0 0.0
        %3620 = vmatpush1.msra.mxu0 0.0
        %3621 = vmatprep.subr.mxu0 0.0
        %3622 = vmatpush1.msra.mxu0 0.0
        %3623 = vmatprep.subr.mxu0 0.0
        %3624 = vmatpush1.msra.mxu0 0.0
        %3625 = vmatprep.subr.mxu0 0.0
        %3626 = vmatpush1.msra.mxu0 0.0
        %3627 = vmatprep.subr.mxu0 0.0
        %3628 = vmatpush1.msra.mxu0 0.0
        %3629 = vmatprep.subr.mxu0 0.0
        %3630 = vmatpush1.msra.mxu0 0.0
        %3631 = vmatprep.subr.mxu0 0.0
        %3632 = vmatpush1.msra.mxu0 0.0
        %3633 = vmatprep.subr.mxu0 0.0
        %v3634 = vand.u32 %v3224, 4294901760
        %3635 = vmatpush1.msra.mxu0 %v3634
        %3636 = vmatprep.subr.mxu0 0.0
        %3637 = vmatpush2.msra.mxu0 0.0
        %3638 = vmatprep.subr.mxu0 0.0
        %3639 = vmatpush2.msra.mxu0 0.0
        %3640 = vmatprep.subr.mxu0 0.0
        %3641 = vmatpush2.msra.mxu0 0.0
        %3642 = vmatprep.subr.mxu0 0.0
        %3643 = vmatpush2.msra.mxu0 0.0
        %3644 = vmatprep.subr.mxu0 0.0
        %3645 = vmatpush2.msra.mxu0 0.0
        %3646 = vmatprep.subr.mxu0 0.0
        %3647 = vmatpush2.msra.mxu0 0.0
        %3648 = vmatprep.subr.mxu0 0.0
        %3649 = vmatpush2.msra.mxu0 0.0
        %3650 = vmatprep.subr.mxu0 0.0
        %3651 = vmatpush2.msra.mxu0 0.0
        %3652 = vmatprep.subr.mxu0 0.0
        %3653 = vmatpush2.msra.mxu0 0.0
        %3654 = vmatprep.subr.mxu0 0.0
        %3655 = vmatpush2.msra.mxu0 0.0
        %3656 = vmatprep.subr.mxu0 0.0
        %3657 = vmatpush2.msra.mxu0 0.0
        %3658 = vmatprep.subr.mxu0 0.0
        %3659 = vmatpush2.msra.mxu0 0.0
        %3660 = vmatprep.subr.mxu0 0.0
        %3661 = vmatpush2.msra.mxu0 0.0
        %3662 = vmatprep.subr.mxu0 0.0
        %3663 = vmatpush2.msra.mxu0 0.0
        %3664 = vmatprep.subr.mxu0 0.0
        %3665 = vmatpush2.msra.mxu0 0.0
        %3666 = vmatprep.subr.mxu0 0.0
        %3667 = vmatpush2.msra.mxu0 0.0
        %3668 = vmatprep.mubr.f32.mxu0 0.0
        %v3669 = vand.u32 %v3227, 4294901760
        %3670 = vmatmul.mubr.f32.gmra.mxu0 %v3669
        %v3671 = vpop.f32.mrf.mxu0
        %v3672 = vadd.f32 %v3600, %v3671
        %v3673 = vpop.f32.mrf.mxu0
        %3674 = vdwg.mxu0
        %v3675 = vrcp.pop %v3221
        %v3676 = vmul.f32 %v3672, %v3675
        %3678 = vrot.lane.b32.xlu0 %v3676, 32
        %v3679 = vpop.permute.xlu0 %3678
        %vm3681 = vcmask 523520
        %3682 = vst.msk [vmem:[#allocation2] sm:$0xff] %vm3681, %v3679
        %3683 = vrot.lane.b32.xlu0 %v1843, 64
        %v3684 = vpop.permute.xlu0 %3683
        %3685 = vrot.lane.b32.xlu0 %v1200, 64
        %v3686 = vpop.permute.xlu0 %3685
        %v3687 = vsel %vm1844, %v3684, 0
        %v3689 = vsel %vm1844, %v3686, 0
        %3691 = vmatprep.subr.mxu0 0.0
        %3692 = vmatpush1.xpose.msra.mxu0 0.0
        %3693 = vmatprep.subr.mxu0 0.0
        %3694 = vmatpush1.xpose.msra.mxu0 0.0
        %3695 = vmatprep.subr.mxu0 0.0
        %3696 = vmatpush1.xpose.msra.mxu0 0.0
        %3697 = vmatprep.subr.mxu0 0.0
        %3698 = vmatpush1.xpose.msra.mxu0 0.0
        %3699 = vmatprep.subr.mxu0 0.0
        %3700 = vmatpush1.xpose.msra.mxu0 0.0
        %3701 = vmatprep.subr.mxu0 0.0
        %3702 = vmatpush1.xpose.msra.mxu0 0.0
        %3703 = vmatprep.subr.mxu0 0.0
        %3704 = vmatpush1.xpose.msra.mxu0 0.0
        %3705 = vmatprep.subr.mxu0 0.0
        %3706 = vmatpush1.xpose.msra.mxu0 0.0
        %3707 = vmatprep.subr.mxu0 0.0
        %3708 = vmatpush1.xpose.msra.mxu0 0.0
        %3709 = vmatprep.subr.mxu0 0.0
        %3710 = vmatpush1.xpose.msra.mxu0 0.0
        %3711 = vmatprep.subr.mxu0 0.0
        %3712 = vmatpush1.xpose.msra.mxu0 0.0
        %3713 = vmatprep.subr.mxu0 0.0
        %3714 = vmatpush1.xpose.msra.mxu0 0.0
        %3715 = vmatprep.subr.mxu0 0.0
        %3716 = vmatpush1.xpose.msra.mxu0 0.0
        %3717 = vmatprep.subr.mxu0 0.0
        %3718 = vmatpush1.xpose.msra.mxu0 0.0
        %3719 = vmatprep.subr.mxu0 0.0
        %3720 = vmatpush1.xpose.msra.mxu0 0.0
        %3721 = vmatprep.subr.mxu0 0.0
        %v3722 = vand.u32 %v3689, 4294901760
        %3723 = vmatpush1.xpose.msra.mxu0 %v3722
        %3724 = vmatprep.subr.mxu0 0.0
        %3725 = vmatpush2.xpose.msra.mxu0 0.0
        %3726 = vmatprep.subr.mxu0 0.0
        %3727 = vmatpush2.xpose.msra.mxu0 0.0
        %3728 = vmatprep.subr.mxu0 0.0
        %3729 = vmatpush2.xpose.msra.mxu0 0.0
        %3730 = vmatprep.subr.mxu0 0.0
        %3731 = vmatpush2.xpose.msra.mxu0 0.0
        %3732 = vmatprep.subr.mxu0 0.0
        %3733 = vmatpush2.xpose.msra.mxu0 0.0
        %3734 = vmatprep.subr.mxu0 0.0
        %3735 = vmatpush2.xpose.msra.mxu0 0.0
        %3736 = vmatprep.subr.mxu0 0.0
        %3737 = vmatpush2.xpose.msra.mxu0 0.0
        %3738 = vmatprep.subr.mxu0 0.0
        %3739 = vmatpush2.xpose.msra.mxu0 0.0
        %3740 = vmatprep.subr.mxu0 0.0
        %3741 = vmatpush2.xpose.msra.mxu0 0.0
        %3742 = vmatprep.subr.mxu0 0.0
        %3743 = vmatpush2.xpose.msra.mxu0 0.0
        %3744 = vmatprep.subr.mxu0 0.0
        %3745 = vmatpush2.xpose.msra.mxu0 0.0
        %3746 = vmatprep.subr.mxu0 0.0
        %3747 = vmatpush2.xpose.msra.mxu0 0.0
        %3748 = vmatprep.subr.mxu0 0.0
        %3749 = vmatpush2.xpose.msra.mxu0 0.0
        %3750 = vmatprep.subr.mxu0 0.0
        %3751 = vmatpush2.xpose.msra.mxu0 0.0
        %3752 = vmatprep.subr.mxu0 0.0
        %3753 = vmatpush2.xpose.msra.mxu0 0.0
        %3754 = vmatprep.subr.mxu0 0.0
        %3755 = vmatpush2.xpose.msra.mxu0 0.0
        %3756 = vmatprep.mubr.f32.mxu0 0.0
        %v3757 = vand.u32 %v3687, 4294901760
        %v3758 = vsub.f32 %v3687, %v3757
        %v3759 = vand.u32 %v3758, 4294901760
        %v3760 = vsub.f32 %v3758, %v3759
        %v3761 = vand.u32 %v3760, 4294901760
        %3762 = vmatmul.mubr.f32.gmra.mxu0 %v3761
        %v3763 = vpop.f32.mrf.mxu0
        %v3764 = vadd.f32 0.0, %v3763
        %v3765 = vpop.f32.mrf.mxu0
        %3766 = vdwg.mxu0
        %3767 = vmatprep.subr.mxu0 0.0
        %3768 = vmatpush1.xpose.msra.mxu0 0.0
        %3769 = vmatprep.subr.mxu0 0.0
        %3770 = vmatpush1.xpose.msra.mxu0 0.0
        %3771 = vmatprep.subr.mxu0 0.0
        %3772 = vmatpush1.xpose.msra.mxu0 0.0
        %3773 = vmatprep.subr.mxu0 0.0
        %3774 = vmatpush1.xpose.msra.mxu0 0.0
        %3775 = vmatprep.subr.mxu0 0.0
        %3776 = vmatpush1.xpose.msra.mxu0 0.0
        %3777 = vmatprep.subr.mxu0 0.0
        %3778 = vmatpush1.xpose.msra.mxu0 0.0
        %3779 = vmatprep.subr.mxu0 0.0
        %3780 = vmatpush1.xpose.msra.mxu0 0.0
        %3781 = vmatprep.subr.mxu0 0.0
        %3782 = vmatpush1.xpose.msra.mxu0 0.0
        %3783 = vmatprep.subr.mxu0 0.0
        %3784 = vmatpush1.xpose.msra.mxu0 0.0
        %3785 = vmatprep.subr.mxu0 0.0
        %3786 = vmatpush1.xpose.msra.mxu0 0.0
        %3787 = vmatprep.subr.mxu0 0.0
        %3788 = vmatpush1.xpose.msra.mxu0 0.0
        %3789 = vmatprep.subr.mxu0 0.0
        %3790 = vmatpush1.xpose.msra.mxu0 0.0
        %3791 = vmatprep.subr.mxu0 0.0
        %3792 = vmatpush1.xpose.msra.mxu0 0.0
        %3793 = vmatprep.subr.mxu0 0.0
        %3794 = vmatpush1.xpose.msra.mxu0 0.0
        %3795 = vmatprep.subr.mxu0 0.0
        %3796 = vmatpush1.xpose.msra.mxu0 0.0
        %3797 = vmatprep.subr.mxu0 0.0
        %v3798 = vand.u32 %v3689, 4294901760
        %v3799 = vsub.f32 %v3689, %v3798
        %v3800 = vand.u32 %v3799, 4294901760
        %v3801 = vsub.f32 %v3799, %v3800
        %v3802 = vand.u32 %v3801, 4294901760
        %3803 = vmatpush1.xpose.msra.mxu0 %v3802
        %3804 = vmatprep.subr.mxu0 0.0
        %3805 = vmatpush2.xpose.msra.mxu0 0.0
        %3806 = vmatprep.subr.mxu0 0.0
        %3807 = vmatpush2.xpose.msra.mxu0 0.0
        %3808 = vmatprep.subr.mxu0 0.0
        %3809 = vmatpush2.xpose.msra.mxu0 0.0
        %3810 = vmatprep.subr.mxu0 0.0
        %3811 = vmatpush2.xpose.msra.mxu0 0.0
        %3812 = vmatprep.subr.mxu0 0.0
        %3813 = vmatpush2.xpose.msra.mxu0 0.0
        %3814 = vmatprep.subr.mxu0 0.0
        %3815 = vmatpush2.xpose.msra.mxu0 0.0
        %3816 = vmatprep.subr.mxu0 0.0
        %3817 = vmatpush2.xpose.msra.mxu0 0.0
        %3818 = vmatprep.subr.mxu0 0.0
        %3819 = vmatpush2.xpose.msra.mxu0 0.0
        %3820 = vmatprep.subr.mxu0 0.0
        %3821 = vmatpush2.xpose.msra.mxu0 0.0
        %3822 = vmatprep.subr.mxu0 0.0
        %3823 = vmatpush2.xpose.msra.mxu0 0.0
        %3824 = vmatprep.subr.mxu0 0.0
        %3825 = vmatpush2.xpose.msra.mxu0 0.0
        %3826 = vmatprep.subr.mxu0 0.0
        %3827 = vmatpush2.xpose.msra.mxu0 0.0
        %3828 = vmatprep.subr.mxu0 0.0
        %3829 = vmatpush2.xpose.msra.mxu0 0.0
        %3830 = vmatprep.subr.mxu0 0.0
        %3831 = vmatpush2.xpose.msra.mxu0 0.0
        %3832 = vmatprep.subr.mxu0 0.0
        %3833 = vmatpush2.xpose.msra.mxu0 0.0
        %3834 = vmatprep.subr.mxu0 0.0
        %3835 = vmatpush2.xpose.msra.mxu0 0.0
        %3836 = vmatprep.mubr.f32.mxu0 0.0
        %v3837 = vand.u32 %v3687, 4294901760
        %3838 = vmatmul.mubr.f32.gmra.mxu0 %v3837
        %v3839 = vpop.f32.mrf.mxu0
        %v3840 = vadd.f32 %v3764, %v3839
        %v3841 = vpop.f32.mrf.mxu0
        %3842 = vdwg.mxu0
        %3843 = vmatprep.subr.mxu0 0.0
        %3844 = vmatpush1.xpose.msra.mxu0 0.0
        %3845 = vmatprep.subr.mxu0 0.0
        %3846 = vmatpush1.xpose.msra.mxu0 0.0
        %3847 = vmatprep.subr.mxu0 0.0
        %3848 = vmatpush1.xpose.msra.mxu0 0.0
        %3849 = vmatprep.subr.mxu0 0.0
        %3850 = vmatpush1.xpose.msra.mxu0 0.0
        %3851 = vmatprep.subr.mxu0 0.0
        %3852 = vmatpush1.xpose.msra.mxu0 0.0
        %3853 = vmatprep.subr.mxu0 0.0
        %3854 = vmatpush1.xpose.msra.mxu0 0.0
        %3855 = vmatprep.subr.mxu0 0.0
        %3856 = vmatpush1.xpose.msra.mxu0 0.0
        %3857 = vmatprep.subr.mxu0 0.0
        %3858 = vmatpush1.xpose.msra.mxu0 0.0
        %3859 = vmatprep.subr.mxu0 0.0
        %3860 = vmatpush1.xpose.msra.mxu0 0.0
        %3861 = vmatprep.subr.mxu0 0.0
        %3862 = vmatpush1.xpose.msra.mxu0 0.0
        %3863 = vmatprep.subr.mxu0 0.0
        %3864 = vmatpush1.xpose.msra.mxu0 0.0
        %3865 = vmatprep.subr.mxu0 0.0
        %3866 = vmatpush1.xpose.msra.mxu0 0.0
        %3867 = vmatprep.subr.mxu0 0.0
        %3868 = vmatpush1.xpose.msra.mxu0 0.0
        %3869 = vmatprep.subr.mxu0 0.0
        %3870 = vmatpush1.xpose.msra.mxu0 0.0
        %3871 = vmatprep.subr.mxu0 0.0
        %3872 = vmatpush1.xpose.msra.mxu0 0.0
        %3873 = vmatprep.subr.mxu0 0.0
        %v3874 = vand.u32 %v3689, 4294901760
        %v3875 = vsub.f32 %v3689, %v3874
        %3876 = vmatpush1.xpose.msra.mxu0 %v3875
        %3877 = vmatprep.subr.mxu0 0.0
        %3878 = vmatpush2.xpose.msra.mxu0 0.0
        %3879 = vmatprep.subr.mxu0 0.0
        %3880 = vmatpush2.xpose.msra.mxu0 0.0
        %3881 = vmatprep.subr.mxu0 0.0
        %3882 = vmatpush2.xpose.msra.mxu0 0.0
        %3883 = vmatprep.subr.mxu0 0.0
        %3884 = vmatpush2.xpose.msra.mxu0 0.0
        %3885 = vmatprep.subr.mxu0 0.0
        %3886 = vmatpush2.xpose.msra.mxu0 0.0
        %3887 = vmatprep.subr.mxu0 0.0
        %3888 = vmatpush2.xpose.msra.mxu0 0.0
        %3889 = vmatprep.subr.mxu0 0.0
        %3890 = vmatpush2.xpose.msra.mxu0 0.0
        %3891 = vmatprep.subr.mxu0 0.0
        %3892 = vmatpush2.xpose.msra.mxu0 0.0
        %3893 = vmatprep.subr.mxu0 0.0
        %3894 = vmatpush2.xpose.msra.mxu0 0.0
        %3895 = vmatprep.subr.mxu0 0.0
        %3896 = vmatpush2.xpose.msra.mxu0 0.0
        %3897 = vmatprep.subr.mxu0 0.0
        %3898 = vmatpush2.xpose.msra.mxu0 0.0
        %3899 = vmatprep.subr.mxu0 0.0
        %3900 = vmatpush2.xpose.msra.mxu0 0.0
        %3901 = vmatprep.subr.mxu0 0.0
        %3902 = vmatpush2.xpose.msra.mxu0 0.0
        %3903 = vmatprep.subr.mxu0 0.0
        %3904 = vmatpush2.xpose.msra.mxu0 0.0
        %3905 = vmatprep.subr.mxu0 0.0
        %3906 = vmatpush2.xpose.msra.mxu0 0.0
        %3907 = vmatprep.subr.mxu0 0.0
        %3908 = vmatpush2.xpose.msra.mxu0 0.0
        %3909 = vmatprep.mubr.f32.mxu0 0.0
        %v3910 = vand.u32 %v3687, 4294901760
        %v3911 = vsub.f32 %v3687, %v3910
        %3912 = vmatmul.mubr.f32.gmra.mxu0 %v3911
        %v3913 = vpop.f32.mrf.mxu0
        %v3914 = vadd.f32 %v3840, %v3913
        %v3915 = vpop.f32.mrf.mxu0
        %3916 = vdwg.mxu0
        %3917 = vmatprep.subr.mxu0 0.0
        %3918 = vmatpush1.xpose.msra.mxu0 0.0
        %3919 = vmatprep.subr.mxu0 0.0
        %3920 = vmatpush1.xpose.msra.mxu0 0.0
        %3921 = vmatprep.subr.mxu0 0.0
        %3922 = vmatpush1.xpose.msra.mxu0 0.0
        %3923 = vmatprep.subr.mxu0 0.0
        %3924 = vmatpush1.xpose.msra.mxu0 0.0
        %3925 = vmatprep.subr.mxu0 0.0
        %3926 = vmatpush1.xpose.msra.mxu0 0.0
        %3927 = vmatprep.subr.mxu0 0.0
        %3928 = vmatpush1.xpose.msra.mxu0 0.0
        %3929 = vmatprep.subr.mxu0 0.0
        %3930 = vmatpush1.xpose.msra.mxu0 0.0
        %3931 = vmatprep.subr.mxu0 0.0
        %3932 = vmatpush1.xpose.msra.mxu0 0.0
        %3933 = vmatprep.subr.mxu0 0.0
        %3934 = vmatpush1.xpose.msra.mxu0 0.0
        %3935 = vmatprep.subr.mxu0 0.0
        %3936 = vmatpush1.xpose.msra.mxu0 0.0
        %3937 = vmatprep.subr.mxu0 0.0
        %3938 = vmatpush1.xpose.msra.mxu0 0.0
        %3939 = vmatprep.subr.mxu0 0.0
        %3940 = vmatpush1.xpose.msra.mxu0 0.0
        %3941 = vmatprep.subr.mxu0 0.0
        %3942 = vmatpush1.xpose.msra.mxu0 0.0
        %3943 = vmatprep.subr.mxu0 0.0
        %3944 = vmatpush1.xpose.msra.mxu0 0.0
        %3945 = vmatprep.subr.mxu0 0.0
        %3946 = vmatpush1.xpose.msra.mxu0 0.0
        %3947 = vmatprep.subr.mxu0 0.0
        %v3948 = vand.u32 %v3689, 4294901760
        %3949 = vmatpush1.xpose.msra.mxu0 %v3948
        %3950 = vmatprep.subr.mxu0 0.0
        %3951 = vmatpush2.xpose.msra.mxu0 0.0
        %3952 = vmatprep.subr.mxu0 0.0
        %3953 = vmatpush2.xpose.msra.mxu0 0.0
        %3954 = vmatprep.subr.mxu0 0.0
        %3955 = vmatpush2.xpose.msra.mxu0 0.0
        %3956 = vmatprep.subr.mxu0 0.0
        %3957 = vmatpush2.xpose.msra.mxu0 0.0
        %3958 = vmatprep.subr.mxu0 0.0
        %3959 = vmatpush2.xpose.msra.mxu0 0.0
        %3960 = vmatprep.subr.mxu0 0.0
        %3961 = vmatpush2.xpose.msra.mxu0 0.0
        %3962 = vmatprep.subr.mxu0 0.0
        %3963 = vmatpush2.xpose.msra.mxu0 0.0
        %3964 = vmatprep.subr.mxu0 0.0
        %3965 = vmatpush2.xpose.msra.mxu0 0.0
        %3966 = vmatprep.subr.mxu0 0.0
        %3967 = vmatpush2.xpose.msra.mxu0 0.0
        %3968 = vmatprep.subr.mxu0 0.0
        %3969 = vmatpush2.xpose.msra.mxu0 0.0
        %3970 = vmatprep.subr.mxu0 0.0
        %3971 = vmatpush2.xpose.msra.mxu0 0.0
        %3972 = vmatprep.subr.mxu0 0.0
        %3973 = vmatpush2.xpose.msra.mxu0 0.0
        %3974 = vmatprep.subr.mxu0 0.0
        %3975 = vmatpush2.xpose.msra.mxu0 0.0
        %3976 = vmatprep.subr.mxu0 0.0
        %3977 = vmatpush2.xpose.msra.mxu0 0.0
        %3978 = vmatprep.subr.mxu0 0.0
        %3979 = vmatpush2.xpose.msra.mxu0 0.0
        %3980 = vmatprep.subr.mxu0 0.0
        %3981 = vmatpush2.xpose.msra.mxu0 0.0
        %3982 = vmatprep.mubr.f32.mxu0 0.0
        %v3983 = vand.u32 %v3687, 4294901760
        %v3984 = vsub.f32 %v3687, %v3983
        %v3985 = vand.u32 %v3984, 4294901760
        %3986 = vmatmul.mubr.f32.gmra.mxu0 %v3985
        %v3987 = vpop.f32.mrf.mxu0
        %v3988 = vadd.f32 %v3914, %v3987
        %v3989 = vpop.f32.mrf.mxu0
        %3990 = vdwg.mxu0
        %3991 = vmatprep.subr.mxu0 0.0
        %3992 = vmatpush1.xpose.msra.mxu0 0.0
        %3993 = vmatprep.subr.mxu0 0.0
        %3994 = vmatpush1.xpose.msra.mxu0 0.0
        %3995 = vmatprep.subr.mxu0 0.0
        %3996 = vmatpush1.xpose.msra.mxu0 0.0
        %3997 = vmatprep.subr.mxu0 0.0
        %3998 = vmatpush1.xpose.msra.mxu0 0.0
        %3999 = vmatprep.subr.mxu0 0.0
        %4000 = vmatpush1.xpose.msra.mxu0 0.0
        %4001 = vmatprep.subr.mxu0 0.0
        %4002 = vmatpush1.xpose.msra.mxu0 0.0
        %4003 = vmatprep.subr.mxu0 0.0
        %4004 = vmatpush1.xpose.msra.mxu0 0.0
        %4005 = vmatprep.subr.mxu0 0.0
        %4006 = vmatpush1.xpose.msra.mxu0 0.0
        %4007 = vmatprep.subr.mxu0 0.0
        %4008 = vmatpush1.xpose.msra.mxu0 0.0
        %4009 = vmatprep.subr.mxu0 0.0
        %4010 = vmatpush1.xpose.msra.mxu0 0.0
        %4011 = vmatprep.subr.mxu0 0.0
        %4012 = vmatpush1.xpose.msra.mxu0 0.0
        %4013 = vmatprep.subr.mxu0 0.0
        %4014 = vmatpush1.xpose.msra.mxu0 0.0
        %4015 = vmatprep.subr.mxu0 0.0
        %4016 = vmatpush1.xpose.msra.mxu0 0.0
        %4017 = vmatprep.subr.mxu0 0.0
        %4018 = vmatpush1.xpose.msra.mxu0 0.0
        %4019 = vmatprep.subr.mxu0 0.0
        %4020 = vmatpush1.xpose.msra.mxu0 0.0
        %4021 = vmatprep.subr.mxu0 0.0
        %v4022 = vand.u32 %v3689, 4294901760
        %v4023 = vsub.f32 %v3689, %v4022
        %v4024 = vand.u32 %v4023, 4294901760
        %4025 = vmatpush1.xpose.msra.mxu0 %v4024
        %4026 = vmatprep.subr.mxu0 0.0
        %4027 = vmatpush2.xpose.msra.mxu0 0.0
        %4028 = vmatprep.subr.mxu0 0.0
        %4029 = vmatpush2.xpose.msra.mxu0 0.0
        %4030 = vmatprep.subr.mxu0 0.0
        %4031 = vmatpush2.xpose.msra.mxu0 0.0
        %4032 = vmatprep.subr.mxu0 0.0
        %4033 = vmatpush2.xpose.msra.mxu0 0.0
        %4034 = vmatprep.subr.mxu0 0.0
        %4035 = vmatpush2.xpose.msra.mxu0 0.0
        %4036 = vmatprep.subr.mxu0 0.0
        %4037 = vmatpush2.xpose.msra.mxu0 0.0
        %4038 = vmatprep.subr.mxu0 0.0
        %4039 = vmatpush2.xpose.msra.mxu0 0.0
        %4040 = vmatprep.subr.mxu0 0.0
        %4041 = vmatpush2.xpose.msra.mxu0 0.0
        %4042 = vmatprep.subr.mxu0 0.0
        %4043 = vmatpush2.xpose.msra.mxu0 0.0
        %4044 = vmatprep.subr.mxu0 0.0
        %4045 = vmatpush2.xpose.msra.mxu0 0.0
        %4046 = vmatprep.subr.mxu0 0.0
        %4047 = vmatpush2.xpose.msra.mxu0 0.0
        %4048 = vmatprep.subr.mxu0 0.0
        %4049 = vmatpush2.xpose.msra.mxu0 0.0
        %4050 = vmatprep.subr.mxu0 0.0
        %4051 = vmatpush2.xpose.msra.mxu0 0.0
        %4052 = vmatprep.subr.mxu0 0.0
        %4053 = vmatpush2.xpose.msra.mxu0 0.0
        %4054 = vmatprep.subr.mxu0 0.0
        %4055 = vmatpush2.xpose.msra.mxu0 0.0
        %4056 = vmatprep.subr.mxu0 0.0
        %4057 = vmatpush2.xpose.msra.mxu0 0.0
        %4058 = vmatprep.mubr.f32.mxu0 0.0
        %v4059 = vand.u32 %v3687, 4294901760
        %4060 = vmatmul.mubr.f32.gmra.mxu0 %v4059
        %v4061 = vpop.f32.mrf.mxu0
        %v4062 = vadd.f32 %v3988, %v4061
        %v4063 = vpop.f32.mrf.mxu0
        %4064 = vdwg.mxu0
        %4065 = vmatprep.subr.mxu0 0.0
        %4066 = vmatpush1.xpose.msra.mxu0 0.0
        %4067 = vmatprep.subr.mxu0 0.0
        %4068 = vmatpush1.xpose.msra.mxu0 0.0
        %4069 = vmatprep.subr.mxu0 0.0
        %4070 = vmatpush1.xpose.msra.mxu0 0.0
        %4071 = vmatprep.subr.mxu0 0.0
        %4072 = vmatpush1.xpose.msra.mxu0 0.0
        %4073 = vmatprep.subr.mxu0 0.0
        %4074 = vmatpush1.xpose.msra.mxu0 0.0
        %4075 = vmatprep.subr.mxu0 0.0
        %4076 = vmatpush1.xpose.msra.mxu0 0.0
        %4077 = vmatprep.subr.mxu0 0.0
        %4078 = vmatpush1.xpose.msra.mxu0 0.0
        %4079 = vmatprep.subr.mxu0 0.0
        %4080 = vmatpush1.xpose.msra.mxu0 0.0
        %4081 = vmatprep.subr.mxu0 0.0
        %4082 = vmatpush1.xpose.msra.mxu0 0.0
        %4083 = vmatprep.subr.mxu0 0.0
        %4084 = vmatpush1.xpose.msra.mxu0 0.0
        %4085 = vmatprep.subr.mxu0 0.0
        %4086 = vmatpush1.xpose.msra.mxu0 0.0
        %4087 = vmatprep.subr.mxu0 0.0
        %4088 = vmatpush1.xpose.msra.mxu0 0.0
        %4089 = vmatprep.subr.mxu0 0.0
        %4090 = vmatpush1.xpose.msra.mxu0 0.0
        %4091 = vmatprep.subr.mxu0 0.0
        %4092 = vmatpush1.xpose.msra.mxu0 0.0
        %4093 = vmatprep.subr.mxu0 0.0
        %4094 = vmatpush1.xpose.msra.mxu0 0.0
        %4095 = vmatprep.subr.mxu0 0.0
        %v4096 = vand.u32 %v3689, 4294901760
        %4097 = vmatpush1.xpose.msra.mxu0 %v4096
        %4098 = vmatprep.subr.mxu0 0.0
        %4099 = vmatpush2.xpose.msra.mxu0 0.0
        %4100 = vmatprep.subr.mxu0 0.0
        %4101 = vmatpush2.xpose.msra.mxu0 0.0
        %4102 = vmatprep.subr.mxu0 0.0
        %4103 = vmatpush2.xpose.msra.mxu0 0.0
        %4104 = vmatprep.subr.mxu0 0.0
        %4105 = vmatpush2.xpose.msra.mxu0 0.0
        %4106 = vmatprep.subr.mxu0 0.0
        %4107 = vmatpush2.xpose.msra.mxu0 0.0
        %4108 = vmatprep.subr.mxu0 0.0
        %4109 = vmatpush2.xpose.msra.mxu0 0.0
        %4110 = vmatprep.subr.mxu0 0.0
        %4111 = vmatpush2.xpose.msra.mxu0 0.0
        %4112 = vmatprep.subr.mxu0 0.0
        %4113 = vmatpush2.xpose.msra.mxu0 0.0
        %4114 = vmatprep.subr.mxu0 0.0
        %4115 = vmatpush2.xpose.msra.mxu0 0.0
        %4116 = vmatprep.subr.mxu0 0.0
        %4117 = vmatpush2.xpose.msra.mxu0 0.0
        %4118 = vmatprep.subr.mxu0 0.0
        %4119 = vmatpush2.xpose.msra.mxu0 0.0
        %4120 = vmatprep.subr.mxu0 0.0
        %4121 = vmatpush2.xpose.msra.mxu0 0.0
        %4122 = vmatprep.subr.mxu0 0.0
        %4123 = vmatpush2.xpose.msra.mxu0 0.0
        %4124 = vmatprep.subr.mxu0 0.0
        %4125 = vmatpush2.xpose.msra.mxu0 0.0
        %4126 = vmatprep.subr.mxu0 0.0
        %4127 = vmatpush2.xpose.msra.mxu0 0.0
        %4128 = vmatprep.subr.mxu0 0.0
        %4129 = vmatpush2.xpose.msra.mxu0 0.0
        %4130 = vmatprep.mubr.f32.mxu0 0.0
        %v4131 = vand.u32 %v3687, 4294901760
        %4132 = vmatmul.mubr.f32.gmra.mxu0 %v4131
        %v4133 = vpop.f32.mrf.mxu0
        %v4134 = vadd.f32 %v4062, %v4133
        %v4135 = vpop.f32.mrf.mxu0
        %4136 = vdwg.mxu0
        %v4137 = vsel %vm2297, %v4134, -inf
        %4138 = vmax.xlane.f32.xlu0 %v4137
        %v4139 = vpop.xlane.xlu0 %4138
        %v4140 = vsub.f32 %v4134, %v4139
        %v4141 = vmul.f32 %v4140, 1.442695
        %v4142 = vpow.pop %v4141
        %v4143 = vsel %vm2297, %v4142, 0.0
        %4144 = vadd.xlane.f32.xlu0 %v4143
        %v4145 = vpop.xlane.xlu0 %4144
        %4146 = vrot.lane.b32.xlu0 %v1840, 64
        %v4147 = vpop.permute.xlu0 %4146
        %v4150 = vsel %vm2297, %v4142, 0
        %4152 = vmatprep.subr.mxu0 0.0
        %4153 = vmatpush1.msra.mxu0 0.0
        %4154 = vmatprep.subr.mxu0 0.0
        %4155 = vmatpush1.msra.mxu0 0.0
        %4156 = vmatprep.subr.mxu0 0.0
        %4157 = vmatpush1.msra.mxu0 0.0
        %4158 = vmatprep.subr.mxu0 0.0
        %4159 = vmatpush1.msra.mxu0 0.0
        %4160 = vmatprep.subr.mxu0 0.0
        %4161 = vmatpush1.msra.mxu0 0.0
        %4162 = vmatprep.subr.mxu0 0.0
        %4163 = vmatpush1.msra.mxu0 0.0
        %4164 = vmatprep.subr.mxu0 0.0
        %4165 = vmatpush1.msra.mxu0 0.0
        %4166 = vmatprep.subr.mxu0 0.0
        %4167 = vmatpush1.msra.mxu0 0.0
        %4168 = vmatprep.subr.mxu0 0.0
        %4169 = vmatpush1.msra.mxu0 0.0
        %4170 = vmatprep.subr.mxu0 0.0
        %4171 = vmatpush1.msra.mxu0 0.0
        %4172 = vmatprep.subr.mxu0 0.0
        %4173 = vmatpush1.msra.mxu0 0.0
        %4174 = vmatprep.subr.mxu0 0.0
        %4175 = vmatpush1.msra.mxu0 0.0
        %4176 = vmatprep.subr.mxu0 0.0
        %4177 = vmatpush1.msra.mxu0 0.0
        %4178 = vmatprep.subr.mxu0 0.0
        %4179 = vmatpush1.msra.mxu0 0.0
        %4180 = vmatprep.subr.mxu0 0.0
        %4181 = vmatpush1.msra.mxu0 0.0
        %4182 = vmatprep.subr.mxu0 0.0
        %v4183 = vand.u32 %v4147, 4294901760
        %4184 = vmatpush1.msra.mxu0 %v4183
        %4185 = vmatprep.subr.mxu0 0.0
        %4186 = vmatpush2.msra.mxu0 0.0
        %4187 = vmatprep.subr.mxu0 0.0
        %4188 = vmatpush2.msra.mxu0 0.0
        %4189 = vmatprep.subr.mxu0 0.0
        %4190 = vmatpush2.msra.mxu0 0.0
        %4191 = vmatprep.subr.mxu0 0.0
        %4192 = vmatpush2.msra.mxu0 0.0
        %4193 = vmatprep.subr.mxu0 0.0
        %4194 = vmatpush2.msra.mxu0 0.0
        %4195 = vmatprep.subr.mxu0 0.0
        %4196 = vmatpush2.msra.mxu0 0.0
        %4197 = vmatprep.subr.mxu0 0.0
        %4198 = vmatpush2.msra.mxu0 0.0
        %4199 = vmatprep.subr.mxu0 0.0
        %4200 = vmatpush2.msra.mxu0 0.0
        %4201 = vmatprep.subr.mxu0 0.0
        %4202 = vmatpush2.msra.mxu0 0.0
        %4203 = vmatprep.subr.mxu0 0.0
        %4204 = vmatpush2.msra.mxu0 0.0
        %4205 = vmatprep.subr.mxu0 0.0
        %4206 = vmatpush2.msra.mxu0 0.0
        %4207 = vmatprep.subr.mxu0 0.0
        %4208 = vmatpush2.msra.mxu0 0.0
        %4209 = vmatprep.subr.mxu0 0.0
        %4210 = vmatpush2.msra.mxu0 0.0
        %4211 = vmatprep.subr.mxu0 0.0
        %4212 = vmatpush2.msra.mxu0 0.0
        %4213 = vmatprep.subr.mxu0 0.0
        %4214 = vmatpush2.msra.mxu0 0.0
        %4215 = vmatprep.subr.mxu0 0.0
        %4216 = vmatpush2.msra.mxu0 0.0
        %4217 = vmatprep.mubr.f32.mxu0 0.0
        %v4218 = vand.u32 %v4150, 4294901760
        %v4219 = vsub.f32 %v4150, %v4218
        %v4220 = vand.u32 %v4219, 4294901760
        %v4221 = vsub.f32 %v4219, %v4220
        %v4222 = vand.u32 %v4221, 4294901760
        %4223 = vmatmul.mubr.f32.gmra.mxu0 %v4222
        %v4224 = vpop.f32.mrf.mxu0
        %v4225 = vadd.f32 0.0, %v4224
        %v4226 = vpop.f32.mrf.mxu0
        %4227 = vdwg.mxu0
        %4228 = vmatprep.subr.mxu0 0.0
        %4229 = vmatpush1.msra.mxu0 0.0
        %4230 = vmatprep.subr.mxu0 0.0
        %4231 = vmatpush1.msra.mxu0 0.0
        %4232 = vmatprep.subr.mxu0 0.0
        %4233 = vmatpush1.msra.mxu0 0.0
        %4234 = vmatprep.subr.mxu0 0.0
        %4235 = vmatpush1.msra.mxu0 0.0
        %4236 = vmatprep.subr.mxu0 0.0
        %4237 = vmatpush1.msra.mxu0 0.0
        %4238 = vmatprep.subr.mxu0 0.0
        %4239 = vmatpush1.msra.mxu0 0.0
        %4240 = vmatprep.subr.mxu0 0.0
        %4241 = vmatpush1.msra.mxu0 0.0
        %4242 = vmatprep.subr.mxu0 0.0
        %4243 = vmatpush1.msra.mxu0 0.0
        %4244 = vmatprep.subr.mxu0 0.0
        %4245 = vmatpush1.msra.mxu0 0.0
        %4246 = vmatprep.subr.mxu0 0.0
        %4247 = vmatpush1.msra.mxu0 0.0
        %4248 = vmatprep.subr.mxu0 0.0
        %4249 = vmatpush1.msra.mxu0 0.0
        %4250 = vmatprep.subr.mxu0 0.0
        %4251 = vmatpush1.msra.mxu0 0.0
        %4252 = vmatprep.subr.mxu0 0.0
        %4253 = vmatpush1.msra.mxu0 0.0
        %4254 = vmatprep.subr.mxu0 0.0
        %4255 = vmatpush1.msra.mxu0 0.0
        %4256 = vmatprep.subr.mxu0 0.0
        %4257 = vmatpush1.msra.mxu0 0.0
        %4258 = vmatprep.subr.mxu0 0.0
        %v4259 = vand.u32 %v4147, 4294901760
        %v4260 = vsub.f32 %v4147, %v4259
        %v4261 = vand.u32 %v4260, 4294901760
        %v4262 = vsub.f32 %v4260, %v4261
        %v4263 = vand.u32 %v4262, 4294901760
        %4264 = vmatpush1.msra.mxu0 %v4263
        %4265 = vmatprep.subr.mxu0 0.0
        %4266 = vmatpush2.msra.mxu0 0.0
        %4267 = vmatprep.subr.mxu0 0.0
        %4268 = vmatpush2.msra.mxu0 0.0
        %4269 = vmatprep.subr.mxu0 0.0
        %4270 = vmatpush2.msra.mxu0 0.0
        %4271 = vmatprep.subr.mxu0 0.0
        %4272 = vmatpush2.msra.mxu0 0.0
        %4273 = vmatprep.subr.mxu0 0.0
        %4274 = vmatpush2.msra.mxu0 0.0
        %4275 = vmatprep.subr.mxu0 0.0
        %4276 = vmatpush2.msra.mxu0 0.0
        %4277 = vmatprep.subr.mxu0 0.0
        %4278 = vmatpush2.msra.mxu0 0.0
        %4279 = vmatprep.subr.mxu0 0.0
        %4280 = vmatpush2.msra.mxu0 0.0
        %4281 = vmatprep.subr.mxu0 0.0
        %4282 = vmatpush2.msra.mxu0 0.0
        %4283 = vmatprep.subr.mxu0 0.0
        %4284 = vmatpush2.msra.mxu0 0.0
        %4285 = vmatprep.subr.mxu0 0.0
        %4286 = vmatpush2.msra.mxu0 0.0
        %4287 = vmatprep.subr.mxu0 0.0
        %4288 = vmatpush2.msra.mxu0 0.0
        %4289 = vmatprep.subr.mxu0 0.0
        %4290 = vmatpush2.msra.mxu0 0.0
        %4291 = vmatprep.subr.mxu0 0.0
        %4292 = vmatpush2.msra.mxu0 0.0
        %4293 = vmatprep.subr.mxu0 0.0
        %4294 = vmatpush2.msra.mxu0 0.0
        %4295 = vmatprep.subr.mxu0 0.0
        %4296 = vmatpush2.msra.mxu0 0.0
        %4297 = vmatprep.mubr.f32.mxu0 0.0
        %v4298 = vand.u32 %v4150, 4294901760
        %4299 = vmatmul.mubr.f32.gmra.mxu0 %v4298
        %v4300 = vpop.f32.mrf.mxu0
        %v4301 = vadd.f32 %v4225, %v4300
        %v4302 = vpop.f32.mrf.mxu0
        %4303 = vdwg.mxu0
        %4304 = vmatprep.subr.mxu0 0.0
        %4305 = vmatpush1.msra.mxu0 0.0
        %4306 = vmatprep.subr.mxu0 0.0
        %4307 = vmatpush1.msra.mxu0 0.0
        %4308 = vmatprep.subr.mxu0 0.0
        %4309 = vmatpush1.msra.mxu0 0.0
        %4310 = vmatprep.subr.mxu0 0.0
        %4311 = vmatpush1.msra.mxu0 0.0
        %4312 = vmatprep.subr.mxu0 0.0
        %4313 = vmatpush1.msra.mxu0 0.0
        %4314 = vmatprep.subr.mxu0 0.0
        %4315 = vmatpush1.msra.mxu0 0.0
        %4316 = vmatprep.subr.mxu0 0.0
        %4317 = vmatpush1.msra.mxu0 0.0
        %4318 = vmatprep.subr.mxu0 0.0
        %4319 = vmatpush1.msra.mxu0 0.0
        %4320 = vmatprep.subr.mxu0 0.0
        %4321 = vmatpush1.msra.mxu0 0.0
        %4322 = vmatprep.subr.mxu0 0.0
        %4323 = vmatpush1.msra.mxu0 0.0
        %4324 = vmatprep.subr.mxu0 0.0
        %4325 = vmatpush1.msra.mxu0 0.0
        %4326 = vmatprep.subr.mxu0 0.0
        %4327 = vmatpush1.msra.mxu0 0.0
        %4328 = vmatprep.subr.mxu0 0.0
        %4329 = vmatpush1.msra.mxu0 0.0
        %4330 = vmatprep.subr.mxu0 0.0
        %4331 = vmatpush1.msra.mxu0 0.0
        %4332 = vmatprep.subr.mxu0 0.0
        %4333 = vmatpush1.msra.mxu0 0.0
        %4334 = vmatprep.subr.mxu0 0.0
        %v4335 = vand.u32 %v4147, 4294901760
        %v4336 = vsub.f32 %v4147, %v4335
        %4337 = vmatpush1.msra.mxu0 %v4336
        %4338 = vmatprep.subr.mxu0 0.0
        %4339 = vmatpush2.msra.mxu0 0.0
        %4340 = vmatprep.subr.mxu0 0.0
        %4341 = vmatpush2.msra.mxu0 0.0
        %4342 = vmatprep.subr.mxu0 0.0
        %4343 = vmatpush2.msra.mxu0 0.0
        %4344 = vmatprep.subr.mxu0 0.0
        %4345 = vmatpush2.msra.mxu0 0.0
        %4346 = vmatprep.subr.mxu0 0.0
        %4347 = vmatpush2.msra.mxu0 0.0
        %4348 = vmatprep.subr.mxu0 0.0
        %4349 = vmatpush2.msra.mxu0 0.0
        %4350 = vmatprep.subr.mxu0 0.0
        %4351 = vmatpush2.msra.mxu0 0.0
        %4352 = vmatprep.subr.mxu0 0.0
        %4353 = vmatpush2.msra.mxu0 0.0
        %4354 = vmatprep.subr.mxu0 0.0
        %4355 = vmatpush2.msra.mxu0 0.0
        %4356 = vmatprep.subr.mxu0 0.0
        %4357 = vmatpush2.msra.mxu0 0.0
        %4358 = vmatprep.subr.mxu0 0.0
        %4359 = vmatpush2.msra.mxu0 0.0
        %4360 = vmatprep.subr.mxu0 0.0
        %4361 = vmatpush2.msra.mxu0 0.0
        %4362 = vmatprep.subr.mxu0 0.0
        %4363 = vmatpush2.msra.mxu0 0.0
        %4364 = vmatprep.subr.mxu0 0.0
        %4365 = vmatpush2.msra.mxu0 0.0
        %4366 = vmatprep.subr.mxu0 0.0
        %4367 = vmatpush2.msra.mxu0 0.0
        %4368 = vmatprep.subr.mxu0 0.0
        %4369 = vmatpush2.msra.mxu0 0.0
        %4370 = vmatprep.mubr.f32.mxu0 0.0
        %v4371 = vand.u32 %v4150, 4294901760
        %v4372 = vsub.f32 %v4150, %v4371
        %4373 = vmatmul.mubr.f32.gmra.mxu0 %v4372
        %v4374 = vpop.f32.mrf.mxu0
        %v4375 = vadd.f32 %v4301, %v4374
        %v4376 = vpop.f32.mrf.mxu0
        %4377 = vdwg.mxu0
        %4378 = vmatprep.subr.mxu0 0.0
        %4379 = vmatpush1.msra.mxu0 0.0
        %4380 = vmatprep.subr.mxu0 0.0
        %4381 = vmatpush1.msra.mxu0 0.0
        %4382 = vmatprep.subr.mxu0 0.0
        %4383 = vmatpush1.msra.mxu0 0.0
        %4384 = vmatprep.subr.mxu0 0.0
        %4385 = vmatpush1.msra.mxu0 0.0
        %4386 = vmatprep.subr.mxu0 0.0
        %4387 = vmatpush1.msra.mxu0 0.0
        %4388 = vmatprep.subr.mxu0 0.0
        %4389 = vmatpush1.msra.mxu0 0.0
        %4390 = vmatprep.subr.mxu0 0.0
        %4391 = vmatpush1.msra.mxu0 0.0
        %4392 = vmatprep.subr.mxu0 0.0
        %4393 = vmatpush1.msra.mxu0 0.0
        %4394 = vmatprep.subr.mxu0 0.0
        %4395 = vmatpush1.msra.mxu0 0.0
        %4396 = vmatprep.subr.mxu0 0.0
        %4397 = vmatpush1.msra.mxu0 0.0
        %4398 = vmatprep.subr.mxu0 0.0
        %4399 = vmatpush1.msra.mxu0 0.0
        %4400 = vmatprep.subr.mxu0 0.0
        %4401 = vmatpush1.msra.mxu0 0.0
        %4402 = vmatprep.subr.mxu0 0.0
        %4403 = vmatpush1.msra.mxu0 0.0
        %4404 = vmatprep.subr.mxu0 0.0
        %4405 = vmatpush1.msra.mxu0 0.0
        %4406 = vmatprep.subr.mxu0 0.0
        %4407 = vmatpush1.msra.mxu0 0.0
        %4408 = vmatprep.subr.mxu0 0.0
        %v4409 = vand.u32 %v4147, 4294901760
        %4410 = vmatpush1.msra.mxu0 %v4409
        %4411 = vmatprep.subr.mxu0 0.0
        %4412 = vmatpush2.msra.mxu0 0.0
        %4413 = vmatprep.subr.mxu0 0.0
        %4414 = vmatpush2.msra.mxu0 0.0
        %4415 = vmatprep.subr.mxu0 0.0
        %4416 = vmatpush2.msra.mxu0 0.0
        %4417 = vmatprep.subr.mxu0 0.0
        %4418 = vmatpush2.msra.mxu0 0.0
        %4419 = vmatprep.subr.mxu0 0.0
        %4420 = vmatpush2.msra.mxu0 0.0
        %4421 = vmatprep.subr.mxu0 0.0
        %4422 = vmatpush2.msra.mxu0 0.0
        %4423 = vmatprep.subr.mxu0 0.0
        %4424 = vmatpush2.msra.mxu0 0.0
        %4425 = vmatprep.subr.mxu0 0.0
        %4426 = vmatpush2.msra.mxu0 0.0
        %4427 = vmatprep.subr.mxu0 0.0
        %4428 = vmatpush2.msra.mxu0 0.0
        %4429 = vmatprep.subr.mxu0 0.0
        %4430 = vmatpush2.msra.mxu0 0.0
        %4431 = vmatprep.subr.mxu0 0.0
        %4432 = vmatpush2.msra.mxu0 0.0
        %4433 = vmatprep.subr.mxu0 0.0
        %4434 = vmatpush2.msra.mxu0 0.0
        %4435 = vmatprep.subr.mxu0 0.0
        %4436 = vmatpush2.msra.mxu0 0.0
        %4437 = vmatprep.subr.mxu0 0.0
        %4438 = vmatpush2.msra.mxu0 0.0
        %4439 = vmatprep.subr.mxu0 0.0
        %4440 = vmatpush2.msra.mxu0 0.0
        %4441 = vmatprep.subr.mxu0 0.0
        %4442 = vmatpush2.msra.mxu0 0.0
        %4443 = vmatprep.mubr.f32.mxu0 0.0
        %v4444 = vand.u32 %v4150, 4294901760
        %v4445 = vsub.f32 %v4150, %v4444
        %v4446 = vand.u32 %v4445, 4294901760
        %4447 = vmatmul.mubr.f32.gmra.mxu0 %v4446
        %v4448 = vpop.f32.mrf.mxu0
        %v4449 = vadd.f32 %v4375, %v4448
        %v4450 = vpop.f32.mrf.mxu0
        %4451 = vdwg.mxu0
        %4452 = vmatprep.subr.mxu0 0.0
        %4453 = vmatpush1.msra.mxu0 0.0
        %4454 = vmatprep.subr.mxu0 0.0
        %4455 = vmatpush1.msra.mxu0 0.0
        %4456 = vmatprep.subr.mxu0 0.0
        %4457 = vmatpush1.msra.mxu0 0.0
        %4458 = vmatprep.subr.mxu0 0.0
        %4459 = vmatpush1.msra.mxu0 0.0
        %4460 = vmatprep.subr.mxu0 0.0
        %4461 = vmatpush1.msra.mxu0 0.0
        %4462 = vmatprep.subr.mxu0 0.0
        %4463 = vmatpush1.msra.mxu0 0.0
        %4464 = vmatprep.subr.mxu0 0.0
        %4465 = vmatpush1.msra.mxu0 0.0
        %4466 = vmatprep.subr.mxu0 0.0
        %4467 = vmatpush1.msra.mxu0 0.0
        %4468 = vmatprep.subr.mxu0 0.0
        %4469 = vmatpush1.msra.mxu0 0.0
        %4470 = vmatprep.subr.mxu0 0.0
        %4471 = vmatpush1.msra.mxu0 0.0
        %4472 = vmatprep.subr.mxu0 0.0
        %4473 = vmatpush1.msra.mxu0 0.0
        %4474 = vmatprep.subr.mxu0 0.0
        %4475 = vmatpush1.msra.mxu0 0.0
        %4476 = vmatprep.subr.mxu0 0.0
        %4477 = vmatpush1.msra.mxu0 0.0
        %4478 = vmatprep.subr.mxu0 0.0
        %4479 = vmatpush1.msra.mxu0 0.0
        %4480 = vmatprep.subr.mxu0 0.0
        %4481 = vmatpush1.msra.mxu0 0.0
        %4482 = vmatprep.subr.mxu0 0.0
        %v4483 = vand.u32 %v4147, 4294901760
        %v4484 = vsub.f32 %v4147, %v4483
        %v4485 = vand.u32 %v4484, 4294901760
        %4486 = vmatpush1.msra.mxu0 %v4485
        %4487 = vmatprep.subr.mxu0 0.0
        %4488 = vmatpush2.msra.mxu0 0.0
        %4489 = vmatprep.subr.mxu0 0.0
        %4490 = vmatpush2.msra.mxu0 0.0
        %4491 = vmatprep.subr.mxu0 0.0
        %4492 = vmatpush2.msra.mxu0 0.0
        %4493 = vmatprep.subr.mxu0 0.0
        %4494 = vmatpush2.msra.mxu0 0.0
        %4495 = vmatprep.subr.mxu0 0.0
        %4496 = vmatpush2.msra.mxu0 0.0
        %4497 = vmatprep.subr.mxu0 0.0
        %4498 = vmatpush2.msra.mxu0 0.0
        %4499 = vmatprep.subr.mxu0 0.0
        %4500 = vmatpush2.msra.mxu0 0.0
        %4501 = vmatprep.subr.mxu0 0.0
        %4502 = vmatpush2.msra.mxu0 0.0
        %4503 = vmatprep.subr.mxu0 0.0
        %4504 = vmatpush2.msra.mxu0 0.0
        %4505 = vmatprep.subr.mxu0 0.0
        %4506 = vmatpush2.msra.mxu0 0.0
        %4507 = vmatprep.subr.mxu0 0.0
        %4508 = vmatpush2.msra.mxu0 0.0
        %4509 = vmatprep.subr.mxu0 0.0
        %4510 = vmatpush2.msra.mxu0 0.0
        %4511 = vmatprep.subr.mxu0 0.0
        %4512 = vmatpush2.msra.mxu0 0.0
        %4513 = vmatprep.subr.mxu0 0.0
        %4514 = vmatpush2.msra.mxu0 0.0
        %4515 = vmatprep.subr.mxu0 0.0
        %4516 = vmatpush2.msra.mxu0 0.0
        %4517 = vmatprep.subr.mxu0 0.0
        %4518 = vmatpush2.msra.mxu0 0.0
        %4519 = vmatprep.mubr.f32.mxu0 0.0
        %v4520 = vand.u32 %v4150, 4294901760
        %4521 = vmatmul.mubr.f32.gmra.mxu0 %v4520
        %v4522 = vpop.f32.mrf.mxu0
        %v4523 = vadd.f32 %v4449, %v4522
        %v4524 = vpop.f32.mrf.mxu0
        %4525 = vdwg.mxu0
        %4526 = vmatprep.subr.mxu0 0.0
        %4527 = vmatpush1.msra.mxu0 0.0
        %4528 = vmatprep.subr.mxu0 0.0
        %4529 = vmatpush1.msra.mxu0 0.0
        %4530 = vmatprep.subr.mxu0 0.0
        %4531 = vmatpush1.msra.mxu0 0.0
        %4532 = vmatprep.subr.mxu0 0.0
        %4533 = vmatpush1.msra.mxu0 0.0
        %4534 = vmatprep.subr.mxu0 0.0
        %4535 = vmatpush1.msra.mxu0 0.0
        %4536 = vmatprep.subr.mxu0 0.0
        %4537 = vmatpush1.msra.mxu0 0.0
        %4538 = vmatprep.subr.mxu0 0.0
        %4539 = vmatpush1.msra.mxu0 0.0
        %4540 = vmatprep.subr.mxu0 0.0
        %4541 = vmatpush1.msra.mxu0 0.0
        %4542 = vmatprep.subr.mxu0 0.0
        %4543 = vmatpush1.msra.mxu0 0.0
        %4544 = vmatprep.subr.mxu0 0.0
        %4545 = vmatpush1.msra.mxu0 0.0
        %4546 = vmatprep.subr.mxu0 0.0
        %4547 = vmatpush1.msra.mxu0 0.0
        %4548 = vmatprep.subr.mxu0 0.0
        %4549 = vmatpush1.msra.mxu0 0.0
        %4550 = vmatprep.subr.mxu0 0.0
        %4551 = vmatpush1.msra.mxu0 0.0
        %4552 = vmatprep.subr.mxu0 0.0
        %4553 = vmatpush1.msra.mxu0 0.0
        %4554 = vmatprep.subr.mxu0 0.0
        %4555 = vmatpush1.msra.mxu0 0.0
        %4556 = vmatprep.subr.mxu0 0.0
        %v4557 = vand.u32 %v4147, 4294901760
        %4558 = vmatpush1.msra.mxu0 %v4557
        %4559 = vmatprep.subr.mxu0 0.0
        %4560 = vmatpush2.msra.mxu0 0.0
        %4561 = vmatprep.subr.mxu0 0.0
        %4562 = vmatpush2.msra.mxu0 0.0
        %4563 = vmatprep.subr.mxu0 0.0
        %4564 = vmatpush2.msra.mxu0 0.0
        %4565 = vmatprep.subr.mxu0 0.0
        %4566 = vmatpush2.msra.mxu0 0.0
        %4567 = vmatprep.subr.mxu0 0.0
        %4568 = vmatpush2.msra.mxu0 0.0
        %4569 = vmatprep.subr.mxu0 0.0
        %4570 = vmatpush2.msra.mxu0 0.0
        %4571 = vmatprep.subr.mxu0 0.0
        %4572 = vmatpush2.msra.mxu0 0.0
        %4573 = vmatprep.subr.mxu0 0.0
        %4574 = vmatpush2.msra.mxu0 0.0
        %4575 = vmatprep.subr.mxu0 0.0
        %4576 = vmatpush2.msra.mxu0 0.0
        %4577 = vmatprep.subr.mxu0 0.0
        %4578 = vmatpush2.msra.mxu0 0.0
        %4579 = vmatprep.subr.mxu0 0.0
        %4580 = vmatpush2.msra.mxu0 0.0
        %4581 = vmatprep.subr.mxu0 0.0
        %4582 = vmatpush2.msra.mxu0 0.0
        %4583 = vmatprep.subr.mxu0 0.0
        %4584 = vmatpush2.msra.mxu0 0.0
        %4585 = vmatprep.subr.mxu0 0.0
        %4586 = vmatpush2.msra.mxu0 0.0
        %4587 = vmatprep.subr.mxu0 0.0
        %4588 = vmatpush2.msra.mxu0 0.0
        %4589 = vmatprep.subr.mxu0 0.0
        %4590 = vmatpush2.msra.mxu0 0.0
        %4591 = vmatprep.mubr.f32.mxu0 0.0
        %v4592 = vand.u32 %v4150, 4294901760
        %4593 = vmatmul.mubr.f32.gmra.mxu0 %v4592
        %v4594 = vpop.f32.mrf.mxu0
        %v4595 = vadd.f32 %v4523, %v4594
        %v4596 = vpop.f32.mrf.mxu0
        %4597 = vdwg.mxu0
        %v4598 = vrcp.pop %v4145
        %v4599 = vmul.f32 %v4595, %v4598
        %4601 = vrot.lane.b32.xlu0 %v4599, 64
        %v4602 = vpop.permute.xlu0 %4601
        %vm4604 = vcmask 785920
        %4605 = vst.msk [vmem:[#allocation2] sm:$0xff] %vm4604, %v4602
        %4606 = vrot.lane.b32.xlu0 %v1843, 32
        %v4607 = vpop.permute.xlu0 %4606
        %4608 = vrot.lane.b32.xlu0 %v1200, 32
        %v4609 = vpop.permute.xlu0 %4608
        %v4610 = vsel %vm1844, %v4607, 0
        %v4612 = vsel %vm1844, %v4609, 0
        %4614 = vmatprep.subr.mxu0 0.0
        %4615 = vmatpush1.xpose.msra.mxu0 0.0
        %4616 = vmatprep.subr.mxu0 0.0
        %4617 = vmatpush1.xpose.msra.mxu0 0.0
        %4618 = vmatprep.subr.mxu0 0.0
        %4619 = vmatpush1.xpose.msra.mxu0 0.0
        %4620 = vmatprep.subr.mxu0 0.0
        %4621 = vmatpush1.xpose.msra.mxu0 0.0
        %4622 = vmatprep.subr.mxu0 0.0
        %4623 = vmatpush1.xpose.msra.mxu0 0.0
        %4624 = vmatprep.subr.mxu0 0.0
        %4625 = vmatpush1.xpose.msra.mxu0 0.0
        %4626 = vmatprep.subr.mxu0 0.0
        %4627 = vmatpush1.xpose.msra.mxu0 0.0
        %4628 = vmatprep.subr.mxu0 0.0
        %4629 = vmatpush1.xpose.msra.mxu0 0.0
        %4630 = vmatprep.subr.mxu0 0.0
        %4631 = vmatpush1.xpose.msra.mxu0 0.0
        %4632 = vmatprep.subr.mxu0 0.0
        %4633 = vmatpush1.xpose.msra.mxu0 0.0
        %4634 = vmatprep.subr.mxu0 0.0
        %4635 = vmatpush1.xpose.msra.mxu0 0.0
        %4636 = vmatprep.subr.mxu0 0.0
        %4637 = vmatpush1.xpose.msra.mxu0 0.0
        %4638 = vmatprep.subr.mxu0 0.0
        %4639 = vmatpush1.xpose.msra.mxu0 0.0
        %4640 = vmatprep.subr.mxu0 0.0
        %4641 = vmatpush1.xpose.msra.mxu0 0.0
        %4642 = vmatprep.subr.mxu0 0.0
        %4643 = vmatpush1.xpose.msra.mxu0 0.0
        %4644 = vmatprep.subr.mxu0 0.0
        %v4645 = vand.u32 %v4612, 4294901760
        %4646 = vmatpush1.xpose.msra.mxu0 %v4645
        %4647 = vmatprep.subr.mxu0 0.0
        %4648 = vmatpush2.xpose.msra.mxu0 0.0
        %4649 = vmatprep.subr.mxu0 0.0
        %4650 = vmatpush2.xpose.msra.mxu0 0.0
        %4651 = vmatprep.subr.mxu0 0.0
        %4652 = vmatpush2.xpose.msra.mxu0 0.0
        %4653 = vmatprep.subr.mxu0 0.0
        %4654 = vmatpush2.xpose.msra.mxu0 0.0
        %4655 = vmatprep.subr.mxu0 0.0
        %4656 = vmatpush2.xpose.msra.mxu0 0.0
        %4657 = vmatprep.subr.mxu0 0.0
        %4658 = vmatpush2.xpose.msra.mxu0 0.0
        %4659 = vmatprep.subr.mxu0 0.0
        %4660 = vmatpush2.xpose.msra.mxu0 0.0
        %4661 = vmatprep.subr.mxu0 0.0
        %4662 = vmatpush2.xpose.msra.mxu0 0.0
        %4663 = vmatprep.subr.mxu0 0.0
        %4664 = vmatpush2.xpose.msra.mxu0 0.0
        %4665 = vmatprep.subr.mxu0 0.0
        %4666 = vmatpush2.xpose.msra.mxu0 0.0
        %4667 = vmatprep.subr.mxu0 0.0
        %4668 = vmatpush2.xpose.msra.mxu0 0.0
        %4669 = vmatprep.subr.mxu0 0.0
        %4670 = vmatpush2.xpose.msra.mxu0 0.0
        %4671 = vmatprep.subr.mxu0 0.0
        %4672 = vmatpush2.xpose.msra.mxu0 0.0
        %4673 = vmatprep.subr.mxu0 0.0
        %4674 = vmatpush2.xpose.msra.mxu0 0.0
        %4675 = vmatprep.subr.mxu0 0.0
        %4676 = vmatpush2.xpose.msra.mxu0 0.0
        %4677 = vmatprep.subr.mxu0 0.0
        %4678 = vmatpush2.xpose.msra.mxu0 0.0
        %4679 = vmatprep.mubr.f32.mxu0 0.0
        %v4680 = vand.u32 %v4610, 4294901760
        %v4681 = vsub.f32 %v4610, %v4680
        %v4682 = vand.u32 %v4681, 4294901760
        %v4683 = vsub.f32 %v4681, %v4682
        %v4684 = vand.u32 %v4683, 4294901760
        %4685 = vmatmul.mubr.f32.gmra.mxu0 %v4684
        %v4686 = vpop.f32.mrf.mxu0
        %v4687 = vadd.f32 0.0, %v4686
        %v4688 = vpop.f32.mrf.mxu0
        %4689 = vdwg.mxu0
        %4690 = vmatprep.subr.mxu0 0.0
        %4691 = vmatpush1.xpose.msra.mxu0 0.0
        %4692 = vmatprep.subr.mxu0 0.0
        %4693 = vmatpush1.xpose.msra.mxu0 0.0
        %4694 = vmatprep.subr.mxu0 0.0
        %4695 = vmatpush1.xpose.msra.mxu0 0.0
        %4696 = vmatprep.subr.mxu0 0.0
        %4697 = vmatpush1.xpose.msra.mxu0 0.0
        %4698 = vmatprep.subr.mxu0 0.0
        %4699 = vmatpush1.xpose.msra.mxu0 0.0
        %4700 = vmatprep.subr.mxu0 0.0
        %4701 = vmatpush1.xpose.msra.mxu0 0.0
        %4702 = vmatprep.subr.mxu0 0.0
        %4703 = vmatpush1.xpose.msra.mxu0 0.0
        %4704 = vmatprep.subr.mxu0 0.0
        %4705 = vmatpush1.xpose.msra.mxu0 0.0
        %4706 = vmatprep.subr.mxu0 0.0
        %4707 = vmatpush1.xpose.msra.mxu0 0.0
        %4708 = vmatprep.subr.mxu0 0.0
        %4709 = vmatpush1.xpose.msra.mxu0 0.0
        %4710 = vmatprep.subr.mxu0 0.0
        %4711 = vmatpush1.xpose.msra.mxu0 0.0
        %4712 = vmatprep.subr.mxu0 0.0
        %4713 = vmatpush1.xpose.msra.mxu0 0.0
        %4714 = vmatprep.subr.mxu0 0.0
        %4715 = vmatpush1.xpose.msra.mxu0 0.0
        %4716 = vmatprep.subr.mxu0 0.0
        %4717 = vmatpush1.xpose.msra.mxu0 0.0
        %4718 = vmatprep.subr.mxu0 0.0
        %4719 = vmatpush1.xpose.msra.mxu0 0.0
        %4720 = vmatprep.subr.mxu0 0.0
        %v4721 = vand.u32 %v4612, 4294901760
        %v4722 = vsub.f32 %v4612, %v4721
        %v4723 = vand.u32 %v4722, 4294901760
        %v4724 = vsub.f32 %v4722, %v4723
        %v4725 = vand.u32 %v4724, 4294901760
        %4726 = vmatpush1.xpose.msra.mxu0 %v4725
        %4727 = vmatprep.subr.mxu0 0.0
        %4728 = vmatpush2.xpose.msra.mxu0 0.0
        %4729 = vmatprep.subr.mxu0 0.0
        %4730 = vmatpush2.xpose.msra.mxu0 0.0
        %4731 = vmatprep.subr.mxu0 0.0
        %4732 = vmatpush2.xpose.msra.mxu0 0.0
        %4733 = vmatprep.subr.mxu0 0.0
        %4734 = vmatpush2.xpose.msra.mxu0 0.0
        %4735 = vmatprep.subr.mxu0 0.0
        %4736 = vmatpush2.xpose.msra.mxu0 0.0
        %4737 = vmatprep.subr.mxu0 0.0
        %4738 = vmatpush2.xpose.msra.mxu0 0.0
        %4739 = vmatprep.subr.mxu0 0.0
        %4740 = vmatpush2.xpose.msra.mxu0 0.0
        %4741 = vmatprep.subr.mxu0 0.0
        %4742 = vmatpush2.xpose.msra.mxu0 0.0
        %4743 = vmatprep.subr.mxu0 0.0
        %4744 = vmatpush2.xpose.msra.mxu0 0.0
        %4745 = vmatprep.subr.mxu0 0.0
        %4746 = vmatpush2.xpose.msra.mxu0 0.0
        %4747 = vmatprep.subr.mxu0 0.0
        %4748 = vmatpush2.xpose.msra.mxu0 0.0
        %4749 = vmatprep.subr.mxu0 0.0
        %4750 = vmatpush2.xpose.msra.mxu0 0.0
        %4751 = vmatprep.subr.mxu0 0.0
        %4752 = vmatpush2.xpose.msra.mxu0 0.0
        %4753 = vmatprep.subr.mxu0 0.0
        %4754 = vmatpush2.xpose.msra.mxu0 0.0
        %4755 = vmatprep.subr.mxu0 0.0
        %4756 = vmatpush2.xpose.msra.mxu0 0.0
        %4757 = vmatprep.subr.mxu0 0.0
        %4758 = vmatpush2.xpose.msra.mxu0 0.0
        %4759 = vmatprep.mubr.f32.mxu0 0.0
        %v4760 = vand.u32 %v4610, 4294901760
        %4761 = vmatmul.mubr.f32.gmra.mxu0 %v4760
        %v4762 = vpop.f32.mrf.mxu0
        %v4763 = vadd.f32 %v4687, %v4762
        %v4764 = vpop.f32.mrf.mxu0
        %4765 = vdwg.mxu0
        %4766 = vmatprep.subr.mxu0 0.0
        %4767 = vmatpush1.xpose.msra.mxu0 0.0
        %4768 = vmatprep.subr.mxu0 0.0
        %4769 = vmatpush1.xpose.msra.mxu0 0.0
        %4770 = vmatprep.subr.mxu0 0.0
        %4771 = vmatpush1.xpose.msra.mxu0 0.0
        %4772 = vmatprep.subr.mxu0 0.0
        %4773 = vmatpush1.xpose.msra.mxu0 0.0
        %4774 = vmatprep.subr.mxu0 0.0
        %4775 = vmatpush1.xpose.msra.mxu0 0.0
        %4776 = vmatprep.subr.mxu0 0.0
        %4777 = vmatpush1.xpose.msra.mxu0 0.0
        %4778 = vmatprep.subr.mxu0 0.0
        %4779 = vmatpush1.xpose.msra.mxu0 0.0
        %4780 = vmatprep.subr.mxu0 0.0
        %4781 = vmatpush1.xpose.msra.mxu0 0.0
        %4782 = vmatprep.subr.mxu0 0.0
        %4783 = vmatpush1.xpose.msra.mxu0 0.0
        %4784 = vmatprep.subr.mxu0 0.0
        %4785 = vmatpush1.xpose.msra.mxu0 0.0
        %4786 = vmatprep.subr.mxu0 0.0
        %4787 = vmatpush1.xpose.msra.mxu0 0.0
        %4788 = vmatprep.subr.mxu0 0.0
        %4789 = vmatpush1.xpose.msra.mxu0 0.0
        %4790 = vmatprep.subr.mxu0 0.0
        %4791 = vmatpush1.xpose.msra.mxu0 0.0
        %4792 = vmatprep.subr.mxu0 0.0
        %4793 = vmatpush1.xpose.msra.mxu0 0.0
        %4794 = vmatprep.subr.mxu0 0.0
        %4795 = vmatpush1.xpose.msra.mxu0 0.0
        %4796 = vmatprep.subr.mxu0 0.0
        %v4797 = vand.u32 %v4612, 4294901760
        %v4798 = vsub.f32 %v4612, %v4797
        %4799 = vmatpush1.xpose.msra.mxu0 %v4798
        %4800 = vmatprep.subr.mxu0 0.0
        %4801 = vmatpush2.xpose.msra.mxu0 0.0
        %4802 = vmatprep.subr.mxu0 0.0
        %4803 = vmatpush2.xpose.msra.mxu0 0.0
        %4804 = vmatprep.subr.mxu0 0.0
        %4805 = vmatpush2.xpose.msra.mxu0 0.0
        %4806 = vmatprep.subr.mxu0 0.0
        %4807 = vmatpush2.xpose.msra.mxu0 0.0
        %4808 = vmatprep.subr.mxu0 0.0
        %4809 = vmatpush2.xpose.msra.mxu0 0.0
        %4810 = vmatprep.subr.mxu0 0.0
        %4811 = vmatpush2.xpose.msra.mxu0 0.0
        %4812 = vmatprep.subr.mxu0 0.0
        %4813 = vmatpush2.xpose.msra.mxu0 0.0
        %4814 = vmatprep.subr.mxu0 0.0
        %4815 = vmatpush2.xpose.msra.mxu0 0.0
        %4816 = vmatprep.subr.mxu0 0.0
        %4817 = vmatpush2.xpose.msra.mxu0 0.0
        %4818 = vmatprep.subr.mxu0 0.0
        %4819 = vmatpush2.xpose.msra.mxu0 0.0
        %4820 = vmatprep.subr.mxu0 0.0
        %4821 = vmatpush2.xpose.msra.mxu0 0.0
        %4822 = vmatprep.subr.mxu0 0.0
        %4823 = vmatpush2.xpose.msra.mxu0 0.0
        %4824 = vmatprep.subr.mxu0 0.0
        %4825 = vmatpush2.xpose.msra.mxu0 0.0
        %4826 = vmatprep.subr.mxu0 0.0
        %4827 = vmatpush2.xpose.msra.mxu0 0.0
        %4828 = vmatprep.subr.mxu0 0.0
        %4829 = vmatpush2.xpose.msra.mxu0 0.0
        %4830 = vmatprep.subr.mxu0 0.0
        %4831 = vmatpush2.xpose.msra.mxu0 0.0
        %4832 = vmatprep.mubr.f32.mxu0 0.0
        %v4833 = vand.u32 %v4610, 4294901760
        %v4834 = vsub.f32 %v4610, %v4833
        %4835 = vmatmul.mubr.f32.gmra.mxu0 %v4834
        %v4836 = vpop.f32.mrf.mxu0
        %v4837 = vadd.f32 %v4763, %v4836
        %v4838 = vpop.f32.mrf.mxu0
        %4839 = vdwg.mxu0
        %4840 = vmatprep.subr.mxu0 0.0
        %4841 = vmatpush1.xpose.msra.mxu0 0.0
        %4842 = vmatprep.subr.mxu0 0.0
        %4843 = vmatpush1.xpose.msra.mxu0 0.0
        %4844 = vmatprep.subr.mxu0 0.0
        %4845 = vmatpush1.xpose.msra.mxu0 0.0
        %4846 = vmatprep.subr.mxu0 0.0
        %4847 = vmatpush1.xpose.msra.mxu0 0.0
        %4848 = vmatprep.subr.mxu0 0.0
        %4849 = vmatpush1.xpose.msra.mxu0 0.0
        %4850 = vmatprep.subr.mxu0 0.0
        %4851 = vmatpush1.xpose.msra.mxu0 0.0
        %4852 = vmatprep.subr.mxu0 0.0
        %4853 = vmatpush1.xpose.msra.mxu0 0.0
        %4854 = vmatprep.subr.mxu0 0.0
        %4855 = vmatpush1.xpose.msra.mxu0 0.0
        %4856 = vmatprep.subr.mxu0 0.0
        %4857 = vmatpush1.xpose.msra.mxu0 0.0
        %4858 = vmatprep.subr.mxu0 0.0
        %4859 = vmatpush1.xpose.msra.mxu0 0.0
        %4860 = vmatprep.subr.mxu0 0.0
        %4861 = vmatpush1.xpose.msra.mxu0 0.0
        %4862 = vmatprep.subr.mxu0 0.0
        %4863 = vmatpush1.xpose.msra.mxu0 0.0
        %4864 = vmatprep.subr.mxu0 0.0
        %4865 = vmatpush1.xpose.msra.mxu0 0.0
        %4866 = vmatprep.subr.mxu0 0.0
        %4867 = vmatpush1.xpose.msra.mxu0 0.0
        %4868 = vmatprep.subr.mxu0 0.0
        %4869 = vmatpush1.xpose.msra.mxu0 0.0
        %4870 = vmatprep.subr.mxu0 0.0
        %v4871 = vand.u32 %v4612, 4294901760
        %4872 = vmatpush1.xpose.msra.mxu0 %v4871
        %4873 = vmatprep.subr.mxu0 0.0
        %4874 = vmatpush2.xpose.msra.mxu0 0.0
        %4875 = vmatprep.subr.mxu0 0.0
        %4876 = vmatpush2.xpose.msra.mxu0 0.0
        %4877 = vmatprep.subr.mxu0 0.0
        %4878 = vmatpush2.xpose.msra.mxu0 0.0
        %4879 = vmatprep.subr.mxu0 0.0
        %4880 = vmatpush2.xpose.msra.mxu0 0.0
        %4881 = vmatprep.subr.mxu0 0.0
        %4882 = vmatpush2.xpose.msra.mxu0 0.0
        %4883 = vmatprep.subr.mxu0 0.0
        %4884 = vmatpush2.xpose.msra.mxu0 0.0
        %4885 = vmatprep.subr.mxu0 0.0
        %4886 = vmatpush2.xpose.msra.mxu0 0.0
        %4887 = vmatprep.subr.mxu0 0.0
        %4888 = vmatpush2.xpose.msra.mxu0 0.0
        %4889 = vmatprep.subr.mxu0 0.0
        %4890 = vmatpush2.xpose.msra.mxu0 0.0
        %4891 = vmatprep.subr.mxu0 0.0
        %4892 = vmatpush2.xpose.msra.mxu0 0.0
        %4893 = vmatprep.subr.mxu0 0.0
        %4894 = vmatpush2.xpose.msra.mxu0 0.0
        %4895 = vmatprep.subr.mxu0 0.0
        %4896 = vmatpush2.xpose.msra.mxu0 0.0
        %4897 = vmatprep.subr.mxu0 0.0
        %4898 = vmatpush2.xpose.msra.mxu0 0.0
        %4899 = vmatprep.subr.mxu0 0.0
        %4900 = vmatpush2.xpose.msra.mxu0 0.0
        %4901 = vmatprep.subr.mxu0 0.0
        %4902 = vmatpush2.xpose.msra.mxu0 0.0
        %4903 = vmatprep.subr.mxu0 0.0
        %4904 = vmatpush2.xpose.msra.mxu0 0.0
        %4905 = vmatprep.mubr.f32.mxu0 0.0
        %v4906 = vand.u32 %v4610, 4294901760
        %v4907 = vsub.f32 %v4610, %v4906
        %v4908 = vand.u32 %v4907, 4294901760
        %4909 = vmatmul.mubr.f32.gmra.mxu0 %v4908
        %v4910 = vpop.f32.mrf.mxu0
        %v4911 = vadd.f32 %v4837, %v4910
        %v4912 = vpop.f32.mrf.mxu0
        %4913 = vdwg.mxu0
        %4914 = vmatprep.subr.mxu0 0.0
        %4915 = vmatpush1.xpose.msra.mxu0 0.0
        %4916 = vmatprep.subr.mxu0 0.0
        %4917 = vmatpush1.xpose.msra.mxu0 0.0
        %4918 = vmatprep.subr.mxu0 0.0
        %4919 = vmatpush1.xpose.msra.mxu0 0.0
        %4920 = vmatprep.subr.mxu0 0.0
        %4921 = vmatpush1.xpose.msra.mxu0 0.0
        %4922 = vmatprep.subr.mxu0 0.0
        %4923 = vmatpush1.xpose.msra.mxu0 0.0
        %4924 = vmatprep.subr.mxu0 0.0
        %4925 = vmatpush1.xpose.msra.mxu0 0.0
        %4926 = vmatprep.subr.mxu0 0.0
        %4927 = vmatpush1.xpose.msra.mxu0 0.0
        %4928 = vmatprep.subr.mxu0 0.0
        %4929 = vmatpush1.xpose.msra.mxu0 0.0
        %4930 = vmatprep.subr.mxu0 0.0
        %4931 = vmatpush1.xpose.msra.mxu0 0.0
        %4932 = vmatprep.subr.mxu0 0.0
        %4933 = vmatpush1.xpose.msra.mxu0 0.0
        %4934 = vmatprep.subr.mxu0 0.0
        %4935 = vmatpush1.xpose.msra.mxu0 0.0
        %4936 = vmatprep.subr.mxu0 0.0
        %4937 = vmatpush1.xpose.msra.mxu0 0.0
        %4938 = vmatprep.subr.mxu0 0.0
        %4939 = vmatpush1.xpose.msra.mxu0 0.0
        %4940 = vmatprep.subr.mxu0 0.0
        %4941 = vmatpush1.xpose.msra.mxu0 0.0
        %4942 = vmatprep.subr.mxu0 0.0
        %4943 = vmatpush1.xpose.msra.mxu0 0.0
        %4944 = vmatprep.subr.mxu0 0.0
        %v4945 = vand.u32 %v4612, 4294901760
        %v4946 = vsub.f32 %v4612, %v4945
        %v4947 = vand.u32 %v4946, 4294901760
        %4948 = vmatpush1.xpose.msra.mxu0 %v4947
        %4949 = vmatprep.subr.mxu0 0.0
        %4950 = vmatpush2.xpose.msra.mxu0 0.0
        %4951 = vmatprep.subr.mxu0 0.0
        %4952 = vmatpush2.xpose.msra.mxu0 0.0
        %4953 = vmatprep.subr.mxu0 0.0
        %4954 = vmatpush2.xpose.msra.mxu0 0.0
        %4955 = vmatprep.subr.mxu0 0.0
        %4956 = vmatpush2.xpose.msra.mxu0 0.0
        %4957 = vmatprep.subr.mxu0 0.0
        %4958 = vmatpush2.xpose.msra.mxu0 0.0
        %4959 = vmatprep.subr.mxu0 0.0
        %4960 = vmatpush2.xpose.msra.mxu0 0.0
        %4961 = vmatprep.subr.mxu0 0.0
        %4962 = vmatpush2.xpose.msra.mxu0 0.0
        %4963 = vmatprep.subr.mxu0 0.0
        %4964 = vmatpush2.xpose.msra.mxu0 0.0
        %4965 = vmatprep.subr.mxu0 0.0
        %4966 = vmatpush2.xpose.msra.mxu0 0.0
        %4967 = vmatprep.subr.mxu0 0.0
        %4968 = vmatpush2.xpose.msra.mxu0 0.0
        %4969 = vmatprep.subr.mxu0 0.0
        %4970 = vmatpush2.xpose.msra.mxu0 0.0
        %4971 = vmatprep.subr.mxu0 0.0
        %4972 = vmatpush2.xpose.msra.mxu0 0.0
        %4973 = vmatprep.subr.mxu0 0.0
        %4974 = vmatpush2.xpose.msra.mxu0 0.0
        %4975 = vmatprep.subr.mxu0 0.0
        %4976 = vmatpush2.xpose.msra.mxu0 0.0
        %4977 = vmatprep.subr.mxu0 0.0
        %4978 = vmatpush2.xpose.msra.mxu0 0.0
        %4979 = vmatprep.subr.mxu0 0.0
        %4980 = vmatpush2.xpose.msra.mxu0 0.0
        %4981 = vmatprep.mubr.f32.mxu0 0.0
        %v4982 = vand.u32 %v4610, 4294901760
        %4983 = vmatmul.mubr.f32.gmra.mxu0 %v4982
        %v4984 = vpop.f32.mrf.mxu0
        %v4985 = vadd.f32 %v4911, %v4984
        %v4986 = vpop.f32.mrf.mxu0
        %4987 = vdwg.mxu0
        %4988 = vmatprep.subr.mxu0 0.0
        %4989 = vmatpush1.xpose.msra.mxu0 0.0
        %4990 = vmatprep.subr.mxu0 0.0
        %4991 = vmatpush1.xpose.msra.mxu0 0.0
        %4992 = vmatprep.subr.mxu0 0.0
        %4993 = vmatpush1.xpose.msra.mxu0 0.0
        %4994 = vmatprep.subr.mxu0 0.0
        %4995 = vmatpush1.xpose.msra.mxu0 0.0
        %4996 = vmatprep.subr.mxu0 0.0
        %4997 = vmatpush1.xpose.msra.mxu0 0.0
        %4998 = vmatprep.subr.mxu0 0.0
        %4999 = vmatpush1.xpose.msra.mxu0 0.0
        %5000 = vmatprep.subr.mxu0 0.0
        %5001 = vmatpush1.xpose.msra.mxu0 0.0
        %5002 = vmatprep.subr.mxu0 0.0
        %5003 = vmatpush1.xpose.msra.mxu0 0.0
        %5004 = vmatprep.subr.mxu0 0.0
        %5005 = vmatpush1.xpose.msra.mxu0 0.0
        %5006 = vmatprep.subr.mxu0 0.0
        %5007 = vmatpush1.xpose.msra.mxu0 0.0
        %5008 = vmatprep.subr.mxu0 0.0
        %5009 = vmatpush1.xpose.msra.mxu0 0.0
        %5010 = vmatprep.subr.mxu0 0.0
        %5011 = vmatpush1.xpose.msra.mxu0 0.0
        %5012 = vmatprep.subr.mxu0 0.0
        %5013 = vmatpush1.xpose.msra.mxu0 0.0
        %5014 = vmatprep.subr.mxu0 0.0
        %5015 = vmatpush1.xpose.msra.mxu0 0.0
        %5016 = vmatprep.subr.mxu0 0.0
        %5017 = vmatpush1.xpose.msra.mxu0 0.0
        %5018 = vmatprep.subr.mxu0 0.0
        %v5019 = vand.u32 %v4612, 4294901760
        %5020 = vmatpush1.xpose.msra.mxu0 %v5019
        %5021 = vmatprep.subr.mxu0 0.0
        %5022 = vmatpush2.xpose.msra.mxu0 0.0
        %5023 = vmatprep.subr.mxu0 0.0
        %5024 = vmatpush2.xpose.msra.mxu0 0.0
        %5025 = vmatprep.subr.mxu0 0.0
        %5026 = vmatpush2.xpose.msra.mxu0 0.0
        %5027 = vmatprep.subr.mxu0 0.0
        %5028 = vmatpush2.xpose.msra.mxu0 0.0
        %5029 = vmatprep.subr.mxu0 0.0
        %5030 = vmatpush2.xpose.msra.mxu0 0.0
        %5031 = vmatprep.subr.mxu0 0.0
        %5032 = vmatpush2.xpose.msra.mxu0 0.0
        %5033 = vmatprep.subr.mxu0 0.0
        %5034 = vmatpush2.xpose.msra.mxu0 0.0
        %5035 = vmatprep.subr.mxu0 0.0
        %5036 = vmatpush2.xpose.msra.mxu0 0.0
        %5037 = vmatprep.subr.mxu0 0.0
        %5038 = vmatpush2.xpose.msra.mxu0 0.0
        %5039 = vmatprep.subr.mxu0 0.0
        %5040 = vmatpush2.xpose.msra.mxu0 0.0
        %5041 = vmatprep.subr.mxu0 0.0
        %5042 = vmatpush2.xpose.msra.mxu0 0.0
        %5043 = vmatprep.subr.mxu0 0.0
        %5044 = vmatpush2.xpose.msra.mxu0 0.0
        %5045 = vmatprep.subr.mxu0 0.0
        %5046 = vmatpush2.xpose.msra.mxu0 0.0
        %5047 = vmatprep.subr.mxu0 0.0
        %5048 = vmatpush2.xpose.msra.mxu0 0.0
        %5049 = vmatprep.subr.mxu0 0.0
        %5050 = vmatpush2.xpose.msra.mxu0 0.0
        %5051 = vmatprep.subr.mxu0 0.0
        %5052 = vmatpush2.xpose.msra.mxu0 0.0
        %5053 = vmatprep.mubr.f32.mxu0 0.0
        %v5054 = vand.u32 %v4610, 4294901760
        %5055 = vmatmul.mubr.f32.gmra.mxu0 %v5054
        %v5056 = vpop.f32.mrf.mxu0
        %v5057 = vadd.f32 %v4985, %v5056
        %v5058 = vpop.f32.mrf.mxu0
        %5059 = vdwg.mxu0
        %v5060 = vsel %vm2297, %v5057, -inf
        %5061 = vmax.xlane.f32.xlu0 %v5060
        %v5062 = vpop.xlane.xlu0 %5061
        %v5063 = vsub.f32 %v5057, %v5062
        %v5064 = vmul.f32 %v5063, 1.442695
        %v5065 = vpow.pop %v5064
        %v5066 = vsel %vm2297, %v5065, 0.0
        %5067 = vadd.xlane.f32.xlu0 %v5066
        %v5068 = vpop.xlane.xlu0 %5067
        %5069 = vrot.lane.b32.xlu0 %v1840, 32
        %v5070 = vpop.permute.xlu0 %5069
        %v5073 = vsel %vm2297, %v5065, 0
        %5075 = vmatprep.subr.mxu0 0.0
        %5076 = vmatpush1.msra.mxu0 0.0
        %5077 = vmatprep.subr.mxu0 0.0
        %5078 = vmatpush1.msra.mxu0 0.0
        %5079 = vmatprep.subr.mxu0 0.0
        %5080 = vmatpush1.msra.mxu0 0.0
        %5081 = vmatprep.subr.mxu0 0.0
        %5082 = vmatpush1.msra.mxu0 0.0
        %5083 = vmatprep.subr.mxu0 0.0
        %5084 = vmatpush1.msra.mxu0 0.0
        %5085 = vmatprep.subr.mxu0 0.0
        %5086 = vmatpush1.msra.mxu0 0.0
        %5087 = vmatprep.subr.mxu0 0.0
        %5088 = vmatpush1.msra.mxu0 0.0
        %5089 = vmatprep.subr.mxu0 0.0
        %5090 = vmatpush1.msra.mxu0 0.0
        %5091 = vmatprep.subr.mxu0 0.0
        %5092 = vmatpush1.msra.mxu0 0.0
        %5093 = vmatprep.subr.mxu0 0.0
        %5094 = vmatpush1.msra.mxu0 0.0
        %5095 = vmatprep.subr.mxu0 0.0
        %5096 = vmatpush1.msra.mxu0 0.0
        %5097 = vmatprep.subr.mxu0 0.0
        %5098 = vmatpush1.msra.mxu0 0.0
        %5099 = vmatprep.subr.mxu0 0.0
        %5100 = vmatpush1.msra.mxu0 0.0
        %5101 = vmatprep.subr.mxu0 0.0
        %5102 = vmatpush1.msra.mxu0 0.0
        %5103 = vmatprep.subr.mxu0 0.0
        %5104 = vmatpush1.msra.mxu0 0.0
        %5105 = vmatprep.subr.mxu0 0.0
        %v5106 = vand.u32 %v5070, 4294901760
        %5107 = vmatpush1.msra.mxu0 %v5106
        %5108 = vmatprep.subr.mxu0 0.0
        %5109 = vmatpush2.msra.mxu0 0.0
        %5110 = vmatprep.subr.mxu0 0.0
        %5111 = vmatpush2.msra.mxu0 0.0
        %5112 = vmatprep.subr.mxu0 0.0
        %5113 = vmatpush2.msra.mxu0 0.0
        %5114 = vmatprep.subr.mxu0 0.0
        %5115 = vmatpush2.msra.mxu0 0.0
        %5116 = vmatprep.subr.mxu0 0.0
        %5117 = vmatpush2.msra.mxu0 0.0
        %5118 = vmatprep.subr.mxu0 0.0
        %5119 = vmatpush2.msra.mxu0 0.0
        %5120 = vmatprep.subr.mxu0 0.0
        %5121 = vmatpush2.msra.mxu0 0.0
        %5122 = vmatprep.subr.mxu0 0.0
        %5123 = vmatpush2.msra.mxu0 0.0
        %5124 = vmatprep.subr.mxu0 0.0
        %5125 = vmatpush2.msra.mxu0 0.0
        %5126 = vmatprep.subr.mxu0 0.0
        %5127 = vmatpush2.msra.mxu0 0.0
        %5128 = vmatprep.subr.mxu0 0.0
        %5129 = vmatpush2.msra.mxu0 0.0
        %5130 = vmatprep.subr.mxu0 0.0
        %5131 = vmatpush2.msra.mxu0 0.0
        %5132 = vmatprep.subr.mxu0 0.0
        %5133 = vmatpush2.msra.mxu0 0.0
        %5134 = vmatprep.subr.mxu0 0.0
        %5135 = vmatpush2.msra.mxu0 0.0
        %5136 = vmatprep.subr.mxu0 0.0
        %5137 = vmatpush2.msra.mxu0 0.0
        %5138 = vmatprep.subr.mxu0 0.0
        %5139 = vmatpush2.msra.mxu0 0.0
        %5140 = vmatprep.mubr.f32.mxu0 0.0
        %v5141 = vand.u32 %v5073, 4294901760
        %v5142 = vsub.f32 %v5073, %v5141
        %v5143 = vand.u32 %v5142, 4294901760
        %v5144 = vsub.f32 %v5142, %v5143
        %v5145 = vand.u32 %v5144, 4294901760
        %5146 = vmatmul.mubr.f32.gmra.mxu0 %v5145
        %v5147 = vpop.f32.mrf.mxu0
        %v5148 = vadd.f32 0.0, %v5147
        %v5149 = vpop.f32.mrf.mxu0
        %5150 = vdwg.mxu0
        %5151 = vmatprep.subr.mxu0 0.0
        %5152 = vmatpush1.msra.mxu0 0.0
        %5153 = vmatprep.subr.mxu0 0.0
        %5154 = vmatpush1.msra.mxu0 0.0
        %5155 = vmatprep.subr.mxu0 0.0
        %5156 = vmatpush1.msra.mxu0 0.0
        %5157 = vmatprep.subr.mxu0 0.0
        %5158 = vmatpush1.msra.mxu0 0.0
        %5159 = vmatprep.subr.mxu0 0.0
        %5160 = vmatpush1.msra.mxu0 0.0
        %5161 = vmatprep.subr.mxu0 0.0
        %5162 = vmatpush1.msra.mxu0 0.0
        %5163 = vmatprep.subr.mxu0 0.0
        %5164 = vmatpush1.msra.mxu0 0.0
        %5165 = vmatprep.subr.mxu0 0.0
        %5166 = vmatpush1.msra.mxu0 0.0
        %5167 = vmatprep.subr.mxu0 0.0
        %5168 = vmatpush1.msra.mxu0 0.0
        %5169 = vmatprep.subr.mxu0 0.0
        %5170 = vmatpush1.msra.mxu0 0.0
        %5171 = vmatprep.subr.mxu0 0.0
        %5172 = vmatpush1.msra.mxu0 0.0
        %5173 = vmatprep.subr.mxu0 0.0
        %5174 = vmatpush1.msra.mxu0 0.0
        %5175 = vmatprep.subr.mxu0 0.0
        %5176 = vmatpush1.msra.mxu0 0.0
        %5177 = vmatprep.subr.mxu0 0.0
        %5178 = vmatpush1.msra.mxu0 0.0
        %5179 = vmatprep.subr.mxu0 0.0
        %5180 = vmatpush1.msra.mxu0 0.0
        %5181 = vmatprep.subr.mxu0 0.0
        %v5182 = vand.u32 %v5070, 4294901760
        %v5183 = vsub.f32 %v5070, %v5182
        %v5184 = vand.u32 %v5183, 4294901760
        %v5185 = vsub.f32 %v5183, %v5184
        %v5186 = vand.u32 %v5185, 4294901760
        %5187 = vmatpush1.msra.mxu0 %v5186
        %5188 = vmatprep.subr.mxu0 0.0
        %5189 = vmatpush2.msra.mxu0 0.0
        %5190 = vmatprep.subr.mxu0 0.0
        %5191 = vmatpush2.msra.mxu0 0.0
        %5192 = vmatprep.subr.mxu0 0.0
        %5193 = vmatpush2.msra.mxu0 0.0
        %5194 = vmatprep.subr.mxu0 0.0
        %5195 = vmatpush2.msra.mxu0 0.0
        %5196 = vmatprep.subr.mxu0 0.0
        %5197 = vmatpush2.msra.mxu0 0.0
        %5198 = vmatprep.subr.mxu0 0.0
        %5199 = vmatpush2.msra.mxu0 0.0
        %5200 = vmatprep.subr.mxu0 0.0
        %5201 = vmatpush2.msra.mxu0 0.0
        %5202 = vmatprep.subr.mxu0 0.0
        %5203 = vmatpush2.msra.mxu0 0.0
        %5204 = vmatprep.subr.mxu0 0.0
        %5205 = vmatpush2.msra.mxu0 0.0
        %5206 = vmatprep.subr.mxu0 0.0
        %5207 = vmatpush2.msra.mxu0 0.0
        %5208 = vmatprep.subr.mxu0 0.0
        %5209 = vmatpush2.msra.mxu0 0.0
        %5210 = vmatprep.subr.mxu0 0.0
        %5211 = vmatpush2.msra.mxu0 0.0
        %5212 = vmatprep.subr.mxu0 0.0
        %5213 = vmatpush2.msra.mxu0 0.0
        %5214 = vmatprep.subr.mxu0 0.0
        %5215 = vmatpush2.msra.mxu0 0.0
        %5216 = vmatprep.subr.mxu0 0.0
        %5217 = vmatpush2.msra.mxu0 0.0
        %5218 = vmatprep.subr.mxu0 0.0
        %5219 = vmatpush2.msra.mxu0 0.0
        %5220 = vmatprep.mubr.f32.mxu0 0.0
        %v5221 = vand.u32 %v5073, 4294901760
        %5222 = vmatmul.mubr.f32.gmra.mxu0 %v5221
        %v5223 = vpop.f32.mrf.mxu0
        %v5224 = vadd.f32 %v5148, %v5223
        %v5225 = vpop.f32.mrf.mxu0
        %5226 = vdwg.mxu0
        %5227 = vmatprep.subr.mxu0 0.0
        %5228 = vmatpush1.msra.mxu0 0.0
        %5229 = vmatprep.subr.mxu0 0.0
        %5230 = vmatpush1.msra.mxu0 0.0
        %5231 = vmatprep.subr.mxu0 0.0
        %5232 = vmatpush1.msra.mxu0 0.0
        %5233 = vmatprep.subr.mxu0 0.0
        %5234 = vmatpush1.msra.mxu0 0.0
        %5235 = vmatprep.subr.mxu0 0.0
        %5236 = vmatpush1.msra.mxu0 0.0
        %5237 = vmatprep.subr.mxu0 0.0
        %5238 = vmatpush1.msra.mxu0 0.0
        %5239 = vmatprep.subr.mxu0 0.0
        %5240 = vmatpush1.msra.mxu0 0.0
        %5241 = vmatprep.subr.mxu0 0.0
        %5242 = vmatpush1.msra.mxu0 0.0
        %5243 = vmatprep.subr.mxu0 0.0
        %5244 = vmatpush1.msra.mxu0 0.0
        %5245 = vmatprep.subr.mxu0 0.0
        %5246 = vmatpush1.msra.mxu0 0.0
        %5247 = vmatprep.subr.mxu0 0.0
        %5248 = vmatpush1.msra.mxu0 0.0
        %5249 = vmatprep.subr.mxu0 0.0
        %5250 = vmatpush1.msra.mxu0 0.0
        %5251 = vmatprep.subr.mxu0 0.0
        %5252 = vmatpush1.msra.mxu0 0.0
        %5253 = vmatprep.subr.mxu0 0.0
        %5254 = vmatpush1.msra.mxu0 0.0
        %5255 = vmatprep.subr.mxu0 0.0
        %5256 = vmatpush1.msra.mxu0 0.0
        %5257 = vmatprep.subr.mxu0 0.0
        %v5258 = vand.u32 %v5070, 4294901760
        %v5259 = vsub.f32 %v5070, %v5258
        %5260 = vmatpush1.msra.mxu0 %v5259
        %5261 = vmatprep.subr.mxu0 0.0
        %5262 = vmatpush2.msra.mxu0 0.0
        %5263 = vmatprep.subr.mxu0 0.0
        %5264 = vmatpush2.msra.mxu0 0.0
        %5265 = vmatprep.subr.mxu0 0.0
        %5266 = vmatpush2.msra.mxu0 0.0
        %5267 = vmatprep.subr.mxu0 0.0
        %5268 = vmatpush2.msra.mxu0 0.0
        %5269 = vmatprep.subr.mxu0 0.0
        %5270 = vmatpush2.msra.mxu0 0.0
        %5271 = vmatprep.subr.mxu0 0.0
        %5272 = vmatpush2.msra.mxu0 0.0
        %5273 = vmatprep.subr.mxu0 0.0
        %5274 = vmatpush2.msra.mxu0 0.0
        %5275 = vmatprep.subr.mxu0 0.0
        %5276 = vmatpush2.msra.mxu0 0.0
        %5277 = vmatprep.subr.mxu0 0.0
        %5278 = vmatpush2.msra.mxu0 0.0
        %5279 = vmatprep.subr.mxu0 0.0
        %5280 = vmatpush2.msra.mxu0 0.0
        %5281 = vmatprep.subr.mxu0 0.0
        %5282 = vmatpush2.msra.mxu0 0.0
        %5283 = vmatprep.subr.mxu0 0.0
        %5284 = vmatpush2.msra.mxu0 0.0
        %5285 = vmatprep.subr.mxu0 0.0
        %5286 = vmatpush2.msra.mxu0 0.0
        %5287 = vmatprep.subr.mxu0 0.0
        %5288 = vmatpush2.msra.mxu0 0.0
        %5289 = vmatprep.subr.mxu0 0.0
        %5290 = vmatpush2.msra.mxu0 0.0
        %5291 = vmatprep.subr.mxu0 0.0
        %5292 = vmatpush2.msra.mxu0 0.0
        %5293 = vmatprep.mubr.f32.mxu0 0.0
        %v5294 = vand.u32 %v5073, 4294901760
        %v5295 = vsub.f32 %v5073, %v5294
        %5296 = vmatmul.mubr.f32.gmra.mxu0 %v5295
        %v5297 = vpop.f32.mrf.mxu0
        %v5298 = vadd.f32 %v5224, %v5297
        %v5299 = vpop.f32.mrf.mxu0
        %5300 = vdwg.mxu0
        %5301 = vmatprep.subr.mxu0 0.0
        %5302 = vmatpush1.msra.mxu0 0.0
        %5303 = vmatprep.subr.mxu0 0.0
        %5304 = vmatpush1.msra.mxu0 0.0
        %5305 = vmatprep.subr.mxu0 0.0
        %5306 = vmatpush1.msra.mxu0 0.0
        %5307 = vmatprep.subr.mxu0 0.0
        %5308 = vmatpush1.msra.mxu0 0.0
        %5309 = vmatprep.subr.mxu0 0.0
        %5310 = vmatpush1.msra.mxu0 0.0
        %5311 = vmatprep.subr.mxu0 0.0
        %5312 = vmatpush1.msra.mxu0 0.0
        %5313 = vmatprep.subr.mxu0 0.0
        %5314 = vmatpush1.msra.mxu0 0.0
        %5315 = vmatprep.subr.mxu0 0.0
        %5316 = vmatpush1.msra.mxu0 0.0
        %5317 = vmatprep.subr.mxu0 0.0
        %5318 = vmatpush1.msra.mxu0 0.0
        %5319 = vmatprep.subr.mxu0 0.0
        %5320 = vmatpush1.msra.mxu0 0.0
        %5321 = vmatprep.subr.mxu0 0.0
        %5322 = vmatpush1.msra.mxu0 0.0
        %5323 = vmatprep.subr.mxu0 0.0
        %5324 = vmatpush1.msra.mxu0 0.0
        %5325 = vmatprep.subr.mxu0 0.0
        %5326 = vmatpush1.msra.mxu0 0.0
        %5327 = vmatprep.subr.mxu0 0.0
        %5328 = vmatpush1.msra.mxu0 0.0
        %5329 = vmatprep.subr.mxu0 0.0
        %5330 = vmatpush1.msra.mxu0 0.0
        %5331 = vmatprep.subr.mxu0 0.0
        %v5332 = vand.u32 %v5070, 4294901760
        %5333 = vmatpush1.msra.mxu0 %v5332
        %5334 = vmatprep.subr.mxu0 0.0
        %5335 = vmatpush2.msra.mxu0 0.0
        %5336 = vmatprep.subr.mxu0 0.0
        %5337 = vmatpush2.msra.mxu0 0.0
        %5338 = vmatprep.subr.mxu0 0.0
        %5339 = vmatpush2.msra.mxu0 0.0
        %5340 = vmatprep.subr.mxu0 0.0
        %5341 = vmatpush2.msra.mxu0 0.0
        %5342 = vmatprep.subr.mxu0 0.0
        %5343 = vmatpush2.msra.mxu0 0.0
        %5344 = vmatprep.subr.mxu0 0.0
        %5345 = vmatpush2.msra.mxu0 0.0
        %5346 = vmatprep.subr.mxu0 0.0
        %5347 = vmatpush2.msra.mxu0 0.0
        %5348 = vmatprep.subr.mxu0 0.0
        %5349 = vmatpush2.msra.mxu0 0.0
        %5350 = vmatprep.subr.mxu0 0.0
        %5351 = vmatpush2.msra.mxu0 0.0
        %5352 = vmatprep.subr.mxu0 0.0
        %5353 = vmatpush2.msra.mxu0 0.0
        %5354 = vmatprep.subr.mxu0 0.0
        %5355 = vmatpush2.msra.mxu0 0.0
        %5356 = vmatprep.subr.mxu0 0.0
        %5357 = vmatpush2.msra.mxu0 0.0
        %5358 = vmatprep.subr.mxu0 0.0
        %5359 = vmatpush2.msra.mxu0 0.0
        %5360 = vmatprep.subr.mxu0 0.0
        %5361 = vmatpush2.msra.mxu0 0.0
        %5362 = vmatprep.subr.mxu0 0.0
        %5363 = vmatpush2.msra.mxu0 0.0
        %5364 = vmatprep.subr.mxu0 0.0
        %5365 = vmatpush2.msra.mxu0 0.0
        %5366 = vmatprep.mubr.f32.mxu0 0.0
        %v5367 = vand.u32 %v5073, 4294901760
        %v5368 = vsub.f32 %v5073, %v5367
        %v5369 = vand.u32 %v5368, 4294901760
        %5370 = vmatmul.mubr.f32.gmra.mxu0 %v5369
        %v5371 = vpop.f32.mrf.mxu0
        %v5372 = vadd.f32 %v5298, %v5371
        %v5373 = vpop.f32.mrf.mxu0
        %5374 = vdwg.mxu0
        %5375 = vmatprep.subr.mxu0 0.0
        %5376 = vmatpush1.msra.mxu0 0.0
        %5377 = vmatprep.subr.mxu0 0.0
        %5378 = vmatpush1.msra.mxu0 0.0
        %5379 = vmatprep.subr.mxu0 0.0
        %5380 = vmatpush1.msra.mxu0 0.0
        %5381 = vmatprep.subr.mxu0 0.0
        %5382 = vmatpush1.msra.mxu0 0.0
        %5383 = vmatprep.subr.mxu0 0.0
        %5384 = vmatpush1.msra.mxu0 0.0
        %5385 = vmatprep.subr.mxu0 0.0
        %5386 = vmatpush1.msra.mxu0 0.0
        %5387 = vmatprep.subr.mxu0 0.0
        %5388 = vmatpush1.msra.mxu0 0.0
        %5389 = vmatprep.subr.mxu0 0.0
        %5390 = vmatpush1.msra.mxu0 0.0
        %5391 = vmatprep.subr.mxu0 0.0
        %5392 = vmatpush1.msra.mxu0 0.0
        %5393 = vmatprep.subr.mxu0 0.0
        %5394 = vmatpush1.msra.mxu0 0.0
        %5395 = vmatprep.subr.mxu0 0.0
        %5396 = vmatpush1.msra.mxu0 0.0
        %5397 = vmatprep.subr.mxu0 0.0
        %5398 = vmatpush1.msra.mxu0 0.0
        %5399 = vmatprep.subr.mxu0 0.0
        %5400 = vmatpush1.msra.mxu0 0.0
        %5401 = vmatprep.subr.mxu0 0.0
        %5402 = vmatpush1.msra.mxu0 0.0
        %5403 = vmatprep.subr.mxu0 0.0
        %5404 = vmatpush1.msra.mxu0 0.0
        %5405 = vmatprep.subr.mxu0 0.0
        %v5406 = vand.u32 %v5070, 4294901760
        %v5407 = vsub.f32 %v5070, %v5406
        %v5408 = vand.u32 %v5407, 4294901760
        %5409 = vmatpush1.msra.mxu0 %v5408
        %5410 = vmatprep.subr.mxu0 0.0
        %5411 = vmatpush2.msra.mxu0 0.0
        %5412 = vmatprep.subr.mxu0 0.0
        %5413 = vmatpush2.msra.mxu0 0.0
        %5414 = vmatprep.subr.mxu0 0.0
        %5415 = vmatpush2.msra.mxu0 0.0
        %5416 = vmatprep.subr.mxu0 0.0
        %5417 = vmatpush2.msra.mxu0 0.0
        %5418 = vmatprep.subr.mxu0 0.0
        %5419 = vmatpush2.msra.mxu0 0.0
        %5420 = vmatprep.subr.mxu0 0.0
        %5421 = vmatpush2.msra.mxu0 0.0
        %5422 = vmatprep.subr.mxu0 0.0
        %5423 = vmatpush2.msra.mxu0 0.0
        %5424 = vmatprep.subr.mxu0 0.0
        %5425 = vmatpush2.msra.mxu0 0.0
        %5426 = vmatprep.subr.mxu0 0.0
        %5427 = vmatpush2.msra.mxu0 0.0
        %5428 = vmatprep.subr.mxu0 0.0
        %5429 = vmatpush2.msra.mxu0 0.0
        %5430 = vmatprep.subr.mxu0 0.0
        %5431 = vmatpush2.msra.mxu0 0.0
        %5432 = vmatprep.subr.mxu0 0.0
        %5433 = vmatpush2.msra.mxu0 0.0
        %5434 = vmatprep.subr.mxu0 0.0
        %5435 = vmatpush2.msra.mxu0 0.0
        %5436 = vmatprep.subr.mxu0 0.0
        %5437 = vmatpush2.msra.mxu0 0.0
        %5438 = vmatprep.subr.mxu0 0.0
        %5439 = vmatpush2.msra.mxu0 0.0
        %5440 = vmatprep.subr.mxu0 0.0
        %5441 = vmatpush2.msra.mxu0 0.0
        %5442 = vmatprep.mubr.f32.mxu0 0.0
        %v5443 = vand.u32 %v5073, 4294901760
        %5444 = vmatmul.mubr.f32.gmra.mxu0 %v5443
        %v5445 = vpop.f32.mrf.mxu0
        %v5446 = vadd.f32 %v5372, %v5445
        %v5447 = vpop.f32.mrf.mxu0
        %5448 = vdwg.mxu0
        %5449 = vmatprep.subr.mxu0 0.0
        %5450 = vmatpush1.msra.mxu0 0.0
        %5451 = vmatprep.subr.mxu0 0.0
        %5452 = vmatpush1.msra.mxu0 0.0
        %5453 = vmatprep.subr.mxu0 0.0
        %5454 = vmatpush1.msra.mxu0 0.0
        %5455 = vmatprep.subr.mxu0 0.0
        %5456 = vmatpush1.msra.mxu0 0.0
        %5457 = vmatprep.subr.mxu0 0.0
        %5458 = vmatpush1.msra.mxu0 0.0
        %5459 = vmatprep.subr.mxu0 0.0
        %5460 = vmatpush1.msra.mxu0 0.0
        %5461 = vmatprep.subr.mxu0 0.0
        %5462 = vmatpush1.msra.mxu0 0.0
        %5463 = vmatprep.subr.mxu0 0.0
        %5464 = vmatpush1.msra.mxu0 0.0
        %5465 = vmatprep.subr.mxu0 0.0
        %5466 = vmatpush1.msra.mxu0 0.0
        %5467 = vmatprep.subr.mxu0 0.0
        %5468 = vmatpush1.msra.mxu0 0.0
        %5469 = vmatprep.subr.mxu0 0.0
        %5470 = vmatpush1.msra.mxu0 0.0
        %5471 = vmatprep.subr.mxu0 0.0
        %5472 = vmatpush1.msra.mxu0 0.0
        %5473 = vmatprep.subr.mxu0 0.0
        %5474 = vmatpush1.msra.mxu0 0.0
        %5475 = vmatprep.subr.mxu0 0.0
        %5476 = vmatpush1.msra.mxu0 0.0
        %5477 = vmatprep.subr.mxu0 0.0
        %5478 = vmatpush1.msra.mxu0 0.0
        %5479 = vmatprep.subr.mxu0 0.0
        %v5480 = vand.u32 %v5070, 4294901760
        %5481 = vmatpush1.msra.mxu0 %v5480
        %5482 = vmatprep.subr.mxu0 0.0
        %5483 = vmatpush2.msra.mxu0 0.0
        %5484 = vmatprep.subr.mxu0 0.0
        %5485 = vmatpush2.msra.mxu0 0.0
        %5486 = vmatprep.subr.mxu0 0.0
        %5487 = vmatpush2.msra.mxu0 0.0
        %5488 = vmatprep.subr.mxu0 0.0
        %5489 = vmatpush2.msra.mxu0 0.0
        %5490 = vmatprep.subr.mxu0 0.0
        %5491 = vmatpush2.msra.mxu0 0.0
        %5492 = vmatprep.subr.mxu0 0.0
        %5493 = vmatpush2.msra.mxu0 0.0
        %5494 = vmatprep.subr.mxu0 0.0
        %5495 = vmatpush2.msra.mxu0 0.0
        %5496 = vmatprep.subr.mxu0 0.0
        %5497 = vmatpush2.msra.mxu0 0.0
        %5498 = vmatprep.subr.mxu0 0.0
        %5499 = vmatpush2.msra.mxu0 0.0
        %5500 = vmatprep.subr.mxu0 0.0
        %5501 = vmatpush2.msra.mxu0 0.0
        %5502 = vmatprep.subr.mxu0 0.0
        %5503 = vmatpush2.msra.mxu0 0.0
        %5504 = vmatprep.subr.mxu0 0.0
        %5505 = vmatpush2.msra.mxu0 0.0
        %5506 = vmatprep.subr.mxu0 0.0
        %5507 = vmatpush2.msra.mxu0 0.0
        %5508 = vmatprep.subr.mxu0 0.0
        %5509 = vmatpush2.msra.mxu0 0.0
        %5510 = vmatprep.subr.mxu0 0.0
        %5511 = vmatpush2.msra.mxu0 0.0
        %5512 = vmatprep.subr.mxu0 0.0
        %5513 = vmatpush2.msra.mxu0 0.0
        %5514 = vmatprep.mubr.f32.mxu0 0.0
        %v5515 = vand.u32 %v5073, 4294901760
        %5516 = vmatmul.mubr.f32.gmra.mxu0 %v5515
        %v5517 = vpop.f32.mrf.mxu0
        %v5518 = vadd.f32 %v5446, %v5517
        %v5519 = vpop.f32.mrf.mxu0
        %5520 = vdwg.mxu0
        %v5521 = vrcp.pop %v5068
        %v5522 = vmul.f32 %v5518, %v5521
        %5524 = vrot.lane.b32.xlu0 %v5522, 96
        %v5525 = vpop.permute.xlu0 %5524
        %vm5527 = vcmask 1048320
        %5528 = vst.msk [vmem:[#allocation2] sm:$0xff] %vm5527, %v5525
        %v5529 = vld [vmem:[#allocation2] sm:$0xff]
        %v5530 = vld [vmem:[#allocation8] sm:$0xff]
        %v5531 = vld [vmem:[#allocation8 + $0x8] sm:$0xff]
        %v5532 = vld [vmem:[#allocation8 + $0x10] sm:$0xff]
        %v5533 = vld [vmem:[#allocation8 + $0x18] sm:$0xff]
        %v5534 = vld [vmem:[#allocation8 + $0x20] sm:$0xff]
        %v5535 = vld [vmem:[#allocation8 + $0x28] sm:$0xff]
        %v5536 = vld [vmem:[#allocation8 + $0x30] sm:$0xff]
        %v5537 = vld [vmem:[#allocation8 + $0x38] sm:$0xff]
        %v5538 = vld [vmem:[#allocation8 + $0x40] sm:$0xff]
        %v5539 = vld [vmem:[#allocation8 + $0x48] sm:$0xff]
        %v5540 = vld [vmem:[#allocation8 + $0x50] sm:$0xff]
        %v5541 = vld [vmem:[#allocation8 + $0x58] sm:$0xff]
        %v5542 = vld [vmem:[#allocation8 + $0x60] sm:$0xff]
        %v5543 = vld [vmem:[#allocation8 + $0x68] sm:$0xff]
        %v5544 = vld [vmem:[#allocation8 + $0x70] sm:$0xff]
        %v5545 = vld [vmem:[#allocation8 + $0x78] sm:$0xff]
        %v5546 = vld [vmem:[%s4] sm:$0x1]
        %v5548 = vlaneseq
        %v5549 = vshrl.u32 %v5548, 7
        %v5550 = vsub.s32 0, %v5549
        %v5551 = vrot.slane %v5546, %v5550
        %5553 = vmatprep.subr.mxu0 0.0
        %v5554 = vand.u32 %v5545, 4294901760
        %5555 = vmatpush1.msra.mxu0 %v5554
        %5556 = vmatprep.subr.mxu0 0.0
        %v5557 = vand.u32 %v5544, 4294901760
        %5558 = vmatpush1.msra.mxu0 %v5557
        %5559 = vmatprep.subr.mxu0 0.0
        %v5560 = vand.u32 %v5543, 4294901760
        %5561 = vmatpush1.msra.mxu0 %v5560
        %5562 = vmatprep.subr.mxu0 0.0
        %v5563 = vand.u32 %v5542, 4294901760
        %5564 = vmatpush1.msra.mxu0 %v5563
        %5565 = vmatprep.subr.mxu0 0.0
        %v5566 = vand.u32 %v5541, 4294901760
        %5567 = vmatpush1.msra.mxu0 %v5566
        %5568 = vmatprep.subr.mxu0 0.0
        %v5569 = vand.u32 %v5540, 4294901760
        %5570 = vmatpush1.msra.mxu0 %v5569
        %5571 = vmatprep.subr.mxu0 0.0
        %v5572 = vand.u32 %v5539, 4294901760
        %5573 = vmatpush1.msra.mxu0 %v5572
        %5574 = vmatprep.subr.mxu0 0.0
        %v5575 = vand.u32 %v5538, 4294901760
        %5576 = vmatpush1.msra.mxu0 %v5575
        %5577 = vmatprep.subr.mxu0 0.0
        %v5578 = vand.u32 %v5537, 4294901760
        %5579 = vmatpush1.msra.mxu0 %v5578
        %5580 = vmatprep.subr.mxu0 0.0
        %v5581 = vand.u32 %v5536, 4294901760
        %5582 = vmatpush1.msra.mxu0 %v5581
        %5583 = vmatprep.subr.mxu0 0.0
        %v5584 = vand.u32 %v5535, 4294901760
        %5585 = vmatpush1.msra.mxu0 %v5584
        %5586 = vmatprep.subr.mxu0 0.0
        %v5587 = vand.u32 %v5534, 4294901760
        %5588 = vmatpush1.msra.mxu0 %v5587
        %5589 = vmatprep.subr.mxu0 0.0
        %v5590 = vand.u32 %v5533, 4294901760
        %5591 = vmatpush1.msra.mxu0 %v5590
        %5592 = vmatprep.subr.mxu0 0.0
        %v5593 = vand.u32 %v5532, 4294901760
        %5594 = vmatpush1.msra.mxu0 %v5593
        %5595 = vmatprep.subr.mxu0 0.0
        %v5596 = vand.u32 %v5531, 4294901760
        %5597 = vmatpush1.msra.mxu0 %v5596
        %5598 = vmatprep.subr.mxu0 0.0
        %v5599 = vand.u32 %v5530, 4294901760
        %5600 = vmatpush1.msra.mxu0 %v5599
        %5601 = vmatprep.subr.mxu0 0.0
        %5602 = vmatpush2.msra.mxu0 0.0
        %5603 = vmatprep.subr.mxu0 0.0
        %5604 = vmatpush2.msra.mxu0 0.0
        %5605 = vmatprep.subr.mxu0 0.0
        %5606 = vmatpush2.msra.mxu0 0.0
        %5607 = vmatprep.subr.mxu0 0.0
        %5608 = vmatpush2.msra.mxu0 0.0
        %5609 = vmatprep.subr.mxu0 0.0
        %5610 = vmatpush2.msra.mxu0 0.0
        %5611 = vmatprep.subr.mxu0 0.0
        %5612 = vmatpush2.msra.mxu0 0.0
        %5613 = vmatprep.subr.mxu0 0.0
        %5614 = vmatpush2.msra.mxu0 0.0
        %5615 = vmatprep.subr.mxu0 0.0
        %5616 = vmatpush2.msra.mxu0 0.0
        %5617 = vmatprep.subr.mxu0 0.0
        %5618 = vmatpush2.msra.mxu0 0.0
        %5619 = vmatprep.subr.mxu0 0.0
        %5620 = vmatpush2.msra.mxu0 0.0
        %5621 = vmatprep.subr.mxu0 0.0
        %5622 = vmatpush2.msra.mxu0 0.0
        %5623 = vmatprep.subr.mxu0 0.0
        %5624 = vmatpush2.msra.mxu0 0.0
        %5625 = vmatprep.subr.mxu0 0.0
        %5626 = vmatpush2.msra.mxu0 0.0
        %5627 = vmatprep.subr.mxu0 0.0
        %5628 = vmatpush2.msra.mxu0 0.0
        %5629 = vmatprep.subr.mxu0 0.0
        %5630 = vmatpush2.msra.mxu0 0.0
        %5631 = vmatprep.subr.mxu0 0.0
        %5632 = vmatpush2.msra.mxu0 0.0
        %5633 = vmatprep.mubr.f32.mxu0 0.0
        %v5634 = vand.u32 %v5529, 4294901760
        %v5635 = vsub.f32 %v5529, %v5634
        %v5636 = vand.u32 %v5635, 4294901760
        %v5637 = vsub.f32 %v5635, %v5636
        %v5638 = vand.u32 %v5637, 4294901760
        %5639 = vmatmul.mubr.f32.gmra.mxu0 %v5638
        %v5640 = vpop.f32.mrf.mxu0
        %v5641 = vadd.f32 %v5551, %v5640
        %v5642 = vpop.f32.mrf.mxu0
        %5643 = vdwg.mxu0
        %5644 = vmatprep.subr.mxu0 0.0
        %v5645 = vand.u32 %v5545, 4294901760
        %v5646 = vsub.f32 %v5545, %v5645
        %v5647 = vand.u32 %v5646, 4294901760
        %v5648 = vsub.f32 %v5646, %v5647
        %v5649 = vand.u32 %v5648, 4294901760
        %5650 = vmatpush1.msra.mxu0 %v5649
        %5651 = vmatprep.subr.mxu0 0.0
        %v5652 = vand.u32 %v5544, 4294901760
        %v5653 = vsub.f32 %v5544, %v5652
        %v5654 = vand.u32 %v5653, 4294901760
        %v5655 = vsub.f32 %v5653, %v5654
        %v5656 = vand.u32 %v5655, 4294901760
        %5657 = vmatpush1.msra.mxu0 %v5656
        %5658 = vmatprep.subr.mxu0 0.0
        %v5659 = vand.u32 %v5543, 4294901760
        %v5660 = vsub.f32 %v5543, %v5659
        %v5661 = vand.u32 %v5660, 4294901760
        %v5662 = vsub.f32 %v5660, %v5661
        %v5663 = vand.u32 %v5662, 4294901760
        %5664 = vmatpush1.msra.mxu0 %v5663
        %5665 = vmatprep.subr.mxu0 0.0
        %v5666 = vand.u32 %v5542, 4294901760
        %v5667 = vsub.f32 %v5542, %v5666
        %v5668 = vand.u32 %v5667, 4294901760
        %v5669 = vsub.f32 %v5667, %v5668
        %v5670 = vand.u32 %v5669, 4294901760
        %5671 = vmatpush1.msra.mxu0 %v5670
        %5672 = vmatprep.subr.mxu0 0.0
        %v5673 = vand.u32 %v5541, 4294901760
        %v5674 = vsub.f32 %v5541, %v5673
        %v5675 = vand.u32 %v5674, 4294901760
        %v5676 = vsub.f32 %v5674, %v5675
        %v5677 = vand.u32 %v5676, 4294901760
        %5678 = vmatpush1.msra.mxu0 %v5677
        %5679 = vmatprep.subr.mxu0 0.0
        %v5680 = vand.u32 %v5540, 4294901760
        %v5681 = vsub.f32 %v5540, %v5680
        %v5682 = vand.u32 %v5681, 4294901760
        %v5683 = vsub.f32 %v5681, %v5682
        %v5684 = vand.u32 %v5683, 4294901760
        %5685 = vmatpush1.msra.mxu0 %v5684
        %5686 = vmatprep.subr.mxu0 0.0
        %v5687 = vand.u32 %v5539, 4294901760
        %v5688 = vsub.f32 %v5539, %v5687
        %v5689 = vand.u32 %v5688, 4294901760
        %v5690 = vsub.f32 %v5688, %v5689
        %v5691 = vand.u32 %v5690, 4294901760
        %5692 = vmatpush1.msra.mxu0 %v5691
        %5693 = vmatprep.subr.mxu0 0.0
        %v5694 = vand.u32 %v5538, 4294901760
        %v5695 = vsub.f32 %v5538, %v5694
        %v5696 = vand.u32 %v5695, 4294901760
        %v5697 = vsub.f32 %v5695, %v5696
        %v5698 = vand.u32 %v5697, 4294901760
        %5699 = vmatpush1.msra.mxu0 %v5698
        %5700 = vmatprep.subr.mxu0 0.0
        %v5701 = vand.u32 %v5537, 4294901760
        %v5702 = vsub.f32 %v5537, %v5701
        %v5703 = vand.u32 %v5702, 4294901760
        %v5704 = vsub.f32 %v5702, %v5703
        %v5705 = vand.u32 %v5704, 4294901760
        %5706 = vmatpush1.msra.mxu0 %v5705
        %5707 = vmatprep.subr.mxu0 0.0
        %v5708 = vand.u32 %v5536, 4294901760
        %v5709 = vsub.f32 %v5536, %v5708
        %v5710 = vand.u32 %v5709, 4294901760
        %v5711 = vsub.f32 %v5709, %v5710
        %v5712 = vand.u32 %v5711, 4294901760
        %5713 = vmatpush1.msra.mxu0 %v5712
        %5714 = vmatprep.subr.mxu0 0.0
        %v5715 = vand.u32 %v5535, 4294901760
        %v5716 = vsub.f32 %v5535, %v5715
        %v5717 = vand.u32 %v5716, 4294901760
        %v5718 = vsub.f32 %v5716, %v5717
        %v5719 = vand.u32 %v5718, 4294901760
        %5720 = vmatpush1.msra.mxu0 %v5719
        %5721 = vmatprep.subr.mxu0 0.0
        %v5722 = vand.u32 %v5534, 4294901760
        %v5723 = vsub.f32 %v5534, %v5722
        %v5724 = vand.u32 %v5723, 4294901760
        %v5725 = vsub.f32 %v5723, %v5724
        %v5726 = vand.u32 %v5725, 4294901760
        %5727 = vmatpush1.msra.mxu0 %v5726
        %5728 = vmatprep.subr.mxu0 0.0
        %v5729 = vand.u32 %v5533, 4294901760
        %v5730 = vsub.f32 %v5533, %v5729
        %v5731 = vand.u32 %v5730, 4294901760
        %v5732 = vsub.f32 %v5730, %v5731
        %v5733 = vand.u32 %v5732, 4294901760
        %5734 = vmatpush1.msra.mxu0 %v5733
        %5735 = vmatprep.subr.mxu0 0.0
        %v5736 = vand.u32 %v5532, 4294901760
        %v5737 = vsub.f32 %v5532, %v5736
        %v5738 = vand.u32 %v5737, 4294901760
        %v5739 = vsub.f32 %v5737, %v5738
        %v5740 = vand.u32 %v5739, 4294901760
        %5741 = vmatpush1.msra.mxu0 %v5740
        %5742 = vmatprep.subr.mxu0 0.0
        %v5743 = vand.u32 %v5531, 4294901760
        %v5744 = vsub.f32 %v5531, %v5743
        %v5745 = vand.u32 %v5744, 4294901760
        %v5746 = vsub.f32 %v5744, %v5745
        %v5747 = vand.u32 %v5746, 4294901760
        %5748 = vmatpush1.msra.mxu0 %v5747
        %5749 = vmatprep.subr.mxu0 0.0
        %v5750 = vand.u32 %v5530, 4294901760
        %v5751 = vsub.f32 %v5530, %v5750
        %v5752 = vand.u32 %v5751, 4294901760
        %v5753 = vsub.f32 %v5751, %v5752
        %v5754 = vand.u32 %v5753, 4294901760
        %5755 = vmatpush1.msra.mxu0 %v5754
        %5756 = vmatprep.subr.mxu0 0.0
        %5757 = vmatpush2.msra.mxu0 0.0
        %5758 = vmatprep.subr.mxu0 0.0
        %5759 = vmatpush2.msra.mxu0 0.0
        %5760 = vmatprep.subr.mxu0 0.0
        %5761 = vmatpush2.msra.mxu0 0.0
        %5762 = vmatprep.subr.mxu0 0.0
        %5763 = vmatpush2.msra.mxu0 0.0
        %5764 = vmatprep.subr.mxu0 0.0
        %5765 = vmatpush2.msra.mxu0 0.0
        %5766 = vmatprep.subr.mxu0 0.0
        %5767 = vmatpush2.msra.mxu0 0.0
        %5768 = vmatprep.subr.mxu0 0.0
        %5769 = vmatpush2.msra.mxu0 0.0
        %5770 = vmatprep.subr.mxu0 0.0
        %5771 = vmatpush2.msra.mxu0 0.0
        %5772 = vmatprep.subr.mxu0 0.0
        %5773 = vmatpush2.msra.mxu0 0.0
        %5774 = vmatprep.subr.mxu0 0.0
        %5775 = vmatpush2.msra.mxu0 0.0
        %5776 = vmatprep.subr.mxu0 0.0
        %5777 = vmatpush2.msra.mxu0 0.0
        %5778 = vmatprep.subr.mxu0 0.0
        %5779 = vmatpush2.msra.mxu0 0.0
        %5780 = vmatprep.subr.mxu0 0.0
        %5781 = vmatpush2.msra.mxu0 0.0
        %5782 = vmatprep.subr.mxu0 0.0
        %5783 = vmatpush2.msra.mxu0 0.0
        %5784 = vmatprep.subr.mxu0 0.0
        %5785 = vmatpush2.msra.mxu0 0.0
        %5786 = vmatprep.subr.mxu0 0.0
        %5787 = vmatpush2.msra.mxu0 0.0
        %5788 = vmatprep.mubr.f32.mxu0 0.0
        %v5789 = vand.u32 %v5529, 4294901760
        %5790 = vmatmul.mubr.f32.gmra.mxu0 %v5789
        %v5791 = vpop.f32.mrf.mxu0
        %v5792 = vadd.f32 %v5641, %v5791
        %v5793 = vpop.f32.mrf.mxu0
        %5794 = vdwg.mxu0
        %5795 = vmatprep.subr.mxu0 0.0
        %v5796 = vand.u32 %v5545, 4294901760
        %v5797 = vsub.f32 %v5545, %v5796
        %5798 = vmatpush1.msra.mxu0 %v5797
        %5799 = vmatprep.subr.mxu0 0.0
        %v5800 = vand.u32 %v5544, 4294901760
        %v5801 = vsub.f32 %v5544, %v5800
        %5802 = vmatpush1.msra.mxu0 %v5801
        %5803 = vmatprep.subr.mxu0 0.0
        %v5804 = vand.u32 %v5543, 4294901760
        %v5805 = vsub.f32 %v5543, %v5804
        %5806 = vmatpush1.msra.mxu0 %v5805
        %5807 = vmatprep.subr.mxu0 0.0
        %v5808 = vand.u32 %v5542, 4294901760
        %v5809 = vsub.f32 %v5542, %v5808
        %5810 = vmatpush1.msra.mxu0 %v5809
        %5811 = vmatprep.subr.mxu0 0.0
        %v5812 = vand.u32 %v5541, 4294901760
        %v5813 = vsub.f32 %v5541, %v5812
        %5814 = vmatpush1.msra.mxu0 %v5813
        %5815 = vmatprep.subr.mxu0 0.0
        %v5816 = vand.u32 %v5540, 4294901760
        %v5817 = vsub.f32 %v5540, %v5816
        %5818 = vmatpush1.msra.mxu0 %v5817
        %5819 = vmatprep.subr.mxu0 0.0
        %v5820 = vand.u32 %v5539, 4294901760
        %v5821 = vsub.f32 %v5539, %v5820
        %5822 = vmatpush1.msra.mxu0 %v5821
        %5823 = vmatprep.subr.mxu0 0.0
        %v5824 = vand.u32 %v5538, 4294901760
        %v5825 = vsub.f32 %v5538, %v5824
        %5826 = vmatpush1.msra.mxu0 %v5825
        %5827 = vmatprep.subr.mxu0 0.0
        %v5828 = vand.u32 %v5537, 4294901760
        %v5829 = vsub.f32 %v5537, %v5828
        %5830 = vmatpush1.msra.mxu0 %v5829
        %5831 = vmatprep.subr.mxu0 0.0
        %v5832 = vand.u32 %v5536, 4294901760
        %v5833 = vsub.f32 %v5536, %v5832
        %5834 = vmatpush1.msra.mxu0 %v5833
        %5835 = vmatprep.subr.mxu0 0.0
        %v5836 = vand.u32 %v5535, 4294901760
        %v5837 = vsub.f32 %v5535, %v5836
        %5838 = vmatpush1.msra.mxu0 %v5837
        %5839 = vmatprep.subr.mxu0 0.0
        %v5840 = vand.u32 %v5534, 4294901760
        %v5841 = vsub.f32 %v5534, %v5840
        %5842 = vmatpush1.msra.mxu0 %v5841
        %5843 = vmatprep.subr.mxu0 0.0
        %v5844 = vand.u32 %v5533, 4294901760
        %v5845 = vsub.f32 %v5533, %v5844
        %5846 = vmatpush1.msra.mxu0 %v5845
        %5847 = vmatprep.subr.mxu0 0.0
        %v5848 = vand.u32 %v5532, 4294901760
        %v5849 = vsub.f32 %v5532, %v5848
        %5850 = vmatpush1.msra.mxu0 %v5849
        %5851 = vmatprep.subr.mxu0 0.0
        %v5852 = vand.u32 %v5531, 4294901760
        %v5853 = vsub.f32 %v5531, %v5852
        %5854 = vmatpush1.msra.mxu0 %v5853
        %5855 = vmatprep.subr.mxu0 0.0
        %v5856 = vand.u32 %v5530, 4294901760
        %v5857 = vsub.f32 %v5530, %v5856
        %5858 = vmatpush1.msra.mxu0 %v5857
        %5859 = vmatprep.subr.mxu0 0.0
        %5860 = vmatpush2.msra.mxu0 0.0
        %5861 = vmatprep.subr.mxu0 0.0
        %5862 = vmatpush2.msra.mxu0 0.0
        %5863 = vmatprep.subr.mxu0 0.0
        %5864 = vmatpush2.msra.mxu0 0.0
        %5865 = vmatprep.subr.mxu0 0.0
        %5866 = vmatpush2.msra.mxu0 0.0
        %5867 = vmatprep.subr.mxu0 0.0
        %5868 = vmatpush2.msra.mxu0 0.0
        %5869 = vmatprep.subr.mxu0 0.0
        %5870 = vmatpush2.msra.mxu0 0.0
        %5871 = vmatprep.subr.mxu0 0.0
        %5872 = vmatpush2.msra.mxu0 0.0
        %5873 = vmatprep.subr.mxu0 0.0
        %5874 = vmatpush2.msra.mxu0 0.0
        %5875 = vmatprep.subr.mxu0 0.0
        %5876 = vmatpush2.msra.mxu0 0.0
        %5877 = vmatprep.subr.mxu0 0.0
        %5878 = vmatpush2.msra.mxu0 0.0
        %5879 = vmatprep.subr.mxu0 0.0
        %5880 = vmatpush2.msra.mxu0 0.0
        %5881 = vmatprep.subr.mxu0 0.0
        %5882 = vmatpush2.msra.mxu0 0.0
        %5883 = vmatprep.subr.mxu0 0.0
        %5884 = vmatpush2.msra.mxu0 0.0
        %5885 = vmatprep.subr.mxu0 0.0
        %5886 = vmatpush2.msra.mxu0 0.0
        %5887 = vmatprep.subr.mxu0 0.0
        %5888 = vmatpush2.msra.mxu0 0.0
        %5889 = vmatprep.subr.mxu0 0.0
        %5890 = vmatpush2.msra.mxu0 0.0
        %5891 = vmatprep.mubr.f32.mxu0 0.0
        %v5892 = vand.u32 %v5529, 4294901760
        %v5893 = vsub.f32 %v5529, %v5892
        %5894 = vmatmul.mubr.f32.gmra.mxu0 %v5893
        %v5895 = vpop.f32.mrf.mxu0
        %v5896 = vadd.f32 %v5792, %v5895
        %v5897 = vpop.f32.mrf.mxu0
        %5898 = vdwg.mxu0
        %5899 = vmatprep.subr.mxu0 0.0
        %v5900 = vand.u32 %v5545, 4294901760
        %5901 = vmatpush1.msra.mxu0 %v5900
        %5902 = vmatprep.subr.mxu0 0.0
        %v5903 = vand.u32 %v5544, 4294901760
        %5904 = vmatpush1.msra.mxu0 %v5903
        %5905 = vmatprep.subr.mxu0 0.0
        %v5906 = vand.u32 %v5543, 4294901760
        %5907 = vmatpush1.msra.mxu0 %v5906
        %5908 = vmatprep.subr.mxu0 0.0
        %v5909 = vand.u32 %v5542, 4294901760
        %5910 = vmatpush1.msra.mxu0 %v5909
        %5911 = vmatprep.subr.mxu0 0.0
        %v5912 = vand.u32 %v5541, 4294901760
        %5913 = vmatpush1.msra.mxu0 %v5912
        %5914 = vmatprep.subr.mxu0 0.0
        %v5915 = vand.u32 %v5540, 4294901760
        %5916 = vmatpush1.msra.mxu0 %v5915
        %5917 = vmatprep.subr.mxu0 0.0
        %v5918 = vand.u32 %v5539, 4294901760
        %5919 = vmatpush1.msra.mxu0 %v5918
        %5920 = vmatprep.subr.mxu0 0.0
        %v5921 = vand.u32 %v5538, 4294901760
        %5922 = vmatpush1.msra.mxu0 %v5921
        %5923 = vmatprep.subr.mxu0 0.0
        %v5924 = vand.u32 %v5537, 4294901760
        %5925 = vmatpush1.msra.mxu0 %v5924
        %5926 = vmatprep.subr.mxu0 0.0
        %v5927 = vand.u32 %v5536, 4294901760
        %5928 = vmatpush1.msra.mxu0 %v5927
        %5929 = vmatprep.subr.mxu0 0.0
        %v5930 = vand.u32 %v5535, 4294901760
        %5931 = vmatpush1.msra.mxu0 %v5930
        %5932 = vmatprep.subr.mxu0 0.0
        %v5933 = vand.u32 %v5534, 4294901760
        %5934 = vmatpush1.msra.mxu0 %v5933
        %5935 = vmatprep.subr.mxu0 0.0
        %v5936 = vand.u32 %v5533, 4294901760
        %5937 = vmatpush1.msra.mxu0 %v5936
        %5938 = vmatprep.subr.mxu0 0.0
        %v5939 = vand.u32 %v5532, 4294901760
        %5940 = vmatpush1.msra.mxu0 %v5939
        %5941 = vmatprep.subr.mxu0 0.0
        %v5942 = vand.u32 %v5531, 4294901760
        %5943 = vmatpush1.msra.mxu0 %v5942
        %5944 = vmatprep.subr.mxu0 0.0
        %v5945 = vand.u32 %v5530, 4294901760
        %5946 = vmatpush1.msra.mxu0 %v5945
        %5947 = vmatprep.subr.mxu0 0.0
        %5948 = vmatpush2.msra.mxu0 0.0
        %5949 = vmatprep.subr.mxu0 0.0
        %5950 = vmatpush2.msra.mxu0 0.0
        %5951 = vmatprep.subr.mxu0 0.0
        %5952 = vmatpush2.msra.mxu0 0.0
        %5953 = vmatprep.subr.mxu0 0.0
        %5954 = vmatpush2.msra.mxu0 0.0
        %5955 = vmatprep.subr.mxu0 0.0
        %5956 = vmatpush2.msra.mxu0 0.0
        %5957 = vmatprep.subr.mxu0 0.0
        %5958 = vmatpush2.msra.mxu0 0.0
        %5959 = vmatprep.subr.mxu0 0.0
        %5960 = vmatpush2.msra.mxu0 0.0
        %5961 = vmatprep.subr.mxu0 0.0
        %5962 = vmatpush2.msra.mxu0 0.0
        %5963 = vmatprep.subr.mxu0 0.0
        %5964 = vmatpush2.msra.mxu0 0.0
        %5965 = vmatprep.subr.mxu0 0.0
        %5966 = vmatpush2.msra.mxu0 0.0
        %5967 = vmatprep.subr.mxu0 0.0
        %5968 = vmatpush2.msra.mxu0 0.0
        %5969 = vmatprep.subr.mxu0 0.0
        %5970 = vmatpush2.msra.mxu0 0.0
        %5971 = vmatprep.subr.mxu0 0.0
        %5972 = vmatpush2.msra.mxu0 0.0
        %5973 = vmatprep.subr.mxu0 0.0
        %5974 = vmatpush2.msra.mxu0 0.0
        %5975 = vmatprep.subr.mxu0 0.0
        %5976 = vmatpush2.msra.mxu0 0.0
        %5977 = vmatprep.subr.mxu0 0.0
        %5978 = vmatpush2.msra.mxu0 0.0
        %5979 = vmatprep.mubr.f32.mxu0 0.0
        %v5980 = vand.u32 %v5529, 4294901760
        %v5981 = vsub.f32 %v5529, %v5980
        %v5982 = vand.u32 %v5981, 4294901760
        %5983 = vmatmul.mubr.f32.gmra.mxu0 %v5982
        %v5984 = vpop.f32.mrf.mxu0
        %v5985 = vadd.f32 %v5896, %v5984
        %v5986 = vpop.f32.mrf.mxu0
        %5987 = vdwg.mxu0
        %5988 = vmatprep.subr.mxu0 0.0
        %v5989 = vand.u32 %v5545, 4294901760
        %v5990 = vsub.f32 %v5545, %v5989
        %v5991 = vand.u32 %v5990, 4294901760
        %5992 = vmatpush1.msra.mxu0 %v5991
        %5993 = vmatprep.subr.mxu0 0.0
        %v5994 = vand.u32 %v5544, 4294901760
        %v5995 = vsub.f32 %v5544, %v5994
        %v5996 = vand.u32 %v5995, 4294901760
        %5997 = vmatpush1.msra.mxu0 %v5996
        %5998 = vmatprep.subr.mxu0 0.0
        %v5999 = vand.u32 %v5543, 4294901760
        %v6000 = vsub.f32 %v5543, %v5999
        %v6001 = vand.u32 %v6000, 4294901760
        %6002 = vmatpush1.msra.mxu0 %v6001
        %6003 = vmatprep.subr.mxu0 0.0
        %v6004 = vand.u32 %v5542, 4294901760
        %v6005 = vsub.f32 %v5542, %v6004
        %v6006 = vand.u32 %v6005, 4294901760
        %6007 = vmatpush1.msra.mxu0 %v6006
        %6008 = vmatprep.subr.mxu0 0.0
        %v6009 = vand.u32 %v5541, 4294901760
        %v6010 = vsub.f32 %v5541, %v6009
        %v6011 = vand.u32 %v6010, 4294901760
        %6012 = vmatpush1.msra.mxu0 %v6011
        %6013 = vmatprep.subr.mxu0 0.0
        %v6014 = vand.u32 %v5540, 4294901760
        %v6015 = vsub.f32 %v5540, %v6014
        %v6016 = vand.u32 %v6015, 4294901760
        %6017 = vmatpush1.msra.mxu0 %v6016
        %6018 = vmatprep.subr.mxu0 0.0
        %v6019 = vand.u32 %v5539, 4294901760
        %v6020 = vsub.f32 %v5539, %v6019
        %v6021 = vand.u32 %v6020, 4294901760
        %6022 = vmatpush1.msra.mxu0 %v6021
        %6023 = vmatprep.subr.mxu0 0.0
        %v6024 = vand.u32 %v5538, 4294901760
        %v6025 = vsub.f32 %v5538, %v6024
        %v6026 = vand.u32 %v6025, 4294901760
        %6027 = vmatpush1.msra.mxu0 %v6026
        %6028 = vmatprep.subr.mxu0 0.0
        %v6029 = vand.u32 %v5537, 4294901760
        %v6030 = vsub.f32 %v5537, %v6029
        %v6031 = vand.u32 %v6030, 4294901760
        %6032 = vmatpush1.msra.mxu0 %v6031
        %6033 = vmatprep.subr.mxu0 0.0
        %v6034 = vand.u32 %v5536, 4294901760
        %v6035 = vsub.f32 %v5536, %v6034
        %v6036 = vand.u32 %v6035, 4294901760
        %6037 = vmatpush1.msra.mxu0 %v6036
        %6038 = vmatprep.subr.mxu0 0.0
        %v6039 = vand.u32 %v5535, 4294901760
        %v6040 = vsub.f32 %v5535, %v6039
        %v6041 = vand.u32 %v6040, 4294901760
        %6042 = vmatpush1.msra.mxu0 %v6041
        %6043 = vmatprep.subr.mxu0 0.0
        %v6044 = vand.u32 %v5534, 4294901760
        %v6045 = vsub.f32 %v5534, %v6044
        %v6046 = vand.u32 %v6045, 4294901760
        %6047 = vmatpush1.msra.mxu0 %v6046
        %6048 = vmatprep.subr.mxu0 0.0
        %v6049 = vand.u32 %v5533, 4294901760
        %v6050 = vsub.f32 %v5533, %v6049
        %v6051 = vand.u32 %v6050, 4294901760
        %6052 = vmatpush1.msra.mxu0 %v6051
        %6053 = vmatprep.subr.mxu0 0.0
        %v6054 = vand.u32 %v5532, 4294901760
        %v6055 = vsub.f32 %v5532, %v6054
        %v6056 = vand.u32 %v6055, 4294901760
        %6057 = vmatpush1.msra.mxu0 %v6056
        %6058 = vmatprep.subr.mxu0 0.0
        %v6059 = vand.u32 %v5531, 4294901760
        %v6060 = vsub.f32 %v5531, %v6059
        %v6061 = vand.u32 %v6060, 4294901760
        %6062 = vmatpush1.msra.mxu0 %v6061
        %6063 = vmatprep.subr.mxu0 0.0
        %v6064 = vand.u32 %v5530, 4294901760
        %v6065 = vsub.f32 %v5530, %v6064
        %v6066 = vand.u32 %v6065, 4294901760
        %6067 = vmatpush1.msra.mxu0 %v6066
        %6068 = vmatprep.subr.mxu0 0.0
        %6069 = vmatpush2.msra.mxu0 0.0
        %6070 = vmatprep.subr.mxu0 0.0
        %6071 = vmatpush2.msra.mxu0 0.0
        %6072 = vmatprep.subr.mxu0 0.0
        %6073 = vmatpush2.msra.mxu0 0.0
        %6074 = vmatprep.subr.mxu0 0.0
        %6075 = vmatpush2.msra.mxu0 0.0
        %6076 = vmatprep.subr.mxu0 0.0
        %6077 = vmatpush2.msra.mxu0 0.0
        %6078 = vmatprep.subr.mxu0 0.0
        %6079 = vmatpush2.msra.mxu0 0.0
        %6080 = vmatprep.subr.mxu0 0.0
        %6081 = vmatpush2.msra.mxu0 0.0
        %6082 = vmatprep.subr.mxu0 0.0
        %6083 = vmatpush2.msra.mxu0 0.0
        %6084 = vmatprep.subr.mxu0 0.0
        %6085 = vmatpush2.msra.mxu0 0.0
        %6086 = vmatprep.subr.mxu0 0.0
        %6087 = vmatpush2.msra.mxu0 0.0
        %6088 = vmatprep.subr.mxu0 0.0
        %6089 = vmatpush2.msra.mxu0 0.0
        %6090 = vmatprep.subr.mxu0 0.0
        %6091 = vmatpush2.msra.mxu0 0.0
        %6092 = vmatprep.subr.mxu0 0.0
        %6093 = vmatpush2.msra.mxu0 0.0
        %6094 = vmatprep.subr.mxu0 0.0
        %6095 = vmatpush2.msra.mxu0 0.0
        %6096 = vmatprep.subr.mxu0 0.0
        %6097 = vmatpush2.msra.mxu0 0.0
        %6098 = vmatprep.subr.mxu0 0.0
        %6099 = vmatpush2.msra.mxu0 0.0
        %6100 = vmatprep.mubr.f32.mxu0 0.0
        %v6101 = vand.u32 %v5529, 4294901760
        %6102 = vmatmul.mubr.f32.gmra.mxu0 %v6101
        %v6103 = vpop.f32.mrf.mxu0
        %v6104 = vadd.f32 %v5985, %v6103
        %v6105 = vpop.f32.mrf.mxu0
        %6106 = vdwg.mxu0
        %6107 = vmatprep.subr.mxu0 0.0
        %v6108 = vand.u32 %v5545, 4294901760
        %6109 = vmatpush1.msra.mxu0 %v6108
        %6110 = vmatprep.subr.mxu0 0.0
        %v6111 = vand.u32 %v5544, 4294901760
        %6112 = vmatpush1.msra.mxu0 %v6111
        %6113 = vmatprep.subr.mxu0 0.0
        %v6114 = vand.u32 %v5543, 4294901760
        %6115 = vmatpush1.msra.mxu0 %v6114
        %6116 = vmatprep.subr.mxu0 0.0
        %v6117 = vand.u32 %v5542, 4294901760
        %6118 = vmatpush1.msra.mxu0 %v6117
        %6119 = vmatprep.subr.mxu0 0.0
        %v6120 = vand.u32 %v5541, 4294901760
        %6121 = vmatpush1.msra.mxu0 %v6120
        %6122 = vmatprep.subr.mxu0 0.0
        %v6123 = vand.u32 %v5540, 4294901760
        %6124 = vmatpush1.msra.mxu0 %v6123
        %6125 = vmatprep.subr.mxu0 0.0
        %v6126 = vand.u32 %v5539, 4294901760
        %6127 = vmatpush1.msra.mxu0 %v6126
        %6128 = vmatprep.subr.mxu0 0.0
        %v6129 = vand.u32 %v5538, 4294901760
        %6130 = vmatpush1.msra.mxu0 %v6129
        %6131 = vmatprep.subr.mxu0 0.0
        %v6132 = vand.u32 %v5537, 4294901760
        %6133 = vmatpush1.msra.mxu0 %v6132
        %6134 = vmatprep.subr.mxu0 0.0
        %v6135 = vand.u32 %v5536, 4294901760
        %6136 = vmatpush1.msra.mxu0 %v6135
        %6137 = vmatprep.subr.mxu0 0.0
        %v6138 = vand.u32 %v5535, 4294901760
        %6139 = vmatpush1.msra.mxu0 %v6138
        %6140 = vmatprep.subr.mxu0 0.0
        %v6141 = vand.u32 %v5534, 4294901760
        %6142 = vmatpush1.msra.mxu0 %v6141
        %6143 = vmatprep.subr.mxu0 0.0
        %v6144 = vand.u32 %v5533, 4294901760
        %6145 = vmatpush1.msra.mxu0 %v6144
        %6146 = vmatprep.subr.mxu0 0.0
        %v6147 = vand.u32 %v5532, 4294901760
        %6148 = vmatpush1.msra.mxu0 %v6147
        %6149 = vmatprep.subr.mxu0 0.0
        %v6150 = vand.u32 %v5531, 4294901760
        %6151 = vmatpush1.msra.mxu0 %v6150
        %6152 = vmatprep.subr.mxu0 0.0
        %v6153 = vand.u32 %v5530, 4294901760
        %6154 = vmatpush1.msra.mxu0 %v6153
        %6155 = vmatprep.subr.mxu0 0.0
        %6156 = vmatpush2.msra.mxu0 0.0
        %6157 = vmatprep.subr.mxu0 0.0
        %6158 = vmatpush2.msra.mxu0 0.0
        %6159 = vmatprep.subr.mxu0 0.0
        %6160 = vmatpush2.msra.mxu0 0.0
        %6161 = vmatprep.subr.mxu0 0.0
        %6162 = vmatpush2.msra.mxu0 0.0
        %6163 = vmatprep.subr.mxu0 0.0
        %6164 = vmatpush2.msra.mxu0 0.0
        %6165 = vmatprep.subr.mxu0 0.0
        %6166 = vmatpush2.msra.mxu0 0.0
        %6167 = vmatprep.subr.mxu0 0.0
        %6168 = vmatpush2.msra.mxu0 0.0
        %6169 = vmatprep.subr.mxu0 0.0
        %6170 = vmatpush2.msra.mxu0 0.0
        %6171 = vmatprep.subr.mxu0 0.0
        %6172 = vmatpush2.msra.mxu0 0.0
        %6173 = vmatprep.subr.mxu0 0.0
        %6174 = vmatpush2.msra.mxu0 0.0
        %6175 = vmatprep.subr.mxu0 0.0
        %6176 = vmatpush2.msra.mxu0 0.0
        %6177 = vmatprep.subr.mxu0 0.0
        %6178 = vmatpush2.msra.mxu0 0.0
        %6179 = vmatprep.subr.mxu0 0.0
        %6180 = vmatpush2.msra.mxu0 0.0
        %6181 = vmatprep.subr.mxu0 0.0
        %6182 = vmatpush2.msra.mxu0 0.0
        %6183 = vmatprep.subr.mxu0 0.0
        %6184 = vmatpush2.msra.mxu0 0.0
        %6185 = vmatprep.subr.mxu0 0.0
        %6186 = vmatpush2.msra.mxu0 0.0
        %6187 = vmatprep.mubr.f32.mxu0 0.0
        %v6188 = vand.u32 %v5529, 4294901760
        %6189 = vmatmul.mubr.f32.gmra.mxu0 %v6188
        %v6190 = vpop.f32.mrf.mxu0
        %v6191 = vadd.f32 %v6104, %v6190
        %v6192 = vpop.f32.mrf.mxu0
        %6193 = vdwg.mxu0
        %6194 = vst [vmem:[%s268] sm:$0xff] %v6191
        %s6195 = sand.u32 %s141, 1
        %s6196 = scalar_lea.sflag [#allocation5], %s6195
        %s6197 = sand.u32 %s141, 1
        %s6198 = smul.addr %s6197, 8
        %s6199 = scalar_lea.vmem [#allocation9], %s6198
        // Predicated region
        $region53: #{tpu_custom_call.1} parent=39 // pred_check
          %p6200 = pneg %p151
        $region54: #{tpu_custom_call.1} parent=39 // pred_check_branch
          %6202 = sbr.rel (%p6200) target = $region56
        $region55: #{tpu_custom_call.1} parent=39 // pred_region
          %s6204 = ssub.s32 128, 128
          %6205 = vsyncadd %s6196, %s6204
          %s6206 = smul.addr %s23, 128
          %s6207 = scalar_lea.hbm %s5, %s6206
          %s6209 = sshll.u32 %s6199, 4
          %s6210 = int_to_ptr.vmem [resolvable:$true] %s6209
          %6212 = dma.vmem_to_hbm [thread:$0]  %s6210, 128, %s6207, %s6196
        $region56: #{tpu_custom_call.1} parent=39 // pred_fallthru
          _
      $region40: #{tpu_custom_call.1} parent=5 // pred_fallthru
        _
      %p6213 = scmp.le.s32.totalorder 2, %s18
      // Predicated region
      $region57: #{tpu_custom_call.1} parent=5 // pred_check
        %p6214 = pneg %p6213
      $region58: #{tpu_custom_call.1} parent=5 // pred_check_branch
        %6216 = sbr.rel (%p6214) target = $region60
      $region59: #{tpu_custom_call.1} parent=5 // pred_region
        %s6217 = ssub.s32 %s18, 2
        // Predicated region
        $region61: #{tpu_custom_call.1} parent=59 // pred_check
          %p6218 = pneg %p157
        $region62: #{tpu_custom_call.1} parent=59 // pred_check_branch
          %6220 = sbr.rel (%p6218) target = $region64
        $region63: #{tpu_custom_call.1} parent=59 // pred_region
          %s6221 = sand.u32 %s142, 1
          %s6222 = scalar_lea.sflag [#allocation5], %s6221
          %s6223 = sand.u32 %s142, 1
          %s6224 = smul.addr %s6223, 8
          %s6225 = scalar_lea.vmem [#allocation9], %s6224
          %6226 = dma.done %s6222, 128
        $region64: #{tpu_custom_call.1} parent=59 // pred_fallthru
          _
      $region60: #{tpu_custom_call.1} parent=5 // pred_fallthru
        _
    $region6: #{tpu_custom_call.1} parent=1 // loop_footer
      %s22 = sadd.s32 1, %s18
    $region7: #{tpu_custom_call.1} parent=1 // loop_footer_branch
      %17 = sbr.rel target = $region3
    $region8: #{tpu_custom_call.1} parent=1 // loop_exit
      _
    %6227 = vsyncpa [#allocation4], 1
    %s6228 = scalar_lea.sflag [#allocation4], 1
    %6229 = vsyncpa %s6228, 1
    %6230 = vsyncpa [#allocation7], 1
    %6231 = vsyncpa [#allocation5], 1
    %s6232 = scalar_lea.sflag [#allocation5], 1
    %6233 = vsyncpa %s6232, 1

</llo_original>
